<compile_context>
chip_gen: v7x
topology: tpu7x:2x2x1
jax: 0.10.0
libtpu: 0.0.40
codegen_flags: <defaults>
</compile_context>

<pallas_src>
import jax
import jax.numpy as jnp
from jax.experimental import pallas as pl
from jax.experimental.pallas import tpu as pltpu


_LANE = 128
_BYPASS_BYTES = 256 * 1024              # below this, plain XLA multiply wins
_MIN_BLOCK_BYTES = 1 * 1024 * 1024      # never shrink blocks below ~1 MiB
_MAX_BLOCK_BYTES = 8 * 1024 * 1024      # cap per-input block at 8 MiB
_DEFAULT_VMEM_BYTES = 64 * 1024 * 1024  # conservative fallback (v7x-sized)

_TPU_PARAMS_CACHE = None


def _hadamard_kernel(a_ref, b_ref, o_ref):
    # Elementwise product on the VPU for the current (tile_rows, cols) tile.
    o_ref[...] = a_ref[...] * b_ref[...]


def _tpu_params():
    """(num_tensorcores, vmem_capacity_bytes) with safe fallbacks."""
    global _TPU_PARAMS_CACHE
    if _TPU_PARAMS_CACHE is not None:
        return _TPU_PARAMS_CACHE

    vmem = _DEFAULT_VMEM_BYTES
    cores = 1
    try:
        info = pltpu.get_tpu_info()
        v = getattr(info, "vmem_capacity_bytes", None)
        if isinstance(v, int) and v > 0:
            vmem = v
    except Exception:
        pass
    try:
        kind = jax.devices()[0].device_kind.lower()
        # v7x has 2 TensorCores per chip; v5e/v6e have 1.
        if "v7" in kind or "7x" in kind:
            cores = 2
    except Exception:
        pass
    _TPU_PARAMS_CACHE = (cores, vmem)
    return _TPU_PARAMS_CACHE


def _sublane_multiple(dtype):
    # Sublane packing multiple: 8 for 4-byte, 16 for 2-byte, 32 for 1-byte.
    itemsize = jnp.dtype(dtype).itemsize
    return max(8, 32 // itemsize)


def _choose_cols(total):
    """Widest lane-dense (multiple-of-128) column count that divides total."""
    for cand in (8192, 4096, 2048, 1024, 512, 256, 128):
        if total % cand == 0:
            return cand
    return None


def _round_up(x, m):
    return -(-x // m) * m


def _run_2d(a2d, b2d, num_cores, target_block_bytes, vmem_limit_bytes):
    rows, cols = a2d.shape
    dtype = a2d.dtype
    itemsize = jnp.dtype(dtype).itemsize
    sub = _sublane_multiple(dtype)
    row_bytes = cols * itemsize

    # Row tile sized for ~target_block_bytes per input block, rounded to the
    # sublane pack multiple so a partial last block stays layout-legal.
    tile_rows = max(sub, (target_block_bytes // row_bytes) // sub * sub)
    tile_rows = min(tile_rows, rows)

    # Megacore (v7x only): aim for >= 2 grid steps per TensorCore so each
    # core's double-buffering engages, but never drop below ~1 MiB blocks.
    # Single-TC chips (v5e/v6e) skip this entirely.
    if num_cores >= 2 and rows >= 2 * sub:
        want_steps = 2 * num_cores
        min_rows = max(sub, (_MIN_BLOCK_BYTES // row_bytes) // sub * sub)
        cand = _round_up(-(-rows // want_steps), sub)
        cand = max(cand, min_rows)
        if cand < tile_rows:
            tile_rows = cand

    grid = (pl.cdiv(rows, tile_rows),)

    return pl.pallas_call(
        _hadamard_kernel,
        out_shape=jax.ShapeDtypeStruct((rows, cols), dtype),
        grid_spec=pltpu.PrefetchScalarGridSpec(
            num_scalar_prefetch=0,
            grid=grid,
            in_specs=[
                pl.BlockSpec((tile_rows, cols), lambda i: (i, 0)),
                pl.BlockSpec((tile_rows, cols), lambda i: (i, 0)),
            ],
            out_specs=pl.BlockSpec((tile_rows, cols), lambda i: (i, 0)),
        ),
        compiler_params=pltpu.CompilerParams(
            dimension_semantics=("parallel",),
            vmem_limit_bytes=vmem_limit_bytes,
        ),
    )(a2d, b2d)


def hadamard(ten_one: jax.Array, ten_two: jax.Array) -> jax.Array:
    """Elementwise product ten_one * ten_two via a Pallas TPU kernel."""
    assert ten_one.shape == ten_two.shape, "hadamard requires identical shapes"
    assert ten_one.dtype == ten_two.dtype

    orig_shape = ten_one.shape
    dtype = ten_one.dtype
    itemsize = jnp.dtype(dtype).itemsize

    total = 1
    for d in orig_shape:
        total *= d

    # Tiny-input bypass: launch/DMA-setup overhead dominates; plain XLA
    # fuses the multiply with surrounding ops and is strictly faster.
    if total * itemsize < _BYPASS_BYTES or total < _LANE:
        return ten_one * ten_two

    num_cores, vmem = _tpu_params()
    target_block = min(max(vmem // 12, _MIN_BLOCK_BYTES), _MAX_BLOCK_BYTES)
    vmem_limit = max(32 * 1024 * 1024,
                     min(3 * vmem // 4, 6 * target_block + 16 * 1024 * 1024))

    cols = _choose_cols(total)
    if cols is not None:
        # Pad-free path: contiguous (free) reshape to a lane-dense 2D slab.
        rows = total // cols
        a2d = jnp.reshape(ten_one, (rows, cols))
        b2d = jnp.reshape(ten_two, (rows, cols))
        out2d = _run_2d(a2d, b2d, num_cores, target_block, vmem_limit)
        return jnp.reshape(out2d, orig_shape)

    # Fallback (total not a multiple of 128): Pallas on the leading
    # multiple-of-128 head, plain jnp on the < 128-element tail. Avoids
    # materializing padded copies of both inputs and slicing a padded output.
    head = (total // _LANE) * _LANE
    a_flat = jnp.reshape(ten_one, (-1,))
    b_flat = jnp.reshape(ten_two, (-1,))
    head_cols = _choose_cols(head)
    head_rows = head // head_cols
    head_out = _run_2d(
        jnp.reshape(a_flat[:head], (head_rows, head_cols)),
        jnp.reshape(b_flat[:head], (head_rows, head_cols)),
        num_cores, target_block, vmem_limit,
    )
    tail_out = a_flat[head:] * b_flat[head:]
    out_flat = jnp.concatenate([jnp.reshape(head_out, (-1,)), tail_out])
    return jnp.reshape(out_flat, orig_shape)


if __name__ == "__main__":
    key = jax.random.PRNGKey(0)
    k1, k2 = jax.random.split(key)

    # Primary small NCHW inputs consistent with the module's forward signature.
    x_shape = (2, 4, 16, 16)
    ten_one = jax.random.normal(k1, x_shape, dtype=jnp.float32)
    ten_two = jax.random.normal(k2, x_shape, dtype=jnp.float32)

    out = jax.block_until_ready(hadamard(ten_one, ten_two))
    ref = ten_one * ten_two
    assert out.shape == x_shape
    assert jnp.allclose(out, ref, atol=1e-6, rtol=1e-6)

    # Extra coverage:
    #  (8, 16, 128, 128): 8 MiB f32  -> multi-step Pallas grid path.
    #  (4, 8, 128, 128):  2 MiB f32  -> single/few-step Pallas path.
    #  (1, 3, 257, 257):  ~0.76 MiB, total % 128 != 0 -> head+tail fallback.
    #  (2, 3, 5, 7):      tiny       -> small-size bypass.
    extra_shapes = ((8, 16, 128, 128), (4, 8, 128, 128),
                    (1, 3, 257, 257), (2, 3, 5, 7))
    for i, extra_shape in enumerate(extra_shapes):
        ka, kb = jax.random.split(jax.random.PRNGKey(i + 1))
        a = jax.random.normal(ka, extra_shape, dtype=jnp.float32)
        b = jax.random.normal(kb, extra_shape, dtype=jnp.float32)
        o = jax.block_until_ready(hadamard(a, b))
        assert o.shape == extra_shape
        assert jnp.allclose(o, a * b, atol=1e-6, rtol=1e-6)

    print("KERNEL_OK")
</pallas_src>

<mosaic_0001>
module attributes {stable_mosaic.version = 11 : i64} {
  func.func @_hadamard_kernel(%arg0: i32, %arg1: memref<168x8192xf32, #tpu.memory_space<vmem>>, %arg2: memref<168x8192xf32, #tpu.memory_space<vmem>>, %arg3: memref<168x8192xf32, #tpu.memory_space<vmem>>) attributes {dimension_semantics = [#tpu.dimension_semantics<parallel>], iteration_bounds = array<i64: 2>, scalar_prefetch = 0 : i64, scratch_operands = 0 : i64, tpu.core_type = #tpu.core_type<tc>, window_params = [{transform_indices = @transform_0, window_bounds = array<i64: 168, 8192>}, {transform_indices = @transform_1, window_bounds = array<i64: 168, 8192>}, {transform_indices = @transform_2, window_bounds = array<i64: 168, 8192>}]} {
    %c0 = arith.constant 0 : index
    %c0_0 = arith.constant 0 : index
    %0 = vector.load %arg1[%c0, %c0_0] : memref<168x8192xf32, #tpu.memory_space<vmem>>, vector<168x8192xf32>
    %c0_1 = arith.constant 0 : index
    %c0_2 = arith.constant 0 : index
    %1 = vector.load %arg2[%c0_1, %c0_2] : memref<168x8192xf32, #tpu.memory_space<vmem>>, vector<168x8192xf32>
    %2 = arith.mulf %0, %1 : vector<168x8192xf32>
    %c0_3 = arith.constant 0 : index
    %c0_4 = arith.constant 0 : index
    %3 = vector.load %arg3[%c0_3, %c0_4] : memref<168x8192xf32, #tpu.memory_space<vmem>>, vector<168x8192xf32>
    tpu.vector_store %arg3[%c0_3, %c0_4], %2 {strides = array<i32>} : memref<168x8192xf32, #tpu.memory_space<vmem>>, vector<168x8192xf32>,
    return
  }
  func.func @transform_0(%arg0: i32) -> (i32, i32) {
    %c0_i32 = arith.constant 0 : i32
    %c0_i32_0 = arith.constant 0 : i32
    return %arg0, %c0_i32 : i32, i32
  }
  func.func @transform_1(%arg0: i32) -> (i32, i32) {
    %c0_i32 = arith.constant 0 : i32
    %c0_i32_0 = arith.constant 0 : i32
    return %arg0, %c0_i32 : i32, i32
  }
  func.func @transform_2(%arg0: i32) -> (i32, i32) {
    %c0_i32 = arith.constant 0 : i32
    %c0_i32_0 = arith.constant 0 : i32
    return %arg0, %c0_i32 : i32, i32
  }
}

</mosaic_0001>

<llo_original>
// kernel: tpu_custom_call.1
$region0: #{tpu_custom_call.1}
  #allocation0 [shape = 'u32[]', space=smem, size = 0x4, offset = 0x4, fixed_abs, tag = 'smem constant byte address 0x4 - core index']
  #allocation1 [shape = 'u32[144,128]{1,0:T(1,128)}', space=vmem, size = 0x12000, scoped, tag = 'internal scratch']
  %s0 = inlined_call_operand.hbm [shape: f32[256,8192], index: 0, kind: input, shape index: {}]
  %s1 = inlined_call_operand.hbm [shape: f32[256,8192], index: 1, kind: input, shape index: {}]
  %s2 = inlined_call_operand.hbm [shape: f32[256,8192], index: 2, kind: output, shape index: {}]
  %s3 = sld [smem:[#allocation0]]
  $region49: #{tpu_custom_call.1} parent=0
    _
  %s5 = ssub.s32 1, %s3
  %s6 = scalar_select 0, %s5, %s3
  $region1: #{tpu_custom_call.1} parent=0
    #allocation2 [shape = 'u8[11010048]{0}', space=vmem, size = 0xa80000, scoped, tag = 'input window, operand 0']
    #allocation3 [shape = 's32[2]{0}', space=sflag, size = 0x8, scoped, tag = 'scoped memory for tpu_custom_call.1']
    #allocation4 [shape = 's32[2]{0}', space=sflag, size = 0x8, scoped, tag = 'scoped memory for tpu_custom_call.1']
    #allocation5 [shape = 'u8[11010048]{0}', space=vmem, size = 0xa80000, scoped, tag = 'input window, operand 1']
    #allocation6 [shape = 's32[2]{0}', space=sflag, size = 0x8, scoped, tag = 'scoped memory for tpu_custom_call.1']
    #allocation7 [shape = 'u8[11010048]{0}', space=vmem, size = 0xa80000, scoped, tag = 'output window, operand 0']
    %7 = vsyncpa [#allocation3], 0
    %s8 = scalar_lea.sflag [#allocation3], 1
    %9 = vsyncpa %s8, 0
    %10 = vsyncpa [#allocation6], 0
    %s11 = scalar_lea.sflag [#allocation6], 1
    %12 = vsyncpa %s11, 0
    %13 = vsyncpa [#allocation4], 0
    %s14 = scalar_lea.sflag [#allocation4], 1
    %15 = vsyncpa %s14, 0
    loop: start=0, step=1, limit=4
    $region2: #{tpu_custom_call.1} parent=1 // loop_pre_header
      _
    $region3: #{tpu_custom_call.1} parent=1 // loop_header
      %s17 = sphi 0, %s21
      %p18 = scmp.ge.s32.totalorder %s17, 4
      %s27 = sphi 0, %s29
      %s30 = sphi 0, %s27
      %s31 = sphi 0, %s30
      %s47 = sphi 0, %s31
      %s53 = sphi 0, %s55
      %s56 = sphi 0, %s53
      %s57 = sphi 0, %s56
      %s73 = sphi 0, %s57
      %s79 = sphi 0, %s81
      %s82 = sphi 0, %s79
      %s83 = sphi 0, %s82
      %s99 = sphi 0, %s83
    $region4: #{tpu_custom_call.1} parent=1 // loop_header_branch
      %20 = sbr.rel (%p18) target = $region8
    $region5: #{tpu_custom_call.1} parent=1 // loop_body
      %s22 = ssub.s32 %s17, 1
      %s23 = ssub.s32 %s17, 2
      %s24 = sadd.s32 %s17, 1
      %s25 = ssub.s32 %s17, %s24
      %p26 = scmp.eq.s32.totalorder %s25, 0
      %s28 = sadd.s32 %s27, 1
      %s29 = scalar_select %p26, %s27, %s28
      %p32 = pneg %p26
      %p33 = scmp.eq.s32.totalorder %s17, 1
      %p34 = por %p32, %p33
      %p35 = scmp.ne.s32.totalorder %s27, %s30
      %p36 = scmp.eq.s32.totalorder %s17, 0
      %p37 = por %p35, %p36
      %p38 = scmp.ne.s32.totalorder %s27, %s30
      %p39 = scmp.eq.s32.totalorder %s22, 1
      %p40 = por %p38, %p39
      %p41 = scmp.ne.s32.totalorder %s30, %s31
      %p42 = scmp.eq.s32.totalorder %s22, 0
      %p43 = por %p41, %p42
      %p44 = scmp.ne.s32.totalorder %s30, %s31
      %p45 = scmp.eq.s32.totalorder %s23, 1
      %p46 = por %p44, %p45
      %p48 = scmp.ne.s32.totalorder %s31, %s47
      %p49 = scmp.eq.s32.totalorder %s23, 0
      %p50 = por %p48, %p49
      %s51 = ssub.s32 %s17, %s24
      %p52 = scmp.eq.s32.totalorder %s51, 0
      %s54 = sadd.s32 %s53, 1
      %s55 = scalar_select %p52, %s53, %s54
      %p58 = pneg %p52
      %p59 = scmp.eq.s32.totalorder %s17, 1
      %p60 = por %p58, %p59
      %p61 = scmp.ne.s32.totalorder %s53, %s56
      %p62 = scmp.eq.s32.totalorder %s17, 0
      %p63 = por %p61, %p62
      %p64 = scmp.ne.s32.totalorder %s53, %s56
      %p65 = scmp.eq.s32.totalorder %s22, 1
      %p66 = por %p64, %p65
      %p67 = scmp.ne.s32.totalorder %s56, %s57
      %p68 = scmp.eq.s32.totalorder %s22, 0
      %p69 = por %p67, %p68
      %p70 = scmp.ne.s32.totalorder %s56, %s57
      %p71 = scmp.eq.s32.totalorder %s23, 1
      %p72 = por %p70, %p71
      %p74 = scmp.ne.s32.totalorder %s57, %s73
      %p75 = scmp.eq.s32.totalorder %s23, 0
      %p76 = por %p74, %p75
      %s77 = ssub.s32 %s17, %s24
      %p78 = scmp.eq.s32.totalorder %s77, 0
      %s80 = sadd.s32 %s79, 1
      %s81 = scalar_select %p78, %s79, %s80
      %p84 = pneg %p78
      %p85 = scmp.eq.s32.totalorder %s17, 1
      %p86 = por %p84, %p85
      %p87 = scmp.ne.s32.totalorder %s79, %s82
      %p88 = scmp.eq.s32.totalorder %s17, 0
      %p89 = por %p87, %p88
      %p90 = scmp.ne.s32.totalorder %s79, %s82
      %p91 = scmp.eq.s32.totalorder %s22, 1
      %p92 = por %p90, %p91
      %p93 = scmp.ne.s32.totalorder %s82, %s83
      %p94 = scmp.eq.s32.totalorder %s22, 0
      %p95 = por %p93, %p94
      %p96 = scmp.ne.s32.totalorder %s82, %s83
      %p97 = scmp.eq.s32.totalorder %s23, 1
      %p98 = por %p96, %p97
      %p100 = scmp.ne.s32.totalorder %s83, %s99
      %p101 = scmp.eq.s32.totalorder %s23, 0
      %p102 = por %p100, %p101
      %p103 = scmp.le.s32.totalorder 1, %s17
      %p104 = scmp.lt.s32.totalorder %s17, 3
      %p105 = pnand %p103, %p104
      %p106 = pneg %p105
      // Predicated region
      $region9: #{tpu_custom_call.1} parent=5 // pred_check
        _
      $region10: #{tpu_custom_call.1} parent=5 // pred_check_branch
        %108 = sbr.rel (%p105) target = $region12
      $region11: #{tpu_custom_call.1} parent=5 // pred_region
        %s109 = ssub.s32 %s17, 1
      $region12: #{tpu_custom_call.1} parent=5 // pred_fallthru
        _
      %p110 = scmp.lt.s32.totalorder %s17, 2
      // Predicated region
      $region13: #{tpu_custom_call.1} parent=5 // pred_check
        %p111 = pneg %p110
      $region14: #{tpu_custom_call.1} parent=5 // pred_check_branch
        %113 = sbr.rel (%p111) target = $region16
      $region15: #{tpu_custom_call.1} parent=5 // pred_region
        // Predicated region
        $region17: #{tpu_custom_call.1} parent=15 // pred_check
          %p114 = pneg %p37
        $region18: #{tpu_custom_call.1} parent=15 // pred_check_branch
          %116 = sbr.rel (%p114) target = $region20
        $region19: #{tpu_custom_call.1} parent=15 // pred_region
          %s117 = sand.u32 %s27, 1
          %s118 = scalar_lea.sflag [#allocation3], %s117
          %s119 = sand.u32 %s27, 1
          %s120 = smul.addr %s119, 10752
          %s121 = scalar_lea.vmem [#allocation2], %s120
          %s122 = smul.u32 21, %s17
          %s123 = ssub.s32 32, %s122
          %p124 = scmp.lt.s32.totalorder %s123, 21
          %s125 = scalar_select %p124, %s123, 21
          %s126 = smul.u32 128, %s125
          %s127 = smul.u32 %s126, 64
          %s129 = ssub.s32 172032, %s127
          %130 = vsyncadd %s118, %s129
          %p131 = scmp.ne.s32.totalorder 0, %s127
          %s132 = smul.addr %s122, 64
          %s133 = smul.addr %s132, 128
          %s134 = scalar_lea.hbm %s0, %s133
          %s135 = smul.u32 512, %s125
          %s136 = sshll.u32 %s121, 4
          %s137 = int_to_ptr.vmem [resolvable:$true] %s136
          %s138 = sshll.u32 %s135, 4
          %142 = dma.hbm_to_vmem [thread:$0]  (%p131), %s134, %s138, %s137, %s118, 8192, 8192, 512
        $region20: #{tpu_custom_call.1} parent=15 // pred_fallthru
          _
        // Predicated region
        $region21: #{tpu_custom_call.1} parent=15 // pred_check
          %p143 = pneg %p63
        $region22: #{tpu_custom_call.1} parent=15 // pred_check_branch
          %145 = sbr.rel (%p143) target = $region24
        $region23: #{tpu_custom_call.1} parent=15 // pred_region
          %s146 = sand.u32 %s53, 1
          %s147 = scalar_lea.sflag [#allocation6], %s146
          %s148 = sand.u32 %s53, 1
          %s149 = smul.addr %s148, 10752
          %s150 = scalar_lea.vmem [#allocation5], %s149
          %s151 = smul.u32 21, %s17
          %s152 = ssub.s32 32, %s151
          %p153 = scmp.lt.s32.totalorder %s152, 21
          %s154 = scalar_select %p153, %s152, 21
          %s155 = smul.u32 128, %s154
          %s156 = smul.u32 %s155, 64
          %s158 = ssub.s32 172032, %s156
          %159 = vsyncadd %s147, %s158
          %p160 = scmp.ne.s32.totalorder 0, %s156
          %s161 = smul.addr %s151, 64
          %s162 = smul.addr %s161, 128
          %s163 = scalar_lea.hbm %s1, %s162
          %s164 = smul.u32 512, %s154
          %s165 = sshll.u32 %s150, 4
          %s166 = int_to_ptr.vmem [resolvable:$true] %s165
          %s167 = sshll.u32 %s164, 4
          %171 = dma.hbm_to_vmem [thread:$0]  (%p160), %s163, %s167, %s166, %s147, 8192, 8192, 512
        $region24: #{tpu_custom_call.1} parent=15 // pred_fallthru
          _
      $region16: #{tpu_custom_call.1} parent=5 // pred_fallthru
        _
      %p172 = scmp.le.s32.totalorder 1, %s17
      %p173 = scmp.lt.s32.totalorder %s17, 3
      %p174 = pnand %p172, %p173
      %p175 = pneg %p174
      // Predicated region
      $region25: #{tpu_custom_call.1} parent=5 // pred_check
        _
      $region26: #{tpu_custom_call.1} parent=5 // pred_check_branch
        %177 = sbr.rel (%p174) target = $region28
      $region27: #{tpu_custom_call.1} parent=5 // pred_region
        %s178 = ssub.s32 %s17, 1
        %s179 = sand.u32 %s30, 1
        %s180 = scalar_lea.sflag [#allocation3], %s179
        %s181 = sand.u32 %s30, 1
        %s182 = smul.addr %s181, 10752
        %s183 = scalar_lea.vmem [#allocation2], %s182
        // Predicated region
        $region29: #{tpu_custom_call.1} parent=27 // pred_check
          %p184 = pneg %p43
        $region30: #{tpu_custom_call.1} parent=27 // pred_check_branch
          %186 = sbr.rel (%p184) target = $region32
        $region31: #{tpu_custom_call.1} parent=27 // pred_region
          %187 = dma.done %s180, 172032
        $region32: #{tpu_custom_call.1} parent=27 // pred_fallthru
          _
        %s188 = sand.u32 %s56, 1
        %s189 = scalar_lea.sflag [#allocation6], %s188
        %s190 = sand.u32 %s56, 1
        %s191 = smul.addr %s190, 10752
        %s192 = scalar_lea.vmem [#allocation5], %s191
        // Predicated region
        $region33: #{tpu_custom_call.1} parent=27 // pred_check
          %p193 = pneg %p69
        $region34: #{tpu_custom_call.1} parent=27 // pred_check_branch
          %195 = sbr.rel (%p193) target = $region36
        $region35: #{tpu_custom_call.1} parent=27 // pred_region
          %196 = dma.done %s189, 172032
        $region36: #{tpu_custom_call.1} parent=27 // pred_fallthru
          _
        %s197 = sand.u32 %s30, 1
        %s198 = scalar_lea.sflag [#allocation3], %s197
        %s199 = sand.u32 %s30, 1
        %s200 = smul.addr %s199, 10752
        %s201 = scalar_lea.vmem [#allocation2], %s200
        %p202 = pneg %p43
        %p203 = pneg %p40
        %s204 = sand.u32 %s56, 1
        %s205 = scalar_lea.sflag [#allocation6], %s204
        %s206 = sand.u32 %s56, 1
        %s207 = smul.addr %s206, 10752
        %s208 = scalar_lea.vmem [#allocation5], %s207
        %p209 = pneg %p69
        %p210 = pneg %p66
        %p211 = pneg %p95
        %p212 = pneg %p92
        %s213 = sand.u32 %s82, 1
        %s214 = scalar_lea.sflag [#allocation4], %s213
        %s215 = sand.u32 %s82, 1
        %s216 = smul.addr %s215, 10752
        %s217 = scalar_lea.vmem [#allocation7], %s216
        %s218 = smul.u32 21, %s22
        %s219 = ssub.s32 32, %s218
        %p220 = scmp.lt.s32.totalorder %s219, 21
        %s221 = scalar_select %p220, %s219, 21
        %s222 = smul.u32 128, %s221
        %s223 = smul.u32 %s222, 64
        %s224 = smul.u32 21, %s22
        %s225 = ssub.s32 32, %s224
        %p226 = scmp.lt.s32.totalorder %s225, 21
        %s227 = scalar_select %p226, %s225, 21
        %s228 = smul.u32 128, %s227
        %s229 = smul.u32 %s228, 64
        %s230 = smul.u32 21, %s22
        %s231 = ssub.s32 32, %s230
        %p232 = scmp.lt.s32.totalorder %s231, 21
        %s233 = scalar_select %p232, %s231, 21
        %s234 = smul.u32 128, %s233
        %s235 = smul.u32 %s234, 64
        %v236 = vld [vmem:[%s183] sm:$0xff]
        %v237 = vld [vmem:[%s183 + $0x8] sm:$0xff]
        %v238 = vld [vmem:[%s183 + $0x10] sm:$0xff]
        %v239 = vld [vmem:[%s183 + $0x18] sm:$0xff]
        %v240 = vld [vmem:[%s183 + $0x20] sm:$0xff]
        %v241 = vld [vmem:[%s183 + $0x28] sm:$0xff]
        %v242 = vld [vmem:[%s183 + $0x30] sm:$0xff]
        %v243 = vld [vmem:[%s183 + $0x38] sm:$0xff]
        %v244 = vld [vmem:[%s183 + $0x40] sm:$0xff]
        %v245 = vld [vmem:[%s183 + $0x48] sm:$0xff]
        %v246 = vld [vmem:[%s183 + $0x50] sm:$0xff]
        %v247 = vld [vmem:[%s183 + $0x58] sm:$0xff]
        %v248 = vld [vmem:[%s183 + $0x60] sm:$0xff]
        %v249 = vld [vmem:[%s183 + $0x68] sm:$0xff]
        %v250 = vld [vmem:[%s183 + $0x70] sm:$0xff]
        %v251 = vld [vmem:[%s183 + $0x78] sm:$0xff]
        %v252 = vld [vmem:[%s183 + $0x80] sm:$0xff]
        %v253 = vld [vmem:[%s183 + $0x88] sm:$0xff]
        %v254 = vld [vmem:[%s183 + $0x90] sm:$0xff]
        %v255 = vld [vmem:[%s183 + $0x98] sm:$0xff]
        %v256 = vld [vmem:[%s183 + $0xa0] sm:$0xff]
        %v257 = vld [vmem:[%s183 + $0xa8] sm:$0xff]
        %v258 = vld [vmem:[%s183 + $0xb0] sm:$0xff]
        %v259 = vld [vmem:[%s183 + $0xb8] sm:$0xff]
        %v260 = vld [vmem:[%s183 + $0xc0] sm:$0xff]
        %v261 = vld [vmem:[%s183 + $0xc8] sm:$0xff]
        %v262 = vld [vmem:[%s183 + $0xd0] sm:$0xff]
        %v263 = vld [vmem:[%s183 + $0xd8] sm:$0xff]
        %v264 = vld [vmem:[%s183 + $0xe0] sm:$0xff]
        %v265 = vld [vmem:[%s183 + $0xe8] sm:$0xff]
        %v266 = vld [vmem:[%s183 + $0xf0] sm:$0xff]
        %v267 = vld [vmem:[%s183 + $0xf8] sm:$0xff]
        %v268 = vld [vmem:[%s183 + $0x100] sm:$0xff]
        %v269 = vld [vmem:[%s183 + $0x108] sm:$0xff]
        %v270 = vld [vmem:[%s183 + $0x110] sm:$0xff]
        %v271 = vld [vmem:[%s183 + $0x118] sm:$0xff]
        %v272 = vld [vmem:[%s183 + $0x120] sm:$0xff]
        %v273 = vld [vmem:[%s183 + $0x128] sm:$0xff]
        %v274 = vld [vmem:[%s183 + $0x130] sm:$0xff]
        %v275 = vld [vmem:[%s183 + $0x138] sm:$0xff]
        %v276 = vld [vmem:[%s183 + $0x140] sm:$0xff]
        %v277 = vld [vmem:[%s183 + $0x148] sm:$0xff]
        %v278 = vld [vmem:[%s183 + $0x150] sm:$0xff]
        %v279 = vld [vmem:[%s183 + $0x158] sm:$0xff]
        %v280 = vld [vmem:[%s183 + $0x160] sm:$0xff]
        %v281 = vld [vmem:[%s183 + $0x168] sm:$0xff]
        %v282 = vld [vmem:[%s183 + $0x170] sm:$0xff]
        %v283 = vld [vmem:[%s183 + $0x178] sm:$0xff]
        %v284 = vld [vmem:[%s183 + $0x180] sm:$0xff]
        %v285 = vld [vmem:[%s183 + $0x188] sm:$0xff]
        %v286 = vld [vmem:[%s183 + $0x190] sm:$0xff]
        %v287 = vld [vmem:[%s183 + $0x198] sm:$0xff]
        %v288 = vld [vmem:[%s183 + $0x1a0] sm:$0xff]
        %v289 = vld [vmem:[%s183 + $0x1a8] sm:$0xff]
        %v290 = vld [vmem:[%s183 + $0x1b0] sm:$0xff]
        %v291 = vld [vmem:[%s183 + $0x1b8] sm:$0xff]
        %v292 = vld [vmem:[%s183 + $0x1c0] sm:$0xff]
        %v293 = vld [vmem:[%s183 + $0x1c8] sm:$0xff]
        %v294 = vld [vmem:[%s183 + $0x1d0] sm:$0xff]
        %v295 = vld [vmem:[%s183 + $0x1d8] sm:$0xff]
        %v296 = vld [vmem:[%s183 + $0x1e0] sm:$0xff]
        %v297 = vld [vmem:[%s183 + $0x1e8] sm:$0xff]
        %v298 = vld [vmem:[%s183 + $0x1f0] sm:$0xff]
        %v299 = vld [vmem:[%s183 + $0x1f8] sm:$0xff]
        %v300 = vld [vmem:[%s183 + $0x200] sm:$0xff]
        %v301 = vld [vmem:[%s183 + $0x208] sm:$0xff]
        %v302 = vld [vmem:[%s183 + $0x210] sm:$0xff]
        %v303 = vld [vmem:[%s183 + $0x218] sm:$0xff]
        %v304 = vld [vmem:[%s183 + $0x220] sm:$0xff]
        %v305 = vld [vmem:[%s183 + $0x228] sm:$0xff]
        %v306 = vld [vmem:[%s183 + $0x230] sm:$0xff]
        %v307 = vld [vmem:[%s183 + $0x238] sm:$0xff]
        %v308 = vld [vmem:[%s183 + $0x240] sm:$0xff]
        %v309 = vld [vmem:[%s183 + $0x248] sm:$0xff]
        %v310 = vld [vmem:[%s183 + $0x250] sm:$0xff]
        %v311 = vld [vmem:[%s183 + $0x258] sm:$0xff]
        %v312 = vld [vmem:[%s183 + $0x260] sm:$0xff]
        %v313 = vld [vmem:[%s183 + $0x268] sm:$0xff]
        %v314 = vld [vmem:[%s183 + $0x270] sm:$0xff]
        %v315 = vld [vmem:[%s183 + $0x278] sm:$0xff]
        %v316 = vld [vmem:[%s183 + $0x280] sm:$0xff]
        %v317 = vld [vmem:[%s183 + $0x288] sm:$0xff]
        %v318 = vld [vmem:[%s183 + $0x290] sm:$0xff]
        %v319 = vld [vmem:[%s183 + $0x298] sm:$0xff]
        %v320 = vld [vmem:[%s183 + $0x2a0] sm:$0xff]
        %v321 = vld [vmem:[%s183 + $0x2a8] sm:$0xff]
        %v322 = vld [vmem:[%s183 + $0x2b0] sm:$0xff]
        %v323 = vld [vmem:[%s183 + $0x2b8] sm:$0xff]
        %v324 = vld [vmem:[%s183 + $0x2c0] sm:$0xff]
        %v325 = vld [vmem:[%s183 + $0x2c8] sm:$0xff]
        %v326 = vld [vmem:[%s183 + $0x2d0] sm:$0xff]
        %v327 = vld [vmem:[%s183 + $0x2d8] sm:$0xff]
        %v328 = vld [vmem:[%s183 + $0x2e0] sm:$0xff]
        %v329 = vld [vmem:[%s183 + $0x2e8] sm:$0xff]
        %v330 = vld [vmem:[%s183 + $0x2f0] sm:$0xff]
        %v331 = vld [vmem:[%s183 + $0x2f8] sm:$0xff]
        %v332 = vld [vmem:[%s183 + $0x300] sm:$0xff]
        %v333 = vld [vmem:[%s183 + $0x308] sm:$0xff]
        %v334 = vld [vmem:[%s183 + $0x310] sm:$0xff]
        %v335 = vld [vmem:[%s183 + $0x318] sm:$0xff]
        %v336 = vld [vmem:[%s183 + $0x320] sm:$0xff]
        %v337 = vld [vmem:[%s183 + $0x328] sm:$0xff]
        %v338 = vld [vmem:[%s183 + $0x330] sm:$0xff]
        %v339 = vld [vmem:[%s183 + $0x338] sm:$0xff]
        %v340 = vld [vmem:[%s183 + $0x340] sm:$0xff]
        %v341 = vld [vmem:[%s183 + $0x348] sm:$0xff]
        %v342 = vld [vmem:[%s183 + $0x350] sm:$0xff]
        %v343 = vld [vmem:[%s183 + $0x358] sm:$0xff]
        %v344 = vld [vmem:[%s183 + $0x360] sm:$0xff]
        %v345 = vld [vmem:[%s183 + $0x368] sm:$0xff]
        %v346 = vld [vmem:[%s183 + $0x370] sm:$0xff]
        %v347 = vld [vmem:[%s183 + $0x378] sm:$0xff]
        %v348 = vld [vmem:[%s183 + $0x380] sm:$0xff]
        %v349 = vld [vmem:[%s183 + $0x388] sm:$0xff]
        %v350 = vld [vmem:[%s183 + $0x390] sm:$0xff]
        %v351 = vld [vmem:[%s183 + $0x398] sm:$0xff]
        %v352 = vld [vmem:[%s183 + $0x3a0] sm:$0xff]
        %v353 = vld [vmem:[%s183 + $0x3a8] sm:$0xff]
        %v354 = vld [vmem:[%s183 + $0x3b0] sm:$0xff]
        %v355 = vld [vmem:[%s183 + $0x3b8] sm:$0xff]
        %v356 = vld [vmem:[%s183 + $0x3c0] sm:$0xff]
        %v357 = vld [vmem:[%s183 + $0x3c8] sm:$0xff]
        %v358 = vld [vmem:[%s183 + $0x3d0] sm:$0xff]
        %v359 = vld [vmem:[%s183 + $0x3d8] sm:$0xff]
        %v360 = vld [vmem:[%s183 + $0x3e0] sm:$0xff]
        %v361 = vld [vmem:[%s183 + $0x3e8] sm:$0xff]
        %v362 = vld [vmem:[%s183 + $0x3f0] sm:$0xff]
        %v363 = vld [vmem:[%s183 + $0x3f8] sm:$0xff]
        %v364 = vld [vmem:[%s183 + $0x400] sm:$0xff]
        %v365 = vld [vmem:[%s183 + $0x408] sm:$0xff]
        %v366 = vld [vmem:[%s183 + $0x410] sm:$0xff]
        %v367 = vld [vmem:[%s183 + $0x418] sm:$0xff]
        %v368 = vld [vmem:[%s183 + $0x420] sm:$0xff]
        %v369 = vld [vmem:[%s183 + $0x428] sm:$0xff]
        %v370 = vld [vmem:[%s183 + $0x430] sm:$0xff]
        %v371 = vld [vmem:[%s183 + $0x438] sm:$0xff]
        %v372 = vld [vmem:[%s183 + $0x440] sm:$0xff]
        %v373 = vld [vmem:[%s183 + $0x448] sm:$0xff]
        %v374 = vld [vmem:[%s183 + $0x450] sm:$0xff]
        %v375 = vld [vmem:[%s183 + $0x458] sm:$0xff]
        %v376 = vld [vmem:[%s183 + $0x460] sm:$0xff]
        %v377 = vld [vmem:[%s183 + $0x468] sm:$0xff]
        %v378 = vld [vmem:[%s183 + $0x470] sm:$0xff]
        %v379 = vld [vmem:[%s183 + $0x478] sm:$0xff]
        %v380 = vld [vmem:[%s183 + $0x480] sm:$0xff]
        %v381 = vld [vmem:[%s183 + $0x488] sm:$0xff]
        %v382 = vld [vmem:[%s183 + $0x490] sm:$0xff]
        %v383 = vld [vmem:[%s183 + $0x498] sm:$0xff]
        %v384 = vld [vmem:[%s183 + $0x4a0] sm:$0xff]
        %v385 = vld [vmem:[%s183 + $0x4a8] sm:$0xff]
        %v386 = vld [vmem:[%s183 + $0x4b0] sm:$0xff]
        %v387 = vld [vmem:[%s183 + $0x4b8] sm:$0xff]
        %v388 = vld [vmem:[%s183 + $0x4c0] sm:$0xff]
        %v389 = vld [vmem:[%s183 + $0x4c8] sm:$0xff]
        %v390 = vld [vmem:[%s183 + $0x4d0] sm:$0xff]
        %v391 = vld [vmem:[%s183 + $0x4d8] sm:$0xff]
        %v392 = vld [vmem:[%s183 + $0x4e0] sm:$0xff]
        %v393 = vld [vmem:[%s183 + $0x4e8] sm:$0xff]
        %v394 = vld [vmem:[%s183 + $0x4f0] sm:$0xff]
        %v395 = vld [vmem:[%s183 + $0x4f8] sm:$0xff]
        %v396 = vld [vmem:[%s183 + $0x500] sm:$0xff]
        %v397 = vld [vmem:[%s183 + $0x508] sm:$0xff]
        %v398 = vld [vmem:[%s183 + $0x510] sm:$0xff]
        %v399 = vld [vmem:[%s183 + $0x518] sm:$0xff]
        %v400 = vld [vmem:[%s183 + $0x520] sm:$0xff]
        %v401 = vld [vmem:[%s183 + $0x528] sm:$0xff]
        %v402 = vld [vmem:[%s183 + $0x530] sm:$0xff]
        %v403 = vld [vmem:[%s183 + $0x538] sm:$0xff]
        %v404 = vld [vmem:[%s183 + $0x540] sm:$0xff]
        %v405 = vld [vmem:[%s183 + $0x548] sm:$0xff]
        %v406 = vld [vmem:[%s183 + $0x550] sm:$0xff]
        %v407 = vld [vmem:[%s183 + $0x558] sm:$0xff]
        %v408 = vld [vmem:[%s183 + $0x560] sm:$0xff]
        %v409 = vld [vmem:[%s183 + $0x568] sm:$0xff]
        %v410 = vld [vmem:[%s183 + $0x570] sm:$0xff]
        %v411 = vld [vmem:[%s183 + $0x578] sm:$0xff]
        %v412 = vld [vmem:[%s183 + $0x580] sm:$0xff]
        %v413 = vld [vmem:[%s183 + $0x588] sm:$0xff]
        %v414 = vld [vmem:[%s183 + $0x590] sm:$0xff]
        %v415 = vld [vmem:[%s183 + $0x598] sm:$0xff]
        %v416 = vld [vmem:[%s183 + $0x5a0] sm:$0xff]
        %v417 = vld [vmem:[%s183 + $0x5a8] sm:$0xff]
        %v418 = vld [vmem:[%s183 + $0x5b0] sm:$0xff]
        %v419 = vld [vmem:[%s183 + $0x5b8] sm:$0xff]
        %v420 = vld [vmem:[%s183 + $0x5c0] sm:$0xff]
        %v421 = vld [vmem:[%s183 + $0x5c8] sm:$0xff]
        %v422 = vld [vmem:[%s183 + $0x5d0] sm:$0xff]
        %v423 = vld [vmem:[%s183 + $0x5d8] sm:$0xff]
        %v424 = vld [vmem:[%s183 + $0x5e0] sm:$0xff]
        %v425 = vld [vmem:[%s183 + $0x5e8] sm:$0xff]
        %v426 = vld [vmem:[%s183 + $0x5f0] sm:$0xff]
        %v427 = vld [vmem:[%s183 + $0x5f8] sm:$0xff]
        %v428 = vld [vmem:[%s183 + $0x600] sm:$0xff]
        %v429 = vld [vmem:[%s183 + $0x608] sm:$0xff]
        %v430 = vld [vmem:[%s183 + $0x610] sm:$0xff]
        %v431 = vld [vmem:[%s183 + $0x618] sm:$0xff]
        %v432 = vld [vmem:[%s183 + $0x620] sm:$0xff]
        %v433 = vld [vmem:[%s183 + $0x628] sm:$0xff]
        %v434 = vld [vmem:[%s183 + $0x630] sm:$0xff]
        %v435 = vld [vmem:[%s183 + $0x638] sm:$0xff]
        %v436 = vld [vmem:[%s183 + $0x640] sm:$0xff]
        %v437 = vld [vmem:[%s183 + $0x648] sm:$0xff]
        %v438 = vld [vmem:[%s183 + $0x650] sm:$0xff]
        %v439 = vld [vmem:[%s183 + $0x658] sm:$0xff]
        %v440 = vld [vmem:[%s183 + $0x660] sm:$0xff]
        %v441 = vld [vmem:[%s183 + $0x668] sm:$0xff]
        %v442 = vld [vmem:[%s183 + $0x670] sm:$0xff]
        %v443 = vld [vmem:[%s183 + $0x678] sm:$0xff]
        %v444 = vld [vmem:[%s183 + $0x680] sm:$0xff]
        %v445 = vld [vmem:[%s183 + $0x688] sm:$0xff]
        %v446 = vld [vmem:[%s183 + $0x690] sm:$0xff]
        %v447 = vld [vmem:[%s183 + $0x698] sm:$0xff]
        %v448 = vld [vmem:[%s183 + $0x6a0] sm:$0xff]
        %v449 = vld [vmem:[%s183 + $0x6a8] sm:$0xff]
        %v450 = vld [vmem:[%s183 + $0x6b0] sm:$0xff]
        %v451 = vld [vmem:[%s183 + $0x6b8] sm:$0xff]
        %v452 = vld [vmem:[%s183 + $0x6c0] sm:$0xff]
        %v453 = vld [vmem:[%s183 + $0x6c8] sm:$0xff]
        %v454 = vld [vmem:[%s183 + $0x6d0] sm:$0xff]
        %v455 = vld [vmem:[%s183 + $0x6d8] sm:$0xff]
        %v456 = vld [vmem:[%s183 + $0x6e0] sm:$0xff]
        %v457 = vld [vmem:[%s183 + $0x6e8] sm:$0xff]
        %v458 = vld [vmem:[%s183 + $0x6f0] sm:$0xff]
        %v459 = vld [vmem:[%s183 + $0x6f8] sm:$0xff]
        %v460 = vld [vmem:[%s183 + $0x700] sm:$0xff]
        %v461 = vld [vmem:[%s183 + $0x708] sm:$0xff]
        %v462 = vld [vmem:[%s183 + $0x710] sm:$0xff]
        %v463 = vld [vmem:[%s183 + $0x718] sm:$0xff]
        %v464 = vld [vmem:[%s183 + $0x720] sm:$0xff]
        %v465 = vld [vmem:[%s183 + $0x728] sm:$0xff]
        %v466 = vld [vmem:[%s183 + $0x730] sm:$0xff]
        %v467 = vld [vmem:[%s183 + $0x738] sm:$0xff]
        %v468 = vld [vmem:[%s183 + $0x740] sm:$0xff]
        %v469 = vld [vmem:[%s183 + $0x748] sm:$0xff]
        %v470 = vld [vmem:[%s183 + $0x750] sm:$0xff]
        %v471 = vld [vmem:[%s183 + $0x758] sm:$0xff]
        %v472 = vld [vmem:[%s183 + $0x760] sm:$0xff]
        %v473 = vld [vmem:[%s183 + $0x768] sm:$0xff]
        %v474 = vld [vmem:[%s183 + $0x770] sm:$0xff]
        %v475 = vld [vmem:[%s183 + $0x778] sm:$0xff]
        %v476 = vld [vmem:[%s183 + $0x780] sm:$0xff]
        %v477 = vld [vmem:[%s183 + $0x788] sm:$0xff]
        %v478 = vld [vmem:[%s183 + $0x790] sm:$0xff]
        %v479 = vld [vmem:[%s183 + $0x798] sm:$0xff]
        %v480 = vld [vmem:[%s183 + $0x7a0] sm:$0xff]
        %v481 = vld [vmem:[%s183 + $0x7a8] sm:$0xff]
        %v482 = vld [vmem:[%s183 + $0x7b0] sm:$0xff]
        %v483 = vld [vmem:[%s183 + $0x7b8] sm:$0xff]
        %v484 = vld [vmem:[%s183 + $0x7c0] sm:$0xff]
        %v485 = vld [vmem:[%s183 + $0x7c8] sm:$0xff]
        %v486 = vld [vmem:[%s183 + $0x7d0] sm:$0xff]
        %v487 = vld [vmem:[%s183 + $0x7d8] sm:$0xff]
        %v488 = vld [vmem:[%s183 + $0x7e0] sm:$0xff]
        %v489 = vld [vmem:[%s183 + $0x7e8] sm:$0xff]
        %v490 = vld [vmem:[%s183 + $0x7f0] sm:$0xff]
        %v491 = vld [vmem:[%s183 + $0x7f8] sm:$0xff]
        %v492 = vld [vmem:[%s183 + $0x800] sm:$0xff]
        %v493 = vld [vmem:[%s183 + $0x808] sm:$0xff]
        %v494 = vld [vmem:[%s183 + $0x810] sm:$0xff]
        %v495 = vld [vmem:[%s183 + $0x818] sm:$0xff]
        %v496 = vld [vmem:[%s183 + $0x820] sm:$0xff]
        %v497 = vld [vmem:[%s183 + $0x828] sm:$0xff]
        %v498 = vld [vmem:[%s183 + $0x830] sm:$0xff]
        %v499 = vld [vmem:[%s183 + $0x838] sm:$0xff]
        %v500 = vld [vmem:[%s183 + $0x840] sm:$0xff]
        %v501 = vld [vmem:[%s183 + $0x848] sm:$0xff]
        %v502 = vld [vmem:[%s183 + $0x850] sm:$0xff]
        %v503 = vld [vmem:[%s183 + $0x858] sm:$0xff]
        %v504 = vld [vmem:[%s183 + $0x860] sm:$0xff]
        %v505 = vld [vmem:[%s183 + $0x868] sm:$0xff]
        %v506 = vld [vmem:[%s183 + $0x870] sm:$0xff]
        %v507 = vld [vmem:[%s183 + $0x878] sm:$0xff]
        %v508 = vld [vmem:[%s183 + $0x880] sm:$0xff]
        %v509 = vld [vmem:[%s183 + $0x888] sm:$0xff]
        %v510 = vld [vmem:[%s183 + $0x890] sm:$0xff]
        %v511 = vld [vmem:[%s183 + $0x898] sm:$0xff]
        %v512 = vld [vmem:[%s183 + $0x8a0] sm:$0xff]
        %v513 = vld [vmem:[%s183 + $0x8a8] sm:$0xff]
        %v514 = vld [vmem:[%s183 + $0x8b0] sm:$0xff]
        %v515 = vld [vmem:[%s183 + $0x8b8] sm:$0xff]
        %v516 = vld [vmem:[%s183 + $0x8c0] sm:$0xff]
        %v517 = vld [vmem:[%s183 + $0x8c8] sm:$0xff]
        %v518 = vld [vmem:[%s183 + $0x8d0] sm:$0xff]
        %v519 = vld [vmem:[%s183 + $0x8d8] sm:$0xff]
        %v520 = vld [vmem:[%s183 + $0x8e0] sm:$0xff]
        %v521 = vld [vmem:[%s183 + $0x8e8] sm:$0xff]
        %v522 = vld [vmem:[%s183 + $0x8f0] sm:$0xff]
        %v523 = vld [vmem:[%s183 + $0x8f8] sm:$0xff]
        %v524 = vld [vmem:[%s183 + $0x900] sm:$0xff]
        %v525 = vld [vmem:[%s183 + $0x908] sm:$0xff]
        %v526 = vld [vmem:[%s183 + $0x910] sm:$0xff]
        %v527 = vld [vmem:[%s183 + $0x918] sm:$0xff]
        %v528 = vld [vmem:[%s183 + $0x920] sm:$0xff]
        %v529 = vld [vmem:[%s183 + $0x928] sm:$0xff]
        %v530 = vld [vmem:[%s183 + $0x930] sm:$0xff]
        %v531 = vld [vmem:[%s183 + $0x938] sm:$0xff]
        %v532 = vld [vmem:[%s183 + $0x940] sm:$0xff]
        %v533 = vld [vmem:[%s183 + $0x948] sm:$0xff]
        %v534 = vld [vmem:[%s183 + $0x950] sm:$0xff]
        %v535 = vld [vmem:[%s183 + $0x958] sm:$0xff]
        %v536 = vld [vmem:[%s183 + $0x960] sm:$0xff]
        %v537 = vld [vmem:[%s183 + $0x968] sm:$0xff]
        %v538 = vld [vmem:[%s183 + $0x970] sm:$0xff]
        %v539 = vld [vmem:[%s183 + $0x978] sm:$0xff]
        %v540 = vld [vmem:[%s183 + $0x980] sm:$0xff]
        %v541 = vld [vmem:[%s183 + $0x988] sm:$0xff]
        %v542 = vld [vmem:[%s183 + $0x990] sm:$0xff]
        %v543 = vld [vmem:[%s183 + $0x998] sm:$0xff]
        %v544 = vld [vmem:[%s183 + $0x9a0] sm:$0xff]
        %v545 = vld [vmem:[%s183 + $0x9a8] sm:$0xff]
        %v546 = vld [vmem:[%s183 + $0x9b0] sm:$0xff]
        %v547 = vld [vmem:[%s183 + $0x9b8] sm:$0xff]
        %v548 = vld [vmem:[%s183 + $0x9c0] sm:$0xff]
        %v549 = vld [vmem:[%s183 + $0x9c8] sm:$0xff]
        %v550 = vld [vmem:[%s183 + $0x9d0] sm:$0xff]
        %v551 = vld [vmem:[%s183 + $0x9d8] sm:$0xff]
        %v552 = vld [vmem:[%s183 + $0x9e0] sm:$0xff]
        %v553 = vld [vmem:[%s183 + $0x9e8] sm:$0xff]
        %v554 = vld [vmem:[%s183 + $0x9f0] sm:$0xff]
        %v555 = vld [vmem:[%s183 + $0x9f8] sm:$0xff]
        %v556 = vld [vmem:[%s183 + $0xa00] sm:$0xff]
        %v557 = vld [vmem:[%s183 + $0xa08] sm:$0xff]
        %v558 = vld [vmem:[%s183 + $0xa10] sm:$0xff]
        %v559 = vld [vmem:[%s183 + $0xa18] sm:$0xff]
        %v560 = vld [vmem:[%s183 + $0xa20] sm:$0xff]
        %v561 = vld [vmem:[%s183 + $0xa28] sm:$0xff]
        %v562 = vld [vmem:[%s183 + $0xa30] sm:$0xff]
        %v563 = vld [vmem:[%s183 + $0xa38] sm:$0xff]
        %v564 = vld [vmem:[%s183 + $0xa40] sm:$0xff]
        %v565 = vld [vmem:[%s183 + $0xa48] sm:$0xff]
        %v566 = vld [vmem:[%s183 + $0xa50] sm:$0xff]
        %v567 = vld [vmem:[%s183 + $0xa58] sm:$0xff]
        %v568 = vld [vmem:[%s183 + $0xa60] sm:$0xff]
        %v569 = vld [vmem:[%s183 + $0xa68] sm:$0xff]
        %v570 = vld [vmem:[%s183 + $0xa70] sm:$0xff]
        %v571 = vld [vmem:[%s183 + $0xa78] sm:$0xff]
        %v572 = vld [vmem:[%s183 + $0xa80] sm:$0xff]
        %v573 = vld [vmem:[%s183 + $0xa88] sm:$0xff]
        %v574 = vld [vmem:[%s183 + $0xa90] sm:$0xff]
        %v575 = vld [vmem:[%s183 + $0xa98] sm:$0xff]
        %v576 = vld [vmem:[%s183 + $0xaa0] sm:$0xff]
        %v577 = vld [vmem:[%s183 + $0xaa8] sm:$0xff]
        %v578 = vld [vmem:[%s183 + $0xab0] sm:$0xff]
        %v579 = vld [vmem:[%s183 + $0xab8] sm:$0xff]
        %v580 = vld [vmem:[%s183 + $0xac0] sm:$0xff]
        %v581 = vld [vmem:[%s183 + $0xac8] sm:$0xff]
        %v582 = vld [vmem:[%s183 + $0xad0] sm:$0xff]
        %v583 = vld [vmem:[%s183 + $0xad8] sm:$0xff]
        %v584 = vld [vmem:[%s183 + $0xae0] sm:$0xff]
        %v585 = vld [vmem:[%s183 + $0xae8] sm:$0xff]
        %v586 = vld [vmem:[%s183 + $0xaf0] sm:$0xff]
        %v587 = vld [vmem:[%s183 + $0xaf8] sm:$0xff]
        %v588 = vld [vmem:[%s183 + $0xb00] sm:$0xff]
        %v589 = vld [vmem:[%s183 + $0xb08] sm:$0xff]
        %v590 = vld [vmem:[%s183 + $0xb10] sm:$0xff]
        %v591 = vld [vmem:[%s183 + $0xb18] sm:$0xff]
        %v592 = vld [vmem:[%s183 + $0xb20] sm:$0xff]
        %v593 = vld [vmem:[%s183 + $0xb28] sm:$0xff]
        %v594 = vld [vmem:[%s183 + $0xb30] sm:$0xff]
        %v595 = vld [vmem:[%s183 + $0xb38] sm:$0xff]
        %v596 = vld [vmem:[%s183 + $0xb40] sm:$0xff]
        %v597 = vld [vmem:[%s183 + $0xb48] sm:$0xff]
        %v598 = vld [vmem:[%s183 + $0xb50] sm:$0xff]
        %v599 = vld [vmem:[%s183 + $0xb58] sm:$0xff]
        %v600 = vld [vmem:[%s183 + $0xb60] sm:$0xff]
        %v601 = vld [vmem:[%s183 + $0xb68] sm:$0xff]
        %v602 = vld [vmem:[%s183 + $0xb70] sm:$0xff]
        %v603 = vld [vmem:[%s183 + $0xb78] sm:$0xff]
        %v604 = vld [vmem:[%s183 + $0xb80] sm:$0xff]
        %v605 = vld [vmem:[%s183 + $0xb88] sm:$0xff]
        %v606 = vld [vmem:[%s183 + $0xb90] sm:$0xff]
        %v607 = vld [vmem:[%s183 + $0xb98] sm:$0xff]
        %v608 = vld [vmem:[%s183 + $0xba0] sm:$0xff]
        %v609 = vld [vmem:[%s183 + $0xba8] sm:$0xff]
        %v610 = vld [vmem:[%s183 + $0xbb0] sm:$0xff]
        %v611 = vld [vmem:[%s183 + $0xbb8] sm:$0xff]
        %v612 = vld [vmem:[%s183 + $0xbc0] sm:$0xff]
        %v613 = vld [vmem:[%s183 + $0xbc8] sm:$0xff]
        %v614 = vld [vmem:[%s183 + $0xbd0] sm:$0xff]
        %v615 = vld [vmem:[%s183 + $0xbd8] sm:$0xff]
        %v616 = vld [vmem:[%s183 + $0xbe0] sm:$0xff]
        %v617 = vld [vmem:[%s183 + $0xbe8] sm:$0xff]
        %v618 = vld [vmem:[%s183 + $0xbf0] sm:$0xff]
        %v619 = vld [vmem:[%s183 + $0xbf8] sm:$0xff]
        %v620 = vld [vmem:[%s183 + $0xc00] sm:$0xff]
        %v621 = vld [vmem:[%s183 + $0xc08] sm:$0xff]
        %v622 = vld [vmem:[%s183 + $0xc10] sm:$0xff]
        %v623 = vld [vmem:[%s183 + $0xc18] sm:$0xff]
        %v624 = vld [vmem:[%s183 + $0xc20] sm:$0xff]
        %v625 = vld [vmem:[%s183 + $0xc28] sm:$0xff]
        %v626 = vld [vmem:[%s183 + $0xc30] sm:$0xff]
        %v627 = vld [vmem:[%s183 + $0xc38] sm:$0xff]
        %v628 = vld [vmem:[%s183 + $0xc40] sm:$0xff]
        %v629 = vld [vmem:[%s183 + $0xc48] sm:$0xff]
        %v630 = vld [vmem:[%s183 + $0xc50] sm:$0xff]
        %v631 = vld [vmem:[%s183 + $0xc58] sm:$0xff]
        %v632 = vld [vmem:[%s183 + $0xc60] sm:$0xff]
        %v633 = vld [vmem:[%s183 + $0xc68] sm:$0xff]
        %v634 = vld [vmem:[%s183 + $0xc70] sm:$0xff]
        %v635 = vld [vmem:[%s183 + $0xc78] sm:$0xff]
        %v636 = vld [vmem:[%s183 + $0xc80] sm:$0xff]
        %v637 = vld [vmem:[%s183 + $0xc88] sm:$0xff]
        %v638 = vld [vmem:[%s183 + $0xc90] sm:$0xff]
        %v639 = vld [vmem:[%s183 + $0xc98] sm:$0xff]
        %v640 = vld [vmem:[%s183 + $0xca0] sm:$0xff]
        %v641 = vld [vmem:[%s183 + $0xca8] sm:$0xff]
        %v642 = vld [vmem:[%s183 + $0xcb0] sm:$0xff]
        %v643 = vld [vmem:[%s183 + $0xcb8] sm:$0xff]
        %v644 = vld [vmem:[%s183 + $0xcc0] sm:$0xff]
        %v645 = vld [vmem:[%s183 + $0xcc8] sm:$0xff]
        %v646 = vld [vmem:[%s183 + $0xcd0] sm:$0xff]
        %v647 = vld [vmem:[%s183 + $0xcd8] sm:$0xff]
        %v648 = vld [vmem:[%s183 + $0xce0] sm:$0xff]
        %v649 = vld [vmem:[%s183 + $0xce8] sm:$0xff]
        %v650 = vld [vmem:[%s183 + $0xcf0] sm:$0xff]
        %v651 = vld [vmem:[%s183 + $0xcf8] sm:$0xff]
        %v652 = vld [vmem:[%s183 + $0xd00] sm:$0xff]
        %v653 = vld [vmem:[%s183 + $0xd08] sm:$0xff]
        %v654 = vld [vmem:[%s183 + $0xd10] sm:$0xff]
        %v655 = vld [vmem:[%s183 + $0xd18] sm:$0xff]
        %v656 = vld [vmem:[%s183 + $0xd20] sm:$0xff]
        %v657 = vld [vmem:[%s183 + $0xd28] sm:$0xff]
        %v658 = vld [vmem:[%s183 + $0xd30] sm:$0xff]
        %v659 = vld [vmem:[%s183 + $0xd38] sm:$0xff]
        %v660 = vld [vmem:[%s183 + $0xd40] sm:$0xff]
        %v661 = vld [vmem:[%s183 + $0xd48] sm:$0xff]
        %v662 = vld [vmem:[%s183 + $0xd50] sm:$0xff]
        %v663 = vld [vmem:[%s183 + $0xd58] sm:$0xff]
        %v664 = vld [vmem:[%s183 + $0xd60] sm:$0xff]
        %v665 = vld [vmem:[%s183 + $0xd68] sm:$0xff]
        %v666 = vld [vmem:[%s183 + $0xd70] sm:$0xff]
        %v667 = vld [vmem:[%s183 + $0xd78] sm:$0xff]
        %v668 = vld [vmem:[%s183 + $0xd80] sm:$0xff]
        %v669 = vld [vmem:[%s183 + $0xd88] sm:$0xff]
        %v670 = vld [vmem:[%s183 + $0xd90] sm:$0xff]
        %v671 = vld [vmem:[%s183 + $0xd98] sm:$0xff]
        %v672 = vld [vmem:[%s183 + $0xda0] sm:$0xff]
        %v673 = vld [vmem:[%s183 + $0xda8] sm:$0xff]
        %v674 = vld [vmem:[%s183 + $0xdb0] sm:$0xff]
        %v675 = vld [vmem:[%s183 + $0xdb8] sm:$0xff]
        %v676 = vld [vmem:[%s183 + $0xdc0] sm:$0xff]
        %v677 = vld [vmem:[%s183 + $0xdc8] sm:$0xff]
        %v678 = vld [vmem:[%s183 + $0xdd0] sm:$0xff]
        %v679 = vld [vmem:[%s183 + $0xdd8] sm:$0xff]
        %v680 = vld [vmem:[%s183 + $0xde0] sm:$0xff]
        %v681 = vld [vmem:[%s183 + $0xde8] sm:$0xff]
        %v682 = vld [vmem:[%s183 + $0xdf0] sm:$0xff]
        %v683 = vld [vmem:[%s183 + $0xdf8] sm:$0xff]
        %v684 = vld [vmem:[%s183 + $0xe00] sm:$0xff]
        %v685 = vld [vmem:[%s183 + $0xe08] sm:$0xff]
        %v686 = vld [vmem:[%s183 + $0xe10] sm:$0xff]
        %v687 = vld [vmem:[%s183 + $0xe18] sm:$0xff]
        %v688 = vld [vmem:[%s183 + $0xe20] sm:$0xff]
        %v689 = vld [vmem:[%s183 + $0xe28] sm:$0xff]
        %v690 = vld [vmem:[%s183 + $0xe30] sm:$0xff]
        %v691 = vld [vmem:[%s183 + $0xe38] sm:$0xff]
        %v692 = vld [vmem:[%s183 + $0xe40] sm:$0xff]
        %v693 = vld [vmem:[%s183 + $0xe48] sm:$0xff]
        %v694 = vld [vmem:[%s183 + $0xe50] sm:$0xff]
        %v695 = vld [vmem:[%s183 + $0xe58] sm:$0xff]
        %v696 = vld [vmem:[%s183 + $0xe60] sm:$0xff]
        %v697 = vld [vmem:[%s183 + $0xe68] sm:$0xff]
        %v698 = vld [vmem:[%s183 + $0xe70] sm:$0xff]
        %v699 = vld [vmem:[%s183 + $0xe78] sm:$0xff]
        %v700 = vld [vmem:[%s183 + $0xe80] sm:$0xff]
        %v701 = vld [vmem:[%s183 + $0xe88] sm:$0xff]
        %v702 = vld [vmem:[%s183 + $0xe90] sm:$0xff]
        %v703 = vld [vmem:[%s183 + $0xe98] sm:$0xff]
        %v704 = vld [vmem:[%s183 + $0xea0] sm:$0xff]
        %v705 = vld [vmem:[%s183 + $0xea8] sm:$0xff]
        %v706 = vld [vmem:[%s183 + $0xeb0] sm:$0xff]
        %v707 = vld [vmem:[%s183 + $0xeb8] sm:$0xff]
        %v708 = vld [vmem:[%s183 + $0xec0] sm:$0xff]
        %v709 = vld [vmem:[%s183 + $0xec8] sm:$0xff]
        %v710 = vld [vmem:[%s183 + $0xed0] sm:$0xff]
        %v711 = vld [vmem:[%s183 + $0xed8] sm:$0xff]
        %v712 = vld [vmem:[%s183 + $0xee0] sm:$0xff]
        %v713 = vld [vmem:[%s183 + $0xee8] sm:$0xff]
        %v714 = vld [vmem:[%s183 + $0xef0] sm:$0xff]
        %v715 = vld [vmem:[%s183 + $0xef8] sm:$0xff]
        %v716 = vld [vmem:[%s183 + $0xf00] sm:$0xff]
        %v717 = vld [vmem:[%s183 + $0xf08] sm:$0xff]
        %v718 = vld [vmem:[%s183 + $0xf10] sm:$0xff]
        %v719 = vld [vmem:[%s183 + $0xf18] sm:$0xff]
        %v720 = vld [vmem:[%s183 + $0xf20] sm:$0xff]
        %v721 = vld [vmem:[%s183 + $0xf28] sm:$0xff]
        %v722 = vld [vmem:[%s183 + $0xf30] sm:$0xff]
        %v723 = vld [vmem:[%s183 + $0xf38] sm:$0xff]
        %v724 = vld [vmem:[%s183 + $0xf40] sm:$0xff]
        %v725 = vld [vmem:[%s183 + $0xf48] sm:$0xff]
        %v726 = vld [vmem:[%s183 + $0xf50] sm:$0xff]
        %v727 = vld [vmem:[%s183 + $0xf58] sm:$0xff]
        %v728 = vld [vmem:[%s183 + $0xf60] sm:$0xff]
        %v729 = vld [vmem:[%s183 + $0xf68] sm:$0xff]
        %v730 = vld [vmem:[%s183 + $0xf70] sm:$0xff]
        %v731 = vld [vmem:[%s183 + $0xf78] sm:$0xff]
        %v732 = vld [vmem:[%s183 + $0xf80] sm:$0xff]
        %v733 = vld [vmem:[%s183 + $0xf88] sm:$0xff]
        %v734 = vld [vmem:[%s183 + $0xf90] sm:$0xff]
        %v735 = vld [vmem:[%s183 + $0xf98] sm:$0xff]
        %v736 = vld [vmem:[%s183 + $0xfa0] sm:$0xff]
        %v737 = vld [vmem:[%s183 + $0xfa8] sm:$0xff]
        %v738 = vld [vmem:[%s183 + $0xfb0] sm:$0xff]
        %v739 = vld [vmem:[%s183 + $0xfb8] sm:$0xff]
        %v740 = vld [vmem:[%s183 + $0xfc0] sm:$0xff]
        %v741 = vld [vmem:[%s183 + $0xfc8] sm:$0xff]
        %v742 = vld [vmem:[%s183 + $0xfd0] sm:$0xff]
        %v743 = vld [vmem:[%s183 + $0xfd8] sm:$0xff]
        %v744 = vld [vmem:[%s183 + $0xfe0] sm:$0xff]
        %v745 = vld [vmem:[%s183 + $0xfe8] sm:$0xff]
        %v746 = vld [vmem:[%s183 + $0xff0] sm:$0xff]
        %v747 = vld [vmem:[%s183 + $0xff8] sm:$0xff]
        %v748 = vld [vmem:[%s183 + $0x1000] sm:$0xff]
        %v749 = vld [vmem:[%s183 + $0x1008] sm:$0xff]
        %v750 = vld [vmem:[%s183 + $0x1010] sm:$0xff]
        %v751 = vld [vmem:[%s183 + $0x1018] sm:$0xff]
        %v752 = vld [vmem:[%s183 + $0x1020] sm:$0xff]
        %v753 = vld [vmem:[%s183 + $0x1028] sm:$0xff]
        %v754 = vld [vmem:[%s183 + $0x1030] sm:$0xff]
        %v755 = vld [vmem:[%s183 + $0x1038] sm:$0xff]
        %v756 = vld [vmem:[%s183 + $0x1040] sm:$0xff]
        %v757 = vld [vmem:[%s183 + $0x1048] sm:$0xff]
        %v758 = vld [vmem:[%s183 + $0x1050] sm:$0xff]
        %v759 = vld [vmem:[%s183 + $0x1058] sm:$0xff]
        %v760 = vld [vmem:[%s183 + $0x1060] sm:$0xff]
        %v761 = vld [vmem:[%s183 + $0x1068] sm:$0xff]
        %v762 = vld [vmem:[%s183 + $0x1070] sm:$0xff]
        %v763 = vld [vmem:[%s183 + $0x1078] sm:$0xff]
        %v764 = vld [vmem:[%s183 + $0x1080] sm:$0xff]
        %v765 = vld [vmem:[%s183 + $0x1088] sm:$0xff]
        %v766 = vld [vmem:[%s183 + $0x1090] sm:$0xff]
        %v767 = vld [vmem:[%s183 + $0x1098] sm:$0xff]
        %v768 = vld [vmem:[%s183 + $0x10a0] sm:$0xff]
        %v769 = vld [vmem:[%s183 + $0x10a8] sm:$0xff]
        %v770 = vld [vmem:[%s183 + $0x10b0] sm:$0xff]
        %v771 = vld [vmem:[%s183 + $0x10b8] sm:$0xff]
        %v772 = vld [vmem:[%s183 + $0x10c0] sm:$0xff]
        %v773 = vld [vmem:[%s183 + $0x10c8] sm:$0xff]
        %v774 = vld [vmem:[%s183 + $0x10d0] sm:$0xff]
        %v775 = vld [vmem:[%s183 + $0x10d8] sm:$0xff]
        %v776 = vld [vmem:[%s183 + $0x10e0] sm:$0xff]
        %v777 = vld [vmem:[%s183 + $0x10e8] sm:$0xff]
        %v778 = vld [vmem:[%s183 + $0x10f0] sm:$0xff]
        %v779 = vld [vmem:[%s183 + $0x10f8] sm:$0xff]
        %v780 = vld [vmem:[%s183 + $0x1100] sm:$0xff]
        %v781 = vld [vmem:[%s183 + $0x1108] sm:$0xff]
        %v782 = vld [vmem:[%s183 + $0x1110] sm:$0xff]
        %v783 = vld [vmem:[%s183 + $0x1118] sm:$0xff]
        %v784 = vld [vmem:[%s183 + $0x1120] sm:$0xff]
        %v785 = vld [vmem:[%s183 + $0x1128] sm:$0xff]
        %v786 = vld [vmem:[%s183 + $0x1130] sm:$0xff]
        %v787 = vld [vmem:[%s183 + $0x1138] sm:$0xff]
        %v788 = vld [vmem:[%s183 + $0x1140] sm:$0xff]
        %v789 = vld [vmem:[%s183 + $0x1148] sm:$0xff]
        %v790 = vld [vmem:[%s183 + $0x1150] sm:$0xff]
        %v791 = vld [vmem:[%s183 + $0x1158] sm:$0xff]
        %v792 = vld [vmem:[%s183 + $0x1160] sm:$0xff]
        %v793 = vld [vmem:[%s183 + $0x1168] sm:$0xff]
        %v794 = vld [vmem:[%s183 + $0x1170] sm:$0xff]
        %v795 = vld [vmem:[%s183 + $0x1178] sm:$0xff]
        %v796 = vld [vmem:[%s183 + $0x1180] sm:$0xff]
        %v797 = vld [vmem:[%s183 + $0x1188] sm:$0xff]
        %v798 = vld [vmem:[%s183 + $0x1190] sm:$0xff]
        %v799 = vld [vmem:[%s183 + $0x1198] sm:$0xff]
        %v800 = vld [vmem:[%s183 + $0x11a0] sm:$0xff]
        %v801 = vld [vmem:[%s183 + $0x11a8] sm:$0xff]
        %v802 = vld [vmem:[%s183 + $0x11b0] sm:$0xff]
        %v803 = vld [vmem:[%s183 + $0x11b8] sm:$0xff]
        %v804 = vld [vmem:[%s183 + $0x11c0] sm:$0xff]
        %v805 = vld [vmem:[%s183 + $0x11c8] sm:$0xff]
        %v806 = vld [vmem:[%s183 + $0x11d0] sm:$0xff]
        %v807 = vld [vmem:[%s183 + $0x11d8] sm:$0xff]
        %v808 = vld [vmem:[%s183 + $0x11e0] sm:$0xff]
        %v809 = vld [vmem:[%s183 + $0x11e8] sm:$0xff]
        %v810 = vld [vmem:[%s183 + $0x11f0] sm:$0xff]
        %v811 = vld [vmem:[%s183 + $0x11f8] sm:$0xff]
        %v812 = vld [vmem:[%s183 + $0x1200] sm:$0xff]
        %v813 = vld [vmem:[%s183 + $0x1208] sm:$0xff]
        %v814 = vld [vmem:[%s183 + $0x1210] sm:$0xff]
        %v815 = vld [vmem:[%s183 + $0x1218] sm:$0xff]
        %v816 = vld [vmem:[%s183 + $0x1220] sm:$0xff]
        %v817 = vld [vmem:[%s183 + $0x1228] sm:$0xff]
        %v818 = vld [vmem:[%s183 + $0x1230] sm:$0xff]
        %v819 = vld [vmem:[%s183 + $0x1238] sm:$0xff]
        %v820 = vld [vmem:[%s183 + $0x1240] sm:$0xff]
        %v821 = vld [vmem:[%s183 + $0x1248] sm:$0xff]
        %v822 = vld [vmem:[%s183 + $0x1250] sm:$0xff]
        %v823 = vld [vmem:[%s183 + $0x1258] sm:$0xff]
        %v824 = vld [vmem:[%s183 + $0x1260] sm:$0xff]
        %v825 = vld [vmem:[%s183 + $0x1268] sm:$0xff]
        %v826 = vld [vmem:[%s183 + $0x1270] sm:$0xff]
        %v827 = vld [vmem:[%s183 + $0x1278] sm:$0xff]
        %v828 = vld [vmem:[%s183 + $0x1280] sm:$0xff]
        %v829 = vld [vmem:[%s183 + $0x1288] sm:$0xff]
        %v830 = vld [vmem:[%s183 + $0x1290] sm:$0xff]
        %v831 = vld [vmem:[%s183 + $0x1298] sm:$0xff]
        %v832 = vld [vmem:[%s183 + $0x12a0] sm:$0xff]
        %v833 = vld [vmem:[%s183 + $0x12a8] sm:$0xff]
        %v834 = vld [vmem:[%s183 + $0x12b0] sm:$0xff]
        %v835 = vld [vmem:[%s183 + $0x12b8] sm:$0xff]
        %v836 = vld [vmem:[%s183 + $0x12c0] sm:$0xff]
        %v837 = vld [vmem:[%s183 + $0x12c8] sm:$0xff]
        %v838 = vld [vmem:[%s183 + $0x12d0] sm:$0xff]
        %v839 = vld [vmem:[%s183 + $0x12d8] sm:$0xff]
        %v840 = vld [vmem:[%s183 + $0x12e0] sm:$0xff]
        %v841 = vld [vmem:[%s183 + $0x12e8] sm:$0xff]
        %v842 = vld [vmem:[%s183 + $0x12f0] sm:$0xff]
        %v843 = vld [vmem:[%s183 + $0x12f8] sm:$0xff]
        %v844 = vld [vmem:[%s183 + $0x1300] sm:$0xff]
        %v845 = vld [vmem:[%s183 + $0x1308] sm:$0xff]
        %v846 = vld [vmem:[%s183 + $0x1310] sm:$0xff]
        %v847 = vld [vmem:[%s183 + $0x1318] sm:$0xff]
        %v848 = vld [vmem:[%s183 + $0x1320] sm:$0xff]
        %v849 = vld [vmem:[%s183 + $0x1328] sm:$0xff]
        %v850 = vld [vmem:[%s183 + $0x1330] sm:$0xff]
        %v851 = vld [vmem:[%s183 + $0x1338] sm:$0xff]
        %v852 = vld [vmem:[%s183 + $0x1340] sm:$0xff]
        %v853 = vld [vmem:[%s183 + $0x1348] sm:$0xff]
        %v854 = vld [vmem:[%s183 + $0x1350] sm:$0xff]
        %v855 = vld [vmem:[%s183 + $0x1358] sm:$0xff]
        %v856 = vld [vmem:[%s183 + $0x1360] sm:$0xff]
        %v857 = vld [vmem:[%s183 + $0x1368] sm:$0xff]
        %v858 = vld [vmem:[%s183 + $0x1370] sm:$0xff]
        %v859 = vld [vmem:[%s183 + $0x1378] sm:$0xff]
        %v860 = vld [vmem:[%s183 + $0x1380] sm:$0xff]
        %v861 = vld [vmem:[%s183 + $0x1388] sm:$0xff]
        %v862 = vld [vmem:[%s183 + $0x1390] sm:$0xff]
        %v863 = vld [vmem:[%s183 + $0x1398] sm:$0xff]
        %v864 = vld [vmem:[%s183 + $0x13a0] sm:$0xff]
        %v865 = vld [vmem:[%s183 + $0x13a8] sm:$0xff]
        %v866 = vld [vmem:[%s183 + $0x13b0] sm:$0xff]
        %v867 = vld [vmem:[%s183 + $0x13b8] sm:$0xff]
        %v868 = vld [vmem:[%s183 + $0x13c0] sm:$0xff]
        %v869 = vld [vmem:[%s183 + $0x13c8] sm:$0xff]
        %v870 = vld [vmem:[%s183 + $0x13d0] sm:$0xff]
        %v871 = vld [vmem:[%s183 + $0x13d8] sm:$0xff]
        %v872 = vld [vmem:[%s183 + $0x13e0] sm:$0xff]
        %v873 = vld [vmem:[%s183 + $0x13e8] sm:$0xff]
        %v874 = vld [vmem:[%s183 + $0x13f0] sm:$0xff]
        %v875 = vld [vmem:[%s183 + $0x13f8] sm:$0xff]
        %v876 = vld [vmem:[%s183 + $0x1400] sm:$0xff]
        %v877 = vld [vmem:[%s183 + $0x1408] sm:$0xff]
        %v878 = vld [vmem:[%s183 + $0x1410] sm:$0xff]
        %v879 = vld [vmem:[%s183 + $0x1418] sm:$0xff]
        %v880 = vld [vmem:[%s183 + $0x1420] sm:$0xff]
        %v881 = vld [vmem:[%s183 + $0x1428] sm:$0xff]
        %v882 = vld [vmem:[%s183 + $0x1430] sm:$0xff]
        %v883 = vld [vmem:[%s183 + $0x1438] sm:$0xff]
        %v884 = vld [vmem:[%s183 + $0x1440] sm:$0xff]
        %v885 = vld [vmem:[%s183 + $0x1448] sm:$0xff]
        %v886 = vld [vmem:[%s183 + $0x1450] sm:$0xff]
        %v887 = vld [vmem:[%s183 + $0x1458] sm:$0xff]
        %v888 = vld [vmem:[%s183 + $0x1460] sm:$0xff]
        %v889 = vld [vmem:[%s183 + $0x1468] sm:$0xff]
        %v890 = vld [vmem:[%s183 + $0x1470] sm:$0xff]
        %v891 = vld [vmem:[%s183 + $0x1478] sm:$0xff]
        %v892 = vld [vmem:[%s183 + $0x1480] sm:$0xff]
        %v893 = vld [vmem:[%s183 + $0x1488] sm:$0xff]
        %v894 = vld [vmem:[%s183 + $0x1490] sm:$0xff]
        %v895 = vld [vmem:[%s183 + $0x1498] sm:$0xff]
        %v896 = vld [vmem:[%s183 + $0x14a0] sm:$0xff]
        %v897 = vld [vmem:[%s183 + $0x14a8] sm:$0xff]
        %v898 = vld [vmem:[%s183 + $0x14b0] sm:$0xff]
        %v899 = vld [vmem:[%s183 + $0x14b8] sm:$0xff]
        %v900 = vld [vmem:[%s183 + $0x14c0] sm:$0xff]
        %v901 = vld [vmem:[%s183 + $0x14c8] sm:$0xff]
        %v902 = vld [vmem:[%s183 + $0x14d0] sm:$0xff]
        %v903 = vld [vmem:[%s183 + $0x14d8] sm:$0xff]
        %v904 = vld [vmem:[%s183 + $0x14e0] sm:$0xff]
        %v905 = vld [vmem:[%s183 + $0x14e8] sm:$0xff]
        %v906 = vld [vmem:[%s183 + $0x14f0] sm:$0xff]
        %v907 = vld [vmem:[%s183 + $0x14f8] sm:$0xff]
        %v908 = vld [vmem:[%s183 + $0x1500] sm:$0xff]
        %v909 = vld [vmem:[%s183 + $0x1508] sm:$0xff]
        %v910 = vld [vmem:[%s183 + $0x1510] sm:$0xff]
        %v911 = vld [vmem:[%s183 + $0x1518] sm:$0xff]
        %v912 = vld [vmem:[%s183 + $0x1520] sm:$0xff]
        %v913 = vld [vmem:[%s183 + $0x1528] sm:$0xff]
        %v914 = vld [vmem:[%s183 + $0x1530] sm:$0xff]
        %v915 = vld [vmem:[%s183 + $0x1538] sm:$0xff]
        %v916 = vld [vmem:[%s183 + $0x1540] sm:$0xff]
        %v917 = vld [vmem:[%s183 + $0x1548] sm:$0xff]
        %v918 = vld [vmem:[%s183 + $0x1550] sm:$0xff]
        %v919 = vld [vmem:[%s183 + $0x1558] sm:$0xff]
        %v920 = vld [vmem:[%s183 + $0x1560] sm:$0xff]
        %v921 = vld [vmem:[%s183 + $0x1568] sm:$0xff]
        %v922 = vld [vmem:[%s183 + $0x1570] sm:$0xff]
        %v923 = vld [vmem:[%s183 + $0x1578] sm:$0xff]
        %v924 = vld [vmem:[%s183 + $0x1580] sm:$0xff]
        %v925 = vld [vmem:[%s183 + $0x1588] sm:$0xff]
        %v926 = vld [vmem:[%s183 + $0x1590] sm:$0xff]
        %v927 = vld [vmem:[%s183 + $0x1598] sm:$0xff]
        %v928 = vld [vmem:[%s183 + $0x15a0] sm:$0xff]
        %v929 = vld [vmem:[%s183 + $0x15a8] sm:$0xff]
        %v930 = vld [vmem:[%s183 + $0x15b0] sm:$0xff]
        %v931 = vld [vmem:[%s183 + $0x15b8] sm:$0xff]
        %v932 = vld [vmem:[%s183 + $0x15c0] sm:$0xff]
        %v933 = vld [vmem:[%s183 + $0x15c8] sm:$0xff]
        %v934 = vld [vmem:[%s183 + $0x15d0] sm:$0xff]
        %v935 = vld [vmem:[%s183 + $0x15d8] sm:$0xff]
        %v936 = vld [vmem:[%s183 + $0x15e0] sm:$0xff]
        %v937 = vld [vmem:[%s183 + $0x15e8] sm:$0xff]
        %v938 = vld [vmem:[%s183 + $0x15f0] sm:$0xff]
        %v939 = vld [vmem:[%s183 + $0x15f8] sm:$0xff]
        %v940 = vld [vmem:[%s183 + $0x1600] sm:$0xff]
        %v941 = vld [vmem:[%s183 + $0x1608] sm:$0xff]
        %v942 = vld [vmem:[%s183 + $0x1610] sm:$0xff]
        %v943 = vld [vmem:[%s183 + $0x1618] sm:$0xff]
        %v944 = vld [vmem:[%s183 + $0x1620] sm:$0xff]
        %v945 = vld [vmem:[%s183 + $0x1628] sm:$0xff]
        %v946 = vld [vmem:[%s183 + $0x1630] sm:$0xff]
        %v947 = vld [vmem:[%s183 + $0x1638] sm:$0xff]
        %v948 = vld [vmem:[%s183 + $0x1640] sm:$0xff]
        %v949 = vld [vmem:[%s183 + $0x1648] sm:$0xff]
        %v950 = vld [vmem:[%s183 + $0x1650] sm:$0xff]
        %v951 = vld [vmem:[%s183 + $0x1658] sm:$0xff]
        %v952 = vld [vmem:[%s183 + $0x1660] sm:$0xff]
        %v953 = vld [vmem:[%s183 + $0x1668] sm:$0xff]
        %v954 = vld [vmem:[%s183 + $0x1670] sm:$0xff]
        %v955 = vld [vmem:[%s183 + $0x1678] sm:$0xff]
        %v956 = vld [vmem:[%s183 + $0x1680] sm:$0xff]
        %v957 = vld [vmem:[%s183 + $0x1688] sm:$0xff]
        %v958 = vld [vmem:[%s183 + $0x1690] sm:$0xff]
        %v959 = vld [vmem:[%s183 + $0x1698] sm:$0xff]
        %v960 = vld [vmem:[%s183 + $0x16a0] sm:$0xff]
        %v961 = vld [vmem:[%s183 + $0x16a8] sm:$0xff]
        %v962 = vld [vmem:[%s183 + $0x16b0] sm:$0xff]
        %v963 = vld [vmem:[%s183 + $0x16b8] sm:$0xff]
        %v964 = vld [vmem:[%s183 + $0x16c0] sm:$0xff]
        %v965 = vld [vmem:[%s183 + $0x16c8] sm:$0xff]
        %v966 = vld [vmem:[%s183 + $0x16d0] sm:$0xff]
        %v967 = vld [vmem:[%s183 + $0x16d8] sm:$0xff]
        %v968 = vld [vmem:[%s183 + $0x16e0] sm:$0xff]
        %v969 = vld [vmem:[%s183 + $0x16e8] sm:$0xff]
        %v970 = vld [vmem:[%s183 + $0x16f0] sm:$0xff]
        %v971 = vld [vmem:[%s183 + $0x16f8] sm:$0xff]
        %v972 = vld [vmem:[%s183 + $0x1700] sm:$0xff]
        %v973 = vld [vmem:[%s183 + $0x1708] sm:$0xff]
        %v974 = vld [vmem:[%s183 + $0x1710] sm:$0xff]
        %v975 = vld [vmem:[%s183 + $0x1718] sm:$0xff]
        %v976 = vld [vmem:[%s183 + $0x1720] sm:$0xff]
        %v977 = vld [vmem:[%s183 + $0x1728] sm:$0xff]
        %v978 = vld [vmem:[%s183 + $0x1730] sm:$0xff]
        %v979 = vld [vmem:[%s183 + $0x1738] sm:$0xff]
        %v980 = vld [vmem:[%s183 + $0x1740] sm:$0xff]
        %v981 = vld [vmem:[%s183 + $0x1748] sm:$0xff]
        %v982 = vld [vmem:[%s183 + $0x1750] sm:$0xff]
        %v983 = vld [vmem:[%s183 + $0x1758] sm:$0xff]
        %v984 = vld [vmem:[%s183 + $0x1760] sm:$0xff]
        %v985 = vld [vmem:[%s183 + $0x1768] sm:$0xff]
        %v986 = vld [vmem:[%s183 + $0x1770] sm:$0xff]
        %v987 = vld [vmem:[%s183 + $0x1778] sm:$0xff]
        %v988 = vld [vmem:[%s183 + $0x1780] sm:$0xff]
        %v989 = vld [vmem:[%s183 + $0x1788] sm:$0xff]
        %v990 = vld [vmem:[%s183 + $0x1790] sm:$0xff]
        %v991 = vld [vmem:[%s183 + $0x1798] sm:$0xff]
        %v992 = vld [vmem:[%s183 + $0x17a0] sm:$0xff]
        %v993 = vld [vmem:[%s183 + $0x17a8] sm:$0xff]
        %v994 = vld [vmem:[%s183 + $0x17b0] sm:$0xff]
        %v995 = vld [vmem:[%s183 + $0x17b8] sm:$0xff]
        %v996 = vld [vmem:[%s183 + $0x17c0] sm:$0xff]
        %v997 = vld [vmem:[%s183 + $0x17c8] sm:$0xff]
        %v998 = vld [vmem:[%s183 + $0x17d0] sm:$0xff]
        %v999 = vld [vmem:[%s183 + $0x17d8] sm:$0xff]
        %v1000 = vld [vmem:[%s183 + $0x17e0] sm:$0xff]
        %v1001 = vld [vmem:[%s183 + $0x17e8] sm:$0xff]
        %v1002 = vld [vmem:[%s183 + $0x17f0] sm:$0xff]
        %v1003 = vld [vmem:[%s183 + $0x17f8] sm:$0xff]
        %v1004 = vld [vmem:[%s183 + $0x1800] sm:$0xff]
        %v1005 = vld [vmem:[%s183 + $0x1808] sm:$0xff]
        %v1006 = vld [vmem:[%s183 + $0x1810] sm:$0xff]
        %v1007 = vld [vmem:[%s183 + $0x1818] sm:$0xff]
        %v1008 = vld [vmem:[%s183 + $0x1820] sm:$0xff]
        %v1009 = vld [vmem:[%s183 + $0x1828] sm:$0xff]
        %v1010 = vld [vmem:[%s183 + $0x1830] sm:$0xff]
        %v1011 = vld [vmem:[%s183 + $0x1838] sm:$0xff]
        %v1012 = vld [vmem:[%s183 + $0x1840] sm:$0xff]
        %v1013 = vld [vmem:[%s183 + $0x1848] sm:$0xff]
        %v1014 = vld [vmem:[%s183 + $0x1850] sm:$0xff]
        %v1015 = vld [vmem:[%s183 + $0x1858] sm:$0xff]
        %v1016 = vld [vmem:[%s183 + $0x1860] sm:$0xff]
        %v1017 = vld [vmem:[%s183 + $0x1868] sm:$0xff]
        %v1018 = vld [vmem:[%s183 + $0x1870] sm:$0xff]
        %v1019 = vld [vmem:[%s183 + $0x1878] sm:$0xff]
        %v1020 = vld [vmem:[%s183 + $0x1880] sm:$0xff]
        %v1021 = vld [vmem:[%s183 + $0x1888] sm:$0xff]
        %v1022 = vld [vmem:[%s183 + $0x1890] sm:$0xff]
        %v1023 = vld [vmem:[%s183 + $0x1898] sm:$0xff]
        %v1024 = vld [vmem:[%s183 + $0x18a0] sm:$0xff]
        %v1025 = vld [vmem:[%s183 + $0x18a8] sm:$0xff]
        %v1026 = vld [vmem:[%s183 + $0x18b0] sm:$0xff]
        %v1027 = vld [vmem:[%s183 + $0x18b8] sm:$0xff]
        %v1028 = vld [vmem:[%s183 + $0x18c0] sm:$0xff]
        %v1029 = vld [vmem:[%s183 + $0x18c8] sm:$0xff]
        %v1030 = vld [vmem:[%s183 + $0x18d0] sm:$0xff]
        %v1031 = vld [vmem:[%s183 + $0x18d8] sm:$0xff]
        %v1032 = vld [vmem:[%s183 + $0x18e0] sm:$0xff]
        %v1033 = vld [vmem:[%s183 + $0x18e8] sm:$0xff]
        %v1034 = vld [vmem:[%s183 + $0x18f0] sm:$0xff]
        %v1035 = vld [vmem:[%s183 + $0x18f8] sm:$0xff]
        %v1036 = vld [vmem:[%s183 + $0x1900] sm:$0xff]
        %v1037 = vld [vmem:[%s183 + $0x1908] sm:$0xff]
        %v1038 = vld [vmem:[%s183 + $0x1910] sm:$0xff]
        %v1039 = vld [vmem:[%s183 + $0x1918] sm:$0xff]
        %v1040 = vld [vmem:[%s183 + $0x1920] sm:$0xff]
        %v1041 = vld [vmem:[%s183 + $0x1928] sm:$0xff]
        %v1042 = vld [vmem:[%s183 + $0x1930] sm:$0xff]
        %v1043 = vld [vmem:[%s183 + $0x1938] sm:$0xff]
        %v1044 = vld [vmem:[%s183 + $0x1940] sm:$0xff]
        %v1045 = vld [vmem:[%s183 + $0x1948] sm:$0xff]
        %v1046 = vld [vmem:[%s183 + $0x1950] sm:$0xff]
        %v1047 = vld [vmem:[%s183 + $0x1958] sm:$0xff]
        %v1048 = vld [vmem:[%s183 + $0x1960] sm:$0xff]
        %v1049 = vld [vmem:[%s183 + $0x1968] sm:$0xff]
        %v1050 = vld [vmem:[%s183 + $0x1970] sm:$0xff]
        %v1051 = vld [vmem:[%s183 + $0x1978] sm:$0xff]
        %v1052 = vld [vmem:[%s183 + $0x1980] sm:$0xff]
        %v1053 = vld [vmem:[%s183 + $0x1988] sm:$0xff]
        %v1054 = vld [vmem:[%s183 + $0x1990] sm:$0xff]
        %v1055 = vld [vmem:[%s183 + $0x1998] sm:$0xff]
        %v1056 = vld [vmem:[%s183 + $0x19a0] sm:$0xff]
        %v1057 = vld [vmem:[%s183 + $0x19a8] sm:$0xff]
        %v1058 = vld [vmem:[%s183 + $0x19b0] sm:$0xff]
        %v1059 = vld [vmem:[%s183 + $0x19b8] sm:$0xff]
        %v1060 = vld [vmem:[%s183 + $0x19c0] sm:$0xff]
        %v1061 = vld [vmem:[%s183 + $0x19c8] sm:$0xff]
        %v1062 = vld [vmem:[%s183 + $0x19d0] sm:$0xff]
        %v1063 = vld [vmem:[%s183 + $0x19d8] sm:$0xff]
        %v1064 = vld [vmem:[%s183 + $0x19e0] sm:$0xff]
        %v1065 = vld [vmem:[%s183 + $0x19e8] sm:$0xff]
        %v1066 = vld [vmem:[%s183 + $0x19f0] sm:$0xff]
        %v1067 = vld [vmem:[%s183 + $0x19f8] sm:$0xff]
        %v1068 = vld [vmem:[%s183 + $0x1a00] sm:$0xff]
        %v1069 = vld [vmem:[%s183 + $0x1a08] sm:$0xff]
        %v1070 = vld [vmem:[%s183 + $0x1a10] sm:$0xff]
        %v1071 = vld [vmem:[%s183 + $0x1a18] sm:$0xff]
        %v1072 = vld [vmem:[%s183 + $0x1a20] sm:$0xff]
        %v1073 = vld [vmem:[%s183 + $0x1a28] sm:$0xff]
        %v1074 = vld [vmem:[%s183 + $0x1a30] sm:$0xff]
        %v1075 = vld [vmem:[%s183 + $0x1a38] sm:$0xff]
        %v1076 = vld [vmem:[%s183 + $0x1a40] sm:$0xff]
        %v1077 = vld [vmem:[%s183 + $0x1a48] sm:$0xff]
        %v1078 = vld [vmem:[%s183 + $0x1a50] sm:$0xff]
        %v1079 = vld [vmem:[%s183 + $0x1a58] sm:$0xff]
        %v1080 = vld [vmem:[%s183 + $0x1a60] sm:$0xff]
        %v1081 = vld [vmem:[%s183 + $0x1a68] sm:$0xff]
        %v1082 = vld [vmem:[%s183 + $0x1a70] sm:$0xff]
        %v1083 = vld [vmem:[%s183 + $0x1a78] sm:$0xff]
        %v1084 = vld [vmem:[%s183 + $0x1a80] sm:$0xff]
        %v1085 = vld [vmem:[%s183 + $0x1a88] sm:$0xff]
        %v1086 = vld [vmem:[%s183 + $0x1a90] sm:$0xff]
        %v1087 = vld [vmem:[%s183 + $0x1a98] sm:$0xff]
        %v1088 = vld [vmem:[%s183 + $0x1aa0] sm:$0xff]
        %v1089 = vld [vmem:[%s183 + $0x1aa8] sm:$0xff]
        %v1090 = vld [vmem:[%s183 + $0x1ab0] sm:$0xff]
        %v1091 = vld [vmem:[%s183 + $0x1ab8] sm:$0xff]
        %v1092 = vld [vmem:[%s183 + $0x1ac0] sm:$0xff]
        %v1093 = vld [vmem:[%s183 + $0x1ac8] sm:$0xff]
        %v1094 = vld [vmem:[%s183 + $0x1ad0] sm:$0xff]
        %v1095 = vld [vmem:[%s183 + $0x1ad8] sm:$0xff]
        %v1096 = vld [vmem:[%s183 + $0x1ae0] sm:$0xff]
        %v1097 = vld [vmem:[%s183 + $0x1ae8] sm:$0xff]
        %v1098 = vld [vmem:[%s183 + $0x1af0] sm:$0xff]
        %v1099 = vld [vmem:[%s183 + $0x1af8] sm:$0xff]
        %v1100 = vld [vmem:[%s183 + $0x1b00] sm:$0xff]
        %v1101 = vld [vmem:[%s183 + $0x1b08] sm:$0xff]
        %v1102 = vld [vmem:[%s183 + $0x1b10] sm:$0xff]
        %v1103 = vld [vmem:[%s183 + $0x1b18] sm:$0xff]
        %v1104 = vld [vmem:[%s183 + $0x1b20] sm:$0xff]
        %v1105 = vld [vmem:[%s183 + $0x1b28] sm:$0xff]
        %v1106 = vld [vmem:[%s183 + $0x1b30] sm:$0xff]
        %v1107 = vld [vmem:[%s183 + $0x1b38] sm:$0xff]
        %v1108 = vld [vmem:[%s183 + $0x1b40] sm:$0xff]
        %v1109 = vld [vmem:[%s183 + $0x1b48] sm:$0xff]
        %v1110 = vld [vmem:[%s183 + $0x1b50] sm:$0xff]
        %v1111 = vld [vmem:[%s183 + $0x1b58] sm:$0xff]
        %v1112 = vld [vmem:[%s183 + $0x1b60] sm:$0xff]
        %v1113 = vld [vmem:[%s183 + $0x1b68] sm:$0xff]
        %v1114 = vld [vmem:[%s183 + $0x1b70] sm:$0xff]
        %v1115 = vld [vmem:[%s183 + $0x1b78] sm:$0xff]
        %v1116 = vld [vmem:[%s183 + $0x1b80] sm:$0xff]
        %v1117 = vld [vmem:[%s183 + $0x1b88] sm:$0xff]
        %v1118 = vld [vmem:[%s183 + $0x1b90] sm:$0xff]
        %v1119 = vld [vmem:[%s183 + $0x1b98] sm:$0xff]
        %v1120 = vld [vmem:[%s183 + $0x1ba0] sm:$0xff]
        %v1121 = vld [vmem:[%s183 + $0x1ba8] sm:$0xff]
        %v1122 = vld [vmem:[%s183 + $0x1bb0] sm:$0xff]
        %v1123 = vld [vmem:[%s183 + $0x1bb8] sm:$0xff]
        %v1124 = vld [vmem:[%s183 + $0x1bc0] sm:$0xff]
        %v1125 = vld [vmem:[%s183 + $0x1bc8] sm:$0xff]
        %v1126 = vld [vmem:[%s183 + $0x1bd0] sm:$0xff]
        %v1127 = vld [vmem:[%s183 + $0x1bd8] sm:$0xff]
        %v1128 = vld [vmem:[%s183 + $0x1be0] sm:$0xff]
        %v1129 = vld [vmem:[%s183 + $0x1be8] sm:$0xff]
        %v1130 = vld [vmem:[%s183 + $0x1bf0] sm:$0xff]
        %v1131 = vld [vmem:[%s183 + $0x1bf8] sm:$0xff]
        %v1132 = vld [vmem:[%s183 + $0x1c00] sm:$0xff]
        %v1133 = vld [vmem:[%s183 + $0x1c08] sm:$0xff]
        %v1134 = vld [vmem:[%s183 + $0x1c10] sm:$0xff]
        %v1135 = vld [vmem:[%s183 + $0x1c18] sm:$0xff]
        %v1136 = vld [vmem:[%s183 + $0x1c20] sm:$0xff]
        %v1137 = vld [vmem:[%s183 + $0x1c28] sm:$0xff]
        %v1138 = vld [vmem:[%s183 + $0x1c30] sm:$0xff]
        %v1139 = vld [vmem:[%s183 + $0x1c38] sm:$0xff]
        %v1140 = vld [vmem:[%s183 + $0x1c40] sm:$0xff]
        %v1141 = vld [vmem:[%s183 + $0x1c48] sm:$0xff]
        %v1142 = vld [vmem:[%s183 + $0x1c50] sm:$0xff]
        %v1143 = vld [vmem:[%s183 + $0x1c58] sm:$0xff]
        %v1144 = vld [vmem:[%s183 + $0x1c60] sm:$0xff]
        %v1145 = vld [vmem:[%s183 + $0x1c68] sm:$0xff]
        %v1146 = vld [vmem:[%s183 + $0x1c70] sm:$0xff]
        %v1147 = vld [vmem:[%s183 + $0x1c78] sm:$0xff]
        %v1148 = vld [vmem:[%s183 + $0x1c80] sm:$0xff]
        %v1149 = vld [vmem:[%s183 + $0x1c88] sm:$0xff]
        %v1150 = vld [vmem:[%s183 + $0x1c90] sm:$0xff]
        %v1151 = vld [vmem:[%s183 + $0x1c98] sm:$0xff]
        %v1152 = vld [vmem:[%s183 + $0x1ca0] sm:$0xff]
        %v1153 = vld [vmem:[%s183 + $0x1ca8] sm:$0xff]
        %v1154 = vld [vmem:[%s183 + $0x1cb0] sm:$0xff]
        %v1155 = vld [vmem:[%s183 + $0x1cb8] sm:$0xff]
        %v1156 = vld [vmem:[%s183 + $0x1cc0] sm:$0xff]
        %v1157 = vld [vmem:[%s183 + $0x1cc8] sm:$0xff]
        %v1158 = vld [vmem:[%s183 + $0x1cd0] sm:$0xff]
        %v1159 = vld [vmem:[%s183 + $0x1cd8] sm:$0xff]
        %v1160 = vld [vmem:[%s183 + $0x1ce0] sm:$0xff]
        %v1161 = vld [vmem:[%s183 + $0x1ce8] sm:$0xff]
        %v1162 = vld [vmem:[%s183 + $0x1cf0] sm:$0xff]
        %v1163 = vld [vmem:[%s183 + $0x1cf8] sm:$0xff]
        %v1164 = vld [vmem:[%s183 + $0x1d00] sm:$0xff]
        %v1165 = vld [vmem:[%s183 + $0x1d08] sm:$0xff]
        %v1166 = vld [vmem:[%s183 + $0x1d10] sm:$0xff]
        %v1167 = vld [vmem:[%s183 + $0x1d18] sm:$0xff]
        %v1168 = vld [vmem:[%s183 + $0x1d20] sm:$0xff]
        %v1169 = vld [vmem:[%s183 + $0x1d28] sm:$0xff]
        %v1170 = vld [vmem:[%s183 + $0x1d30] sm:$0xff]
        %v1171 = vld [vmem:[%s183 + $0x1d38] sm:$0xff]
        %v1172 = vld [vmem:[%s183 + $0x1d40] sm:$0xff]
        %v1173 = vld [vmem:[%s183 + $0x1d48] sm:$0xff]
        %v1174 = vld [vmem:[%s183 + $0x1d50] sm:$0xff]
        %v1175 = vld [vmem:[%s183 + $0x1d58] sm:$0xff]
        %v1176 = vld [vmem:[%s183 + $0x1d60] sm:$0xff]
        %v1177 = vld [vmem:[%s183 + $0x1d68] sm:$0xff]
        %v1178 = vld [vmem:[%s183 + $0x1d70] sm:$0xff]
        %v1179 = vld [vmem:[%s183 + $0x1d78] sm:$0xff]
        %v1180 = vld [vmem:[%s183 + $0x1d80] sm:$0xff]
        %v1181 = vld [vmem:[%s183 + $0x1d88] sm:$0xff]
        %v1182 = vld [vmem:[%s183 + $0x1d90] sm:$0xff]
        %v1183 = vld [vmem:[%s183 + $0x1d98] sm:$0xff]
        %v1184 = vld [vmem:[%s183 + $0x1da0] sm:$0xff]
        %v1185 = vld [vmem:[%s183 + $0x1da8] sm:$0xff]
        %v1186 = vld [vmem:[%s183 + $0x1db0] sm:$0xff]
        %v1187 = vld [vmem:[%s183 + $0x1db8] sm:$0xff]
        %v1188 = vld [vmem:[%s183 + $0x1dc0] sm:$0xff]
        %v1189 = vld [vmem:[%s183 + $0x1dc8] sm:$0xff]
        %v1190 = vld [vmem:[%s183 + $0x1dd0] sm:$0xff]
        %v1191 = vld [vmem:[%s183 + $0x1dd8] sm:$0xff]
        %v1192 = vld [vmem:[%s183 + $0x1de0] sm:$0xff]
        %v1193 = vld [vmem:[%s183 + $0x1de8] sm:$0xff]
        %v1194 = vld [vmem:[%s183 + $0x1df0] sm:$0xff]
        %v1195 = vld [vmem:[%s183 + $0x1df8] sm:$0xff]
        %v1196 = vld [vmem:[%s183 + $0x1e00] sm:$0xff]
        %v1197 = vld [vmem:[%s183 + $0x1e08] sm:$0xff]
        %v1198 = vld [vmem:[%s183 + $0x1e10] sm:$0xff]
        %v1199 = vld [vmem:[%s183 + $0x1e18] sm:$0xff]
        %v1200 = vld [vmem:[%s183 + $0x1e20] sm:$0xff]
        %v1201 = vld [vmem:[%s183 + $0x1e28] sm:$0xff]
        %v1202 = vld [vmem:[%s183 + $0x1e30] sm:$0xff]
        %v1203 = vld [vmem:[%s183 + $0x1e38] sm:$0xff]
        %v1204 = vld [vmem:[%s183 + $0x1e40] sm:$0xff]
        %v1205 = vld [vmem:[%s183 + $0x1e48] sm:$0xff]
        %v1206 = vld [vmem:[%s183 + $0x1e50] sm:$0xff]
        %v1207 = vld [vmem:[%s183 + $0x1e58] sm:$0xff]
        %v1208 = vld [vmem:[%s183 + $0x1e60] sm:$0xff]
        %v1209 = vld [vmem:[%s183 + $0x1e68] sm:$0xff]
        %v1210 = vld [vmem:[%s183 + $0x1e70] sm:$0xff]
        %v1211 = vld [vmem:[%s183 + $0x1e78] sm:$0xff]
        %v1212 = vld [vmem:[%s183 + $0x1e80] sm:$0xff]
        %v1213 = vld [vmem:[%s183 + $0x1e88] sm:$0xff]
        %v1214 = vld [vmem:[%s183 + $0x1e90] sm:$0xff]
        %v1215 = vld [vmem:[%s183 + $0x1e98] sm:$0xff]
        %v1216 = vld [vmem:[%s183 + $0x1ea0] sm:$0xff]
        %v1217 = vld [vmem:[%s183 + $0x1ea8] sm:$0xff]
        %v1218 = vld [vmem:[%s183 + $0x1eb0] sm:$0xff]
        %v1219 = vld [vmem:[%s183 + $0x1eb8] sm:$0xff]
        %v1220 = vld [vmem:[%s183 + $0x1ec0] sm:$0xff]
        %v1221 = vld [vmem:[%s183 + $0x1ec8] sm:$0xff]
        %v1222 = vld [vmem:[%s183 + $0x1ed0] sm:$0xff]
        %v1223 = vld [vmem:[%s183 + $0x1ed8] sm:$0xff]
        %v1224 = vld [vmem:[%s183 + $0x1ee0] sm:$0xff]
        %v1225 = vld [vmem:[%s183 + $0x1ee8] sm:$0xff]
        %v1226 = vld [vmem:[%s183 + $0x1ef0] sm:$0xff]
        %v1227 = vld [vmem:[%s183 + $0x1ef8] sm:$0xff]
        %v1228 = vld [vmem:[%s183 + $0x1f00] sm:$0xff]
        %v1229 = vld [vmem:[%s183 + $0x1f08] sm:$0xff]
        %v1230 = vld [vmem:[%s183 + $0x1f10] sm:$0xff]
        %v1231 = vld [vmem:[%s183 + $0x1f18] sm:$0xff]
        %v1232 = vld [vmem:[%s183 + $0x1f20] sm:$0xff]
        %v1233 = vld [vmem:[%s183 + $0x1f28] sm:$0xff]
        %v1234 = vld [vmem:[%s183 + $0x1f30] sm:$0xff]
        %v1235 = vld [vmem:[%s183 + $0x1f38] sm:$0xff]
        %v1236 = vld [vmem:[%s183 + $0x1f40] sm:$0xff]
        %v1237 = vld [vmem:[%s183 + $0x1f48] sm:$0xff]
        %v1238 = vld [vmem:[%s183 + $0x1f50] sm:$0xff]
        %v1239 = vld [vmem:[%s183 + $0x1f58] sm:$0xff]
        %v1240 = vld [vmem:[%s183 + $0x1f60] sm:$0xff]
        %v1241 = vld [vmem:[%s183 + $0x1f68] sm:$0xff]
        %v1242 = vld [vmem:[%s183 + $0x1f70] sm:$0xff]
        %v1243 = vld [vmem:[%s183 + $0x1f78] sm:$0xff]
        %v1244 = vld [vmem:[%s183 + $0x1f80] sm:$0xff]
        %v1245 = vld [vmem:[%s183 + $0x1f88] sm:$0xff]
        %v1246 = vld [vmem:[%s183 + $0x1f90] sm:$0xff]
        %v1247 = vld [vmem:[%s183 + $0x1f98] sm:$0xff]
        %v1248 = vld [vmem:[%s183 + $0x1fa0] sm:$0xff]
        %v1249 = vld [vmem:[%s183 + $0x1fa8] sm:$0xff]
        %v1250 = vld [vmem:[%s183 + $0x1fb0] sm:$0xff]
        %v1251 = vld [vmem:[%s183 + $0x1fb8] sm:$0xff]
        %v1252 = vld [vmem:[%s183 + $0x1fc0] sm:$0xff]
        %v1253 = vld [vmem:[%s183 + $0x1fc8] sm:$0xff]
        %v1254 = vld [vmem:[%s183 + $0x1fd0] sm:$0xff]
        %v1255 = vld [vmem:[%s183 + $0x1fd8] sm:$0xff]
        %v1256 = vld [vmem:[%s183 + $0x1fe0] sm:$0xff]
        %v1257 = vld [vmem:[%s183 + $0x1fe8] sm:$0xff]
        %v1258 = vld [vmem:[%s183 + $0x1ff0] sm:$0xff]
        %v1259 = vld [vmem:[%s183 + $0x1ff8] sm:$0xff]
        %v1260 = vld [vmem:[%s183 + $0x2000] sm:$0xff]
        %v1261 = vld [vmem:[%s183 + $0x2008] sm:$0xff]
        %v1262 = vld [vmem:[%s183 + $0x2010] sm:$0xff]
        %v1263 = vld [vmem:[%s183 + $0x2018] sm:$0xff]
        %v1264 = vld [vmem:[%s183 + $0x2020] sm:$0xff]
        %v1265 = vld [vmem:[%s183 + $0x2028] sm:$0xff]
        %v1266 = vld [vmem:[%s183 + $0x2030] sm:$0xff]
        %v1267 = vld [vmem:[%s183 + $0x2038] sm:$0xff]
        %v1268 = vld [vmem:[%s183 + $0x2040] sm:$0xff]
        %v1269 = vld [vmem:[%s183 + $0x2048] sm:$0xff]
        %v1270 = vld [vmem:[%s183 + $0x2050] sm:$0xff]
        %v1271 = vld [vmem:[%s183 + $0x2058] sm:$0xff]
        %v1272 = vld [vmem:[%s183 + $0x2060] sm:$0xff]
        %v1273 = vld [vmem:[%s183 + $0x2068] sm:$0xff]
        %v1274 = vld [vmem:[%s183 + $0x2070] sm:$0xff]
        %v1275 = vld [vmem:[%s183 + $0x2078] sm:$0xff]
        %v1276 = vld [vmem:[%s183 + $0x2080] sm:$0xff]
        %v1277 = vld [vmem:[%s183 + $0x2088] sm:$0xff]
        %v1278 = vld [vmem:[%s183 + $0x2090] sm:$0xff]
        %v1279 = vld [vmem:[%s183 + $0x2098] sm:$0xff]
        %v1280 = vld [vmem:[%s183 + $0x20a0] sm:$0xff]
        %v1281 = vld [vmem:[%s183 + $0x20a8] sm:$0xff]
        %v1282 = vld [vmem:[%s183 + $0x20b0] sm:$0xff]
        %v1283 = vld [vmem:[%s183 + $0x20b8] sm:$0xff]
        %v1284 = vld [vmem:[%s183 + $0x20c0] sm:$0xff]
        %v1285 = vld [vmem:[%s183 + $0x20c8] sm:$0xff]
        %v1286 = vld [vmem:[%s183 + $0x20d0] sm:$0xff]
        %v1287 = vld [vmem:[%s183 + $0x20d8] sm:$0xff]
        %v1288 = vld [vmem:[%s183 + $0x20e0] sm:$0xff]
        %v1289 = vld [vmem:[%s183 + $0x20e8] sm:$0xff]
        %v1290 = vld [vmem:[%s183 + $0x20f0] sm:$0xff]
        %v1291 = vld [vmem:[%s183 + $0x20f8] sm:$0xff]
        %v1292 = vld [vmem:[%s183 + $0x2100] sm:$0xff]
        %v1293 = vld [vmem:[%s183 + $0x2108] sm:$0xff]
        %v1294 = vld [vmem:[%s183 + $0x2110] sm:$0xff]
        %v1295 = vld [vmem:[%s183 + $0x2118] sm:$0xff]
        %v1296 = vld [vmem:[%s183 + $0x2120] sm:$0xff]
        %v1297 = vld [vmem:[%s183 + $0x2128] sm:$0xff]
        %v1298 = vld [vmem:[%s183 + $0x2130] sm:$0xff]
        %v1299 = vld [vmem:[%s183 + $0x2138] sm:$0xff]
        %v1300 = vld [vmem:[%s183 + $0x2140] sm:$0xff]
        %v1301 = vld [vmem:[%s183 + $0x2148] sm:$0xff]
        %v1302 = vld [vmem:[%s183 + $0x2150] sm:$0xff]
        %v1303 = vld [vmem:[%s183 + $0x2158] sm:$0xff]
        %v1304 = vld [vmem:[%s183 + $0x2160] sm:$0xff]
        %v1305 = vld [vmem:[%s183 + $0x2168] sm:$0xff]
        %v1306 = vld [vmem:[%s183 + $0x2170] sm:$0xff]
        %v1307 = vld [vmem:[%s183 + $0x2178] sm:$0xff]
        %v1308 = vld [vmem:[%s183 + $0x2180] sm:$0xff]
        %v1309 = vld [vmem:[%s183 + $0x2188] sm:$0xff]
        %v1310 = vld [vmem:[%s183 + $0x2190] sm:$0xff]
        %v1311 = vld [vmem:[%s183 + $0x2198] sm:$0xff]
        %v1312 = vld [vmem:[%s183 + $0x21a0] sm:$0xff]
        %v1313 = vld [vmem:[%s183 + $0x21a8] sm:$0xff]
        %v1314 = vld [vmem:[%s183 + $0x21b0] sm:$0xff]
        %v1315 = vld [vmem:[%s183 + $0x21b8] sm:$0xff]
        %v1316 = vld [vmem:[%s183 + $0x21c0] sm:$0xff]
        %v1317 = vld [vmem:[%s183 + $0x21c8] sm:$0xff]
        %v1318 = vld [vmem:[%s183 + $0x21d0] sm:$0xff]
        %v1319 = vld [vmem:[%s183 + $0x21d8] sm:$0xff]
        %v1320 = vld [vmem:[%s183 + $0x21e0] sm:$0xff]
        %v1321 = vld [vmem:[%s183 + $0x21e8] sm:$0xff]
        %v1322 = vld [vmem:[%s183 + $0x21f0] sm:$0xff]
        %v1323 = vld [vmem:[%s183 + $0x21f8] sm:$0xff]
        %v1324 = vld [vmem:[%s183 + $0x2200] sm:$0xff]
        %v1325 = vld [vmem:[%s183 + $0x2208] sm:$0xff]
        %v1326 = vld [vmem:[%s183 + $0x2210] sm:$0xff]
        %v1327 = vld [vmem:[%s183 + $0x2218] sm:$0xff]
        %v1328 = vld [vmem:[%s183 + $0x2220] sm:$0xff]
        %v1329 = vld [vmem:[%s183 + $0x2228] sm:$0xff]
        %v1330 = vld [vmem:[%s183 + $0x2230] sm:$0xff]
        %v1331 = vld [vmem:[%s183 + $0x2238] sm:$0xff]
        %v1332 = vld [vmem:[%s183 + $0x2240] sm:$0xff]
        %v1333 = vld [vmem:[%s183 + $0x2248] sm:$0xff]
        %v1334 = vld [vmem:[%s183 + $0x2250] sm:$0xff]
        %v1335 = vld [vmem:[%s183 + $0x2258] sm:$0xff]
        %v1336 = vld [vmem:[%s183 + $0x2260] sm:$0xff]
        %v1337 = vld [vmem:[%s183 + $0x2268] sm:$0xff]
        %v1338 = vld [vmem:[%s183 + $0x2270] sm:$0xff]
        %v1339 = vld [vmem:[%s183 + $0x2278] sm:$0xff]
        %v1340 = vld [vmem:[%s183 + $0x2280] sm:$0xff]
        %v1341 = vld [vmem:[%s183 + $0x2288] sm:$0xff]
        %v1342 = vld [vmem:[%s183 + $0x2290] sm:$0xff]
        %v1343 = vld [vmem:[%s183 + $0x2298] sm:$0xff]
        %v1344 = vld [vmem:[%s183 + $0x22a0] sm:$0xff]
        %v1345 = vld [vmem:[%s183 + $0x22a8] sm:$0xff]
        %v1346 = vld [vmem:[%s183 + $0x22b0] sm:$0xff]
        %v1347 = vld [vmem:[%s183 + $0x22b8] sm:$0xff]
        %v1348 = vld [vmem:[%s183 + $0x22c0] sm:$0xff]
        %v1349 = vld [vmem:[%s183 + $0x22c8] sm:$0xff]
        %v1350 = vld [vmem:[%s183 + $0x22d0] sm:$0xff]
        %v1351 = vld [vmem:[%s183 + $0x22d8] sm:$0xff]
        %v1352 = vld [vmem:[%s183 + $0x22e0] sm:$0xff]
        %v1353 = vld [vmem:[%s183 + $0x22e8] sm:$0xff]
        %v1354 = vld [vmem:[%s183 + $0x22f0] sm:$0xff]
        %v1355 = vld [vmem:[%s183 + $0x22f8] sm:$0xff]
        %v1356 = vld [vmem:[%s183 + $0x2300] sm:$0xff]
        %v1357 = vld [vmem:[%s183 + $0x2308] sm:$0xff]
        %v1358 = vld [vmem:[%s183 + $0x2310] sm:$0xff]
        %v1359 = vld [vmem:[%s183 + $0x2318] sm:$0xff]
        %v1360 = vld [vmem:[%s183 + $0x2320] sm:$0xff]
        %v1361 = vld [vmem:[%s183 + $0x2328] sm:$0xff]
        %v1362 = vld [vmem:[%s183 + $0x2330] sm:$0xff]
        %v1363 = vld [vmem:[%s183 + $0x2338] sm:$0xff]
        %v1364 = vld [vmem:[%s183 + $0x2340] sm:$0xff]
        %v1365 = vld [vmem:[%s183 + $0x2348] sm:$0xff]
        %v1366 = vld [vmem:[%s183 + $0x2350] sm:$0xff]
        %v1367 = vld [vmem:[%s183 + $0x2358] sm:$0xff]
        %v1368 = vld [vmem:[%s183 + $0x2360] sm:$0xff]
        %v1369 = vld [vmem:[%s183 + $0x2368] sm:$0xff]
        %v1370 = vld [vmem:[%s183 + $0x2370] sm:$0xff]
        %v1371 = vld [vmem:[%s183 + $0x2378] sm:$0xff]
        %v1372 = vld [vmem:[%s183 + $0x2380] sm:$0xff]
        %v1373 = vld [vmem:[%s183 + $0x2388] sm:$0xff]
        %v1374 = vld [vmem:[%s183 + $0x2390] sm:$0xff]
        %v1375 = vld [vmem:[%s183 + $0x2398] sm:$0xff]
        %v1376 = vld [vmem:[%s183 + $0x23a0] sm:$0xff]
        %v1377 = vld [vmem:[%s183 + $0x23a8] sm:$0xff]
        %v1378 = vld [vmem:[%s183 + $0x23b0] sm:$0xff]
        %v1379 = vld [vmem:[%s183 + $0x23b8] sm:$0xff]
        %v1380 = vld [vmem:[%s183 + $0x23c0] sm:$0xff]
        %v1381 = vld [vmem:[%s183 + $0x23c8] sm:$0xff]
        %v1382 = vld [vmem:[%s183 + $0x23d0] sm:$0xff]
        %v1383 = vld [vmem:[%s183 + $0x23d8] sm:$0xff]
        %v1384 = vld [vmem:[%s183 + $0x23e0] sm:$0xff]
        %v1385 = vld [vmem:[%s183 + $0x23e8] sm:$0xff]
        %v1386 = vld [vmem:[%s183 + $0x23f0] sm:$0xff]
        %v1387 = vld [vmem:[%s183 + $0x23f8] sm:$0xff]
        %v1388 = vld [vmem:[%s183 + $0x2400] sm:$0xff]
        %v1389 = vld [vmem:[%s183 + $0x2408] sm:$0xff]
        %v1390 = vld [vmem:[%s183 + $0x2410] sm:$0xff]
        %v1391 = vld [vmem:[%s183 + $0x2418] sm:$0xff]
        %v1392 = vld [vmem:[%s183 + $0x2420] sm:$0xff]
        %v1393 = vld [vmem:[%s183 + $0x2428] sm:$0xff]
        %v1394 = vld [vmem:[%s183 + $0x2430] sm:$0xff]
        %v1395 = vld [vmem:[%s183 + $0x2438] sm:$0xff]
        %v1396 = vld [vmem:[%s183 + $0x2440] sm:$0xff]
        %v1397 = vld [vmem:[%s183 + $0x2448] sm:$0xff]
        %v1398 = vld [vmem:[%s183 + $0x2450] sm:$0xff]
        %v1399 = vld [vmem:[%s183 + $0x2458] sm:$0xff]
        %v1400 = vld [vmem:[%s183 + $0x2460] sm:$0xff]
        %v1401 = vld [vmem:[%s183 + $0x2468] sm:$0xff]
        %v1402 = vld [vmem:[%s183 + $0x2470] sm:$0xff]
        %v1403 = vld [vmem:[%s183 + $0x2478] sm:$0xff]
        %v1404 = vld [vmem:[%s183 + $0x2480] sm:$0xff]
        %v1405 = vld [vmem:[%s183 + $0x2488] sm:$0xff]
        %v1406 = vld [vmem:[%s183 + $0x2490] sm:$0xff]
        %v1407 = vld [vmem:[%s183 + $0x2498] sm:$0xff]
        %v1408 = vld [vmem:[%s183 + $0x24a0] sm:$0xff]
        %v1409 = vld [vmem:[%s183 + $0x24a8] sm:$0xff]
        %v1410 = vld [vmem:[%s183 + $0x24b0] sm:$0xff]
        %v1411 = vld [vmem:[%s183 + $0x24b8] sm:$0xff]
        %v1412 = vld [vmem:[%s183 + $0x24c0] sm:$0xff]
        %v1413 = vld [vmem:[%s183 + $0x24c8] sm:$0xff]
        %v1414 = vld [vmem:[%s183 + $0x24d0] sm:$0xff]
        %v1415 = vld [vmem:[%s183 + $0x24d8] sm:$0xff]
        %v1416 = vld [vmem:[%s183 + $0x24e0] sm:$0xff]
        %v1417 = vld [vmem:[%s183 + $0x24e8] sm:$0xff]
        %v1418 = vld [vmem:[%s183 + $0x24f0] sm:$0xff]
        %v1419 = vld [vmem:[%s183 + $0x24f8] sm:$0xff]
        %v1420 = vld [vmem:[%s183 + $0x2500] sm:$0xff]
        %v1421 = vld [vmem:[%s183 + $0x2508] sm:$0xff]
        %v1422 = vld [vmem:[%s183 + $0x2510] sm:$0xff]
        %v1423 = vld [vmem:[%s183 + $0x2518] sm:$0xff]
        %v1424 = vld [vmem:[%s183 + $0x2520] sm:$0xff]
        %v1425 = vld [vmem:[%s183 + $0x2528] sm:$0xff]
        %v1426 = vld [vmem:[%s183 + $0x2530] sm:$0xff]
        %v1427 = vld [vmem:[%s183 + $0x2538] sm:$0xff]
        %v1428 = vld [vmem:[%s183 + $0x2540] sm:$0xff]
        %v1429 = vld [vmem:[%s183 + $0x2548] sm:$0xff]
        %v1430 = vld [vmem:[%s183 + $0x2550] sm:$0xff]
        %v1431 = vld [vmem:[%s183 + $0x2558] sm:$0xff]
        %v1432 = vld [vmem:[%s183 + $0x2560] sm:$0xff]
        %v1433 = vld [vmem:[%s183 + $0x2568] sm:$0xff]
        %v1434 = vld [vmem:[%s183 + $0x2570] sm:$0xff]
        %v1435 = vld [vmem:[%s183 + $0x2578] sm:$0xff]
        %v1436 = vld [vmem:[%s183 + $0x2580] sm:$0xff]
        %v1437 = vld [vmem:[%s183 + $0x2588] sm:$0xff]
        %v1438 = vld [vmem:[%s183 + $0x2590] sm:$0xff]
        %v1439 = vld [vmem:[%s183 + $0x2598] sm:$0xff]
        %v1440 = vld [vmem:[%s183 + $0x25a0] sm:$0xff]
        %v1441 = vld [vmem:[%s183 + $0x25a8] sm:$0xff]
        %v1442 = vld [vmem:[%s183 + $0x25b0] sm:$0xff]
        %v1443 = vld [vmem:[%s183 + $0x25b8] sm:$0xff]
        %v1444 = vld [vmem:[%s183 + $0x25c0] sm:$0xff]
        %v1445 = vld [vmem:[%s183 + $0x25c8] sm:$0xff]
        %v1446 = vld [vmem:[%s183 + $0x25d0] sm:$0xff]
        %v1447 = vld [vmem:[%s183 + $0x25d8] sm:$0xff]
        %v1448 = vld [vmem:[%s183 + $0x25e0] sm:$0xff]
        %v1449 = vld [vmem:[%s183 + $0x25e8] sm:$0xff]
        %v1450 = vld [vmem:[%s183 + $0x25f0] sm:$0xff]
        %v1451 = vld [vmem:[%s183 + $0x25f8] sm:$0xff]
        %v1452 = vld [vmem:[%s183 + $0x2600] sm:$0xff]
        %v1453 = vld [vmem:[%s183 + $0x2608] sm:$0xff]
        %v1454 = vld [vmem:[%s183 + $0x2610] sm:$0xff]
        %v1455 = vld [vmem:[%s183 + $0x2618] sm:$0xff]
        %v1456 = vld [vmem:[%s183 + $0x2620] sm:$0xff]
        %v1457 = vld [vmem:[%s183 + $0x2628] sm:$0xff]
        %v1458 = vld [vmem:[%s183 + $0x2630] sm:$0xff]
        %v1459 = vld [vmem:[%s183 + $0x2638] sm:$0xff]
        %v1460 = vld [vmem:[%s183 + $0x2640] sm:$0xff]
        %v1461 = vld [vmem:[%s183 + $0x2648] sm:$0xff]
        %v1462 = vld [vmem:[%s183 + $0x2650] sm:$0xff]
        %v1463 = vld [vmem:[%s183 + $0x2658] sm:$0xff]
        %v1464 = vld [vmem:[%s183 + $0x2660] sm:$0xff]
        %v1465 = vld [vmem:[%s183 + $0x2668] sm:$0xff]
        %v1466 = vld [vmem:[%s183 + $0x2670] sm:$0xff]
        %v1467 = vld [vmem:[%s183 + $0x2678] sm:$0xff]
        %v1468 = vld [vmem:[%s183 + $0x2680] sm:$0xff]
        %v1469 = vld [vmem:[%s183 + $0x2688] sm:$0xff]
        %v1470 = vld [vmem:[%s183 + $0x2690] sm:$0xff]
        %v1471 = vld [vmem:[%s183 + $0x2698] sm:$0xff]
        %v1472 = vld [vmem:[%s183 + $0x26a0] sm:$0xff]
        %v1473 = vld [vmem:[%s183 + $0x26a8] sm:$0xff]
        %v1474 = vld [vmem:[%s183 + $0x26b0] sm:$0xff]
        %v1475 = vld [vmem:[%s183 + $0x26b8] sm:$0xff]
        %v1476 = vld [vmem:[%s183 + $0x26c0] sm:$0xff]
        %v1477 = vld [vmem:[%s183 + $0x26c8] sm:$0xff]
        %v1478 = vld [vmem:[%s183 + $0x26d0] sm:$0xff]
        %v1479 = vld [vmem:[%s183 + $0x26d8] sm:$0xff]
        %v1480 = vld [vmem:[%s183 + $0x26e0] sm:$0xff]
        %v1481 = vld [vmem:[%s183 + $0x26e8] sm:$0xff]
        %v1482 = vld [vmem:[%s183 + $0x26f0] sm:$0xff]
        %v1483 = vld [vmem:[%s183 + $0x26f8] sm:$0xff]
        %v1484 = vld [vmem:[%s183 + $0x2700] sm:$0xff]
        %v1485 = vld [vmem:[%s183 + $0x2708] sm:$0xff]
        %v1486 = vld [vmem:[%s183 + $0x2710] sm:$0xff]
        %v1487 = vld [vmem:[%s183 + $0x2718] sm:$0xff]
        %v1488 = vld [vmem:[%s183 + $0x2720] sm:$0xff]
        %v1489 = vld [vmem:[%s183 + $0x2728] sm:$0xff]
        %v1490 = vld [vmem:[%s183 + $0x2730] sm:$0xff]
        %v1491 = vld [vmem:[%s183 + $0x2738] sm:$0xff]
        %v1492 = vld [vmem:[%s183 + $0x2740] sm:$0xff]
        %v1493 = vld [vmem:[%s183 + $0x2748] sm:$0xff]
        %v1494 = vld [vmem:[%s183 + $0x2750] sm:$0xff]
        %v1495 = vld [vmem:[%s183 + $0x2758] sm:$0xff]
        %v1496 = vld [vmem:[%s183 + $0x2760] sm:$0xff]
        %v1497 = vld [vmem:[%s183 + $0x2768] sm:$0xff]
        %v1498 = vld [vmem:[%s183 + $0x2770] sm:$0xff]
        %v1499 = vld [vmem:[%s183 + $0x2778] sm:$0xff]
        %v1500 = vld [vmem:[%s183 + $0x2780] sm:$0xff]
        %v1501 = vld [vmem:[%s183 + $0x2788] sm:$0xff]
        %v1502 = vld [vmem:[%s183 + $0x2790] sm:$0xff]
        %v1503 = vld [vmem:[%s183 + $0x2798] sm:$0xff]
        %v1504 = vld [vmem:[%s183 + $0x27a0] sm:$0xff]
        %v1505 = vld [vmem:[%s183 + $0x27a8] sm:$0xff]
        %v1506 = vld [vmem:[%s183 + $0x27b0] sm:$0xff]
        %v1507 = vld [vmem:[%s183 + $0x27b8] sm:$0xff]
        %v1508 = vld [vmem:[%s183 + $0x27c0] sm:$0xff]
        %v1509 = vld [vmem:[%s183 + $0x27c8] sm:$0xff]
        %v1510 = vld [vmem:[%s183 + $0x27d0] sm:$0xff]
        %v1511 = vld [vmem:[%s183 + $0x27d8] sm:$0xff]
        %v1512 = vld [vmem:[%s183 + $0x27e0] sm:$0xff]
        %v1513 = vld [vmem:[%s183 + $0x27e8] sm:$0xff]
        %v1514 = vld [vmem:[%s183 + $0x27f0] sm:$0xff]
        %v1515 = vld [vmem:[%s183 + $0x27f8] sm:$0xff]
        %v1516 = vld [vmem:[%s183 + $0x2800] sm:$0xff]
        %v1517 = vld [vmem:[%s183 + $0x2808] sm:$0xff]
        %v1518 = vld [vmem:[%s183 + $0x2810] sm:$0xff]
        %v1519 = vld [vmem:[%s183 + $0x2818] sm:$0xff]
        %v1520 = vld [vmem:[%s183 + $0x2820] sm:$0xff]
        %v1521 = vld [vmem:[%s183 + $0x2828] sm:$0xff]
        %v1522 = vld [vmem:[%s183 + $0x2830] sm:$0xff]
        %v1523 = vld [vmem:[%s183 + $0x2838] sm:$0xff]
        %v1524 = vld [vmem:[%s183 + $0x2840] sm:$0xff]
        %v1525 = vld [vmem:[%s183 + $0x2848] sm:$0xff]
        %v1526 = vld [vmem:[%s183 + $0x2850] sm:$0xff]
        %v1527 = vld [vmem:[%s183 + $0x2858] sm:$0xff]
        %v1528 = vld [vmem:[%s183 + $0x2860] sm:$0xff]
        %v1529 = vld [vmem:[%s183 + $0x2868] sm:$0xff]
        %v1530 = vld [vmem:[%s183 + $0x2870] sm:$0xff]
        %v1531 = vld [vmem:[%s183 + $0x2878] sm:$0xff]
        %v1532 = vld [vmem:[%s183 + $0x2880] sm:$0xff]
        %v1533 = vld [vmem:[%s183 + $0x2888] sm:$0xff]
        %v1534 = vld [vmem:[%s183 + $0x2890] sm:$0xff]
        %v1535 = vld [vmem:[%s183 + $0x2898] sm:$0xff]
        %v1536 = vld [vmem:[%s183 + $0x28a0] sm:$0xff]
        %v1537 = vld [vmem:[%s183 + $0x28a8] sm:$0xff]
        %v1538 = vld [vmem:[%s183 + $0x28b0] sm:$0xff]
        %v1539 = vld [vmem:[%s183 + $0x28b8] sm:$0xff]
        %v1540 = vld [vmem:[%s183 + $0x28c0] sm:$0xff]
        %v1541 = vld [vmem:[%s183 + $0x28c8] sm:$0xff]
        %v1542 = vld [vmem:[%s183 + $0x28d0] sm:$0xff]
        %v1543 = vld [vmem:[%s183 + $0x28d8] sm:$0xff]
        %v1544 = vld [vmem:[%s183 + $0x28e0] sm:$0xff]
        %v1545 = vld [vmem:[%s183 + $0x28e8] sm:$0xff]
        %v1546 = vld [vmem:[%s183 + $0x28f0] sm:$0xff]
        %v1547 = vld [vmem:[%s183 + $0x28f8] sm:$0xff]
        %v1548 = vld [vmem:[%s183 + $0x2900] sm:$0xff]
        %v1549 = vld [vmem:[%s183 + $0x2908] sm:$0xff]
        %v1550 = vld [vmem:[%s183 + $0x2910] sm:$0xff]
        %v1551 = vld [vmem:[%s183 + $0x2918] sm:$0xff]
        %v1552 = vld [vmem:[%s183 + $0x2920] sm:$0xff]
        %v1553 = vld [vmem:[%s183 + $0x2928] sm:$0xff]
        %v1554 = vld [vmem:[%s183 + $0x2930] sm:$0xff]
        %v1555 = vld [vmem:[%s183 + $0x2938] sm:$0xff]
        %v1556 = vld [vmem:[%s183 + $0x2940] sm:$0xff]
        %v1557 = vld [vmem:[%s183 + $0x2948] sm:$0xff]
        %v1558 = vld [vmem:[%s183 + $0x2950] sm:$0xff]
        %v1559 = vld [vmem:[%s183 + $0x2958] sm:$0xff]
        %v1560 = vld [vmem:[%s183 + $0x2960] sm:$0xff]
        %v1561 = vld [vmem:[%s183 + $0x2968] sm:$0xff]
        %v1562 = vld [vmem:[%s183 + $0x2970] sm:$0xff]
        %v1563 = vld [vmem:[%s183 + $0x2978] sm:$0xff]
        %v1564 = vld [vmem:[%s183 + $0x2980] sm:$0xff]
        %v1565 = vld [vmem:[%s183 + $0x2988] sm:$0xff]
        %v1566 = vld [vmem:[%s183 + $0x2990] sm:$0xff]
        %v1567 = vld [vmem:[%s183 + $0x2998] sm:$0xff]
        %v1568 = vld [vmem:[%s183 + $0x29a0] sm:$0xff]
        %v1569 = vld [vmem:[%s183 + $0x29a8] sm:$0xff]
        %v1570 = vld [vmem:[%s183 + $0x29b0] sm:$0xff]
        %v1571 = vld [vmem:[%s183 + $0x29b8] sm:$0xff]
        %v1572 = vld [vmem:[%s183 + $0x29c0] sm:$0xff]
        %v1573 = vld [vmem:[%s183 + $0x29c8] sm:$0xff]
        %v1574 = vld [vmem:[%s183 + $0x29d0] sm:$0xff]
        %v1575 = vld [vmem:[%s183 + $0x29d8] sm:$0xff]
        %v1576 = vld [vmem:[%s183 + $0x29e0] sm:$0xff]
        %v1577 = vld [vmem:[%s183 + $0x29e8] sm:$0xff]
        %v1578 = vld [vmem:[%s183 + $0x29f0] sm:$0xff]
        %v1579 = vld [vmem:[%s183 + $0x29f8] sm:$0xff]
        %v1580 = vld [vmem:[%s192] sm:$0xff]
        %v1581 = vld [vmem:[%s192 + $0x8] sm:$0xff]
        %v1582 = vld [vmem:[%s192 + $0x10] sm:$0xff]
        %v1583 = vld [vmem:[%s192 + $0x18] sm:$0xff]
        %v1584 = vld [vmem:[%s192 + $0x20] sm:$0xff]
        %v1585 = vld [vmem:[%s192 + $0x28] sm:$0xff]
        %v1586 = vld [vmem:[%s192 + $0x30] sm:$0xff]
        %v1587 = vld [vmem:[%s192 + $0x38] sm:$0xff]
        %v1588 = vld [vmem:[%s192 + $0x40] sm:$0xff]
        %v1589 = vld [vmem:[%s192 + $0x48] sm:$0xff]
        %v1590 = vld [vmem:[%s192 + $0x50] sm:$0xff]
        %v1591 = vld [vmem:[%s192 + $0x58] sm:$0xff]
        %v1592 = vld [vmem:[%s192 + $0x60] sm:$0xff]
        %v1593 = vld [vmem:[%s192 + $0x68] sm:$0xff]
        %v1594 = vld [vmem:[%s192 + $0x70] sm:$0xff]
        %v1595 = vld [vmem:[%s192 + $0x78] sm:$0xff]
        %v1596 = vld [vmem:[%s192 + $0x80] sm:$0xff]
        %v1597 = vld [vmem:[%s192 + $0x88] sm:$0xff]
        %v1598 = vld [vmem:[%s192 + $0x90] sm:$0xff]
        %v1599 = vld [vmem:[%s192 + $0x98] sm:$0xff]
        %v1600 = vld [vmem:[%s192 + $0xa0] sm:$0xff]
        %v1601 = vld [vmem:[%s192 + $0xa8] sm:$0xff]
        %v1602 = vld [vmem:[%s192 + $0xb0] sm:$0xff]
        %v1603 = vld [vmem:[%s192 + $0xb8] sm:$0xff]
        %v1604 = vld [vmem:[%s192 + $0xc0] sm:$0xff]
        %v1605 = vld [vmem:[%s192 + $0xc8] sm:$0xff]
        %v1606 = vld [vmem:[%s192 + $0xd0] sm:$0xff]
        %v1607 = vld [vmem:[%s192 + $0xd8] sm:$0xff]
        %v1608 = vld [vmem:[%s192 + $0xe0] sm:$0xff]
        %v1609 = vld [vmem:[%s192 + $0xe8] sm:$0xff]
        %v1610 = vld [vmem:[%s192 + $0xf0] sm:$0xff]
        %v1611 = vld [vmem:[%s192 + $0xf8] sm:$0xff]
        %v1612 = vld [vmem:[%s192 + $0x100] sm:$0xff]
        %v1613 = vld [vmem:[%s192 + $0x108] sm:$0xff]
        %v1614 = vld [vmem:[%s192 + $0x110] sm:$0xff]
        %v1615 = vld [vmem:[%s192 + $0x118] sm:$0xff]
        %v1616 = vld [vmem:[%s192 + $0x120] sm:$0xff]
        %v1617 = vld [vmem:[%s192 + $0x128] sm:$0xff]
        %v1618 = vld [vmem:[%s192 + $0x130] sm:$0xff]
        %v1619 = vld [vmem:[%s192 + $0x138] sm:$0xff]
        %v1620 = vld [vmem:[%s192 + $0x140] sm:$0xff]
        %v1621 = vld [vmem:[%s192 + $0x148] sm:$0xff]
        %v1622 = vld [vmem:[%s192 + $0x150] sm:$0xff]
        %v1623 = vld [vmem:[%s192 + $0x158] sm:$0xff]
        %v1624 = vld [vmem:[%s192 + $0x160] sm:$0xff]
        %v1625 = vld [vmem:[%s192 + $0x168] sm:$0xff]
        %v1626 = vld [vmem:[%s192 + $0x170] sm:$0xff]
        %v1627 = vld [vmem:[%s192 + $0x178] sm:$0xff]
        %v1628 = vld [vmem:[%s192 + $0x180] sm:$0xff]
        %v1629 = vld [vmem:[%s192 + $0x188] sm:$0xff]
        %v1630 = vld [vmem:[%s192 + $0x190] sm:$0xff]
        %v1631 = vld [vmem:[%s192 + $0x198] sm:$0xff]
        %v1632 = vld [vmem:[%s192 + $0x1a0] sm:$0xff]
        %v1633 = vld [vmem:[%s192 + $0x1a8] sm:$0xff]
        %v1634 = vld [vmem:[%s192 + $0x1b0] sm:$0xff]
        %v1635 = vld [vmem:[%s192 + $0x1b8] sm:$0xff]
        %v1636 = vld [vmem:[%s192 + $0x1c0] sm:$0xff]
        %v1637 = vld [vmem:[%s192 + $0x1c8] sm:$0xff]
        %v1638 = vld [vmem:[%s192 + $0x1d0] sm:$0xff]
        %v1639 = vld [vmem:[%s192 + $0x1d8] sm:$0xff]
        %v1640 = vld [vmem:[%s192 + $0x1e0] sm:$0xff]
        %v1641 = vld [vmem:[%s192 + $0x1e8] sm:$0xff]
        %v1642 = vld [vmem:[%s192 + $0x1f0] sm:$0xff]
        %v1643 = vld [vmem:[%s192 + $0x1f8] sm:$0xff]
        %v1644 = vld [vmem:[%s192 + $0x200] sm:$0xff]
        %v1645 = vld [vmem:[%s192 + $0x208] sm:$0xff]
        %v1646 = vld [vmem:[%s192 + $0x210] sm:$0xff]
        %v1647 = vld [vmem:[%s192 + $0x218] sm:$0xff]
        %v1648 = vld [vmem:[%s192 + $0x220] sm:$0xff]
        %v1649 = vld [vmem:[%s192 + $0x228] sm:$0xff]
        %v1650 = vld [vmem:[%s192 + $0x230] sm:$0xff]
        %v1651 = vld [vmem:[%s192 + $0x238] sm:$0xff]
        %v1652 = vld [vmem:[%s192 + $0x240] sm:$0xff]
        %v1653 = vld [vmem:[%s192 + $0x248] sm:$0xff]
        %v1654 = vld [vmem:[%s192 + $0x250] sm:$0xff]
        %v1655 = vld [vmem:[%s192 + $0x258] sm:$0xff]
        %v1656 = vld [vmem:[%s192 + $0x260] sm:$0xff]
        %v1657 = vld [vmem:[%s192 + $0x268] sm:$0xff]
        %v1658 = vld [vmem:[%s192 + $0x270] sm:$0xff]
        %v1659 = vld [vmem:[%s192 + $0x278] sm:$0xff]
        %v1660 = vld [vmem:[%s192 + $0x280] sm:$0xff]
        %v1661 = vld [vmem:[%s192 + $0x288] sm:$0xff]
        %v1662 = vld [vmem:[%s192 + $0x290] sm:$0xff]
        %v1663 = vld [vmem:[%s192 + $0x298] sm:$0xff]
        %v1664 = vld [vmem:[%s192 + $0x2a0] sm:$0xff]
        %v1665 = vld [vmem:[%s192 + $0x2a8] sm:$0xff]
        %v1666 = vld [vmem:[%s192 + $0x2b0] sm:$0xff]
        %v1667 = vld [vmem:[%s192 + $0x2b8] sm:$0xff]
        %v1668 = vld [vmem:[%s192 + $0x2c0] sm:$0xff]
        %v1669 = vld [vmem:[%s192 + $0x2c8] sm:$0xff]
        %v1670 = vld [vmem:[%s192 + $0x2d0] sm:$0xff]
        %v1671 = vld [vmem:[%s192 + $0x2d8] sm:$0xff]
        %v1672 = vld [vmem:[%s192 + $0x2e0] sm:$0xff]
        %v1673 = vld [vmem:[%s192 + $0x2e8] sm:$0xff]
        %v1674 = vld [vmem:[%s192 + $0x2f0] sm:$0xff]
        %v1675 = vld [vmem:[%s192 + $0x2f8] sm:$0xff]
        %v1676 = vld [vmem:[%s192 + $0x300] sm:$0xff]
        %v1677 = vld [vmem:[%s192 + $0x308] sm:$0xff]
        %v1678 = vld [vmem:[%s192 + $0x310] sm:$0xff]
        %v1679 = vld [vmem:[%s192 + $0x318] sm:$0xff]
        %v1680 = vld [vmem:[%s192 + $0x320] sm:$0xff]
        %v1681 = vld [vmem:[%s192 + $0x328] sm:$0xff]
        %v1682 = vld [vmem:[%s192 + $0x330] sm:$0xff]
        %v1683 = vld [vmem:[%s192 + $0x338] sm:$0xff]
        %v1684 = vld [vmem:[%s192 + $0x340] sm:$0xff]
        %v1685 = vld [vmem:[%s192 + $0x348] sm:$0xff]
        %v1686 = vld [vmem:[%s192 + $0x350] sm:$0xff]
        %v1687 = vld [vmem:[%s192 + $0x358] sm:$0xff]
        %v1688 = vld [vmem:[%s192 + $0x360] sm:$0xff]
        %v1689 = vld [vmem:[%s192 + $0x368] sm:$0xff]
        %v1690 = vld [vmem:[%s192 + $0x370] sm:$0xff]
        %v1691 = vld [vmem:[%s192 + $0x378] sm:$0xff]
        %v1692 = vld [vmem:[%s192 + $0x380] sm:$0xff]
        %v1693 = vld [vmem:[%s192 + $0x388] sm:$0xff]
        %v1694 = vld [vmem:[%s192 + $0x390] sm:$0xff]
        %v1695 = vld [vmem:[%s192 + $0x398] sm:$0xff]
        %v1696 = vld [vmem:[%s192 + $0x3a0] sm:$0xff]
        %v1697 = vld [vmem:[%s192 + $0x3a8] sm:$0xff]
        %v1698 = vld [vmem:[%s192 + $0x3b0] sm:$0xff]
        %v1699 = vld [vmem:[%s192 + $0x3b8] sm:$0xff]
        %v1700 = vld [vmem:[%s192 + $0x3c0] sm:$0xff]
        %v1701 = vld [vmem:[%s192 + $0x3c8] sm:$0xff]
        %v1702 = vld [vmem:[%s192 + $0x3d0] sm:$0xff]
        %v1703 = vld [vmem:[%s192 + $0x3d8] sm:$0xff]
        %v1704 = vld [vmem:[%s192 + $0x3e0] sm:$0xff]
        %v1705 = vld [vmem:[%s192 + $0x3e8] sm:$0xff]
        %v1706 = vld [vmem:[%s192 + $0x3f0] sm:$0xff]
        %v1707 = vld [vmem:[%s192 + $0x3f8] sm:$0xff]
        %v1708 = vld [vmem:[%s192 + $0x400] sm:$0xff]
        %v1709 = vld [vmem:[%s192 + $0x408] sm:$0xff]
        %v1710 = vld [vmem:[%s192 + $0x410] sm:$0xff]
        %v1711 = vld [vmem:[%s192 + $0x418] sm:$0xff]
        %v1712 = vld [vmem:[%s192 + $0x420] sm:$0xff]
        %v1713 = vld [vmem:[%s192 + $0x428] sm:$0xff]
        %v1714 = vld [vmem:[%s192 + $0x430] sm:$0xff]
        %v1715 = vld [vmem:[%s192 + $0x438] sm:$0xff]
        %v1716 = vld [vmem:[%s192 + $0x440] sm:$0xff]
        %v1717 = vld [vmem:[%s192 + $0x448] sm:$0xff]
        %v1718 = vld [vmem:[%s192 + $0x450] sm:$0xff]
        %v1719 = vld [vmem:[%s192 + $0x458] sm:$0xff]
        %v1720 = vld [vmem:[%s192 + $0x460] sm:$0xff]
        %v1721 = vld [vmem:[%s192 + $0x468] sm:$0xff]
        %v1722 = vld [vmem:[%s192 + $0x470] sm:$0xff]
        %v1723 = vld [vmem:[%s192 + $0x478] sm:$0xff]
        %v1724 = vld [vmem:[%s192 + $0x480] sm:$0xff]
        %v1725 = vld [vmem:[%s192 + $0x488] sm:$0xff]
        %v1726 = vld [vmem:[%s192 + $0x490] sm:$0xff]
        %v1727 = vld [vmem:[%s192 + $0x498] sm:$0xff]
        %v1728 = vld [vmem:[%s192 + $0x4a0] sm:$0xff]
        %v1729 = vld [vmem:[%s192 + $0x4a8] sm:$0xff]
        %v1730 = vld [vmem:[%s192 + $0x4b0] sm:$0xff]
        %v1731 = vld [vmem:[%s192 + $0x4b8] sm:$0xff]
        %v1732 = vld [vmem:[%s192 + $0x4c0] sm:$0xff]
        %v1733 = vld [vmem:[%s192 + $0x4c8] sm:$0xff]
        %v1734 = vld [vmem:[%s192 + $0x4d0] sm:$0xff]
        %v1735 = vld [vmem:[%s192 + $0x4d8] sm:$0xff]
        %v1736 = vld [vmem:[%s192 + $0x4e0] sm:$0xff]
        %v1737 = vld [vmem:[%s192 + $0x4e8] sm:$0xff]
        %v1738 = vld [vmem:[%s192 + $0x4f0] sm:$0xff]
        %v1739 = vld [vmem:[%s192 + $0x4f8] sm:$0xff]
        %v1740 = vld [vmem:[%s192 + $0x500] sm:$0xff]
        %v1741 = vld [vmem:[%s192 + $0x508] sm:$0xff]
        %v1742 = vld [vmem:[%s192 + $0x510] sm:$0xff]
        %v1743 = vld [vmem:[%s192 + $0x518] sm:$0xff]
        %v1744 = vld [vmem:[%s192 + $0x520] sm:$0xff]
        %v1745 = vld [vmem:[%s192 + $0x528] sm:$0xff]
        %v1746 = vld [vmem:[%s192 + $0x530] sm:$0xff]
        %v1747 = vld [vmem:[%s192 + $0x538] sm:$0xff]
        %v1748 = vld [vmem:[%s192 + $0x540] sm:$0xff]
        %v1749 = vld [vmem:[%s192 + $0x548] sm:$0xff]
        %v1750 = vld [vmem:[%s192 + $0x550] sm:$0xff]
        %v1751 = vld [vmem:[%s192 + $0x558] sm:$0xff]
        %v1752 = vld [vmem:[%s192 + $0x560] sm:$0xff]
        %v1753 = vld [vmem:[%s192 + $0x568] sm:$0xff]
        %v1754 = vld [vmem:[%s192 + $0x570] sm:$0xff]
        %v1755 = vld [vmem:[%s192 + $0x578] sm:$0xff]
        %v1756 = vld [vmem:[%s192 + $0x580] sm:$0xff]
        %v1757 = vld [vmem:[%s192 + $0x588] sm:$0xff]
        %v1758 = vld [vmem:[%s192 + $0x590] sm:$0xff]
        %v1759 = vld [vmem:[%s192 + $0x598] sm:$0xff]
        %v1760 = vld [vmem:[%s192 + $0x5a0] sm:$0xff]
        %v1761 = vld [vmem:[%s192 + $0x5a8] sm:$0xff]
        %v1762 = vld [vmem:[%s192 + $0x5b0] sm:$0xff]
        %v1763 = vld [vmem:[%s192 + $0x5b8] sm:$0xff]
        %v1764 = vld [vmem:[%s192 + $0x5c0] sm:$0xff]
        %v1765 = vld [vmem:[%s192 + $0x5c8] sm:$0xff]
        %v1766 = vld [vmem:[%s192 + $0x5d0] sm:$0xff]
        %v1767 = vld [vmem:[%s192 + $0x5d8] sm:$0xff]
        %v1768 = vld [vmem:[%s192 + $0x5e0] sm:$0xff]
        %v1769 = vld [vmem:[%s192 + $0x5e8] sm:$0xff]
        %v1770 = vld [vmem:[%s192 + $0x5f0] sm:$0xff]
        %v1771 = vld [vmem:[%s192 + $0x5f8] sm:$0xff]
        %v1772 = vld [vmem:[%s192 + $0x600] sm:$0xff]
        %v1773 = vld [vmem:[%s192 + $0x608] sm:$0xff]
        %v1774 = vld [vmem:[%s192 + $0x610] sm:$0xff]
        %v1775 = vld [vmem:[%s192 + $0x618] sm:$0xff]
        %v1776 = vld [vmem:[%s192 + $0x620] sm:$0xff]
        %v1777 = vld [vmem:[%s192 + $0x628] sm:$0xff]
        %v1778 = vld [vmem:[%s192 + $0x630] sm:$0xff]
        %v1779 = vld [vmem:[%s192 + $0x638] sm:$0xff]
        %v1780 = vld [vmem:[%s192 + $0x640] sm:$0xff]
        %v1781 = vld [vmem:[%s192 + $0x648] sm:$0xff]
        %v1782 = vld [vmem:[%s192 + $0x650] sm:$0xff]
        %v1783 = vld [vmem:[%s192 + $0x658] sm:$0xff]
        %v1784 = vld [vmem:[%s192 + $0x660] sm:$0xff]
        %v1785 = vld [vmem:[%s192 + $0x668] sm:$0xff]
        %v1786 = vld [vmem:[%s192 + $0x670] sm:$0xff]
        %v1787 = vld [vmem:[%s192 + $0x678] sm:$0xff]
        %v1788 = vld [vmem:[%s192 + $0x680] sm:$0xff]
        %v1789 = vld [vmem:[%s192 + $0x688] sm:$0xff]
        %v1790 = vld [vmem:[%s192 + $0x690] sm:$0xff]
        %v1791 = vld [vmem:[%s192 + $0x698] sm:$0xff]
        %v1792 = vld [vmem:[%s192 + $0x6a0] sm:$0xff]
        %v1793 = vld [vmem:[%s192 + $0x6a8] sm:$0xff]
        %v1794 = vld [vmem:[%s192 + $0x6b0] sm:$0xff]
        %v1795 = vld [vmem:[%s192 + $0x6b8] sm:$0xff]
        %v1796 = vld [vmem:[%s192 + $0x6c0] sm:$0xff]
        %v1797 = vld [vmem:[%s192 + $0x6c8] sm:$0xff]
        %v1798 = vld [vmem:[%s192 + $0x6d0] sm:$0xff]
        %v1799 = vld [vmem:[%s192 + $0x6d8] sm:$0xff]
        %v1800 = vld [vmem:[%s192 + $0x6e0] sm:$0xff]
        %v1801 = vld [vmem:[%s192 + $0x6e8] sm:$0xff]
        %v1802 = vld [vmem:[%s192 + $0x6f0] sm:$0xff]
        %v1803 = vld [vmem:[%s192 + $0x6f8] sm:$0xff]
        %v1804 = vld [vmem:[%s192 + $0x700] sm:$0xff]
        %v1805 = vld [vmem:[%s192 + $0x708] sm:$0xff]
        %v1806 = vld [vmem:[%s192 + $0x710] sm:$0xff]
        %v1807 = vld [vmem:[%s192 + $0x718] sm:$0xff]
        %v1808 = vld [vmem:[%s192 + $0x720] sm:$0xff]
        %v1809 = vld [vmem:[%s192 + $0x728] sm:$0xff]
        %v1810 = vld [vmem:[%s192 + $0x730] sm:$0xff]
        %v1811 = vld [vmem:[%s192 + $0x738] sm:$0xff]
        %v1812 = vld [vmem:[%s192 + $0x740] sm:$0xff]
        %v1813 = vld [vmem:[%s192 + $0x748] sm:$0xff]
        %v1814 = vld [vmem:[%s192 + $0x750] sm:$0xff]
        %v1815 = vld [vmem:[%s192 + $0x758] sm:$0xff]
        %v1816 = vld [vmem:[%s192 + $0x760] sm:$0xff]
        %v1817 = vld [vmem:[%s192 + $0x768] sm:$0xff]
        %v1818 = vld [vmem:[%s192 + $0x770] sm:$0xff]
        %v1819 = vld [vmem:[%s192 + $0x778] sm:$0xff]
        %v1820 = vld [vmem:[%s192 + $0x780] sm:$0xff]
        %v1821 = vld [vmem:[%s192 + $0x788] sm:$0xff]
        %v1822 = vld [vmem:[%s192 + $0x790] sm:$0xff]
        %v1823 = vld [vmem:[%s192 + $0x798] sm:$0xff]
        %v1824 = vld [vmem:[%s192 + $0x7a0] sm:$0xff]
        %v1825 = vld [vmem:[%s192 + $0x7a8] sm:$0xff]
        %v1826 = vld [vmem:[%s192 + $0x7b0] sm:$0xff]
        %v1827 = vld [vmem:[%s192 + $0x7b8] sm:$0xff]
        %v1828 = vld [vmem:[%s192 + $0x7c0] sm:$0xff]
        %v1829 = vld [vmem:[%s192 + $0x7c8] sm:$0xff]
        %v1830 = vld [vmem:[%s192 + $0x7d0] sm:$0xff]
        %v1831 = vld [vmem:[%s192 + $0x7d8] sm:$0xff]
        %v1832 = vld [vmem:[%s192 + $0x7e0] sm:$0xff]
        %v1833 = vld [vmem:[%s192 + $0x7e8] sm:$0xff]
        %v1834 = vld [vmem:[%s192 + $0x7f0] sm:$0xff]
        %v1835 = vld [vmem:[%s192 + $0x7f8] sm:$0xff]
        %v1836 = vld [vmem:[%s192 + $0x800] sm:$0xff]
        %v1837 = vld [vmem:[%s192 + $0x808] sm:$0xff]
        %v1838 = vld [vmem:[%s192 + $0x810] sm:$0xff]
        %v1839 = vld [vmem:[%s192 + $0x818] sm:$0xff]
        %v1840 = vld [vmem:[%s192 + $0x820] sm:$0xff]
        %v1841 = vld [vmem:[%s192 + $0x828] sm:$0xff]
        %v1842 = vld [vmem:[%s192 + $0x830] sm:$0xff]
        %v1843 = vld [vmem:[%s192 + $0x838] sm:$0xff]
        %v1844 = vld [vmem:[%s192 + $0x840] sm:$0xff]
        %v1845 = vld [vmem:[%s192 + $0x848] sm:$0xff]
        %v1846 = vld [vmem:[%s192 + $0x850] sm:$0xff]
        %v1847 = vld [vmem:[%s192 + $0x858] sm:$0xff]
        %v1848 = vld [vmem:[%s192 + $0x860] sm:$0xff]
        %v1849 = vld [vmem:[%s192 + $0x868] sm:$0xff]
        %v1850 = vld [vmem:[%s192 + $0x870] sm:$0xff]
        %v1851 = vld [vmem:[%s192 + $0x878] sm:$0xff]
        %v1852 = vld [vmem:[%s192 + $0x880] sm:$0xff]
        %v1853 = vld [vmem:[%s192 + $0x888] sm:$0xff]
        %v1854 = vld [vmem:[%s192 + $0x890] sm:$0xff]
        %v1855 = vld [vmem:[%s192 + $0x898] sm:$0xff]
        %v1856 = vld [vmem:[%s192 + $0x8a0] sm:$0xff]
        %v1857 = vld [vmem:[%s192 + $0x8a8] sm:$0xff]
        %v1858 = vld [vmem:[%s192 + $0x8b0] sm:$0xff]
        %v1859 = vld [vmem:[%s192 + $0x8b8] sm:$0xff]
        %v1860 = vld [vmem:[%s192 + $0x8c0] sm:$0xff]
        %v1861 = vld [vmem:[%s192 + $0x8c8] sm:$0xff]
        %v1862 = vld [vmem:[%s192 + $0x8d0] sm:$0xff]
        %v1863 = vld [vmem:[%s192 + $0x8d8] sm:$0xff]
        %v1864 = vld [vmem:[%s192 + $0x8e0] sm:$0xff]
        %v1865 = vld [vmem:[%s192 + $0x8e8] sm:$0xff]
        %v1866 = vld [vmem:[%s192 + $0x8f0] sm:$0xff]
        %v1867 = vld [vmem:[%s192 + $0x8f8] sm:$0xff]
        %v1868 = vld [vmem:[%s192 + $0x900] sm:$0xff]
        %v1869 = vld [vmem:[%s192 + $0x908] sm:$0xff]
        %v1870 = vld [vmem:[%s192 + $0x910] sm:$0xff]
        %v1871 = vld [vmem:[%s192 + $0x918] sm:$0xff]
        %v1872 = vld [vmem:[%s192 + $0x920] sm:$0xff]
        %v1873 = vld [vmem:[%s192 + $0x928] sm:$0xff]
        %v1874 = vld [vmem:[%s192 + $0x930] sm:$0xff]
        %v1875 = vld [vmem:[%s192 + $0x938] sm:$0xff]
        %v1876 = vld [vmem:[%s192 + $0x940] sm:$0xff]
        %v1877 = vld [vmem:[%s192 + $0x948] sm:$0xff]
        %v1878 = vld [vmem:[%s192 + $0x950] sm:$0xff]
        %v1879 = vld [vmem:[%s192 + $0x958] sm:$0xff]
        %v1880 = vld [vmem:[%s192 + $0x960] sm:$0xff]
        %v1881 = vld [vmem:[%s192 + $0x968] sm:$0xff]
        %v1882 = vld [vmem:[%s192 + $0x970] sm:$0xff]
        %v1883 = vld [vmem:[%s192 + $0x978] sm:$0xff]
        %v1884 = vld [vmem:[%s192 + $0x980] sm:$0xff]
        %v1885 = vld [vmem:[%s192 + $0x988] sm:$0xff]
        %v1886 = vld [vmem:[%s192 + $0x990] sm:$0xff]
        %v1887 = vld [vmem:[%s192 + $0x998] sm:$0xff]
        %v1888 = vld [vmem:[%s192 + $0x9a0] sm:$0xff]
        %v1889 = vld [vmem:[%s192 + $0x9a8] sm:$0xff]
        %v1890 = vld [vmem:[%s192 + $0x9b0] sm:$0xff]
        %v1891 = vld [vmem:[%s192 + $0x9b8] sm:$0xff]
        %v1892 = vld [vmem:[%s192 + $0x9c0] sm:$0xff]
        %v1893 = vld [vmem:[%s192 + $0x9c8] sm:$0xff]
        %v1894 = vld [vmem:[%s192 + $0x9d0] sm:$0xff]
        %v1895 = vld [vmem:[%s192 + $0x9d8] sm:$0xff]
        %v1896 = vld [vmem:[%s192 + $0x9e0] sm:$0xff]
        %v1897 = vld [vmem:[%s192 + $0x9e8] sm:$0xff]
        %v1898 = vld [vmem:[%s192 + $0x9f0] sm:$0xff]
        %v1899 = vld [vmem:[%s192 + $0x9f8] sm:$0xff]
        %v1900 = vld [vmem:[%s192 + $0xa00] sm:$0xff]
        %v1901 = vld [vmem:[%s192 + $0xa08] sm:$0xff]
        %v1902 = vld [vmem:[%s192 + $0xa10] sm:$0xff]
        %v1903 = vld [vmem:[%s192 + $0xa18] sm:$0xff]
        %v1904 = vld [vmem:[%s192 + $0xa20] sm:$0xff]
        %v1905 = vld [vmem:[%s192 + $0xa28] sm:$0xff]
        %v1906 = vld [vmem:[%s192 + $0xa30] sm:$0xff]
        %v1907 = vld [vmem:[%s192 + $0xa38] sm:$0xff]
        %v1908 = vld [vmem:[%s192 + $0xa40] sm:$0xff]
        %v1909 = vld [vmem:[%s192 + $0xa48] sm:$0xff]
        %v1910 = vld [vmem:[%s192 + $0xa50] sm:$0xff]
        %v1911 = vld [vmem:[%s192 + $0xa58] sm:$0xff]
        %v1912 = vld [vmem:[%s192 + $0xa60] sm:$0xff]
        %v1913 = vld [vmem:[%s192 + $0xa68] sm:$0xff]
        %v1914 = vld [vmem:[%s192 + $0xa70] sm:$0xff]
        %v1915 = vld [vmem:[%s192 + $0xa78] sm:$0xff]
        %v1916 = vld [vmem:[%s192 + $0xa80] sm:$0xff]
        %v1917 = vld [vmem:[%s192 + $0xa88] sm:$0xff]
        %v1918 = vld [vmem:[%s192 + $0xa90] sm:$0xff]
        %v1919 = vld [vmem:[%s192 + $0xa98] sm:$0xff]
        %v1920 = vld [vmem:[%s192 + $0xaa0] sm:$0xff]
        %v1921 = vld [vmem:[%s192 + $0xaa8] sm:$0xff]
        %v1922 = vld [vmem:[%s192 + $0xab0] sm:$0xff]
        %v1923 = vld [vmem:[%s192 + $0xab8] sm:$0xff]
        %v1924 = vld [vmem:[%s192 + $0xac0] sm:$0xff]
        %v1925 = vld [vmem:[%s192 + $0xac8] sm:$0xff]
        %v1926 = vld [vmem:[%s192 + $0xad0] sm:$0xff]
        %v1927 = vld [vmem:[%s192 + $0xad8] sm:$0xff]
        %v1928 = vld [vmem:[%s192 + $0xae0] sm:$0xff]
        %v1929 = vld [vmem:[%s192 + $0xae8] sm:$0xff]
        %v1930 = vld [vmem:[%s192 + $0xaf0] sm:$0xff]
        %v1931 = vld [vmem:[%s192 + $0xaf8] sm:$0xff]
        %v1932 = vld [vmem:[%s192 + $0xb00] sm:$0xff]
        %v1933 = vld [vmem:[%s192 + $0xb08] sm:$0xff]
        %v1934 = vld [vmem:[%s192 + $0xb10] sm:$0xff]
        %v1935 = vld [vmem:[%s192 + $0xb18] sm:$0xff]
        %v1936 = vld [vmem:[%s192 + $0xb20] sm:$0xff]
        %v1937 = vld [vmem:[%s192 + $0xb28] sm:$0xff]
        %v1938 = vld [vmem:[%s192 + $0xb30] sm:$0xff]
        %v1939 = vld [vmem:[%s192 + $0xb38] sm:$0xff]
        %v1940 = vld [vmem:[%s192 + $0xb40] sm:$0xff]
        %v1941 = vld [vmem:[%s192 + $0xb48] sm:$0xff]
        %v1942 = vld [vmem:[%s192 + $0xb50] sm:$0xff]
        %v1943 = vld [vmem:[%s192 + $0xb58] sm:$0xff]
        %v1944 = vld [vmem:[%s192 + $0xb60] sm:$0xff]
        %v1945 = vld [vmem:[%s192 + $0xb68] sm:$0xff]
        %v1946 = vld [vmem:[%s192 + $0xb70] sm:$0xff]
        %v1947 = vld [vmem:[%s192 + $0xb78] sm:$0xff]
        %v1948 = vld [vmem:[%s192 + $0xb80] sm:$0xff]
        %v1949 = vld [vmem:[%s192 + $0xb88] sm:$0xff]
        %v1950 = vld [vmem:[%s192 + $0xb90] sm:$0xff]
        %v1951 = vld [vmem:[%s192 + $0xb98] sm:$0xff]
        %v1952 = vld [vmem:[%s192 + $0xba0] sm:$0xff]
        %v1953 = vld [vmem:[%s192 + $0xba8] sm:$0xff]
        %v1954 = vld [vmem:[%s192 + $0xbb0] sm:$0xff]
        %v1955 = vld [vmem:[%s192 + $0xbb8] sm:$0xff]
        %v1956 = vld [vmem:[%s192 + $0xbc0] sm:$0xff]
        %v1957 = vld [vmem:[%s192 + $0xbc8] sm:$0xff]
        %v1958 = vld [vmem:[%s192 + $0xbd0] sm:$0xff]
        %v1959 = vld [vmem:[%s192 + $0xbd8] sm:$0xff]
        %v1960 = vld [vmem:[%s192 + $0xbe0] sm:$0xff]
        %v1961 = vld [vmem:[%s192 + $0xbe8] sm:$0xff]
        %v1962 = vld [vmem:[%s192 + $0xbf0] sm:$0xff]
        %v1963 = vld [vmem:[%s192 + $0xbf8] sm:$0xff]
        %v1964 = vld [vmem:[%s192 + $0xc00] sm:$0xff]
        %v1965 = vld [vmem:[%s192 + $0xc08] sm:$0xff]
        %v1966 = vld [vmem:[%s192 + $0xc10] sm:$0xff]
        %v1967 = vld [vmem:[%s192 + $0xc18] sm:$0xff]
        %v1968 = vld [vmem:[%s192 + $0xc20] sm:$0xff]
        %v1969 = vld [vmem:[%s192 + $0xc28] sm:$0xff]
        %v1970 = vld [vmem:[%s192 + $0xc30] sm:$0xff]
        %v1971 = vld [vmem:[%s192 + $0xc38] sm:$0xff]
        %v1972 = vld [vmem:[%s192 + $0xc40] sm:$0xff]
        %v1973 = vld [vmem:[%s192 + $0xc48] sm:$0xff]
        %v1974 = vld [vmem:[%s192 + $0xc50] sm:$0xff]
        %v1975 = vld [vmem:[%s192 + $0xc58] sm:$0xff]
        %v1976 = vld [vmem:[%s192 + $0xc60] sm:$0xff]
        %v1977 = vld [vmem:[%s192 + $0xc68] sm:$0xff]
        %v1978 = vld [vmem:[%s192 + $0xc70] sm:$0xff]
        %v1979 = vld [vmem:[%s192 + $0xc78] sm:$0xff]
        %v1980 = vld [vmem:[%s192 + $0xc80] sm:$0xff]
        %v1981 = vld [vmem:[%s192 + $0xc88] sm:$0xff]
        %v1982 = vld [vmem:[%s192 + $0xc90] sm:$0xff]
        %v1983 = vld [vmem:[%s192 + $0xc98] sm:$0xff]
        %v1984 = vld [vmem:[%s192 + $0xca0] sm:$0xff]
        %v1985 = vld [vmem:[%s192 + $0xca8] sm:$0xff]
        %v1986 = vld [vmem:[%s192 + $0xcb0] sm:$0xff]
        %v1987 = vld [vmem:[%s192 + $0xcb8] sm:$0xff]
        %v1988 = vld [vmem:[%s192 + $0xcc0] sm:$0xff]
        %v1989 = vld [vmem:[%s192 + $0xcc8] sm:$0xff]
        %v1990 = vld [vmem:[%s192 + $0xcd0] sm:$0xff]
        %v1991 = vld [vmem:[%s192 + $0xcd8] sm:$0xff]
        %v1992 = vld [vmem:[%s192 + $0xce0] sm:$0xff]
        %v1993 = vld [vmem:[%s192 + $0xce8] sm:$0xff]
        %v1994 = vld [vmem:[%s192 + $0xcf0] sm:$0xff]
        %v1995 = vld [vmem:[%s192 + $0xcf8] sm:$0xff]
        %v1996 = vld [vmem:[%s192 + $0xd00] sm:$0xff]
        %v1997 = vld [vmem:[%s192 + $0xd08] sm:$0xff]
        %v1998 = vld [vmem:[%s192 + $0xd10] sm:$0xff]
        %v1999 = vld [vmem:[%s192 + $0xd18] sm:$0xff]
        %v2000 = vld [vmem:[%s192 + $0xd20] sm:$0xff]
        %v2001 = vld [vmem:[%s192 + $0xd28] sm:$0xff]
        %v2002 = vld [vmem:[%s192 + $0xd30] sm:$0xff]
        %v2003 = vld [vmem:[%s192 + $0xd38] sm:$0xff]
        %v2004 = vld [vmem:[%s192 + $0xd40] sm:$0xff]
        %v2005 = vld [vmem:[%s192 + $0xd48] sm:$0xff]
        %v2006 = vld [vmem:[%s192 + $0xd50] sm:$0xff]
        %v2007 = vld [vmem:[%s192 + $0xd58] sm:$0xff]
        %v2008 = vld [vmem:[%s192 + $0xd60] sm:$0xff]
        %v2009 = vld [vmem:[%s192 + $0xd68] sm:$0xff]
        %v2010 = vld [vmem:[%s192 + $0xd70] sm:$0xff]
        %v2011 = vld [vmem:[%s192 + $0xd78] sm:$0xff]
        %v2012 = vld [vmem:[%s192 + $0xd80] sm:$0xff]
        %v2013 = vld [vmem:[%s192 + $0xd88] sm:$0xff]
        %v2014 = vld [vmem:[%s192 + $0xd90] sm:$0xff]
        %v2015 = vld [vmem:[%s192 + $0xd98] sm:$0xff]
        %v2016 = vld [vmem:[%s192 + $0xda0] sm:$0xff]
        %v2017 = vld [vmem:[%s192 + $0xda8] sm:$0xff]
        %v2018 = vld [vmem:[%s192 + $0xdb0] sm:$0xff]
        %v2019 = vld [vmem:[%s192 + $0xdb8] sm:$0xff]
        %v2020 = vld [vmem:[%s192 + $0xdc0] sm:$0xff]
        %v2021 = vld [vmem:[%s192 + $0xdc8] sm:$0xff]
        %v2022 = vld [vmem:[%s192 + $0xdd0] sm:$0xff]
        %v2023 = vld [vmem:[%s192 + $0xdd8] sm:$0xff]
        %v2024 = vld [vmem:[%s192 + $0xde0] sm:$0xff]
        %v2025 = vld [vmem:[%s192 + $0xde8] sm:$0xff]
        %v2026 = vld [vmem:[%s192 + $0xdf0] sm:$0xff]
        %v2027 = vld [vmem:[%s192 + $0xdf8] sm:$0xff]
        %v2028 = vld [vmem:[%s192 + $0xe00] sm:$0xff]
        %v2029 = vld [vmem:[%s192 + $0xe08] sm:$0xff]
        %v2030 = vld [vmem:[%s192 + $0xe10] sm:$0xff]
        %v2031 = vld [vmem:[%s192 + $0xe18] sm:$0xff]
        %v2032 = vld [vmem:[%s192 + $0xe20] sm:$0xff]
        %v2033 = vld [vmem:[%s192 + $0xe28] sm:$0xff]
        %v2034 = vld [vmem:[%s192 + $0xe30] sm:$0xff]
        %v2035 = vld [vmem:[%s192 + $0xe38] sm:$0xff]
        %v2036 = vld [vmem:[%s192 + $0xe40] sm:$0xff]
        %v2037 = vld [vmem:[%s192 + $0xe48] sm:$0xff]
        %v2038 = vld [vmem:[%s192 + $0xe50] sm:$0xff]
        %v2039 = vld [vmem:[%s192 + $0xe58] sm:$0xff]
        %v2040 = vld [vmem:[%s192 + $0xe60] sm:$0xff]
        %v2041 = vld [vmem:[%s192 + $0xe68] sm:$0xff]
        %v2042 = vld [vmem:[%s192 + $0xe70] sm:$0xff]
        %v2043 = vld [vmem:[%s192 + $0xe78] sm:$0xff]
        %v2044 = vld [vmem:[%s192 + $0xe80] sm:$0xff]
        %v2045 = vld [vmem:[%s192 + $0xe88] sm:$0xff]
        %v2046 = vld [vmem:[%s192 + $0xe90] sm:$0xff]
        %v2047 = vld [vmem:[%s192 + $0xe98] sm:$0xff]
        %v2048 = vld [vmem:[%s192 + $0xea0] sm:$0xff]
        %v2049 = vld [vmem:[%s192 + $0xea8] sm:$0xff]
        %v2050 = vld [vmem:[%s192 + $0xeb0] sm:$0xff]
        %v2051 = vld [vmem:[%s192 + $0xeb8] sm:$0xff]
        %v2052 = vld [vmem:[%s192 + $0xec0] sm:$0xff]
        %v2053 = vld [vmem:[%s192 + $0xec8] sm:$0xff]
        %v2054 = vld [vmem:[%s192 + $0xed0] sm:$0xff]
        %v2055 = vld [vmem:[%s192 + $0xed8] sm:$0xff]
        %v2056 = vld [vmem:[%s192 + $0xee0] sm:$0xff]
        %v2057 = vld [vmem:[%s192 + $0xee8] sm:$0xff]
        %v2058 = vld [vmem:[%s192 + $0xef0] sm:$0xff]
        %v2059 = vld [vmem:[%s192 + $0xef8] sm:$0xff]
        %v2060 = vld [vmem:[%s192 + $0xf00] sm:$0xff]
        %v2061 = vld [vmem:[%s192 + $0xf08] sm:$0xff]
        %v2062 = vld [vmem:[%s192 + $0xf10] sm:$0xff]
        %v2063 = vld [vmem:[%s192 + $0xf18] sm:$0xff]
        %v2064 = vld [vmem:[%s192 + $0xf20] sm:$0xff]
        %v2065 = vld [vmem:[%s192 + $0xf28] sm:$0xff]
        %v2066 = vld [vmem:[%s192 + $0xf30] sm:$0xff]
        %v2067 = vld [vmem:[%s192 + $0xf38] sm:$0xff]
        %v2068 = vld [vmem:[%s192 + $0xf40] sm:$0xff]
        %v2069 = vld [vmem:[%s192 + $0xf48] sm:$0xff]
        %v2070 = vld [vmem:[%s192 + $0xf50] sm:$0xff]
        %v2071 = vld [vmem:[%s192 + $0xf58] sm:$0xff]
        %v2072 = vld [vmem:[%s192 + $0xf60] sm:$0xff]
        %v2073 = vld [vmem:[%s192 + $0xf68] sm:$0xff]
        %v2074 = vld [vmem:[%s192 + $0xf70] sm:$0xff]
        %v2075 = vld [vmem:[%s192 + $0xf78] sm:$0xff]
        %v2076 = vld [vmem:[%s192 + $0xf80] sm:$0xff]
        %v2077 = vld [vmem:[%s192 + $0xf88] sm:$0xff]
        %v2078 = vld [vmem:[%s192 + $0xf90] sm:$0xff]
        %v2079 = vld [vmem:[%s192 + $0xf98] sm:$0xff]
        %v2080 = vld [vmem:[%s192 + $0xfa0] sm:$0xff]
        %v2081 = vld [vmem:[%s192 + $0xfa8] sm:$0xff]
        %v2082 = vld [vmem:[%s192 + $0xfb0] sm:$0xff]
        %v2083 = vld [vmem:[%s192 + $0xfb8] sm:$0xff]
        %v2084 = vld [vmem:[%s192 + $0xfc0] sm:$0xff]
        %v2085 = vld [vmem:[%s192 + $0xfc8] sm:$0xff]
        %v2086 = vld [vmem:[%s192 + $0xfd0] sm:$0xff]
        %v2087 = vld [vmem:[%s192 + $0xfd8] sm:$0xff]
        %v2088 = vld [vmem:[%s192 + $0xfe0] sm:$0xff]
        %v2089 = vld [vmem:[%s192 + $0xfe8] sm:$0xff]
        %v2090 = vld [vmem:[%s192 + $0xff0] sm:$0xff]
        %v2091 = vld [vmem:[%s192 + $0xff8] sm:$0xff]
        %v2092 = vld [vmem:[%s192 + $0x1000] sm:$0xff]
        %v2093 = vld [vmem:[%s192 + $0x1008] sm:$0xff]
        %v2094 = vld [vmem:[%s192 + $0x1010] sm:$0xff]
        %v2095 = vld [vmem:[%s192 + $0x1018] sm:$0xff]
        %v2096 = vld [vmem:[%s192 + $0x1020] sm:$0xff]
        %v2097 = vld [vmem:[%s192 + $0x1028] sm:$0xff]
        %v2098 = vld [vmem:[%s192 + $0x1030] sm:$0xff]
        %v2099 = vld [vmem:[%s192 + $0x1038] sm:$0xff]
        %v2100 = vld [vmem:[%s192 + $0x1040] sm:$0xff]
        %v2101 = vld [vmem:[%s192 + $0x1048] sm:$0xff]
        %v2102 = vld [vmem:[%s192 + $0x1050] sm:$0xff]
        %v2103 = vld [vmem:[%s192 + $0x1058] sm:$0xff]
        %v2104 = vld [vmem:[%s192 + $0x1060] sm:$0xff]
        %v2105 = vld [vmem:[%s192 + $0x1068] sm:$0xff]
        %v2106 = vld [vmem:[%s192 + $0x1070] sm:$0xff]
        %v2107 = vld [vmem:[%s192 + $0x1078] sm:$0xff]
        %v2108 = vld [vmem:[%s192 + $0x1080] sm:$0xff]
        %v2109 = vld [vmem:[%s192 + $0x1088] sm:$0xff]
        %v2110 = vld [vmem:[%s192 + $0x1090] sm:$0xff]
        %v2111 = vld [vmem:[%s192 + $0x1098] sm:$0xff]
        %v2112 = vld [vmem:[%s192 + $0x10a0] sm:$0xff]
        %v2113 = vld [vmem:[%s192 + $0x10a8] sm:$0xff]
        %v2114 = vld [vmem:[%s192 + $0x10b0] sm:$0xff]
        %v2115 = vld [vmem:[%s192 + $0x10b8] sm:$0xff]
        %v2116 = vld [vmem:[%s192 + $0x10c0] sm:$0xff]
        %v2117 = vld [vmem:[%s192 + $0x10c8] sm:$0xff]
        %v2118 = vld [vmem:[%s192 + $0x10d0] sm:$0xff]
        %v2119 = vld [vmem:[%s192 + $0x10d8] sm:$0xff]
        %v2120 = vld [vmem:[%s192 + $0x10e0] sm:$0xff]
        %v2121 = vld [vmem:[%s192 + $0x10e8] sm:$0xff]
        %v2122 = vld [vmem:[%s192 + $0x10f0] sm:$0xff]
        %v2123 = vld [vmem:[%s192 + $0x10f8] sm:$0xff]
        %v2124 = vld [vmem:[%s192 + $0x1100] sm:$0xff]
        %v2125 = vld [vmem:[%s192 + $0x1108] sm:$0xff]
        %v2126 = vld [vmem:[%s192 + $0x1110] sm:$0xff]
        %v2127 = vld [vmem:[%s192 + $0x1118] sm:$0xff]
        %v2128 = vld [vmem:[%s192 + $0x1120] sm:$0xff]
        %v2129 = vld [vmem:[%s192 + $0x1128] sm:$0xff]
        %v2130 = vld [vmem:[%s192 + $0x1130] sm:$0xff]
        %v2131 = vld [vmem:[%s192 + $0x1138] sm:$0xff]
        %v2132 = vld [vmem:[%s192 + $0x1140] sm:$0xff]
        %v2133 = vld [vmem:[%s192 + $0x1148] sm:$0xff]
        %v2134 = vld [vmem:[%s192 + $0x1150] sm:$0xff]
        %v2135 = vld [vmem:[%s192 + $0x1158] sm:$0xff]
        %v2136 = vld [vmem:[%s192 + $0x1160] sm:$0xff]
        %v2137 = vld [vmem:[%s192 + $0x1168] sm:$0xff]
        %v2138 = vld [vmem:[%s192 + $0x1170] sm:$0xff]
        %v2139 = vld [vmem:[%s192 + $0x1178] sm:$0xff]
        %v2140 = vld [vmem:[%s192 + $0x1180] sm:$0xff]
        %v2141 = vld [vmem:[%s192 + $0x1188] sm:$0xff]
        %v2142 = vld [vmem:[%s192 + $0x1190] sm:$0xff]
        %v2143 = vld [vmem:[%s192 + $0x1198] sm:$0xff]
        %v2144 = vld [vmem:[%s192 + $0x11a0] sm:$0xff]
        %v2145 = vld [vmem:[%s192 + $0x11a8] sm:$0xff]
        %v2146 = vld [vmem:[%s192 + $0x11b0] sm:$0xff]
        %v2147 = vld [vmem:[%s192 + $0x11b8] sm:$0xff]
        %v2148 = vld [vmem:[%s192 + $0x11c0] sm:$0xff]
        %v2149 = vld [vmem:[%s192 + $0x11c8] sm:$0xff]
        %v2150 = vld [vmem:[%s192 + $0x11d0] sm:$0xff]
        %v2151 = vld [vmem:[%s192 + $0x11d8] sm:$0xff]
        %v2152 = vld [vmem:[%s192 + $0x11e0] sm:$0xff]
        %v2153 = vld [vmem:[%s192 + $0x11e8] sm:$0xff]
        %v2154 = vld [vmem:[%s192 + $0x11f0] sm:$0xff]
        %v2155 = vld [vmem:[%s192 + $0x11f8] sm:$0xff]
        %v2156 = vld [vmem:[%s192 + $0x1200] sm:$0xff]
        %v2157 = vld [vmem:[%s192 + $0x1208] sm:$0xff]
        %v2158 = vld [vmem:[%s192 + $0x1210] sm:$0xff]
        %v2159 = vld [vmem:[%s192 + $0x1218] sm:$0xff]
        %v2160 = vld [vmem:[%s192 + $0x1220] sm:$0xff]
        %v2161 = vld [vmem:[%s192 + $0x1228] sm:$0xff]
        %v2162 = vld [vmem:[%s192 + $0x1230] sm:$0xff]
        %v2163 = vld [vmem:[%s192 + $0x1238] sm:$0xff]
        %v2164 = vld [vmem:[%s192 + $0x1240] sm:$0xff]
        %v2165 = vld [vmem:[%s192 + $0x1248] sm:$0xff]
        %v2166 = vld [vmem:[%s192 + $0x1250] sm:$0xff]
        %v2167 = vld [vmem:[%s192 + $0x1258] sm:$0xff]
        %v2168 = vld [vmem:[%s192 + $0x1260] sm:$0xff]
        %v2169 = vld [vmem:[%s192 + $0x1268] sm:$0xff]
        %v2170 = vld [vmem:[%s192 + $0x1270] sm:$0xff]
        %v2171 = vld [vmem:[%s192 + $0x1278] sm:$0xff]
        %v2172 = vld [vmem:[%s192 + $0x1280] sm:$0xff]
        %v2173 = vld [vmem:[%s192 + $0x1288] sm:$0xff]
        %v2174 = vld [vmem:[%s192 + $0x1290] sm:$0xff]
        %v2175 = vld [vmem:[%s192 + $0x1298] sm:$0xff]
        %v2176 = vld [vmem:[%s192 + $0x12a0] sm:$0xff]
        %v2177 = vld [vmem:[%s192 + $0x12a8] sm:$0xff]
        %v2178 = vld [vmem:[%s192 + $0x12b0] sm:$0xff]
        %v2179 = vld [vmem:[%s192 + $0x12b8] sm:$0xff]
        %v2180 = vld [vmem:[%s192 + $0x12c0] sm:$0xff]
        %v2181 = vld [vmem:[%s192 + $0x12c8] sm:$0xff]
        %v2182 = vld [vmem:[%s192 + $0x12d0] sm:$0xff]
        %v2183 = vld [vmem:[%s192 + $0x12d8] sm:$0xff]
        %v2184 = vld [vmem:[%s192 + $0x12e0] sm:$0xff]
        %v2185 = vld [vmem:[%s192 + $0x12e8] sm:$0xff]
        %v2186 = vld [vmem:[%s192 + $0x12f0] sm:$0xff]
        %v2187 = vld [vmem:[%s192 + $0x12f8] sm:$0xff]
        %v2188 = vld [vmem:[%s192 + $0x1300] sm:$0xff]
        %v2189 = vld [vmem:[%s192 + $0x1308] sm:$0xff]
        %v2190 = vld [vmem:[%s192 + $0x1310] sm:$0xff]
        %v2191 = vld [vmem:[%s192 + $0x1318] sm:$0xff]
        %v2192 = vld [vmem:[%s192 + $0x1320] sm:$0xff]
        %v2193 = vld [vmem:[%s192 + $0x1328] sm:$0xff]
        %v2194 = vld [vmem:[%s192 + $0x1330] sm:$0xff]
        %v2195 = vld [vmem:[%s192 + $0x1338] sm:$0xff]
        %v2196 = vld [vmem:[%s192 + $0x1340] sm:$0xff]
        %v2197 = vld [vmem:[%s192 + $0x1348] sm:$0xff]
        %v2198 = vld [vmem:[%s192 + $0x1350] sm:$0xff]
        %v2199 = vld [vmem:[%s192 + $0x1358] sm:$0xff]
        %v2200 = vld [vmem:[%s192 + $0x1360] sm:$0xff]
        %v2201 = vld [vmem:[%s192 + $0x1368] sm:$0xff]
        %v2202 = vld [vmem:[%s192 + $0x1370] sm:$0xff]
        %v2203 = vld [vmem:[%s192 + $0x1378] sm:$0xff]
        %v2204 = vld [vmem:[%s192 + $0x1380] sm:$0xff]
        %v2205 = vld [vmem:[%s192 + $0x1388] sm:$0xff]
        %v2206 = vld [vmem:[%s192 + $0x1390] sm:$0xff]
        %v2207 = vld [vmem:[%s192 + $0x1398] sm:$0xff]
        %v2208 = vld [vmem:[%s192 + $0x13a0] sm:$0xff]
        %v2209 = vld [vmem:[%s192 + $0x13a8] sm:$0xff]
        %v2210 = vld [vmem:[%s192 + $0x13b0] sm:$0xff]
        %v2211 = vld [vmem:[%s192 + $0x13b8] sm:$0xff]
        %v2212 = vld [vmem:[%s192 + $0x13c0] sm:$0xff]
        %v2213 = vld [vmem:[%s192 + $0x13c8] sm:$0xff]
        %v2214 = vld [vmem:[%s192 + $0x13d0] sm:$0xff]
        %v2215 = vld [vmem:[%s192 + $0x13d8] sm:$0xff]
        %v2216 = vld [vmem:[%s192 + $0x13e0] sm:$0xff]
        %v2217 = vld [vmem:[%s192 + $0x13e8] sm:$0xff]
        %v2218 = vld [vmem:[%s192 + $0x13f0] sm:$0xff]
        %v2219 = vld [vmem:[%s192 + $0x13f8] sm:$0xff]
        %v2220 = vld [vmem:[%s192 + $0x1400] sm:$0xff]
        %v2221 = vld [vmem:[%s192 + $0x1408] sm:$0xff]
        %v2222 = vld [vmem:[%s192 + $0x1410] sm:$0xff]
        %v2223 = vld [vmem:[%s192 + $0x1418] sm:$0xff]
        %v2224 = vld [vmem:[%s192 + $0x1420] sm:$0xff]
        %v2225 = vld [vmem:[%s192 + $0x1428] sm:$0xff]
        %v2226 = vld [vmem:[%s192 + $0x1430] sm:$0xff]
        %v2227 = vld [vmem:[%s192 + $0x1438] sm:$0xff]
        %v2228 = vld [vmem:[%s192 + $0x1440] sm:$0xff]
        %v2229 = vld [vmem:[%s192 + $0x1448] sm:$0xff]
        %v2230 = vld [vmem:[%s192 + $0x1450] sm:$0xff]
        %v2231 = vld [vmem:[%s192 + $0x1458] sm:$0xff]
        %v2232 = vld [vmem:[%s192 + $0x1460] sm:$0xff]
        %v2233 = vld [vmem:[%s192 + $0x1468] sm:$0xff]
        %v2234 = vld [vmem:[%s192 + $0x1470] sm:$0xff]
        %v2235 = vld [vmem:[%s192 + $0x1478] sm:$0xff]
        %v2236 = vld [vmem:[%s192 + $0x1480] sm:$0xff]
        %v2237 = vld [vmem:[%s192 + $0x1488] sm:$0xff]
        %v2238 = vld [vmem:[%s192 + $0x1490] sm:$0xff]
        %v2239 = vld [vmem:[%s192 + $0x1498] sm:$0xff]
        %v2240 = vld [vmem:[%s192 + $0x14a0] sm:$0xff]
        %v2241 = vld [vmem:[%s192 + $0x14a8] sm:$0xff]
        %v2242 = vld [vmem:[%s192 + $0x14b0] sm:$0xff]
        %v2243 = vld [vmem:[%s192 + $0x14b8] sm:$0xff]
        %v2244 = vld [vmem:[%s192 + $0x14c0] sm:$0xff]
        %v2245 = vld [vmem:[%s192 + $0x14c8] sm:$0xff]
        %v2246 = vld [vmem:[%s192 + $0x14d0] sm:$0xff]
        %v2247 = vld [vmem:[%s192 + $0x14d8] sm:$0xff]
        %v2248 = vld [vmem:[%s192 + $0x14e0] sm:$0xff]
        %v2249 = vld [vmem:[%s192 + $0x14e8] sm:$0xff]
        %v2250 = vld [vmem:[%s192 + $0x14f0] sm:$0xff]
        %v2251 = vld [vmem:[%s192 + $0x14f8] sm:$0xff]
        %v2252 = vld [vmem:[%s192 + $0x1500] sm:$0xff]
        %v2253 = vld [vmem:[%s192 + $0x1508] sm:$0xff]
        %v2254 = vld [vmem:[%s192 + $0x1510] sm:$0xff]
        %v2255 = vld [vmem:[%s192 + $0x1518] sm:$0xff]
        %v2256 = vld [vmem:[%s192 + $0x1520] sm:$0xff]
        %v2257 = vld [vmem:[%s192 + $0x1528] sm:$0xff]
        %v2258 = vld [vmem:[%s192 + $0x1530] sm:$0xff]
        %v2259 = vld [vmem:[%s192 + $0x1538] sm:$0xff]
        %v2260 = vld [vmem:[%s192 + $0x1540] sm:$0xff]
        %v2261 = vld [vmem:[%s192 + $0x1548] sm:$0xff]
        %v2262 = vld [vmem:[%s192 + $0x1550] sm:$0xff]
        %v2263 = vld [vmem:[%s192 + $0x1558] sm:$0xff]
        %v2264 = vld [vmem:[%s192 + $0x1560] sm:$0xff]
        %v2265 = vld [vmem:[%s192 + $0x1568] sm:$0xff]
        %v2266 = vld [vmem:[%s192 + $0x1570] sm:$0xff]
        %v2267 = vld [vmem:[%s192 + $0x1578] sm:$0xff]
        %v2268 = vld [vmem:[%s192 + $0x1580] sm:$0xff]
        %v2269 = vld [vmem:[%s192 + $0x1588] sm:$0xff]
        %v2270 = vld [vmem:[%s192 + $0x1590] sm:$0xff]
        %v2271 = vld [vmem:[%s192 + $0x1598] sm:$0xff]
        %v2272 = vld [vmem:[%s192 + $0x15a0] sm:$0xff]
        %v2273 = vld [vmem:[%s192 + $0x15a8] sm:$0xff]
        %v2274 = vld [vmem:[%s192 + $0x15b0] sm:$0xff]
        %v2275 = vld [vmem:[%s192 + $0x15b8] sm:$0xff]
        %v2276 = vld [vmem:[%s192 + $0x15c0] sm:$0xff]
        %v2277 = vld [vmem:[%s192 + $0x15c8] sm:$0xff]
        %v2278 = vld [vmem:[%s192 + $0x15d0] sm:$0xff]
        %v2279 = vld [vmem:[%s192 + $0x15d8] sm:$0xff]
        %v2280 = vld [vmem:[%s192 + $0x15e0] sm:$0xff]
        %v2281 = vld [vmem:[%s192 + $0x15e8] sm:$0xff]
        %v2282 = vld [vmem:[%s192 + $0x15f0] sm:$0xff]
        %v2283 = vld [vmem:[%s192 + $0x15f8] sm:$0xff]
        %v2284 = vld [vmem:[%s192 + $0x1600] sm:$0xff]
        %v2285 = vld [vmem:[%s192 + $0x1608] sm:$0xff]
        %v2286 = vld [vmem:[%s192 + $0x1610] sm:$0xff]
        %v2287 = vld [vmem:[%s192 + $0x1618] sm:$0xff]
        %v2288 = vld [vmem:[%s192 + $0x1620] sm:$0xff]
        %v2289 = vld [vmem:[%s192 + $0x1628] sm:$0xff]
        %v2290 = vld [vmem:[%s192 + $0x1630] sm:$0xff]
        %v2291 = vld [vmem:[%s192 + $0x1638] sm:$0xff]
        %v2292 = vld [vmem:[%s192 + $0x1640] sm:$0xff]
        %v2293 = vld [vmem:[%s192 + $0x1648] sm:$0xff]
        %v2294 = vld [vmem:[%s192 + $0x1650] sm:$0xff]
        %v2295 = vld [vmem:[%s192 + $0x1658] sm:$0xff]
        %v2296 = vld [vmem:[%s192 + $0x1660] sm:$0xff]
        %v2297 = vld [vmem:[%s192 + $0x1668] sm:$0xff]
        %v2298 = vld [vmem:[%s192 + $0x1670] sm:$0xff]
        %v2299 = vld [vmem:[%s192 + $0x1678] sm:$0xff]
        %v2300 = vld [vmem:[%s192 + $0x1680] sm:$0xff]
        %v2301 = vld [vmem:[%s192 + $0x1688] sm:$0xff]
        %v2302 = vld [vmem:[%s192 + $0x1690] sm:$0xff]
        %v2303 = vld [vmem:[%s192 + $0x1698] sm:$0xff]
        %v2304 = vld [vmem:[%s192 + $0x16a0] sm:$0xff]
        %v2305 = vld [vmem:[%s192 + $0x16a8] sm:$0xff]
        %v2306 = vld [vmem:[%s192 + $0x16b0] sm:$0xff]
        %v2307 = vld [vmem:[%s192 + $0x16b8] sm:$0xff]
        %v2308 = vld [vmem:[%s192 + $0x16c0] sm:$0xff]
        %v2309 = vld [vmem:[%s192 + $0x16c8] sm:$0xff]
        %v2310 = vld [vmem:[%s192 + $0x16d0] sm:$0xff]
        %v2311 = vld [vmem:[%s192 + $0x16d8] sm:$0xff]
        %v2312 = vld [vmem:[%s192 + $0x16e0] sm:$0xff]
        %v2313 = vld [vmem:[%s192 + $0x16e8] sm:$0xff]
        %v2314 = vld [vmem:[%s192 + $0x16f0] sm:$0xff]
        %v2315 = vld [vmem:[%s192 + $0x16f8] sm:$0xff]
        %v2316 = vld [vmem:[%s192 + $0x1700] sm:$0xff]
        %v2317 = vld [vmem:[%s192 + $0x1708] sm:$0xff]
        %v2318 = vld [vmem:[%s192 + $0x1710] sm:$0xff]
        %v2319 = vld [vmem:[%s192 + $0x1718] sm:$0xff]
        %v2320 = vld [vmem:[%s192 + $0x1720] sm:$0xff]
        %v2321 = vld [vmem:[%s192 + $0x1728] sm:$0xff]
        %v2322 = vld [vmem:[%s192 + $0x1730] sm:$0xff]
        %v2323 = vld [vmem:[%s192 + $0x1738] sm:$0xff]
        %v2324 = vld [vmem:[%s192 + $0x1740] sm:$0xff]
        %v2325 = vld [vmem:[%s192 + $0x1748] sm:$0xff]
        %v2326 = vld [vmem:[%s192 + $0x1750] sm:$0xff]
        %v2327 = vld [vmem:[%s192 + $0x1758] sm:$0xff]
        %v2328 = vld [vmem:[%s192 + $0x1760] sm:$0xff]
        %v2329 = vld [vmem:[%s192 + $0x1768] sm:$0xff]
        %v2330 = vld [vmem:[%s192 + $0x1770] sm:$0xff]
        %v2331 = vld [vmem:[%s192 + $0x1778] sm:$0xff]
        %v2332 = vld [vmem:[%s192 + $0x1780] sm:$0xff]
        %v2333 = vld [vmem:[%s192 + $0x1788] sm:$0xff]
        %v2334 = vld [vmem:[%s192 + $0x1790] sm:$0xff]
        %v2335 = vld [vmem:[%s192 + $0x1798] sm:$0xff]
        %v2336 = vld [vmem:[%s192 + $0x17a0] sm:$0xff]
        %v2337 = vld [vmem:[%s192 + $0x17a8] sm:$0xff]
        %v2338 = vld [vmem:[%s192 + $0x17b0] sm:$0xff]
        %v2339 = vld [vmem:[%s192 + $0x17b8] sm:$0xff]
        %v2340 = vld [vmem:[%s192 + $0x17c0] sm:$0xff]
        %v2341 = vld [vmem:[%s192 + $0x17c8] sm:$0xff]
        %v2342 = vld [vmem:[%s192 + $0x17d0] sm:$0xff]
        %v2343 = vld [vmem:[%s192 + $0x17d8] sm:$0xff]
        %v2344 = vld [vmem:[%s192 + $0x17e0] sm:$0xff]
        %v2345 = vld [vmem:[%s192 + $0x17e8] sm:$0xff]
        %v2346 = vld [vmem:[%s192 + $0x17f0] sm:$0xff]
        %v2347 = vld [vmem:[%s192 + $0x17f8] sm:$0xff]
        %v2348 = vld [vmem:[%s192 + $0x1800] sm:$0xff]
        %v2349 = vld [vmem:[%s192 + $0x1808] sm:$0xff]
        %v2350 = vld [vmem:[%s192 + $0x1810] sm:$0xff]
        %v2351 = vld [vmem:[%s192 + $0x1818] sm:$0xff]
        %v2352 = vld [vmem:[%s192 + $0x1820] sm:$0xff]
        %v2353 = vld [vmem:[%s192 + $0x1828] sm:$0xff]
        %v2354 = vld [vmem:[%s192 + $0x1830] sm:$0xff]
        %v2355 = vld [vmem:[%s192 + $0x1838] sm:$0xff]
        %v2356 = vld [vmem:[%s192 + $0x1840] sm:$0xff]
        %v2357 = vld [vmem:[%s192 + $0x1848] sm:$0xff]
        %v2358 = vld [vmem:[%s192 + $0x1850] sm:$0xff]
        %v2359 = vld [vmem:[%s192 + $0x1858] sm:$0xff]
        %v2360 = vld [vmem:[%s192 + $0x1860] sm:$0xff]
        %v2361 = vld [vmem:[%s192 + $0x1868] sm:$0xff]
        %v2362 = vld [vmem:[%s192 + $0x1870] sm:$0xff]
        %v2363 = vld [vmem:[%s192 + $0x1878] sm:$0xff]
        %v2364 = vld [vmem:[%s192 + $0x1880] sm:$0xff]
        %v2365 = vld [vmem:[%s192 + $0x1888] sm:$0xff]
        %v2366 = vld [vmem:[%s192 + $0x1890] sm:$0xff]
        %v2367 = vld [vmem:[%s192 + $0x1898] sm:$0xff]
        %v2368 = vld [vmem:[%s192 + $0x18a0] sm:$0xff]
        %v2369 = vld [vmem:[%s192 + $0x18a8] sm:$0xff]
        %v2370 = vld [vmem:[%s192 + $0x18b0] sm:$0xff]
        %v2371 = vld [vmem:[%s192 + $0x18b8] sm:$0xff]
        %v2372 = vld [vmem:[%s192 + $0x18c0] sm:$0xff]
        %v2373 = vld [vmem:[%s192 + $0x18c8] sm:$0xff]
        %v2374 = vld [vmem:[%s192 + $0x18d0] sm:$0xff]
        %v2375 = vld [vmem:[%s192 + $0x18d8] sm:$0xff]
        %v2376 = vld [vmem:[%s192 + $0x18e0] sm:$0xff]
        %v2377 = vld [vmem:[%s192 + $0x18e8] sm:$0xff]
        %v2378 = vld [vmem:[%s192 + $0x18f0] sm:$0xff]
        %v2379 = vld [vmem:[%s192 + $0x18f8] sm:$0xff]
        %v2380 = vld [vmem:[%s192 + $0x1900] sm:$0xff]
        %v2381 = vld [vmem:[%s192 + $0x1908] sm:$0xff]
        %v2382 = vld [vmem:[%s192 + $0x1910] sm:$0xff]
        %v2383 = vld [vmem:[%s192 + $0x1918] sm:$0xff]
        %v2384 = vld [vmem:[%s192 + $0x1920] sm:$0xff]
        %v2385 = vld [vmem:[%s192 + $0x1928] sm:$0xff]
        %v2386 = vld [vmem:[%s192 + $0x1930] sm:$0xff]
        %v2387 = vld [vmem:[%s192 + $0x1938] sm:$0xff]
        %v2388 = vld [vmem:[%s192 + $0x1940] sm:$0xff]
        %v2389 = vld [vmem:[%s192 + $0x1948] sm:$0xff]
        %v2390 = vld [vmem:[%s192 + $0x1950] sm:$0xff]
        %v2391 = vld [vmem:[%s192 + $0x1958] sm:$0xff]
        %v2392 = vld [vmem:[%s192 + $0x1960] sm:$0xff]
        %v2393 = vld [vmem:[%s192 + $0x1968] sm:$0xff]
        %v2394 = vld [vmem:[%s192 + $0x1970] sm:$0xff]
        %v2395 = vld [vmem:[%s192 + $0x1978] sm:$0xff]
        %v2396 = vld [vmem:[%s192 + $0x1980] sm:$0xff]
        %v2397 = vld [vmem:[%s192 + $0x1988] sm:$0xff]
        %v2398 = vld [vmem:[%s192 + $0x1990] sm:$0xff]
        %v2399 = vld [vmem:[%s192 + $0x1998] sm:$0xff]
        %v2400 = vld [vmem:[%s192 + $0x19a0] sm:$0xff]
        %v2401 = vld [vmem:[%s192 + $0x19a8] sm:$0xff]
        %v2402 = vld [vmem:[%s192 + $0x19b0] sm:$0xff]
        %v2403 = vld [vmem:[%s192 + $0x19b8] sm:$0xff]
        %v2404 = vld [vmem:[%s192 + $0x19c0] sm:$0xff]
        %v2405 = vld [vmem:[%s192 + $0x19c8] sm:$0xff]
        %v2406 = vld [vmem:[%s192 + $0x19d0] sm:$0xff]
        %v2407 = vld [vmem:[%s192 + $0x19d8] sm:$0xff]
        %v2408 = vld [vmem:[%s192 + $0x19e0] sm:$0xff]
        %v2409 = vld [vmem:[%s192 + $0x19e8] sm:$0xff]
        %v2410 = vld [vmem:[%s192 + $0x19f0] sm:$0xff]
        %v2411 = vld [vmem:[%s192 + $0x19f8] sm:$0xff]
        %v2412 = vld [vmem:[%s192 + $0x1a00] sm:$0xff]
        %v2413 = vld [vmem:[%s192 + $0x1a08] sm:$0xff]
        %v2414 = vld [vmem:[%s192 + $0x1a10] sm:$0xff]
        %v2415 = vld [vmem:[%s192 + $0x1a18] sm:$0xff]
        %v2416 = vld [vmem:[%s192 + $0x1a20] sm:$0xff]
        %v2417 = vld [vmem:[%s192 + $0x1a28] sm:$0xff]
        %v2418 = vld [vmem:[%s192 + $0x1a30] sm:$0xff]
        %v2419 = vld [vmem:[%s192 + $0x1a38] sm:$0xff]
        %v2420 = vld [vmem:[%s192 + $0x1a40] sm:$0xff]
        %v2421 = vld [vmem:[%s192 + $0x1a48] sm:$0xff]
        %v2422 = vld [vmem:[%s192 + $0x1a50] sm:$0xff]
        %v2423 = vld [vmem:[%s192 + $0x1a58] sm:$0xff]
        %v2424 = vld [vmem:[%s192 + $0x1a60] sm:$0xff]
        %v2425 = vld [vmem:[%s192 + $0x1a68] sm:$0xff]
        %v2426 = vld [vmem:[%s192 + $0x1a70] sm:$0xff]
        %v2427 = vld [vmem:[%s192 + $0x1a78] sm:$0xff]
        %v2428 = vld [vmem:[%s192 + $0x1a80] sm:$0xff]
        %v2429 = vld [vmem:[%s192 + $0x1a88] sm:$0xff]
        %v2430 = vld [vmem:[%s192 + $0x1a90] sm:$0xff]
        %v2431 = vld [vmem:[%s192 + $0x1a98] sm:$0xff]
        %v2432 = vld [vmem:[%s192 + $0x1aa0] sm:$0xff]
        %v2433 = vld [vmem:[%s192 + $0x1aa8] sm:$0xff]
        %v2434 = vld [vmem:[%s192 + $0x1ab0] sm:$0xff]
        %v2435 = vld [vmem:[%s192 + $0x1ab8] sm:$0xff]
        %v2436 = vld [vmem:[%s192 + $0x1ac0] sm:$0xff]
        %v2437 = vld [vmem:[%s192 + $0x1ac8] sm:$0xff]
        %v2438 = vld [vmem:[%s192 + $0x1ad0] sm:$0xff]
        %v2439 = vld [vmem:[%s192 + $0x1ad8] sm:$0xff]
        %v2440 = vld [vmem:[%s192 + $0x1ae0] sm:$0xff]
        %v2441 = vld [vmem:[%s192 + $0x1ae8] sm:$0xff]
        %v2442 = vld [vmem:[%s192 + $0x1af0] sm:$0xff]
        %v2443 = vld [vmem:[%s192 + $0x1af8] sm:$0xff]
        %v2444 = vld [vmem:[%s192 + $0x1b00] sm:$0xff]
        %v2445 = vld [vmem:[%s192 + $0x1b08] sm:$0xff]
        %v2446 = vld [vmem:[%s192 + $0x1b10] sm:$0xff]
        %v2447 = vld [vmem:[%s192 + $0x1b18] sm:$0xff]
        %v2448 = vld [vmem:[%s192 + $0x1b20] sm:$0xff]
        %v2449 = vld [vmem:[%s192 + $0x1b28] sm:$0xff]
        %v2450 = vld [vmem:[%s192 + $0x1b30] sm:$0xff]
        %v2451 = vld [vmem:[%s192 + $0x1b38] sm:$0xff]
        %v2452 = vld [vmem:[%s192 + $0x1b40] sm:$0xff]
        %v2453 = vld [vmem:[%s192 + $0x1b48] sm:$0xff]
        %v2454 = vld [vmem:[%s192 + $0x1b50] sm:$0xff]
        %v2455 = vld [vmem:[%s192 + $0x1b58] sm:$0xff]
        %v2456 = vld [vmem:[%s192 + $0x1b60] sm:$0xff]
        %v2457 = vld [vmem:[%s192 + $0x1b68] sm:$0xff]
        %v2458 = vld [vmem:[%s192 + $0x1b70] sm:$0xff]
        %v2459 = vld [vmem:[%s192 + $0x1b78] sm:$0xff]
        %v2460 = vld [vmem:[%s192 + $0x1b80] sm:$0xff]
        %v2461 = vld [vmem:[%s192 + $0x1b88] sm:$0xff]
        %v2462 = vld [vmem:[%s192 + $0x1b90] sm:$0xff]
        %v2463 = vld [vmem:[%s192 + $0x1b98] sm:$0xff]
        %v2464 = vld [vmem:[%s192 + $0x1ba0] sm:$0xff]
        %v2465 = vld [vmem:[%s192 + $0x1ba8] sm:$0xff]
        %v2466 = vld [vmem:[%s192 + $0x1bb0] sm:$0xff]
        %v2467 = vld [vmem:[%s192 + $0x1bb8] sm:$0xff]
        %v2468 = vld [vmem:[%s192 + $0x1bc0] sm:$0xff]
        %v2469 = vld [vmem:[%s192 + $0x1bc8] sm:$0xff]
        %v2470 = vld [vmem:[%s192 + $0x1bd0] sm:$0xff]
        %v2471 = vld [vmem:[%s192 + $0x1bd8] sm:$0xff]
        %v2472 = vld [vmem:[%s192 + $0x1be0] sm:$0xff]
        %v2473 = vld [vmem:[%s192 + $0x1be8] sm:$0xff]
        %v2474 = vld [vmem:[%s192 + $0x1bf0] sm:$0xff]
        %v2475 = vld [vmem:[%s192 + $0x1bf8] sm:$0xff]
        %v2476 = vld [vmem:[%s192 + $0x1c00] sm:$0xff]
        %v2477 = vld [vmem:[%s192 + $0x1c08] sm:$0xff]
        %v2478 = vld [vmem:[%s192 + $0x1c10] sm:$0xff]
        %v2479 = vld [vmem:[%s192 + $0x1c18] sm:$0xff]
        %v2480 = vld [vmem:[%s192 + $0x1c20] sm:$0xff]
        %v2481 = vld [vmem:[%s192 + $0x1c28] sm:$0xff]
        %v2482 = vld [vmem:[%s192 + $0x1c30] sm:$0xff]
        %v2483 = vld [vmem:[%s192 + $0x1c38] sm:$0xff]
        %v2484 = vld [vmem:[%s192 + $0x1c40] sm:$0xff]
        %v2485 = vld [vmem:[%s192 + $0x1c48] sm:$0xff]
        %v2486 = vld [vmem:[%s192 + $0x1c50] sm:$0xff]
        %v2487 = vld [vmem:[%s192 + $0x1c58] sm:$0xff]
        %v2488 = vld [vmem:[%s192 + $0x1c60] sm:$0xff]
        %v2489 = vld [vmem:[%s192 + $0x1c68] sm:$0xff]
        %v2490 = vld [vmem:[%s192 + $0x1c70] sm:$0xff]
        %v2491 = vld [vmem:[%s192 + $0x1c78] sm:$0xff]
        %v2492 = vld [vmem:[%s192 + $0x1c80] sm:$0xff]
        %v2493 = vld [vmem:[%s192 + $0x1c88] sm:$0xff]
        %v2494 = vld [vmem:[%s192 + $0x1c90] sm:$0xff]
        %v2495 = vld [vmem:[%s192 + $0x1c98] sm:$0xff]
        %v2496 = vld [vmem:[%s192 + $0x1ca0] sm:$0xff]
        %v2497 = vld [vmem:[%s192 + $0x1ca8] sm:$0xff]
        %v2498 = vld [vmem:[%s192 + $0x1cb0] sm:$0xff]
        %v2499 = vld [vmem:[%s192 + $0x1cb8] sm:$0xff]
        %v2500 = vld [vmem:[%s192 + $0x1cc0] sm:$0xff]
        %v2501 = vld [vmem:[%s192 + $0x1cc8] sm:$0xff]
        %v2502 = vld [vmem:[%s192 + $0x1cd0] sm:$0xff]
        %v2503 = vld [vmem:[%s192 + $0x1cd8] sm:$0xff]
        %v2504 = vld [vmem:[%s192 + $0x1ce0] sm:$0xff]
        %v2505 = vld [vmem:[%s192 + $0x1ce8] sm:$0xff]
        %v2506 = vld [vmem:[%s192 + $0x1cf0] sm:$0xff]
        %v2507 = vld [vmem:[%s192 + $0x1cf8] sm:$0xff]
        %v2508 = vld [vmem:[%s192 + $0x1d00] sm:$0xff]
        %v2509 = vld [vmem:[%s192 + $0x1d08] sm:$0xff]
        %v2510 = vld [vmem:[%s192 + $0x1d10] sm:$0xff]
        %v2511 = vld [vmem:[%s192 + $0x1d18] sm:$0xff]
        %v2512 = vld [vmem:[%s192 + $0x1d20] sm:$0xff]
        %v2513 = vld [vmem:[%s192 + $0x1d28] sm:$0xff]
        %v2514 = vld [vmem:[%s192 + $0x1d30] sm:$0xff]
        %v2515 = vld [vmem:[%s192 + $0x1d38] sm:$0xff]
        %v2516 = vld [vmem:[%s192 + $0x1d40] sm:$0xff]
        %v2517 = vld [vmem:[%s192 + $0x1d48] sm:$0xff]
        %v2518 = vld [vmem:[%s192 + $0x1d50] sm:$0xff]
        %v2519 = vld [vmem:[%s192 + $0x1d58] sm:$0xff]
        %v2520 = vld [vmem:[%s192 + $0x1d60] sm:$0xff]
        %v2521 = vld [vmem:[%s192 + $0x1d68] sm:$0xff]
        %v2522 = vld [vmem:[%s192 + $0x1d70] sm:$0xff]
        %v2523 = vld [vmem:[%s192 + $0x1d78] sm:$0xff]
        %v2524 = vld [vmem:[%s192 + $0x1d80] sm:$0xff]
        %v2525 = vld [vmem:[%s192 + $0x1d88] sm:$0xff]
        %v2526 = vld [vmem:[%s192 + $0x1d90] sm:$0xff]
        %v2527 = vld [vmem:[%s192 + $0x1d98] sm:$0xff]
        %v2528 = vld [vmem:[%s192 + $0x1da0] sm:$0xff]
        %v2529 = vld [vmem:[%s192 + $0x1da8] sm:$0xff]
        %v2530 = vld [vmem:[%s192 + $0x1db0] sm:$0xff]
        %v2531 = vld [vmem:[%s192 + $0x1db8] sm:$0xff]
        %v2532 = vld [vmem:[%s192 + $0x1dc0] sm:$0xff]
        %v2533 = vld [vmem:[%s192 + $0x1dc8] sm:$0xff]
        %v2534 = vld [vmem:[%s192 + $0x1dd0] sm:$0xff]
        %v2535 = vld [vmem:[%s192 + $0x1dd8] sm:$0xff]
        %v2536 = vld [vmem:[%s192 + $0x1de0] sm:$0xff]
        %v2537 = vld [vmem:[%s192 + $0x1de8] sm:$0xff]
        %v2538 = vld [vmem:[%s192 + $0x1df0] sm:$0xff]
        %v2539 = vld [vmem:[%s192 + $0x1df8] sm:$0xff]
        %v2540 = vld [vmem:[%s192 + $0x1e00] sm:$0xff]
        %v2541 = vld [vmem:[%s192 + $0x1e08] sm:$0xff]
        %v2542 = vld [vmem:[%s192 + $0x1e10] sm:$0xff]
        %v2543 = vld [vmem:[%s192 + $0x1e18] sm:$0xff]
        %v2544 = vld [vmem:[%s192 + $0x1e20] sm:$0xff]
        %v2545 = vld [vmem:[%s192 + $0x1e28] sm:$0xff]
        %v2546 = vld [vmem:[%s192 + $0x1e30] sm:$0xff]
        %v2547 = vld [vmem:[%s192 + $0x1e38] sm:$0xff]
        %v2548 = vld [vmem:[%s192 + $0x1e40] sm:$0xff]
        %v2549 = vld [vmem:[%s192 + $0x1e48] sm:$0xff]
        %v2550 = vld [vmem:[%s192 + $0x1e50] sm:$0xff]
        %v2551 = vld [vmem:[%s192 + $0x1e58] sm:$0xff]
        %v2552 = vld [vmem:[%s192 + $0x1e60] sm:$0xff]
        %v2553 = vld [vmem:[%s192 + $0x1e68] sm:$0xff]
        %v2554 = vld [vmem:[%s192 + $0x1e70] sm:$0xff]
        %v2555 = vld [vmem:[%s192 + $0x1e78] sm:$0xff]
        %v2556 = vld [vmem:[%s192 + $0x1e80] sm:$0xff]
        %v2557 = vld [vmem:[%s192 + $0x1e88] sm:$0xff]
        %v2558 = vld [vmem:[%s192 + $0x1e90] sm:$0xff]
        %v2559 = vld [vmem:[%s192 + $0x1e98] sm:$0xff]
        %v2560 = vld [vmem:[%s192 + $0x1ea0] sm:$0xff]
        %v2561 = vld [vmem:[%s192 + $0x1ea8] sm:$0xff]
        %v2562 = vld [vmem:[%s192 + $0x1eb0] sm:$0xff]
        %v2563 = vld [vmem:[%s192 + $0x1eb8] sm:$0xff]
        %v2564 = vld [vmem:[%s192 + $0x1ec0] sm:$0xff]
        %v2565 = vld [vmem:[%s192 + $0x1ec8] sm:$0xff]
        %v2566 = vld [vmem:[%s192 + $0x1ed0] sm:$0xff]
        %v2567 = vld [vmem:[%s192 + $0x1ed8] sm:$0xff]
        %v2568 = vld [vmem:[%s192 + $0x1ee0] sm:$0xff]
        %v2569 = vld [vmem:[%s192 + $0x1ee8] sm:$0xff]
        %v2570 = vld [vmem:[%s192 + $0x1ef0] sm:$0xff]
        %v2571 = vld [vmem:[%s192 + $0x1ef8] sm:$0xff]
        %v2572 = vld [vmem:[%s192 + $0x1f00] sm:$0xff]
        %v2573 = vld [vmem:[%s192 + $0x1f08] sm:$0xff]
        %v2574 = vld [vmem:[%s192 + $0x1f10] sm:$0xff]
        %v2575 = vld [vmem:[%s192 + $0x1f18] sm:$0xff]
        %v2576 = vld [vmem:[%s192 + $0x1f20] sm:$0xff]
        %v2577 = vld [vmem:[%s192 + $0x1f28] sm:$0xff]
        %v2578 = vld [vmem:[%s192 + $0x1f30] sm:$0xff]
        %v2579 = vld [vmem:[%s192 + $0x1f38] sm:$0xff]
        %v2580 = vld [vmem:[%s192 + $0x1f40] sm:$0xff]
        %v2581 = vld [vmem:[%s192 + $0x1f48] sm:$0xff]
        %v2582 = vld [vmem:[%s192 + $0x1f50] sm:$0xff]
        %v2583 = vld [vmem:[%s192 + $0x1f58] sm:$0xff]
        %v2584 = vld [vmem:[%s192 + $0x1f60] sm:$0xff]
        %v2585 = vld [vmem:[%s192 + $0x1f68] sm:$0xff]
        %v2586 = vld [vmem:[%s192 + $0x1f70] sm:$0xff]
        %v2587 = vld [vmem:[%s192 + $0x1f78] sm:$0xff]
        %v2588 = vld [vmem:[%s192 + $0x1f80] sm:$0xff]
        %v2589 = vld [vmem:[%s192 + $0x1f88] sm:$0xff]
        %v2590 = vld [vmem:[%s192 + $0x1f90] sm:$0xff]
        %v2591 = vld [vmem:[%s192 + $0x1f98] sm:$0xff]
        %v2592 = vld [vmem:[%s192 + $0x1fa0] sm:$0xff]
        %v2593 = vld [vmem:[%s192 + $0x1fa8] sm:$0xff]
        %v2594 = vld [vmem:[%s192 + $0x1fb0] sm:$0xff]
        %v2595 = vld [vmem:[%s192 + $0x1fb8] sm:$0xff]
        %v2596 = vld [vmem:[%s192 + $0x1fc0] sm:$0xff]
        %v2597 = vld [vmem:[%s192 + $0x1fc8] sm:$0xff]
        %v2598 = vld [vmem:[%s192 + $0x1fd0] sm:$0xff]
        %v2599 = vld [vmem:[%s192 + $0x1fd8] sm:$0xff]
        %v2600 = vld [vmem:[%s192 + $0x1fe0] sm:$0xff]
        %v2601 = vld [vmem:[%s192 + $0x1fe8] sm:$0xff]
        %v2602 = vld [vmem:[%s192 + $0x1ff0] sm:$0xff]
        %v2603 = vld [vmem:[%s192 + $0x1ff8] sm:$0xff]
        %v2604 = vld [vmem:[%s192 + $0x2000] sm:$0xff]
        %v2605 = vld [vmem:[%s192 + $0x2008] sm:$0xff]
        %v2606 = vld [vmem:[%s192 + $0x2010] sm:$0xff]
        %v2607 = vld [vmem:[%s192 + $0x2018] sm:$0xff]
        %v2608 = vld [vmem:[%s192 + $0x2020] sm:$0xff]
        %v2609 = vld [vmem:[%s192 + $0x2028] sm:$0xff]
        %v2610 = vld [vmem:[%s192 + $0x2030] sm:$0xff]
        %v2611 = vld [vmem:[%s192 + $0x2038] sm:$0xff]
        %v2612 = vld [vmem:[%s192 + $0x2040] sm:$0xff]
        %v2613 = vld [vmem:[%s192 + $0x2048] sm:$0xff]
        %v2614 = vld [vmem:[%s192 + $0x2050] sm:$0xff]
        %v2615 = vld [vmem:[%s192 + $0x2058] sm:$0xff]
        %v2616 = vld [vmem:[%s192 + $0x2060] sm:$0xff]
        %v2617 = vld [vmem:[%s192 + $0x2068] sm:$0xff]
        %v2618 = vld [vmem:[%s192 + $0x2070] sm:$0xff]
        %v2619 = vld [vmem:[%s192 + $0x2078] sm:$0xff]
        %v2620 = vld [vmem:[%s192 + $0x2080] sm:$0xff]
        %v2621 = vld [vmem:[%s192 + $0x2088] sm:$0xff]
        %v2622 = vld [vmem:[%s192 + $0x2090] sm:$0xff]
        %v2623 = vld [vmem:[%s192 + $0x2098] sm:$0xff]
        %v2624 = vld [vmem:[%s192 + $0x20a0] sm:$0xff]
        %v2625 = vld [vmem:[%s192 + $0x20a8] sm:$0xff]
        %v2626 = vld [vmem:[%s192 + $0x20b0] sm:$0xff]
        %v2627 = vld [vmem:[%s192 + $0x20b8] sm:$0xff]
        %v2628 = vld [vmem:[%s192 + $0x20c0] sm:$0xff]
        %v2629 = vld [vmem:[%s192 + $0x20c8] sm:$0xff]
        %v2630 = vld [vmem:[%s192 + $0x20d0] sm:$0xff]
        %v2631 = vld [vmem:[%s192 + $0x20d8] sm:$0xff]
        %v2632 = vld [vmem:[%s192 + $0x20e0] sm:$0xff]
        %v2633 = vld [vmem:[%s192 + $0x20e8] sm:$0xff]
        %v2634 = vld [vmem:[%s192 + $0x20f0] sm:$0xff]
        %v2635 = vld [vmem:[%s192 + $0x20f8] sm:$0xff]
        %v2636 = vld [vmem:[%s192 + $0x2100] sm:$0xff]
        %v2637 = vld [vmem:[%s192 + $0x2108] sm:$0xff]
        %v2638 = vld [vmem:[%s192 + $0x2110] sm:$0xff]
        %v2639 = vld [vmem:[%s192 + $0x2118] sm:$0xff]
        %v2640 = vld [vmem:[%s192 + $0x2120] sm:$0xff]
        %v2641 = vld [vmem:[%s192 + $0x2128] sm:$0xff]
        %v2642 = vld [vmem:[%s192 + $0x2130] sm:$0xff]
        %v2643 = vld [vmem:[%s192 + $0x2138] sm:$0xff]
        %v2644 = vld [vmem:[%s192 + $0x2140] sm:$0xff]
        %v2645 = vld [vmem:[%s192 + $0x2148] sm:$0xff]
        %v2646 = vld [vmem:[%s192 + $0x2150] sm:$0xff]
        %v2647 = vld [vmem:[%s192 + $0x2158] sm:$0xff]
        %v2648 = vld [vmem:[%s192 + $0x2160] sm:$0xff]
        %v2649 = vld [vmem:[%s192 + $0x2168] sm:$0xff]
        %v2650 = vld [vmem:[%s192 + $0x2170] sm:$0xff]
        %v2651 = vld [vmem:[%s192 + $0x2178] sm:$0xff]
        %v2652 = vld [vmem:[%s192 + $0x2180] sm:$0xff]
        %v2653 = vld [vmem:[%s192 + $0x2188] sm:$0xff]
        %v2654 = vld [vmem:[%s192 + $0x2190] sm:$0xff]
        %v2655 = vld [vmem:[%s192 + $0x2198] sm:$0xff]
        %v2656 = vld [vmem:[%s192 + $0x21a0] sm:$0xff]
        %v2657 = vld [vmem:[%s192 + $0x21a8] sm:$0xff]
        %v2658 = vld [vmem:[%s192 + $0x21b0] sm:$0xff]
        %v2659 = vld [vmem:[%s192 + $0x21b8] sm:$0xff]
        %v2660 = vld [vmem:[%s192 + $0x21c0] sm:$0xff]
        %v2661 = vld [vmem:[%s192 + $0x21c8] sm:$0xff]
        %v2662 = vld [vmem:[%s192 + $0x21d0] sm:$0xff]
        %v2663 = vld [vmem:[%s192 + $0x21d8] sm:$0xff]
        %v2664 = vld [vmem:[%s192 + $0x21e0] sm:$0xff]
        %v2665 = vld [vmem:[%s192 + $0x21e8] sm:$0xff]
        %v2666 = vld [vmem:[%s192 + $0x21f0] sm:$0xff]
        %v2667 = vld [vmem:[%s192 + $0x21f8] sm:$0xff]
        %v2668 = vld [vmem:[%s192 + $0x2200] sm:$0xff]
        %v2669 = vld [vmem:[%s192 + $0x2208] sm:$0xff]
        %v2670 = vld [vmem:[%s192 + $0x2210] sm:$0xff]
        %v2671 = vld [vmem:[%s192 + $0x2218] sm:$0xff]
        %v2672 = vld [vmem:[%s192 + $0x2220] sm:$0xff]
        %v2673 = vld [vmem:[%s192 + $0x2228] sm:$0xff]
        %v2674 = vld [vmem:[%s192 + $0x2230] sm:$0xff]
        %v2675 = vld [vmem:[%s192 + $0x2238] sm:$0xff]
        %v2676 = vld [vmem:[%s192 + $0x2240] sm:$0xff]
        %v2677 = vld [vmem:[%s192 + $0x2248] sm:$0xff]
        %v2678 = vld [vmem:[%s192 + $0x2250] sm:$0xff]
        %v2679 = vld [vmem:[%s192 + $0x2258] sm:$0xff]
        %v2680 = vld [vmem:[%s192 + $0x2260] sm:$0xff]
        %v2681 = vld [vmem:[%s192 + $0x2268] sm:$0xff]
        %v2682 = vld [vmem:[%s192 + $0x2270] sm:$0xff]
        %v2683 = vld [vmem:[%s192 + $0x2278] sm:$0xff]
        %v2684 = vld [vmem:[%s192 + $0x2280] sm:$0xff]
        %v2685 = vld [vmem:[%s192 + $0x2288] sm:$0xff]
        %v2686 = vld [vmem:[%s192 + $0x2290] sm:$0xff]
        %v2687 = vld [vmem:[%s192 + $0x2298] sm:$0xff]
        %v2688 = vld [vmem:[%s192 + $0x22a0] sm:$0xff]
        %v2689 = vld [vmem:[%s192 + $0x22a8] sm:$0xff]
        %v2690 = vld [vmem:[%s192 + $0x22b0] sm:$0xff]
        %v2691 = vld [vmem:[%s192 + $0x22b8] sm:$0xff]
        %v2692 = vld [vmem:[%s192 + $0x22c0] sm:$0xff]
        %v2693 = vld [vmem:[%s192 + $0x22c8] sm:$0xff]
        %v2694 = vld [vmem:[%s192 + $0x22d0] sm:$0xff]
        %v2695 = vld [vmem:[%s192 + $0x22d8] sm:$0xff]
        %v2696 = vld [vmem:[%s192 + $0x22e0] sm:$0xff]
        %v2697 = vld [vmem:[%s192 + $0x22e8] sm:$0xff]
        %v2698 = vld [vmem:[%s192 + $0x22f0] sm:$0xff]
        %v2699 = vld [vmem:[%s192 + $0x22f8] sm:$0xff]
        %v2700 = vld [vmem:[%s192 + $0x2300] sm:$0xff]
        %v2701 = vld [vmem:[%s192 + $0x2308] sm:$0xff]
        %v2702 = vld [vmem:[%s192 + $0x2310] sm:$0xff]
        %v2703 = vld [vmem:[%s192 + $0x2318] sm:$0xff]
        %v2704 = vld [vmem:[%s192 + $0x2320] sm:$0xff]
        %v2705 = vld [vmem:[%s192 + $0x2328] sm:$0xff]
        %v2706 = vld [vmem:[%s192 + $0x2330] sm:$0xff]
        %v2707 = vld [vmem:[%s192 + $0x2338] sm:$0xff]
        %v2708 = vld [vmem:[%s192 + $0x2340] sm:$0xff]
        %v2709 = vld [vmem:[%s192 + $0x2348] sm:$0xff]
        %v2710 = vld [vmem:[%s192 + $0x2350] sm:$0xff]
        %v2711 = vld [vmem:[%s192 + $0x2358] sm:$0xff]
        %v2712 = vld [vmem:[%s192 + $0x2360] sm:$0xff]
        %v2713 = vld [vmem:[%s192 + $0x2368] sm:$0xff]
        %v2714 = vld [vmem:[%s192 + $0x2370] sm:$0xff]
        %v2715 = vld [vmem:[%s192 + $0x2378] sm:$0xff]
        %v2716 = vld [vmem:[%s192 + $0x2380] sm:$0xff]
        %v2717 = vld [vmem:[%s192 + $0x2388] sm:$0xff]
        %v2718 = vld [vmem:[%s192 + $0x2390] sm:$0xff]
        %v2719 = vld [vmem:[%s192 + $0x2398] sm:$0xff]
        %v2720 = vld [vmem:[%s192 + $0x23a0] sm:$0xff]
        %v2721 = vld [vmem:[%s192 + $0x23a8] sm:$0xff]
        %v2722 = vld [vmem:[%s192 + $0x23b0] sm:$0xff]
        %v2723 = vld [vmem:[%s192 + $0x23b8] sm:$0xff]
        %v2724 = vld [vmem:[%s192 + $0x23c0] sm:$0xff]
        %v2725 = vld [vmem:[%s192 + $0x23c8] sm:$0xff]
        %v2726 = vld [vmem:[%s192 + $0x23d0] sm:$0xff]
        %v2727 = vld [vmem:[%s192 + $0x23d8] sm:$0xff]
        %v2728 = vld [vmem:[%s192 + $0x23e0] sm:$0xff]
        %v2729 = vld [vmem:[%s192 + $0x23e8] sm:$0xff]
        %v2730 = vld [vmem:[%s192 + $0x23f0] sm:$0xff]
        %v2731 = vld [vmem:[%s192 + $0x23f8] sm:$0xff]
        %v2732 = vld [vmem:[%s192 + $0x2400] sm:$0xff]
        %v2733 = vld [vmem:[%s192 + $0x2408] sm:$0xff]
        %v2734 = vld [vmem:[%s192 + $0x2410] sm:$0xff]
        %v2735 = vld [vmem:[%s192 + $0x2418] sm:$0xff]
        %v2736 = vld [vmem:[%s192 + $0x2420] sm:$0xff]
        %v2737 = vld [vmem:[%s192 + $0x2428] sm:$0xff]
        %v2738 = vld [vmem:[%s192 + $0x2430] sm:$0xff]
        %v2739 = vld [vmem:[%s192 + $0x2438] sm:$0xff]
        %v2740 = vld [vmem:[%s192 + $0x2440] sm:$0xff]
        %v2741 = vld [vmem:[%s192 + $0x2448] sm:$0xff]
        %v2742 = vld [vmem:[%s192 + $0x2450] sm:$0xff]
        %v2743 = vld [vmem:[%s192 + $0x2458] sm:$0xff]
        %v2744 = vld [vmem:[%s192 + $0x2460] sm:$0xff]
        %v2745 = vld [vmem:[%s192 + $0x2468] sm:$0xff]
        %v2746 = vld [vmem:[%s192 + $0x2470] sm:$0xff]
        %v2747 = vld [vmem:[%s192 + $0x2478] sm:$0xff]
        %v2748 = vld [vmem:[%s192 + $0x2480] sm:$0xff]
        %v2749 = vld [vmem:[%s192 + $0x2488] sm:$0xff]
        %v2750 = vld [vmem:[%s192 + $0x2490] sm:$0xff]
        %v2751 = vld [vmem:[%s192 + $0x2498] sm:$0xff]
        %v2752 = vld [vmem:[%s192 + $0x24a0] sm:$0xff]
        %v2753 = vld [vmem:[%s192 + $0x24a8] sm:$0xff]
        %v2754 = vld [vmem:[%s192 + $0x24b0] sm:$0xff]
        %v2755 = vld [vmem:[%s192 + $0x24b8] sm:$0xff]
        %v2756 = vld [vmem:[%s192 + $0x24c0] sm:$0xff]
        %v2757 = vld [vmem:[%s192 + $0x24c8] sm:$0xff]
        %v2758 = vld [vmem:[%s192 + $0x24d0] sm:$0xff]
        %v2759 = vld [vmem:[%s192 + $0x24d8] sm:$0xff]
        %v2760 = vld [vmem:[%s192 + $0x24e0] sm:$0xff]
        %v2761 = vld [vmem:[%s192 + $0x24e8] sm:$0xff]
        %v2762 = vld [vmem:[%s192 + $0x24f0] sm:$0xff]
        %v2763 = vld [vmem:[%s192 + $0x24f8] sm:$0xff]
        %v2764 = vld [vmem:[%s192 + $0x2500] sm:$0xff]
        %v2765 = vld [vmem:[%s192 + $0x2508] sm:$0xff]
        %v2766 = vld [vmem:[%s192 + $0x2510] sm:$0xff]
        %v2767 = vld [vmem:[%s192 + $0x2518] sm:$0xff]
        %v2768 = vld [vmem:[%s192 + $0x2520] sm:$0xff]
        %v2769 = vld [vmem:[%s192 + $0x2528] sm:$0xff]
        %v2770 = vld [vmem:[%s192 + $0x2530] sm:$0xff]
        %v2771 = vld [vmem:[%s192 + $0x2538] sm:$0xff]
        %v2772 = vld [vmem:[%s192 + $0x2540] sm:$0xff]
        %v2773 = vld [vmem:[%s192 + $0x2548] sm:$0xff]
        %v2774 = vld [vmem:[%s192 + $0x2550] sm:$0xff]
        %v2775 = vld [vmem:[%s192 + $0x2558] sm:$0xff]
        %v2776 = vld [vmem:[%s192 + $0x2560] sm:$0xff]
        %v2777 = vld [vmem:[%s192 + $0x2568] sm:$0xff]
        %v2778 = vld [vmem:[%s192 + $0x2570] sm:$0xff]
        %v2779 = vld [vmem:[%s192 + $0x2578] sm:$0xff]
        %v2780 = vld [vmem:[%s192 + $0x2580] sm:$0xff]
        %v2781 = vld [vmem:[%s192 + $0x2588] sm:$0xff]
        %v2782 = vld [vmem:[%s192 + $0x2590] sm:$0xff]
        %v2783 = vld [vmem:[%s192 + $0x2598] sm:$0xff]
        %v2784 = vld [vmem:[%s192 + $0x25a0] sm:$0xff]
        %v2785 = vld [vmem:[%s192 + $0x25a8] sm:$0xff]
        %v2786 = vld [vmem:[%s192 + $0x25b0] sm:$0xff]
        %v2787 = vld [vmem:[%s192 + $0x25b8] sm:$0xff]
        %v2788 = vld [vmem:[%s192 + $0x25c0] sm:$0xff]
        %v2789 = vld [vmem:[%s192 + $0x25c8] sm:$0xff]
        %v2790 = vld [vmem:[%s192 + $0x25d0] sm:$0xff]
        %v2791 = vld [vmem:[%s192 + $0x25d8] sm:$0xff]
        %v2792 = vld [vmem:[%s192 + $0x25e0] sm:$0xff]
        %v2793 = vld [vmem:[%s192 + $0x25e8] sm:$0xff]
        %v2794 = vld [vmem:[%s192 + $0x25f0] sm:$0xff]
        %v2795 = vld [vmem:[%s192 + $0x25f8] sm:$0xff]
        %v2796 = vld [vmem:[%s192 + $0x2600] sm:$0xff]
        %v2797 = vld [vmem:[%s192 + $0x2608] sm:$0xff]
        %v2798 = vld [vmem:[%s192 + $0x2610] sm:$0xff]
        %v2799 = vld [vmem:[%s192 + $0x2618] sm:$0xff]
        %v2800 = vld [vmem:[%s192 + $0x2620] sm:$0xff]
        %v2801 = vld [vmem:[%s192 + $0x2628] sm:$0xff]
        %v2802 = vld [vmem:[%s192 + $0x2630] sm:$0xff]
        %v2803 = vld [vmem:[%s192 + $0x2638] sm:$0xff]
        %v2804 = vld [vmem:[%s192 + $0x2640] sm:$0xff]
        %v2805 = vld [vmem:[%s192 + $0x2648] sm:$0xff]
        %v2806 = vld [vmem:[%s192 + $0x2650] sm:$0xff]
        %v2807 = vld [vmem:[%s192 + $0x2658] sm:$0xff]
        %v2808 = vld [vmem:[%s192 + $0x2660] sm:$0xff]
        %v2809 = vld [vmem:[%s192 + $0x2668] sm:$0xff]
        %v2810 = vld [vmem:[%s192 + $0x2670] sm:$0xff]
        %v2811 = vld [vmem:[%s192 + $0x2678] sm:$0xff]
        %v2812 = vld [vmem:[%s192 + $0x2680] sm:$0xff]
        %v2813 = vld [vmem:[%s192 + $0x2688] sm:$0xff]
        %v2814 = vld [vmem:[%s192 + $0x2690] sm:$0xff]
        %v2815 = vld [vmem:[%s192 + $0x2698] sm:$0xff]
        %v2816 = vld [vmem:[%s192 + $0x26a0] sm:$0xff]
        %v2817 = vld [vmem:[%s192 + $0x26a8] sm:$0xff]
        %v2818 = vld [vmem:[%s192 + $0x26b0] sm:$0xff]
        %v2819 = vld [vmem:[%s192 + $0x26b8] sm:$0xff]
        %v2820 = vld [vmem:[%s192 + $0x26c0] sm:$0xff]
        %v2821 = vld [vmem:[%s192 + $0x26c8] sm:$0xff]
        %v2822 = vld [vmem:[%s192 + $0x26d0] sm:$0xff]
        %v2823 = vld [vmem:[%s192 + $0x26d8] sm:$0xff]
        %v2824 = vld [vmem:[%s192 + $0x26e0] sm:$0xff]
        %v2825 = vld [vmem:[%s192 + $0x26e8] sm:$0xff]
        %v2826 = vld [vmem:[%s192 + $0x26f0] sm:$0xff]
        %v2827 = vld [vmem:[%s192 + $0x26f8] sm:$0xff]
        %v2828 = vld [vmem:[%s192 + $0x2700] sm:$0xff]
        %v2829 = vld [vmem:[%s192 + $0x2708] sm:$0xff]
        %v2830 = vld [vmem:[%s192 + $0x2710] sm:$0xff]
        %v2831 = vld [vmem:[%s192 + $0x2718] sm:$0xff]
        %v2832 = vld [vmem:[%s192 + $0x2720] sm:$0xff]
        %v2833 = vld [vmem:[%s192 + $0x2728] sm:$0xff]
        %v2834 = vld [vmem:[%s192 + $0x2730] sm:$0xff]
        %v2835 = vld [vmem:[%s192 + $0x2738] sm:$0xff]
        %v2836 = vld [vmem:[%s192 + $0x2740] sm:$0xff]
        %v2837 = vld [vmem:[%s192 + $0x2748] sm:$0xff]
        %v2838 = vld [vmem:[%s192 + $0x2750] sm:$0xff]
        %v2839 = vld [vmem:[%s192 + $0x2758] sm:$0xff]
        %v2840 = vld [vmem:[%s192 + $0x2760] sm:$0xff]
        %v2841 = vld [vmem:[%s192 + $0x2768] sm:$0xff]
        %v2842 = vld [vmem:[%s192 + $0x2770] sm:$0xff]
        %v2843 = vld [vmem:[%s192 + $0x2778] sm:$0xff]
        %v2844 = vld [vmem:[%s192 + $0x2780] sm:$0xff]
        %v2845 = vld [vmem:[%s192 + $0x2788] sm:$0xff]
        %v2846 = vld [vmem:[%s192 + $0x2790] sm:$0xff]
        %v2847 = vld [vmem:[%s192 + $0x2798] sm:$0xff]
        %v2848 = vld [vmem:[%s192 + $0x27a0] sm:$0xff]
        %v2849 = vld [vmem:[%s192 + $0x27a8] sm:$0xff]
        %v2850 = vld [vmem:[%s192 + $0x27b0] sm:$0xff]
        %v2851 = vld [vmem:[%s192 + $0x27b8] sm:$0xff]
        %v2852 = vld [vmem:[%s192 + $0x27c0] sm:$0xff]
        %v2853 = vld [vmem:[%s192 + $0x27c8] sm:$0xff]
        %v2854 = vld [vmem:[%s192 + $0x27d0] sm:$0xff]
        %v2855 = vld [vmem:[%s192 + $0x27d8] sm:$0xff]
        %v2856 = vld [vmem:[%s192 + $0x27e0] sm:$0xff]
        %v2857 = vld [vmem:[%s192 + $0x27e8] sm:$0xff]
        %v2858 = vld [vmem:[%s192 + $0x27f0] sm:$0xff]
        %v2859 = vld [vmem:[%s192 + $0x27f8] sm:$0xff]
        %v2860 = vld [vmem:[%s192 + $0x2800] sm:$0xff]
        %v2861 = vld [vmem:[%s192 + $0x2808] sm:$0xff]
        %v2862 = vld [vmem:[%s192 + $0x2810] sm:$0xff]
        %v2863 = vld [vmem:[%s192 + $0x2818] sm:$0xff]
        %v2864 = vld [vmem:[%s192 + $0x2820] sm:$0xff]
        %v2865 = vld [vmem:[%s192 + $0x2828] sm:$0xff]
        %v2866 = vld [vmem:[%s192 + $0x2830] sm:$0xff]
        %v2867 = vld [vmem:[%s192 + $0x2838] sm:$0xff]
        %v2868 = vld [vmem:[%s192 + $0x2840] sm:$0xff]
        %v2869 = vld [vmem:[%s192 + $0x2848] sm:$0xff]
        %v2870 = vld [vmem:[%s192 + $0x2850] sm:$0xff]
        %v2871 = vld [vmem:[%s192 + $0x2858] sm:$0xff]
        %v2872 = vld [vmem:[%s192 + $0x2860] sm:$0xff]
        %v2873 = vld [vmem:[%s192 + $0x2868] sm:$0xff]
        %v2874 = vld [vmem:[%s192 + $0x2870] sm:$0xff]
        %v2875 = vld [vmem:[%s192 + $0x2878] sm:$0xff]
        %v2876 = vld [vmem:[%s192 + $0x2880] sm:$0xff]
        %v2877 = vld [vmem:[%s192 + $0x2888] sm:$0xff]
        %v2878 = vld [vmem:[%s192 + $0x2890] sm:$0xff]
        %v2879 = vld [vmem:[%s192 + $0x2898] sm:$0xff]
        %v2880 = vld [vmem:[%s192 + $0x28a0] sm:$0xff]
        %v2881 = vld [vmem:[%s192 + $0x28a8] sm:$0xff]
        %v2882 = vld [vmem:[%s192 + $0x28b0] sm:$0xff]
        %v2883 = vld [vmem:[%s192 + $0x28b8] sm:$0xff]
        %v2884 = vld [vmem:[%s192 + $0x28c0] sm:$0xff]
        %v2885 = vld [vmem:[%s192 + $0x28c8] sm:$0xff]
        %v2886 = vld [vmem:[%s192 + $0x28d0] sm:$0xff]
        %v2887 = vld [vmem:[%s192 + $0x28d8] sm:$0xff]
        %v2888 = vld [vmem:[%s192 + $0x28e0] sm:$0xff]
        %v2889 = vld [vmem:[%s192 + $0x28e8] sm:$0xff]
        %v2890 = vld [vmem:[%s192 + $0x28f0] sm:$0xff]
        %v2891 = vld [vmem:[%s192 + $0x28f8] sm:$0xff]
        %v2892 = vld [vmem:[%s192 + $0x2900] sm:$0xff]
        %v2893 = vld [vmem:[%s192 + $0x2908] sm:$0xff]
        %v2894 = vld [vmem:[%s192 + $0x2910] sm:$0xff]
        %v2895 = vld [vmem:[%s192 + $0x2918] sm:$0xff]
        %v2896 = vld [vmem:[%s192 + $0x2920] sm:$0xff]
        %v2897 = vld [vmem:[%s192 + $0x2928] sm:$0xff]
        %v2898 = vld [vmem:[%s192 + $0x2930] sm:$0xff]
        %v2899 = vld [vmem:[%s192 + $0x2938] sm:$0xff]
        %v2900 = vld [vmem:[%s192 + $0x2940] sm:$0xff]
        %v2901 = vld [vmem:[%s192 + $0x2948] sm:$0xff]
        %v2902 = vld [vmem:[%s192 + $0x2950] sm:$0xff]
        %v2903 = vld [vmem:[%s192 + $0x2958] sm:$0xff]
        %v2904 = vld [vmem:[%s192 + $0x2960] sm:$0xff]
        %v2905 = vld [vmem:[%s192 + $0x2968] sm:$0xff]
        %v2906 = vld [vmem:[%s192 + $0x2970] sm:$0xff]
        %v2907 = vld [vmem:[%s192 + $0x2978] sm:$0xff]
        %v2908 = vld [vmem:[%s192 + $0x2980] sm:$0xff]
        %v2909 = vld [vmem:[%s192 + $0x2988] sm:$0xff]
        %v2910 = vld [vmem:[%s192 + $0x2990] sm:$0xff]
        %v2911 = vld [vmem:[%s192 + $0x2998] sm:$0xff]
        %v2912 = vld [vmem:[%s192 + $0x29a0] sm:$0xff]
        %v2913 = vld [vmem:[%s192 + $0x29a8] sm:$0xff]
        %v2914 = vld [vmem:[%s192 + $0x29b0] sm:$0xff]
        %v2915 = vld [vmem:[%s192 + $0x29b8] sm:$0xff]
        %v2916 = vld [vmem:[%s192 + $0x29c0] sm:$0xff]
        %v2917 = vld [vmem:[%s192 + $0x29c8] sm:$0xff]
        %v2918 = vld [vmem:[%s192 + $0x29d0] sm:$0xff]
        %v2919 = vld [vmem:[%s192 + $0x29d8] sm:$0xff]
        %v2920 = vld [vmem:[%s192 + $0x29e0] sm:$0xff]
        %v2921 = vld [vmem:[%s192 + $0x29e8] sm:$0xff]
        %v2922 = vld [vmem:[%s192 + $0x29f0] sm:$0xff]
        %v2923 = vld [vmem:[%s192 + $0x29f8] sm:$0xff]
        %v2924 = vmul.f32 %v236, %v1580
        %v2925 = vmul.f32 %v237, %v1581
        %v2926 = vmul.f32 %v238, %v1582
        %v2927 = vmul.f32 %v239, %v1583
        %v2928 = vmul.f32 %v240, %v1584
        %v2929 = vmul.f32 %v241, %v1585
        %v2930 = vmul.f32 %v242, %v1586
        %v2931 = vmul.f32 %v243, %v1587
        %v2932 = vmul.f32 %v244, %v1588
        %v2933 = vmul.f32 %v245, %v1589
        %v2934 = vmul.f32 %v246, %v1590
        %v2935 = vmul.f32 %v247, %v1591
        %v2936 = vmul.f32 %v248, %v1592
        %v2937 = vmul.f32 %v249, %v1593
        %v2938 = vmul.f32 %v250, %v1594
        %v2939 = vmul.f32 %v251, %v1595
        %v2940 = vmul.f32 %v252, %v1596
        %v2941 = vmul.f32 %v253, %v1597
        %v2942 = vmul.f32 %v254, %v1598
        %v2943 = vmul.f32 %v255, %v1599
        %v2944 = vmul.f32 %v256, %v1600
        %v2945 = vmul.f32 %v257, %v1601
        %v2946 = vmul.f32 %v258, %v1602
        %v2947 = vmul.f32 %v259, %v1603
        %v2948 = vmul.f32 %v260, %v1604
        %v2949 = vmul.f32 %v261, %v1605
        %v2950 = vmul.f32 %v262, %v1606
        %v2951 = vmul.f32 %v263, %v1607
        %v2952 = vmul.f32 %v264, %v1608
        %v2953 = vmul.f32 %v265, %v1609
        %v2954 = vmul.f32 %v266, %v1610
        %v2955 = vmul.f32 %v267, %v1611
        %v2956 = vmul.f32 %v268, %v1612
        %v2957 = vmul.f32 %v269, %v1613
        %v2958 = vmul.f32 %v270, %v1614
        %v2959 = vmul.f32 %v271, %v1615
        %v2960 = vmul.f32 %v272, %v1616
        %v2961 = vmul.f32 %v273, %v1617
        %v2962 = vmul.f32 %v274, %v1618
        %v2963 = vmul.f32 %v275, %v1619
        %v2964 = vmul.f32 %v276, %v1620
        %v2965 = vmul.f32 %v277, %v1621
        %v2966 = vmul.f32 %v278, %v1622
        %v2967 = vmul.f32 %v279, %v1623
        %v2968 = vmul.f32 %v280, %v1624
        %v2969 = vmul.f32 %v281, %v1625
        %v2970 = vmul.f32 %v282, %v1626
        %v2971 = vmul.f32 %v283, %v1627
        %v2972 = vmul.f32 %v284, %v1628
        %v2973 = vmul.f32 %v285, %v1629
        %v2974 = vmul.f32 %v286, %v1630
        %v2975 = vmul.f32 %v287, %v1631
        %v2976 = vmul.f32 %v288, %v1632
        %v2977 = vmul.f32 %v289, %v1633
        %v2978 = vmul.f32 %v290, %v1634
        %v2979 = vmul.f32 %v291, %v1635
        %v2980 = vmul.f32 %v292, %v1636
        %v2981 = vmul.f32 %v293, %v1637
        %v2982 = vmul.f32 %v294, %v1638
        %v2983 = vmul.f32 %v295, %v1639
        %v2984 = vmul.f32 %v296, %v1640
        %v2985 = vmul.f32 %v297, %v1641
        %v2986 = vmul.f32 %v298, %v1642
        %v2987 = vmul.f32 %v299, %v1643
        %v2988 = vmul.f32 %v300, %v1644
        %v2989 = vmul.f32 %v301, %v1645
        %v2990 = vmul.f32 %v302, %v1646
        %v2991 = vmul.f32 %v303, %v1647
        %v2992 = vmul.f32 %v304, %v1648
        %v2993 = vmul.f32 %v305, %v1649
        %v2994 = vmul.f32 %v306, %v1650
        %v2995 = vmul.f32 %v307, %v1651
        %v2996 = vmul.f32 %v308, %v1652
        %v2997 = vmul.f32 %v309, %v1653
        %v2998 = vmul.f32 %v310, %v1654
        %v2999 = vmul.f32 %v311, %v1655
        %v3000 = vmul.f32 %v312, %v1656
        %v3001 = vmul.f32 %v313, %v1657
        %v3002 = vmul.f32 %v314, %v1658
        %v3003 = vmul.f32 %v315, %v1659
        %v3004 = vmul.f32 %v316, %v1660
        %v3005 = vmul.f32 %v317, %v1661
        %v3006 = vmul.f32 %v318, %v1662
        %v3007 = vmul.f32 %v319, %v1663
        %v3008 = vmul.f32 %v320, %v1664
        %v3009 = vmul.f32 %v321, %v1665
        %v3010 = vmul.f32 %v322, %v1666
        %v3011 = vmul.f32 %v323, %v1667
        %v3012 = vmul.f32 %v324, %v1668
        %v3013 = vmul.f32 %v325, %v1669
        %v3014 = vmul.f32 %v326, %v1670
        %v3015 = vmul.f32 %v327, %v1671
        %v3016 = vmul.f32 %v328, %v1672
        %v3017 = vmul.f32 %v329, %v1673
        %v3018 = vmul.f32 %v330, %v1674
        %v3019 = vmul.f32 %v331, %v1675
        %v3020 = vmul.f32 %v332, %v1676
        %v3021 = vmul.f32 %v333, %v1677
        %v3022 = vmul.f32 %v334, %v1678
        %v3023 = vmul.f32 %v335, %v1679
        %v3024 = vmul.f32 %v336, %v1680
        %v3025 = vmul.f32 %v337, %v1681
        %v3026 = vmul.f32 %v338, %v1682
        %v3027 = vmul.f32 %v339, %v1683
        %v3028 = vmul.f32 %v340, %v1684
        %v3029 = vmul.f32 %v341, %v1685
        %v3030 = vmul.f32 %v342, %v1686
        %v3031 = vmul.f32 %v343, %v1687
        %v3032 = vmul.f32 %v344, %v1688
        %v3033 = vmul.f32 %v345, %v1689
        %v3034 = vmul.f32 %v346, %v1690
        %v3035 = vmul.f32 %v347, %v1691
        %v3036 = vmul.f32 %v348, %v1692
        %v3037 = vmul.f32 %v349, %v1693
        %v3038 = vmul.f32 %v350, %v1694
        %v3039 = vmul.f32 %v351, %v1695
        %v3040 = vmul.f32 %v352, %v1696
        %v3041 = vmul.f32 %v353, %v1697
        %v3042 = vmul.f32 %v354, %v1698
        %v3043 = vmul.f32 %v355, %v1699
        %v3044 = vmul.f32 %v356, %v1700
        %v3045 = vmul.f32 %v357, %v1701
        %v3046 = vmul.f32 %v358, %v1702
        %v3047 = vmul.f32 %v359, %v1703
        %v3048 = vmul.f32 %v360, %v1704
        %v3049 = vmul.f32 %v361, %v1705
        %v3050 = vmul.f32 %v362, %v1706
        %v3051 = vmul.f32 %v363, %v1707
        %v3052 = vmul.f32 %v364, %v1708
        %v3053 = vmul.f32 %v365, %v1709
        %v3054 = vmul.f32 %v366, %v1710
        %v3055 = vmul.f32 %v367, %v1711
        %v3056 = vmul.f32 %v368, %v1712
        %v3057 = vmul.f32 %v369, %v1713
        %v3058 = vmul.f32 %v370, %v1714
        %v3059 = vmul.f32 %v371, %v1715
        %v3060 = vmul.f32 %v372, %v1716
        %v3061 = vmul.f32 %v373, %v1717
        %v3062 = vmul.f32 %v374, %v1718
        %v3063 = vmul.f32 %v375, %v1719
        %v3064 = vmul.f32 %v376, %v1720
        %v3065 = vmul.f32 %v377, %v1721
        %v3066 = vmul.f32 %v378, %v1722
        %v3067 = vmul.f32 %v379, %v1723
        %v3068 = vmul.f32 %v380, %v1724
        %v3069 = vmul.f32 %v381, %v1725
        %v3070 = vmul.f32 %v382, %v1726
        %v3071 = vmul.f32 %v383, %v1727
        %v3072 = vmul.f32 %v384, %v1728
        %v3073 = vmul.f32 %v385, %v1729
        %v3074 = vmul.f32 %v386, %v1730
        %v3075 = vmul.f32 %v387, %v1731
        %v3076 = vmul.f32 %v388, %v1732
        %v3077 = vmul.f32 %v389, %v1733
        %v3078 = vmul.f32 %v390, %v1734
        %v3079 = vmul.f32 %v391, %v1735
        %v3080 = vmul.f32 %v392, %v1736
        %v3081 = vmul.f32 %v393, %v1737
        %v3082 = vmul.f32 %v394, %v1738
        %v3083 = vmul.f32 %v395, %v1739
        %v3084 = vmul.f32 %v396, %v1740
        %v3085 = vmul.f32 %v397, %v1741
        %v3086 = vmul.f32 %v398, %v1742
        %v3087 = vmul.f32 %v399, %v1743
        %v3088 = vmul.f32 %v400, %v1744
        %v3089 = vmul.f32 %v401, %v1745
        %v3090 = vmul.f32 %v402, %v1746
        %v3091 = vmul.f32 %v403, %v1747
        %v3092 = vmul.f32 %v404, %v1748
        %v3093 = vmul.f32 %v405, %v1749
        %v3094 = vmul.f32 %v406, %v1750
        %v3095 = vmul.f32 %v407, %v1751
        %v3096 = vmul.f32 %v408, %v1752
        %v3097 = vmul.f32 %v409, %v1753
        %v3098 = vmul.f32 %v410, %v1754
        %v3099 = vmul.f32 %v411, %v1755
        %v3100 = vmul.f32 %v412, %v1756
        %v3101 = vmul.f32 %v413, %v1757
        %v3102 = vmul.f32 %v414, %v1758
        %v3103 = vmul.f32 %v415, %v1759
        %v3104 = vmul.f32 %v416, %v1760
        %v3105 = vmul.f32 %v417, %v1761
        %v3106 = vmul.f32 %v418, %v1762
        %v3107 = vmul.f32 %v419, %v1763
        %v3108 = vmul.f32 %v420, %v1764
        %v3109 = vmul.f32 %v421, %v1765
        %v3110 = vmul.f32 %v422, %v1766
        %v3111 = vmul.f32 %v423, %v1767
        %v3112 = vmul.f32 %v424, %v1768
        %v3113 = vmul.f32 %v425, %v1769
        %v3114 = vmul.f32 %v426, %v1770
        %v3115 = vmul.f32 %v427, %v1771
        %v3116 = vmul.f32 %v428, %v1772
        %v3117 = vmul.f32 %v429, %v1773
        %v3118 = vmul.f32 %v430, %v1774
        %v3119 = vmul.f32 %v431, %v1775
        %v3120 = vmul.f32 %v432, %v1776
        %v3121 = vmul.f32 %v433, %v1777
        %v3122 = vmul.f32 %v434, %v1778
        %v3123 = vmul.f32 %v435, %v1779
        %v3124 = vmul.f32 %v436, %v1780
        %v3125 = vmul.f32 %v437, %v1781
        %v3126 = vmul.f32 %v438, %v1782
        %v3127 = vmul.f32 %v439, %v1783
        %v3128 = vmul.f32 %v440, %v1784
        %v3129 = vmul.f32 %v441, %v1785
        %v3130 = vmul.f32 %v442, %v1786
        %v3131 = vmul.f32 %v443, %v1787
        %v3132 = vmul.f32 %v444, %v1788
        %v3133 = vmul.f32 %v445, %v1789
        %v3134 = vmul.f32 %v446, %v1790
        %v3135 = vmul.f32 %v447, %v1791
        %v3136 = vmul.f32 %v448, %v1792
        %v3137 = vmul.f32 %v449, %v1793
        %v3138 = vmul.f32 %v450, %v1794
        %v3139 = vmul.f32 %v451, %v1795
        %v3140 = vmul.f32 %v452, %v1796
        %v3141 = vmul.f32 %v453, %v1797
        %v3142 = vmul.f32 %v454, %v1798
        %v3143 = vmul.f32 %v455, %v1799
        %v3144 = vmul.f32 %v456, %v1800
        %v3145 = vmul.f32 %v457, %v1801
        %v3146 = vmul.f32 %v458, %v1802
        %v3147 = vmul.f32 %v459, %v1803
        %v3148 = vmul.f32 %v460, %v1804
        %v3149 = vmul.f32 %v461, %v1805
        %v3150 = vmul.f32 %v462, %v1806
        %v3151 = vmul.f32 %v463, %v1807
        %v3152 = vmul.f32 %v464, %v1808
        %v3153 = vmul.f32 %v465, %v1809
        %v3154 = vmul.f32 %v466, %v1810
        %v3155 = vmul.f32 %v467, %v1811
        %v3156 = vmul.f32 %v468, %v1812
        %v3157 = vmul.f32 %v469, %v1813
        %v3158 = vmul.f32 %v470, %v1814
        %v3159 = vmul.f32 %v471, %v1815
        %v3160 = vmul.f32 %v472, %v1816
        %v3161 = vmul.f32 %v473, %v1817
        %v3162 = vmul.f32 %v474, %v1818
        %v3163 = vmul.f32 %v475, %v1819
        %v3164 = vmul.f32 %v476, %v1820
        %v3165 = vmul.f32 %v477, %v1821
        %v3166 = vmul.f32 %v478, %v1822
        %v3167 = vmul.f32 %v479, %v1823
        %v3168 = vmul.f32 %v480, %v1824
        %v3169 = vmul.f32 %v481, %v1825
        %v3170 = vmul.f32 %v482, %v1826
        %v3171 = vmul.f32 %v483, %v1827
        %v3172 = vmul.f32 %v484, %v1828
        %v3173 = vmul.f32 %v485, %v1829
        %v3174 = vmul.f32 %v486, %v1830
        %v3175 = vmul.f32 %v487, %v1831
        %v3176 = vmul.f32 %v488, %v1832
        %v3177 = vmul.f32 %v489, %v1833
        %v3178 = vmul.f32 %v490, %v1834
        %v3179 = vmul.f32 %v491, %v1835
        %v3180 = vmul.f32 %v492, %v1836
        %v3181 = vmul.f32 %v493, %v1837
        %v3182 = vmul.f32 %v494, %v1838
        %v3183 = vmul.f32 %v495, %v1839
        %v3184 = vmul.f32 %v496, %v1840
        %v3185 = vmul.f32 %v497, %v1841
        %v3186 = vmul.f32 %v498, %v1842
        %v3187 = vmul.f32 %v499, %v1843
        %v3188 = vmul.f32 %v500, %v1844
        %v3189 = vmul.f32 %v501, %v1845
        %v3190 = vmul.f32 %v502, %v1846
        %v3191 = vmul.f32 %v503, %v1847
        %v3192 = vmul.f32 %v504, %v1848
        %v3193 = vmul.f32 %v505, %v1849
        %v3194 = vmul.f32 %v506, %v1850
        %v3195 = vmul.f32 %v507, %v1851
        %v3196 = vmul.f32 %v508, %v1852
        %v3197 = vmul.f32 %v509, %v1853
        %v3198 = vmul.f32 %v510, %v1854
        %v3199 = vmul.f32 %v511, %v1855
        %v3200 = vmul.f32 %v512, %v1856
        %v3201 = vmul.f32 %v513, %v1857
        %v3202 = vmul.f32 %v514, %v1858
        %v3203 = vmul.f32 %v515, %v1859
        %v3204 = vmul.f32 %v516, %v1860
        %v3205 = vmul.f32 %v517, %v1861
        %v3206 = vmul.f32 %v518, %v1862
        %v3207 = vmul.f32 %v519, %v1863
        %v3208 = vmul.f32 %v520, %v1864
        %v3209 = vmul.f32 %v521, %v1865
        %v3210 = vmul.f32 %v522, %v1866
        %v3211 = vmul.f32 %v523, %v1867
        %v3212 = vmul.f32 %v524, %v1868
        %v3213 = vmul.f32 %v525, %v1869
        %v3214 = vmul.f32 %v526, %v1870
        %v3215 = vmul.f32 %v527, %v1871
        %v3216 = vmul.f32 %v528, %v1872
        %v3217 = vmul.f32 %v529, %v1873
        %v3218 = vmul.f32 %v530, %v1874
        %v3219 = vmul.f32 %v531, %v1875
        %v3220 = vmul.f32 %v532, %v1876
        %v3221 = vmul.f32 %v533, %v1877
        %v3222 = vmul.f32 %v534, %v1878
        %v3223 = vmul.f32 %v535, %v1879
        %v3224 = vmul.f32 %v536, %v1880
        %v3225 = vmul.f32 %v537, %v1881
        %v3226 = vmul.f32 %v538, %v1882
        %v3227 = vmul.f32 %v539, %v1883
        %v3228 = vmul.f32 %v540, %v1884
        %v3229 = vmul.f32 %v541, %v1885
        %v3230 = vmul.f32 %v542, %v1886
        %v3231 = vmul.f32 %v543, %v1887
        %v3232 = vmul.f32 %v544, %v1888
        %v3233 = vmul.f32 %v545, %v1889
        %v3234 = vmul.f32 %v546, %v1890
        %v3235 = vmul.f32 %v547, %v1891
        %v3236 = vmul.f32 %v548, %v1892
        %v3237 = vmul.f32 %v549, %v1893
        %v3238 = vmul.f32 %v550, %v1894
        %v3239 = vmul.f32 %v551, %v1895
        %v3240 = vmul.f32 %v552, %v1896
        %v3241 = vmul.f32 %v553, %v1897
        %v3242 = vmul.f32 %v554, %v1898
        %v3243 = vmul.f32 %v555, %v1899
        %v3244 = vmul.f32 %v556, %v1900
        %v3245 = vmul.f32 %v557, %v1901
        %v3246 = vmul.f32 %v558, %v1902
        %v3247 = vmul.f32 %v559, %v1903
        %v3248 = vmul.f32 %v560, %v1904
        %v3249 = vmul.f32 %v561, %v1905
        %v3250 = vmul.f32 %v562, %v1906
        %v3251 = vmul.f32 %v563, %v1907
        %v3252 = vmul.f32 %v564, %v1908
        %v3253 = vmul.f32 %v565, %v1909
        %v3254 = vmul.f32 %v566, %v1910
        %v3255 = vmul.f32 %v567, %v1911
        %v3256 = vmul.f32 %v568, %v1912
        %v3257 = vmul.f32 %v569, %v1913
        %v3258 = vmul.f32 %v570, %v1914
        %v3259 = vmul.f32 %v571, %v1915
        %v3260 = vmul.f32 %v572, %v1916
        %v3261 = vmul.f32 %v573, %v1917
        %v3262 = vmul.f32 %v574, %v1918
        %v3263 = vmul.f32 %v575, %v1919
        %v3264 = vmul.f32 %v576, %v1920
        %v3265 = vmul.f32 %v577, %v1921
        %v3266 = vmul.f32 %v578, %v1922
        %v3267 = vmul.f32 %v579, %v1923
        %v3268 = vmul.f32 %v580, %v1924
        %v3269 = vmul.f32 %v581, %v1925
        %v3270 = vmul.f32 %v582, %v1926
        %v3271 = vmul.f32 %v583, %v1927
        %v3272 = vmul.f32 %v584, %v1928
        %v3273 = vmul.f32 %v585, %v1929
        %v3274 = vmul.f32 %v586, %v1930
        %v3275 = vmul.f32 %v587, %v1931
        %v3276 = vmul.f32 %v588, %v1932
        %v3277 = vmul.f32 %v589, %v1933
        %v3278 = vmul.f32 %v590, %v1934
        %v3279 = vmul.f32 %v591, %v1935
        %v3280 = vmul.f32 %v592, %v1936
        %v3281 = vmul.f32 %v593, %v1937
        %v3282 = vmul.f32 %v594, %v1938
        %v3283 = vmul.f32 %v595, %v1939
        %v3284 = vmul.f32 %v596, %v1940
        %v3285 = vmul.f32 %v597, %v1941
        %v3286 = vmul.f32 %v598, %v1942
        %v3287 = vmul.f32 %v599, %v1943
        %v3288 = vmul.f32 %v600, %v1944
        %v3289 = vmul.f32 %v601, %v1945
        %v3290 = vmul.f32 %v602, %v1946
        %v3291 = vmul.f32 %v603, %v1947
        %v3292 = vmul.f32 %v604, %v1948
        %v3293 = vmul.f32 %v605, %v1949
        %v3294 = vmul.f32 %v606, %v1950
        %v3295 = vmul.f32 %v607, %v1951
        %v3296 = vmul.f32 %v608, %v1952
        %v3297 = vmul.f32 %v609, %v1953
        %v3298 = vmul.f32 %v610, %v1954
        %v3299 = vmul.f32 %v611, %v1955
        %v3300 = vmul.f32 %v612, %v1956
        %v3301 = vmul.f32 %v613, %v1957
        %v3302 = vmul.f32 %v614, %v1958
        %v3303 = vmul.f32 %v615, %v1959
        %v3304 = vmul.f32 %v616, %v1960
        %v3305 = vmul.f32 %v617, %v1961
        %v3306 = vmul.f32 %v618, %v1962
        %v3307 = vmul.f32 %v619, %v1963
        %v3308 = vmul.f32 %v620, %v1964
        %v3309 = vmul.f32 %v621, %v1965
        %v3310 = vmul.f32 %v622, %v1966
        %v3311 = vmul.f32 %v623, %v1967
        %v3312 = vmul.f32 %v624, %v1968
        %v3313 = vmul.f32 %v625, %v1969
        %v3314 = vmul.f32 %v626, %v1970
        %v3315 = vmul.f32 %v627, %v1971
        %v3316 = vmul.f32 %v628, %v1972
        %v3317 = vmul.f32 %v629, %v1973
        %v3318 = vmul.f32 %v630, %v1974
        %v3319 = vmul.f32 %v631, %v1975
        %v3320 = vmul.f32 %v632, %v1976
        %v3321 = vmul.f32 %v633, %v1977
        %v3322 = vmul.f32 %v634, %v1978
        %v3323 = vmul.f32 %v635, %v1979
        %v3324 = vmul.f32 %v636, %v1980
        %v3325 = vmul.f32 %v637, %v1981
        %v3326 = vmul.f32 %v638, %v1982
        %v3327 = vmul.f32 %v639, %v1983
        %v3328 = vmul.f32 %v640, %v1984
        %v3329 = vmul.f32 %v641, %v1985
        %v3330 = vmul.f32 %v642, %v1986
        %v3331 = vmul.f32 %v643, %v1987
        %v3332 = vmul.f32 %v644, %v1988
        %v3333 = vmul.f32 %v645, %v1989
        %v3334 = vmul.f32 %v646, %v1990
        %v3335 = vmul.f32 %v647, %v1991
        %v3336 = vmul.f32 %v648, %v1992
        %v3337 = vmul.f32 %v649, %v1993
        %v3338 = vmul.f32 %v650, %v1994
        %v3339 = vmul.f32 %v651, %v1995
        %v3340 = vmul.f32 %v652, %v1996
        %v3341 = vmul.f32 %v653, %v1997
        %v3342 = vmul.f32 %v654, %v1998
        %v3343 = vmul.f32 %v655, %v1999
        %v3344 = vmul.f32 %v656, %v2000
        %v3345 = vmul.f32 %v657, %v2001
        %v3346 = vmul.f32 %v658, %v2002
        %v3347 = vmul.f32 %v659, %v2003
        %v3348 = vmul.f32 %v660, %v2004
        %v3349 = vmul.f32 %v661, %v2005
        %v3350 = vmul.f32 %v662, %v2006
        %v3351 = vmul.f32 %v663, %v2007
        %v3352 = vmul.f32 %v664, %v2008
        %v3353 = vmul.f32 %v665, %v2009
        %v3354 = vmul.f32 %v666, %v2010
        %v3355 = vmul.f32 %v667, %v2011
        %v3356 = vmul.f32 %v668, %v2012
        %v3357 = vmul.f32 %v669, %v2013
        %v3358 = vmul.f32 %v670, %v2014
        %v3359 = vmul.f32 %v671, %v2015
        %v3360 = vmul.f32 %v672, %v2016
        %v3361 = vmul.f32 %v673, %v2017
        %v3362 = vmul.f32 %v674, %v2018
        %v3363 = vmul.f32 %v675, %v2019
        %v3364 = vmul.f32 %v676, %v2020
        %v3365 = vmul.f32 %v677, %v2021
        %v3366 = vmul.f32 %v678, %v2022
        %v3367 = vmul.f32 %v679, %v2023
        %v3368 = vmul.f32 %v680, %v2024
        %v3369 = vmul.f32 %v681, %v2025
        %v3370 = vmul.f32 %v682, %v2026
        %v3371 = vmul.f32 %v683, %v2027
        %v3372 = vmul.f32 %v684, %v2028
        %v3373 = vmul.f32 %v685, %v2029
        %v3374 = vmul.f32 %v686, %v2030
        %v3375 = vmul.f32 %v687, %v2031
        %v3376 = vmul.f32 %v688, %v2032
        %v3377 = vmul.f32 %v689, %v2033
        %v3378 = vmul.f32 %v690, %v2034
        %v3379 = vmul.f32 %v691, %v2035
        %v3380 = vmul.f32 %v692, %v2036
        %v3381 = vmul.f32 %v693, %v2037
        %v3382 = vmul.f32 %v694, %v2038
        %v3383 = vmul.f32 %v695, %v2039
        %v3384 = vmul.f32 %v696, %v2040
        %v3385 = vmul.f32 %v697, %v2041
        %v3386 = vmul.f32 %v698, %v2042
        %v3387 = vmul.f32 %v699, %v2043
        %v3388 = vmul.f32 %v700, %v2044
        %v3389 = vmul.f32 %v701, %v2045
        %v3390 = vmul.f32 %v702, %v2046
        %v3391 = vmul.f32 %v703, %v2047
        %v3392 = vmul.f32 %v704, %v2048
        %v3393 = vmul.f32 %v705, %v2049
        %v3394 = vmul.f32 %v706, %v2050
        %v3395 = vmul.f32 %v707, %v2051
        %v3396 = vmul.f32 %v708, %v2052
        %v3397 = vmul.f32 %v709, %v2053
        %v3398 = vmul.f32 %v710, %v2054
        %v3399 = vmul.f32 %v711, %v2055
        %v3400 = vmul.f32 %v712, %v2056
        %v3401 = vmul.f32 %v713, %v2057
        %v3402 = vmul.f32 %v714, %v2058
        %v3403 = vmul.f32 %v715, %v2059
        %v3404 = vmul.f32 %v716, %v2060
        %v3405 = vmul.f32 %v717, %v2061
        %v3406 = vmul.f32 %v718, %v2062
        %v3407 = vmul.f32 %v719, %v2063
        %v3408 = vmul.f32 %v720, %v2064
        %v3409 = vmul.f32 %v721, %v2065
        %v3410 = vmul.f32 %v722, %v2066
        %v3411 = vmul.f32 %v723, %v2067
        %v3412 = vmul.f32 %v724, %v2068
        %v3413 = vmul.f32 %v725, %v2069
        %v3414 = vmul.f32 %v726, %v2070
        %v3415 = vmul.f32 %v727, %v2071
        %v3416 = vmul.f32 %v728, %v2072
        %v3417 = vmul.f32 %v729, %v2073
        %v3418 = vmul.f32 %v730, %v2074
        %v3419 = vmul.f32 %v731, %v2075
        %v3420 = vmul.f32 %v732, %v2076
        %v3421 = vmul.f32 %v733, %v2077
        %v3422 = vmul.f32 %v734, %v2078
        %v3423 = vmul.f32 %v735, %v2079
        %v3424 = vmul.f32 %v736, %v2080
        %v3425 = vmul.f32 %v737, %v2081
        %v3426 = vmul.f32 %v738, %v2082
        %v3427 = vmul.f32 %v739, %v2083
        %v3428 = vmul.f32 %v740, %v2084
        %v3429 = vmul.f32 %v741, %v2085
        %v3430 = vmul.f32 %v742, %v2086
        %v3431 = vmul.f32 %v743, %v2087
        %v3432 = vmul.f32 %v744, %v2088
        %v3433 = vmul.f32 %v745, %v2089
        %v3434 = vmul.f32 %v746, %v2090
        %v3435 = vmul.f32 %v747, %v2091
        %v3436 = vmul.f32 %v748, %v2092
        %v3437 = vmul.f32 %v749, %v2093
        %v3438 = vmul.f32 %v750, %v2094
        %v3439 = vmul.f32 %v751, %v2095
        %v3440 = vmul.f32 %v752, %v2096
        %v3441 = vmul.f32 %v753, %v2097
        %v3442 = vmul.f32 %v754, %v2098
        %v3443 = vmul.f32 %v755, %v2099
        %v3444 = vmul.f32 %v756, %v2100
        %v3445 = vmul.f32 %v757, %v2101
        %v3446 = vmul.f32 %v758, %v2102
        %v3447 = vmul.f32 %v759, %v2103
        %v3448 = vmul.f32 %v760, %v2104
        %v3449 = vmul.f32 %v761, %v2105
        %v3450 = vmul.f32 %v762, %v2106
        %v3451 = vmul.f32 %v763, %v2107
        %v3452 = vmul.f32 %v764, %v2108
        %v3453 = vmul.f32 %v765, %v2109
        %v3454 = vmul.f32 %v766, %v2110
        %v3455 = vmul.f32 %v767, %v2111
        %v3456 = vmul.f32 %v768, %v2112
        %v3457 = vmul.f32 %v769, %v2113
        %v3458 = vmul.f32 %v770, %v2114
        %v3459 = vmul.f32 %v771, %v2115
        %v3460 = vmul.f32 %v772, %v2116
        %v3461 = vmul.f32 %v773, %v2117
        %v3462 = vmul.f32 %v774, %v2118
        %v3463 = vmul.f32 %v775, %v2119
        %v3464 = vmul.f32 %v776, %v2120
        %v3465 = vmul.f32 %v777, %v2121
        %v3466 = vmul.f32 %v778, %v2122
        %v3467 = vmul.f32 %v779, %v2123
        %v3468 = vmul.f32 %v780, %v2124
        %v3469 = vmul.f32 %v781, %v2125
        %v3470 = vmul.f32 %v782, %v2126
        %v3471 = vmul.f32 %v783, %v2127
        %v3472 = vmul.f32 %v784, %v2128
        %v3473 = vmul.f32 %v785, %v2129
        %v3474 = vmul.f32 %v786, %v2130
        %v3475 = vmul.f32 %v787, %v2131
        %v3476 = vmul.f32 %v788, %v2132
        %v3477 = vmul.f32 %v789, %v2133
        %v3478 = vmul.f32 %v790, %v2134
        %v3479 = vmul.f32 %v791, %v2135
        %v3480 = vmul.f32 %v792, %v2136
        %v3481 = vmul.f32 %v793, %v2137
        %v3482 = vmul.f32 %v794, %v2138
        %v3483 = vmul.f32 %v795, %v2139
        %v3484 = vmul.f32 %v796, %v2140
        %v3485 = vmul.f32 %v797, %v2141
        %v3486 = vmul.f32 %v798, %v2142
        %v3487 = vmul.f32 %v799, %v2143
        %v3488 = vmul.f32 %v800, %v2144
        %v3489 = vmul.f32 %v801, %v2145
        %v3490 = vmul.f32 %v802, %v2146
        %v3491 = vmul.f32 %v803, %v2147
        %v3492 = vmul.f32 %v804, %v2148
        %v3493 = vmul.f32 %v805, %v2149
        %v3494 = vmul.f32 %v806, %v2150
        %v3495 = vmul.f32 %v807, %v2151
        %v3496 = vmul.f32 %v808, %v2152
        %v3497 = vmul.f32 %v809, %v2153
        %v3498 = vmul.f32 %v810, %v2154
        %v3499 = vmul.f32 %v811, %v2155
        %v3500 = vmul.f32 %v812, %v2156
        %v3501 = vmul.f32 %v813, %v2157
        %v3502 = vmul.f32 %v814, %v2158
        %v3503 = vmul.f32 %v815, %v2159
        %v3504 = vmul.f32 %v816, %v2160
        %v3505 = vmul.f32 %v817, %v2161
        %v3506 = vmul.f32 %v818, %v2162
        %v3507 = vmul.f32 %v819, %v2163
        %v3508 = vmul.f32 %v820, %v2164
        %v3509 = vmul.f32 %v821, %v2165
        %v3510 = vmul.f32 %v822, %v2166
        %v3511 = vmul.f32 %v823, %v2167
        %v3512 = vmul.f32 %v824, %v2168
        %v3513 = vmul.f32 %v825, %v2169
        %v3514 = vmul.f32 %v826, %v2170
        %v3515 = vmul.f32 %v827, %v2171
        %v3516 = vmul.f32 %v828, %v2172
        %v3517 = vmul.f32 %v829, %v2173
        %v3518 = vmul.f32 %v830, %v2174
        %v3519 = vmul.f32 %v831, %v2175
        %v3520 = vmul.f32 %v832, %v2176
        %v3521 = vmul.f32 %v833, %v2177
        %v3522 = vmul.f32 %v834, %v2178
        %v3523 = vmul.f32 %v835, %v2179
        %v3524 = vmul.f32 %v836, %v2180
        %v3525 = vmul.f32 %v837, %v2181
        %v3526 = vmul.f32 %v838, %v2182
        %v3527 = vmul.f32 %v839, %v2183
        %v3528 = vmul.f32 %v840, %v2184
        %v3529 = vmul.f32 %v841, %v2185
        %v3530 = vmul.f32 %v842, %v2186
        %v3531 = vmul.f32 %v843, %v2187
        %v3532 = vmul.f32 %v844, %v2188
        %v3533 = vmul.f32 %v845, %v2189
        %v3534 = vmul.f32 %v846, %v2190
        %v3535 = vmul.f32 %v847, %v2191
        %v3536 = vmul.f32 %v848, %v2192
        %v3537 = vmul.f32 %v849, %v2193
        %v3538 = vmul.f32 %v850, %v2194
        %v3539 = vmul.f32 %v851, %v2195
        %v3540 = vmul.f32 %v852, %v2196
        %v3541 = vmul.f32 %v853, %v2197
        %v3542 = vmul.f32 %v854, %v2198
        %v3543 = vmul.f32 %v855, %v2199
        %v3544 = vmul.f32 %v856, %v2200
        %v3545 = vmul.f32 %v857, %v2201
        %v3546 = vmul.f32 %v858, %v2202
        %v3547 = vmul.f32 %v859, %v2203
        %v3548 = vmul.f32 %v860, %v2204
        %v3549 = vmul.f32 %v861, %v2205
        %v3550 = vmul.f32 %v862, %v2206
        %v3551 = vmul.f32 %v863, %v2207
        %v3552 = vmul.f32 %v864, %v2208
        %v3553 = vmul.f32 %v865, %v2209
        %v3554 = vmul.f32 %v866, %v2210
        %v3555 = vmul.f32 %v867, %v2211
        %v3556 = vmul.f32 %v868, %v2212
        %v3557 = vmul.f32 %v869, %v2213
        %v3558 = vmul.f32 %v870, %v2214
        %v3559 = vmul.f32 %v871, %v2215
        %v3560 = vmul.f32 %v872, %v2216
        %v3561 = vmul.f32 %v873, %v2217
        %v3562 = vmul.f32 %v874, %v2218
        %v3563 = vmul.f32 %v875, %v2219
        %v3564 = vmul.f32 %v876, %v2220
        %v3565 = vmul.f32 %v877, %v2221
        %v3566 = vmul.f32 %v878, %v2222
        %v3567 = vmul.f32 %v879, %v2223
        %v3568 = vmul.f32 %v880, %v2224
        %v3569 = vmul.f32 %v881, %v2225
        %v3570 = vmul.f32 %v882, %v2226
        %v3571 = vmul.f32 %v883, %v2227
        %v3572 = vmul.f32 %v884, %v2228
        %v3573 = vmul.f32 %v885, %v2229
        %v3574 = vmul.f32 %v886, %v2230
        %v3575 = vmul.f32 %v887, %v2231
        %v3576 = vmul.f32 %v888, %v2232
        %v3577 = vmul.f32 %v889, %v2233
        %v3578 = vmul.f32 %v890, %v2234
        %v3579 = vmul.f32 %v891, %v2235
        %v3580 = vmul.f32 %v892, %v2236
        %v3581 = vmul.f32 %v893, %v2237
        %v3582 = vmul.f32 %v894, %v2238
        %v3583 = vmul.f32 %v895, %v2239
        %v3584 = vmul.f32 %v896, %v2240
        %v3585 = vmul.f32 %v897, %v2241
        %v3586 = vmul.f32 %v898, %v2242
        %v3587 = vmul.f32 %v899, %v2243
        %v3588 = vmul.f32 %v900, %v2244
        %v3589 = vmul.f32 %v901, %v2245
        %v3590 = vmul.f32 %v902, %v2246
        %v3591 = vmul.f32 %v903, %v2247
        %v3592 = vmul.f32 %v904, %v2248
        %v3593 = vmul.f32 %v905, %v2249
        %v3594 = vmul.f32 %v906, %v2250
        %v3595 = vmul.f32 %v907, %v2251
        %v3596 = vmul.f32 %v908, %v2252
        %v3597 = vmul.f32 %v909, %v2253
        %v3598 = vmul.f32 %v910, %v2254
        %v3599 = vmul.f32 %v911, %v2255
        %v3600 = vmul.f32 %v912, %v2256
        %v3601 = vmul.f32 %v913, %v2257
        %v3602 = vmul.f32 %v914, %v2258
        %v3603 = vmul.f32 %v915, %v2259
        %v3604 = vmul.f32 %v916, %v2260
        %v3605 = vmul.f32 %v917, %v2261
        %v3606 = vmul.f32 %v918, %v2262
        %v3607 = vmul.f32 %v919, %v2263
        %v3608 = vmul.f32 %v920, %v2264
        %v3609 = vmul.f32 %v921, %v2265
        %v3610 = vmul.f32 %v922, %v2266
        %v3611 = vmul.f32 %v923, %v2267
        %v3612 = vmul.f32 %v924, %v2268
        %v3613 = vmul.f32 %v925, %v2269
        %v3614 = vmul.f32 %v926, %v2270
        %v3615 = vmul.f32 %v927, %v2271
        %v3616 = vmul.f32 %v928, %v2272
        %v3617 = vmul.f32 %v929, %v2273
        %v3618 = vmul.f32 %v930, %v2274
        %v3619 = vmul.f32 %v931, %v2275
        %v3620 = vmul.f32 %v932, %v2276
        %v3621 = vmul.f32 %v933, %v2277
        %v3622 = vmul.f32 %v934, %v2278
        %v3623 = vmul.f32 %v935, %v2279
        %v3624 = vmul.f32 %v936, %v2280
        %v3625 = vmul.f32 %v937, %v2281
        %v3626 = vmul.f32 %v938, %v2282
        %v3627 = vmul.f32 %v939, %v2283
        %v3628 = vmul.f32 %v940, %v2284
        %v3629 = vmul.f32 %v941, %v2285
        %v3630 = vmul.f32 %v942, %v2286
        %v3631 = vmul.f32 %v943, %v2287
        %v3632 = vmul.f32 %v944, %v2288
        %v3633 = vmul.f32 %v945, %v2289
        %v3634 = vmul.f32 %v946, %v2290
        %v3635 = vmul.f32 %v947, %v2291
        %v3636 = vmul.f32 %v948, %v2292
        %v3637 = vmul.f32 %v949, %v2293
        %v3638 = vmul.f32 %v950, %v2294
        %v3639 = vmul.f32 %v951, %v2295
        %v3640 = vmul.f32 %v952, %v2296
        %v3641 = vmul.f32 %v953, %v2297
        %v3642 = vmul.f32 %v954, %v2298
        %v3643 = vmul.f32 %v955, %v2299
        %v3644 = vmul.f32 %v956, %v2300
        %v3645 = vmul.f32 %v957, %v2301
        %v3646 = vmul.f32 %v958, %v2302
        %v3647 = vmul.f32 %v959, %v2303
        %v3648 = vmul.f32 %v960, %v2304
        %v3649 = vmul.f32 %v961, %v2305
        %v3650 = vmul.f32 %v962, %v2306
        %v3651 = vmul.f32 %v963, %v2307
        %v3652 = vmul.f32 %v964, %v2308
        %v3653 = vmul.f32 %v965, %v2309
        %v3654 = vmul.f32 %v966, %v2310
        %v3655 = vmul.f32 %v967, %v2311
        %v3656 = vmul.f32 %v968, %v2312
        %v3657 = vmul.f32 %v969, %v2313
        %v3658 = vmul.f32 %v970, %v2314
        %v3659 = vmul.f32 %v971, %v2315
        %v3660 = vmul.f32 %v972, %v2316
        %v3661 = vmul.f32 %v973, %v2317
        %v3662 = vmul.f32 %v974, %v2318
        %v3663 = vmul.f32 %v975, %v2319
        %v3664 = vmul.f32 %v976, %v2320
        %v3665 = vmul.f32 %v977, %v2321
        %v3666 = vmul.f32 %v978, %v2322
        %v3667 = vmul.f32 %v979, %v2323
        %v3668 = vmul.f32 %v980, %v2324
        %v3669 = vmul.f32 %v981, %v2325
        %v3670 = vmul.f32 %v982, %v2326
        %v3671 = vmul.f32 %v983, %v2327
        %v3672 = vmul.f32 %v984, %v2328
        %v3673 = vmul.f32 %v985, %v2329
        %v3674 = vmul.f32 %v986, %v2330
        %v3675 = vmul.f32 %v987, %v2331
        %v3676 = vmul.f32 %v988, %v2332
        %v3677 = vmul.f32 %v989, %v2333
        %v3678 = vmul.f32 %v990, %v2334
        %v3679 = vmul.f32 %v991, %v2335
        %v3680 = vmul.f32 %v992, %v2336
        %v3681 = vmul.f32 %v993, %v2337
        %v3682 = vmul.f32 %v994, %v2338
        %v3683 = vmul.f32 %v995, %v2339
        %v3684 = vmul.f32 %v996, %v2340
        %v3685 = vmul.f32 %v997, %v2341
        %v3686 = vmul.f32 %v998, %v2342
        %v3687 = vmul.f32 %v999, %v2343
        %v3688 = vmul.f32 %v1000, %v2344
        %v3689 = vmul.f32 %v1001, %v2345
        %v3690 = vmul.f32 %v1002, %v2346
        %v3691 = vmul.f32 %v1003, %v2347
        %v3692 = vmul.f32 %v1004, %v2348
        %v3693 = vmul.f32 %v1005, %v2349
        %v3694 = vmul.f32 %v1006, %v2350
        %v3695 = vmul.f32 %v1007, %v2351
        %v3696 = vmul.f32 %v1008, %v2352
        %v3697 = vmul.f32 %v1009, %v2353
        %v3698 = vmul.f32 %v1010, %v2354
        %v3699 = vmul.f32 %v1011, %v2355
        %v3700 = vmul.f32 %v1012, %v2356
        %v3701 = vmul.f32 %v1013, %v2357
        %v3702 = vmul.f32 %v1014, %v2358
        %v3703 = vmul.f32 %v1015, %v2359
        %v3704 = vmul.f32 %v1016, %v2360
        %v3705 = vmul.f32 %v1017, %v2361
        %v3706 = vmul.f32 %v1018, %v2362
        %v3707 = vmul.f32 %v1019, %v2363
        %v3708 = vmul.f32 %v1020, %v2364
        %v3709 = vmul.f32 %v1021, %v2365
        %v3710 = vmul.f32 %v1022, %v2366
        %v3711 = vmul.f32 %v1023, %v2367
        %v3712 = vmul.f32 %v1024, %v2368
        %v3713 = vmul.f32 %v1025, %v2369
        %v3714 = vmul.f32 %v1026, %v2370
        %v3715 = vmul.f32 %v1027, %v2371
        %v3716 = vmul.f32 %v1028, %v2372
        %v3717 = vmul.f32 %v1029, %v2373
        %v3718 = vmul.f32 %v1030, %v2374
        %v3719 = vmul.f32 %v1031, %v2375
        %v3720 = vmul.f32 %v1032, %v2376
        %v3721 = vmul.f32 %v1033, %v2377
        %v3722 = vmul.f32 %v1034, %v2378
        %v3723 = vmul.f32 %v1035, %v2379
        %v3724 = vmul.f32 %v1036, %v2380
        %v3725 = vmul.f32 %v1037, %v2381
        %v3726 = vmul.f32 %v1038, %v2382
        %v3727 = vmul.f32 %v1039, %v2383
        %v3728 = vmul.f32 %v1040, %v2384
        %v3729 = vmul.f32 %v1041, %v2385
        %v3730 = vmul.f32 %v1042, %v2386
        %v3731 = vmul.f32 %v1043, %v2387
        %v3732 = vmul.f32 %v1044, %v2388
        %v3733 = vmul.f32 %v1045, %v2389
        %v3734 = vmul.f32 %v1046, %v2390
        %v3735 = vmul.f32 %v1047, %v2391
        %v3736 = vmul.f32 %v1048, %v2392
        %v3737 = vmul.f32 %v1049, %v2393
        %v3738 = vmul.f32 %v1050, %v2394
        %v3739 = vmul.f32 %v1051, %v2395
        %v3740 = vmul.f32 %v1052, %v2396
        %v3741 = vmul.f32 %v1053, %v2397
        %v3742 = vmul.f32 %v1054, %v2398
        %v3743 = vmul.f32 %v1055, %v2399
        %v3744 = vmul.f32 %v1056, %v2400
        %v3745 = vmul.f32 %v1057, %v2401
        %v3746 = vmul.f32 %v1058, %v2402
        %v3747 = vmul.f32 %v1059, %v2403
        %v3748 = vmul.f32 %v1060, %v2404
        %v3749 = vmul.f32 %v1061, %v2405
        %v3750 = vmul.f32 %v1062, %v2406
        %v3751 = vmul.f32 %v1063, %v2407
        %v3752 = vmul.f32 %v1064, %v2408
        %v3753 = vmul.f32 %v1065, %v2409
        %v3754 = vmul.f32 %v1066, %v2410
        %v3755 = vmul.f32 %v1067, %v2411
        %v3756 = vmul.f32 %v1068, %v2412
        %v3757 = vmul.f32 %v1069, %v2413
        %v3758 = vmul.f32 %v1070, %v2414
        %v3759 = vmul.f32 %v1071, %v2415
        %v3760 = vmul.f32 %v1072, %v2416
        %v3761 = vmul.f32 %v1073, %v2417
        %v3762 = vmul.f32 %v1074, %v2418
        %v3763 = vmul.f32 %v1075, %v2419
        %v3764 = vmul.f32 %v1076, %v2420
        %v3765 = vmul.f32 %v1077, %v2421
        %v3766 = vmul.f32 %v1078, %v2422
        %v3767 = vmul.f32 %v1079, %v2423
        %v3768 = vmul.f32 %v1080, %v2424
        %v3769 = vmul.f32 %v1081, %v2425
        %v3770 = vmul.f32 %v1082, %v2426
        %v3771 = vmul.f32 %v1083, %v2427
        %v3772 = vmul.f32 %v1084, %v2428
        %v3773 = vmul.f32 %v1085, %v2429
        %v3774 = vmul.f32 %v1086, %v2430
        %v3775 = vmul.f32 %v1087, %v2431
        %v3776 = vmul.f32 %v1088, %v2432
        %v3777 = vmul.f32 %v1089, %v2433
        %v3778 = vmul.f32 %v1090, %v2434
        %v3779 = vmul.f32 %v1091, %v2435
        %v3780 = vmul.f32 %v1092, %v2436
        %v3781 = vmul.f32 %v1093, %v2437
        %v3782 = vmul.f32 %v1094, %v2438
        %v3783 = vmul.f32 %v1095, %v2439
        %v3784 = vmul.f32 %v1096, %v2440
        %v3785 = vmul.f32 %v1097, %v2441
        %v3786 = vmul.f32 %v1098, %v2442
        %v3787 = vmul.f32 %v1099, %v2443
        %v3788 = vmul.f32 %v1100, %v2444
        %v3789 = vmul.f32 %v1101, %v2445
        %v3790 = vmul.f32 %v1102, %v2446
        %v3791 = vmul.f32 %v1103, %v2447
        %v3792 = vmul.f32 %v1104, %v2448
        %v3793 = vmul.f32 %v1105, %v2449
        %v3794 = vmul.f32 %v1106, %v2450
        %v3795 = vmul.f32 %v1107, %v2451
        %v3796 = vmul.f32 %v1108, %v2452
        %v3797 = vmul.f32 %v1109, %v2453
        %v3798 = vmul.f32 %v1110, %v2454
        %v3799 = vmul.f32 %v1111, %v2455
        %v3800 = vmul.f32 %v1112, %v2456
        %v3801 = vmul.f32 %v1113, %v2457
        %v3802 = vmul.f32 %v1114, %v2458
        %v3803 = vmul.f32 %v1115, %v2459
        %v3804 = vmul.f32 %v1116, %v2460
        %v3805 = vmul.f32 %v1117, %v2461
        %v3806 = vmul.f32 %v1118, %v2462
        %v3807 = vmul.f32 %v1119, %v2463
        %v3808 = vmul.f32 %v1120, %v2464
        %v3809 = vmul.f32 %v1121, %v2465
        %v3810 = vmul.f32 %v1122, %v2466
        %v3811 = vmul.f32 %v1123, %v2467
        %v3812 = vmul.f32 %v1124, %v2468
        %v3813 = vmul.f32 %v1125, %v2469
        %v3814 = vmul.f32 %v1126, %v2470
        %v3815 = vmul.f32 %v1127, %v2471
        %v3816 = vmul.f32 %v1128, %v2472
        %v3817 = vmul.f32 %v1129, %v2473
        %v3818 = vmul.f32 %v1130, %v2474
        %v3819 = vmul.f32 %v1131, %v2475
        %v3820 = vmul.f32 %v1132, %v2476
        %v3821 = vmul.f32 %v1133, %v2477
        %v3822 = vmul.f32 %v1134, %v2478
        %v3823 = vmul.f32 %v1135, %v2479
        %v3824 = vmul.f32 %v1136, %v2480
        %v3825 = vmul.f32 %v1137, %v2481
        %v3826 = vmul.f32 %v1138, %v2482
        %v3827 = vmul.f32 %v1139, %v2483
        %v3828 = vmul.f32 %v1140, %v2484
        %v3829 = vmul.f32 %v1141, %v2485
        %v3830 = vmul.f32 %v1142, %v2486
        %v3831 = vmul.f32 %v1143, %v2487
        %v3832 = vmul.f32 %v1144, %v2488
        %v3833 = vmul.f32 %v1145, %v2489
        %v3834 = vmul.f32 %v1146, %v2490
        %v3835 = vmul.f32 %v1147, %v2491
        %v3836 = vmul.f32 %v1148, %v2492
        %v3837 = vmul.f32 %v1149, %v2493
        %v3838 = vmul.f32 %v1150, %v2494
        %v3839 = vmul.f32 %v1151, %v2495
        %v3840 = vmul.f32 %v1152, %v2496
        %v3841 = vmul.f32 %v1153, %v2497
        %v3842 = vmul.f32 %v1154, %v2498
        %v3843 = vmul.f32 %v1155, %v2499
        %v3844 = vmul.f32 %v1156, %v2500
        %v3845 = vmul.f32 %v1157, %v2501
        %v3846 = vmul.f32 %v1158, %v2502
        %v3847 = vmul.f32 %v1159, %v2503
        %v3848 = vmul.f32 %v1160, %v2504
        %v3849 = vmul.f32 %v1161, %v2505
        %v3850 = vmul.f32 %v1162, %v2506
        %v3851 = vmul.f32 %v1163, %v2507
        %v3852 = vmul.f32 %v1164, %v2508
        %v3853 = vmul.f32 %v1165, %v2509
        %v3854 = vmul.f32 %v1166, %v2510
        %v3855 = vmul.f32 %v1167, %v2511
        %v3856 = vmul.f32 %v1168, %v2512
        %v3857 = vmul.f32 %v1169, %v2513
        %v3858 = vmul.f32 %v1170, %v2514
        %v3859 = vmul.f32 %v1171, %v2515
        %v3860 = vmul.f32 %v1172, %v2516
        %v3861 = vmul.f32 %v1173, %v2517
        %v3862 = vmul.f32 %v1174, %v2518
        %v3863 = vmul.f32 %v1175, %v2519
        %v3864 = vmul.f32 %v1176, %v2520
        %v3865 = vmul.f32 %v1177, %v2521
        %v3866 = vmul.f32 %v1178, %v2522
        %v3867 = vmul.f32 %v1179, %v2523
        %v3868 = vmul.f32 %v1180, %v2524
        %v3869 = vmul.f32 %v1181, %v2525
        %v3870 = vmul.f32 %v1182, %v2526
        %v3871 = vmul.f32 %v1183, %v2527
        %v3872 = vmul.f32 %v1184, %v2528
        %v3873 = vmul.f32 %v1185, %v2529
        %v3874 = vmul.f32 %v1186, %v2530
        %v3875 = vmul.f32 %v1187, %v2531
        %v3876 = vmul.f32 %v1188, %v2532
        %v3877 = vmul.f32 %v1189, %v2533
        %v3878 = vmul.f32 %v1190, %v2534
        %v3879 = vmul.f32 %v1191, %v2535
        %v3880 = vmul.f32 %v1192, %v2536
        %v3881 = vmul.f32 %v1193, %v2537
        %v3882 = vmul.f32 %v1194, %v2538
        %v3883 = vmul.f32 %v1195, %v2539
        %v3884 = vmul.f32 %v1196, %v2540
        %v3885 = vmul.f32 %v1197, %v2541
        %v3886 = vmul.f32 %v1198, %v2542
        %v3887 = vmul.f32 %v1199, %v2543
        %v3888 = vmul.f32 %v1200, %v2544
        %v3889 = vmul.f32 %v1201, %v2545
        %v3890 = vmul.f32 %v1202, %v2546
        %v3891 = vmul.f32 %v1203, %v2547
        %v3892 = vmul.f32 %v1204, %v2548
        %v3893 = vmul.f32 %v1205, %v2549
        %v3894 = vmul.f32 %v1206, %v2550
        %v3895 = vmul.f32 %v1207, %v2551
        %v3896 = vmul.f32 %v1208, %v2552
        %v3897 = vmul.f32 %v1209, %v2553
        %v3898 = vmul.f32 %v1210, %v2554
        %v3899 = vmul.f32 %v1211, %v2555
        %v3900 = vmul.f32 %v1212, %v2556
        %v3901 = vmul.f32 %v1213, %v2557
        %v3902 = vmul.f32 %v1214, %v2558
        %v3903 = vmul.f32 %v1215, %v2559
        %v3904 = vmul.f32 %v1216, %v2560
        %v3905 = vmul.f32 %v1217, %v2561
        %v3906 = vmul.f32 %v1218, %v2562
        %v3907 = vmul.f32 %v1219, %v2563
        %v3908 = vmul.f32 %v1220, %v2564
        %v3909 = vmul.f32 %v1221, %v2565
        %v3910 = vmul.f32 %v1222, %v2566
        %v3911 = vmul.f32 %v1223, %v2567
        %v3912 = vmul.f32 %v1224, %v2568
        %v3913 = vmul.f32 %v1225, %v2569
        %v3914 = vmul.f32 %v1226, %v2570
        %v3915 = vmul.f32 %v1227, %v2571
        %v3916 = vmul.f32 %v1228, %v2572
        %v3917 = vmul.f32 %v1229, %v2573
        %v3918 = vmul.f32 %v1230, %v2574
        %v3919 = vmul.f32 %v1231, %v2575
        %v3920 = vmul.f32 %v1232, %v2576
        %v3921 = vmul.f32 %v1233, %v2577
        %v3922 = vmul.f32 %v1234, %v2578
        %v3923 = vmul.f32 %v1235, %v2579
        %v3924 = vmul.f32 %v1236, %v2580
        %v3925 = vmul.f32 %v1237, %v2581
        %v3926 = vmul.f32 %v1238, %v2582
        %v3927 = vmul.f32 %v1239, %v2583
        %v3928 = vmul.f32 %v1240, %v2584
        %v3929 = vmul.f32 %v1241, %v2585
        %v3930 = vmul.f32 %v1242, %v2586
        %v3931 = vmul.f32 %v1243, %v2587
        %v3932 = vmul.f32 %v1244, %v2588
        %v3933 = vmul.f32 %v1245, %v2589
        %v3934 = vmul.f32 %v1246, %v2590
        %v3935 = vmul.f32 %v1247, %v2591
        %v3936 = vmul.f32 %v1248, %v2592
        %v3937 = vmul.f32 %v1249, %v2593
        %v3938 = vmul.f32 %v1250, %v2594
        %v3939 = vmul.f32 %v1251, %v2595
        %v3940 = vmul.f32 %v1252, %v2596
        %v3941 = vmul.f32 %v1253, %v2597
        %v3942 = vmul.f32 %v1254, %v2598
        %v3943 = vmul.f32 %v1255, %v2599
        %v3944 = vmul.f32 %v1256, %v2600
        %v3945 = vmul.f32 %v1257, %v2601
        %v3946 = vmul.f32 %v1258, %v2602
        %v3947 = vmul.f32 %v1259, %v2603
        %v3948 = vmul.f32 %v1260, %v2604
        %v3949 = vmul.f32 %v1261, %v2605
        %v3950 = vmul.f32 %v1262, %v2606
        %v3951 = vmul.f32 %v1263, %v2607
        %v3952 = vmul.f32 %v1264, %v2608
        %v3953 = vmul.f32 %v1265, %v2609
        %v3954 = vmul.f32 %v1266, %v2610
        %v3955 = vmul.f32 %v1267, %v2611
        %v3956 = vmul.f32 %v1268, %v2612
        %v3957 = vmul.f32 %v1269, %v2613
        %v3958 = vmul.f32 %v1270, %v2614
        %v3959 = vmul.f32 %v1271, %v2615
        %v3960 = vmul.f32 %v1272, %v2616
        %v3961 = vmul.f32 %v1273, %v2617
        %v3962 = vmul.f32 %v1274, %v2618
        %v3963 = vmul.f32 %v1275, %v2619
        %v3964 = vmul.f32 %v1276, %v2620
        %v3965 = vmul.f32 %v1277, %v2621
        %v3966 = vmul.f32 %v1278, %v2622
        %v3967 = vmul.f32 %v1279, %v2623
        %v3968 = vmul.f32 %v1280, %v2624
        %v3969 = vmul.f32 %v1281, %v2625
        %v3970 = vmul.f32 %v1282, %v2626
        %v3971 = vmul.f32 %v1283, %v2627
        %v3972 = vmul.f32 %v1284, %v2628
        %v3973 = vmul.f32 %v1285, %v2629
        %v3974 = vmul.f32 %v1286, %v2630
        %v3975 = vmul.f32 %v1287, %v2631
        %v3976 = vmul.f32 %v1288, %v2632
        %v3977 = vmul.f32 %v1289, %v2633
        %v3978 = vmul.f32 %v1290, %v2634
        %v3979 = vmul.f32 %v1291, %v2635
        %v3980 = vmul.f32 %v1292, %v2636
        %v3981 = vmul.f32 %v1293, %v2637
        %v3982 = vmul.f32 %v1294, %v2638
        %v3983 = vmul.f32 %v1295, %v2639
        %v3984 = vmul.f32 %v1296, %v2640
        %v3985 = vmul.f32 %v1297, %v2641
        %v3986 = vmul.f32 %v1298, %v2642
        %v3987 = vmul.f32 %v1299, %v2643
        %v3988 = vmul.f32 %v1300, %v2644
        %v3989 = vmul.f32 %v1301, %v2645
        %v3990 = vmul.f32 %v1302, %v2646
        %v3991 = vmul.f32 %v1303, %v2647
        %v3992 = vmul.f32 %v1304, %v2648
        %v3993 = vmul.f32 %v1305, %v2649
        %v3994 = vmul.f32 %v1306, %v2650
        %v3995 = vmul.f32 %v1307, %v2651
        %v3996 = vmul.f32 %v1308, %v2652
        %v3997 = vmul.f32 %v1309, %v2653
        %v3998 = vmul.f32 %v1310, %v2654
        %v3999 = vmul.f32 %v1311, %v2655
        %v4000 = vmul.f32 %v1312, %v2656
        %v4001 = vmul.f32 %v1313, %v2657
        %v4002 = vmul.f32 %v1314, %v2658
        %v4003 = vmul.f32 %v1315, %v2659
        %v4004 = vmul.f32 %v1316, %v2660
        %v4005 = vmul.f32 %v1317, %v2661
        %v4006 = vmul.f32 %v1318, %v2662
        %v4007 = vmul.f32 %v1319, %v2663
        %v4008 = vmul.f32 %v1320, %v2664
        %v4009 = vmul.f32 %v1321, %v2665
        %v4010 = vmul.f32 %v1322, %v2666
        %v4011 = vmul.f32 %v1323, %v2667
        %v4012 = vmul.f32 %v1324, %v2668
        %v4013 = vmul.f32 %v1325, %v2669
        %v4014 = vmul.f32 %v1326, %v2670
        %v4015 = vmul.f32 %v1327, %v2671
        %v4016 = vmul.f32 %v1328, %v2672
        %v4017 = vmul.f32 %v1329, %v2673
        %v4018 = vmul.f32 %v1330, %v2674
        %v4019 = vmul.f32 %v1331, %v2675
        %v4020 = vmul.f32 %v1332, %v2676
        %v4021 = vmul.f32 %v1333, %v2677
        %v4022 = vmul.f32 %v1334, %v2678
        %v4023 = vmul.f32 %v1335, %v2679
        %v4024 = vmul.f32 %v1336, %v2680
        %v4025 = vmul.f32 %v1337, %v2681
        %v4026 = vmul.f32 %v1338, %v2682
        %v4027 = vmul.f32 %v1339, %v2683
        %v4028 = vmul.f32 %v1340, %v2684
        %v4029 = vmul.f32 %v1341, %v2685
        %v4030 = vmul.f32 %v1342, %v2686
        %v4031 = vmul.f32 %v1343, %v2687
        %v4032 = vmul.f32 %v1344, %v2688
        %v4033 = vmul.f32 %v1345, %v2689
        %v4034 = vmul.f32 %v1346, %v2690
        %v4035 = vmul.f32 %v1347, %v2691
        %v4036 = vmul.f32 %v1348, %v2692
        %v4037 = vmul.f32 %v1349, %v2693
        %v4038 = vmul.f32 %v1350, %v2694
        %v4039 = vmul.f32 %v1351, %v2695
        %v4040 = vmul.f32 %v1352, %v2696
        %v4041 = vmul.f32 %v1353, %v2697
        %v4042 = vmul.f32 %v1354, %v2698
        %v4043 = vmul.f32 %v1355, %v2699
        %v4044 = vmul.f32 %v1356, %v2700
        %v4045 = vmul.f32 %v1357, %v2701
        %v4046 = vmul.f32 %v1358, %v2702
        %v4047 = vmul.f32 %v1359, %v2703
        %v4048 = vmul.f32 %v1360, %v2704
        %v4049 = vmul.f32 %v1361, %v2705
        %v4050 = vmul.f32 %v1362, %v2706
        %v4051 = vmul.f32 %v1363, %v2707
        %v4052 = vmul.f32 %v1364, %v2708
        %v4053 = vmul.f32 %v1365, %v2709
        %v4054 = vmul.f32 %v1366, %v2710
        %v4055 = vmul.f32 %v1367, %v2711
        %v4056 = vmul.f32 %v1368, %v2712
        %v4057 = vmul.f32 %v1369, %v2713
        %v4058 = vmul.f32 %v1370, %v2714
        %v4059 = vmul.f32 %v1371, %v2715
        %v4060 = vmul.f32 %v1372, %v2716
        %v4061 = vmul.f32 %v1373, %v2717
        %v4062 = vmul.f32 %v1374, %v2718
        %v4063 = vmul.f32 %v1375, %v2719
        %v4064 = vmul.f32 %v1376, %v2720
        %v4065 = vmul.f32 %v1377, %v2721
        %v4066 = vmul.f32 %v1378, %v2722
        %v4067 = vmul.f32 %v1379, %v2723
        %v4068 = vmul.f32 %v1380, %v2724
        %v4069 = vmul.f32 %v1381, %v2725
        %v4070 = vmul.f32 %v1382, %v2726
        %v4071 = vmul.f32 %v1383, %v2727
        %v4072 = vmul.f32 %v1384, %v2728
        %v4073 = vmul.f32 %v1385, %v2729
        %v4074 = vmul.f32 %v1386, %v2730
        %v4075 = vmul.f32 %v1387, %v2731
        %v4076 = vmul.f32 %v1388, %v2732
        %v4077 = vmul.f32 %v1389, %v2733
        %v4078 = vmul.f32 %v1390, %v2734
        %v4079 = vmul.f32 %v1391, %v2735
        %v4080 = vmul.f32 %v1392, %v2736
        %v4081 = vmul.f32 %v1393, %v2737
        %v4082 = vmul.f32 %v1394, %v2738
        %v4083 = vmul.f32 %v1395, %v2739
        %v4084 = vmul.f32 %v1396, %v2740
        %v4085 = vmul.f32 %v1397, %v2741
        %v4086 = vmul.f32 %v1398, %v2742
        %v4087 = vmul.f32 %v1399, %v2743
        %v4088 = vmul.f32 %v1400, %v2744
        %v4089 = vmul.f32 %v1401, %v2745
        %v4090 = vmul.f32 %v1402, %v2746
        %v4091 = vmul.f32 %v1403, %v2747
        %v4092 = vmul.f32 %v1404, %v2748
        %v4093 = vmul.f32 %v1405, %v2749
        %v4094 = vmul.f32 %v1406, %v2750
        %v4095 = vmul.f32 %v1407, %v2751
        %v4096 = vmul.f32 %v1408, %v2752
        %v4097 = vmul.f32 %v1409, %v2753
        %v4098 = vmul.f32 %v1410, %v2754
        %v4099 = vmul.f32 %v1411, %v2755
        %v4100 = vmul.f32 %v1412, %v2756
        %v4101 = vmul.f32 %v1413, %v2757
        %v4102 = vmul.f32 %v1414, %v2758
        %v4103 = vmul.f32 %v1415, %v2759
        %v4104 = vmul.f32 %v1416, %v2760
        %v4105 = vmul.f32 %v1417, %v2761
        %v4106 = vmul.f32 %v1418, %v2762
        %v4107 = vmul.f32 %v1419, %v2763
        %v4108 = vmul.f32 %v1420, %v2764
        %v4109 = vmul.f32 %v1421, %v2765
        %v4110 = vmul.f32 %v1422, %v2766
        %v4111 = vmul.f32 %v1423, %v2767
        %v4112 = vmul.f32 %v1424, %v2768
        %v4113 = vmul.f32 %v1425, %v2769
        %v4114 = vmul.f32 %v1426, %v2770
        %v4115 = vmul.f32 %v1427, %v2771
        %v4116 = vmul.f32 %v1428, %v2772
        %v4117 = vmul.f32 %v1429, %v2773
        %v4118 = vmul.f32 %v1430, %v2774
        %v4119 = vmul.f32 %v1431, %v2775
        %v4120 = vmul.f32 %v1432, %v2776
        %v4121 = vmul.f32 %v1433, %v2777
        %v4122 = vmul.f32 %v1434, %v2778
        %v4123 = vmul.f32 %v1435, %v2779
        %v4124 = vmul.f32 %v1436, %v2780
        %v4125 = vmul.f32 %v1437, %v2781
        %v4126 = vmul.f32 %v1438, %v2782
        %v4127 = vmul.f32 %v1439, %v2783
        %v4128 = vmul.f32 %v1440, %v2784
        %v4129 = vmul.f32 %v1441, %v2785
        %v4130 = vmul.f32 %v1442, %v2786
        %v4131 = vmul.f32 %v1443, %v2787
        %v4132 = vmul.f32 %v1444, %v2788
        %v4133 = vmul.f32 %v1445, %v2789
        %v4134 = vmul.f32 %v1446, %v2790
        %v4135 = vmul.f32 %v1447, %v2791
        %v4136 = vmul.f32 %v1448, %v2792
        %v4137 = vmul.f32 %v1449, %v2793
        %v4138 = vmul.f32 %v1450, %v2794
        %v4139 = vmul.f32 %v1451, %v2795
        %v4140 = vmul.f32 %v1452, %v2796
        %v4141 = vmul.f32 %v1453, %v2797
        %v4142 = vmul.f32 %v1454, %v2798
        %v4143 = vmul.f32 %v1455, %v2799
        %v4144 = vmul.f32 %v1456, %v2800
        %v4145 = vmul.f32 %v1457, %v2801
        %v4146 = vmul.f32 %v1458, %v2802
        %v4147 = vmul.f32 %v1459, %v2803
        %v4148 = vmul.f32 %v1460, %v2804
        %v4149 = vmul.f32 %v1461, %v2805
        %v4150 = vmul.f32 %v1462, %v2806
        %v4151 = vmul.f32 %v1463, %v2807
        %v4152 = vmul.f32 %v1464, %v2808
        %v4153 = vmul.f32 %v1465, %v2809
        %v4154 = vmul.f32 %v1466, %v2810
        %v4155 = vmul.f32 %v1467, %v2811
        %v4156 = vmul.f32 %v1468, %v2812
        %v4157 = vmul.f32 %v1469, %v2813
        %v4158 = vmul.f32 %v1470, %v2814
        %v4159 = vmul.f32 %v1471, %v2815
        %v4160 = vmul.f32 %v1472, %v2816
        %v4161 = vmul.f32 %v1473, %v2817
        %v4162 = vmul.f32 %v1474, %v2818
        %v4163 = vmul.f32 %v1475, %v2819
        %v4164 = vmul.f32 %v1476, %v2820
        %v4165 = vmul.f32 %v1477, %v2821
        %v4166 = vmul.f32 %v1478, %v2822
        %v4167 = vmul.f32 %v1479, %v2823
        %v4168 = vmul.f32 %v1480, %v2824
        %v4169 = vmul.f32 %v1481, %v2825
        %v4170 = vmul.f32 %v1482, %v2826
        %v4171 = vmul.f32 %v1483, %v2827
        %v4172 = vmul.f32 %v1484, %v2828
        %v4173 = vmul.f32 %v1485, %v2829
        %v4174 = vmul.f32 %v1486, %v2830
        %v4175 = vmul.f32 %v1487, %v2831
        %v4176 = vmul.f32 %v1488, %v2832
        %v4177 = vmul.f32 %v1489, %v2833
        %v4178 = vmul.f32 %v1490, %v2834
        %v4179 = vmul.f32 %v1491, %v2835
        %v4180 = vmul.f32 %v1492, %v2836
        %v4181 = vmul.f32 %v1493, %v2837
        %v4182 = vmul.f32 %v1494, %v2838
        %v4183 = vmul.f32 %v1495, %v2839
        %v4184 = vmul.f32 %v1496, %v2840
        %v4185 = vmul.f32 %v1497, %v2841
        %v4186 = vmul.f32 %v1498, %v2842
        %v4187 = vmul.f32 %v1499, %v2843
        %v4188 = vmul.f32 %v1500, %v2844
        %v4189 = vmul.f32 %v1501, %v2845
        %v4190 = vmul.f32 %v1502, %v2846
        %v4191 = vmul.f32 %v1503, %v2847
        %v4192 = vmul.f32 %v1504, %v2848
        %v4193 = vmul.f32 %v1505, %v2849
        %v4194 = vmul.f32 %v1506, %v2850
        %v4195 = vmul.f32 %v1507, %v2851
        %v4196 = vmul.f32 %v1508, %v2852
        %v4197 = vmul.f32 %v1509, %v2853
        %v4198 = vmul.f32 %v1510, %v2854
        %v4199 = vmul.f32 %v1511, %v2855
        %v4200 = vmul.f32 %v1512, %v2856
        %v4201 = vmul.f32 %v1513, %v2857
        %v4202 = vmul.f32 %v1514, %v2858
        %v4203 = vmul.f32 %v1515, %v2859
        %v4204 = vmul.f32 %v1516, %v2860
        %v4205 = vmul.f32 %v1517, %v2861
        %v4206 = vmul.f32 %v1518, %v2862
        %v4207 = vmul.f32 %v1519, %v2863
        %v4208 = vmul.f32 %v1520, %v2864
        %v4209 = vmul.f32 %v1521, %v2865
        %v4210 = vmul.f32 %v1522, %v2866
        %v4211 = vmul.f32 %v1523, %v2867
        %v4212 = vmul.f32 %v1524, %v2868
        %v4213 = vmul.f32 %v1525, %v2869
        %v4214 = vmul.f32 %v1526, %v2870
        %v4215 = vmul.f32 %v1527, %v2871
        %v4216 = vmul.f32 %v1528, %v2872
        %v4217 = vmul.f32 %v1529, %v2873
        %v4218 = vmul.f32 %v1530, %v2874
        %v4219 = vmul.f32 %v1531, %v2875
        %v4220 = vmul.f32 %v1532, %v2876
        %v4221 = vmul.f32 %v1533, %v2877
        %v4222 = vmul.f32 %v1534, %v2878
        %v4223 = vmul.f32 %v1535, %v2879
        %v4224 = vmul.f32 %v1536, %v2880
        %v4225 = vmul.f32 %v1537, %v2881
        %v4226 = vmul.f32 %v1538, %v2882
        %v4227 = vmul.f32 %v1539, %v2883
        %v4228 = vmul.f32 %v1540, %v2884
        %v4229 = vmul.f32 %v1541, %v2885
        %v4230 = vmul.f32 %v1542, %v2886
        %v4231 = vmul.f32 %v1543, %v2887
        %v4232 = vmul.f32 %v1544, %v2888
        %v4233 = vmul.f32 %v1545, %v2889
        %v4234 = vmul.f32 %v1546, %v2890
        %v4235 = vmul.f32 %v1547, %v2891
        %v4236 = vmul.f32 %v1548, %v2892
        %v4237 = vmul.f32 %v1549, %v2893
        %v4238 = vmul.f32 %v1550, %v2894
        %v4239 = vmul.f32 %v1551, %v2895
        %v4240 = vmul.f32 %v1552, %v2896
        %v4241 = vmul.f32 %v1553, %v2897
        %v4242 = vmul.f32 %v1554, %v2898
        %v4243 = vmul.f32 %v1555, %v2899
        %v4244 = vmul.f32 %v1556, %v2900
        %v4245 = vmul.f32 %v1557, %v2901
        %v4246 = vmul.f32 %v1558, %v2902
        %v4247 = vmul.f32 %v1559, %v2903
        %v4248 = vmul.f32 %v1560, %v2904
        %v4249 = vmul.f32 %v1561, %v2905
        %v4250 = vmul.f32 %v1562, %v2906
        %v4251 = vmul.f32 %v1563, %v2907
        %v4252 = vmul.f32 %v1564, %v2908
        %v4253 = vmul.f32 %v1565, %v2909
        %v4254 = vmul.f32 %v1566, %v2910
        %v4255 = vmul.f32 %v1567, %v2911
        %v4256 = vmul.f32 %v1568, %v2912
        %v4257 = vmul.f32 %v1569, %v2913
        %v4258 = vmul.f32 %v1570, %v2914
        %v4259 = vmul.f32 %v1571, %v2915
        %v4260 = vmul.f32 %v1572, %v2916
        %v4261 = vmul.f32 %v1573, %v2917
        %v4262 = vmul.f32 %v1574, %v2918
        %v4263 = vmul.f32 %v1575, %v2919
        %v4264 = vmul.f32 %v1576, %v2920
        %v4265 = vmul.f32 %v1577, %v2921
        %v4266 = vmul.f32 %v1578, %v2922
        %v4267 = vmul.f32 %v1579, %v2923
        %4268 = vst [vmem:[%s217] sm:$0xff] %v2924
        %4269 = vst [vmem:[%s217 + $0x8] sm:$0xff] %v2925
        %4270 = vst [vmem:[%s217 + $0x10] sm:$0xff] %v2926
        %4271 = vst [vmem:[%s217 + $0x18] sm:$0xff] %v2927
        %4272 = vst [vmem:[%s217 + $0x20] sm:$0xff] %v2928
        %4273 = vst [vmem:[%s217 + $0x28] sm:$0xff] %v2929
        %4274 = vst [vmem:[%s217 + $0x30] sm:$0xff] %v2930
        %4275 = vst [vmem:[%s217 + $0x38] sm:$0xff] %v2931
        %4276 = vst [vmem:[%s217 + $0x40] sm:$0xff] %v2932
        %4277 = vst [vmem:[%s217 + $0x48] sm:$0xff] %v2933
        %4278 = vst [vmem:[%s217 + $0x50] sm:$0xff] %v2934
        %4279 = vst [vmem:[%s217 + $0x58] sm:$0xff] %v2935
        %4280 = vst [vmem:[%s217 + $0x60] sm:$0xff] %v2936
        %4281 = vst [vmem:[%s217 + $0x68] sm:$0xff] %v2937
        %4282 = vst [vmem:[%s217 + $0x70] sm:$0xff] %v2938
        %4283 = vst [vmem:[%s217 + $0x78] sm:$0xff] %v2939
        %4284 = vst [vmem:[%s217 + $0x80] sm:$0xff] %v2940
        %4285 = vst [vmem:[%s217 + $0x88] sm:$0xff] %v2941
        %4286 = vst [vmem:[%s217 + $0x90] sm:$0xff] %v2942
        %4287 = vst [vmem:[%s217 + $0x98] sm:$0xff] %v2943
        %4288 = vst [vmem:[%s217 + $0xa0] sm:$0xff] %v2944
        %4289 = vst [vmem:[%s217 + $0xa8] sm:$0xff] %v2945
        %4290 = vst [vmem:[%s217 + $0xb0] sm:$0xff] %v2946
        %4291 = vst [vmem:[%s217 + $0xb8] sm:$0xff] %v2947
        %4292 = vst [vmem:[%s217 + $0xc0] sm:$0xff] %v2948
        %4293 = vst [vmem:[%s217 + $0xc8] sm:$0xff] %v2949
        %4294 = vst [vmem:[%s217 + $0xd0] sm:$0xff] %v2950
        %4295 = vst [vmem:[%s217 + $0xd8] sm:$0xff] %v2951
        %4296 = vst [vmem:[%s217 + $0xe0] sm:$0xff] %v2952
        %4297 = vst [vmem:[%s217 + $0xe8] sm:$0xff] %v2953
        %4298 = vst [vmem:[%s217 + $0xf0] sm:$0xff] %v2954
        %4299 = vst [vmem:[%s217 + $0xf8] sm:$0xff] %v2955
        %4300 = vst [vmem:[%s217 + $0x100] sm:$0xff] %v2956
        %4301 = vst [vmem:[%s217 + $0x108] sm:$0xff] %v2957
        %4302 = vst [vmem:[%s217 + $0x110] sm:$0xff] %v2958
        %4303 = vst [vmem:[%s217 + $0x118] sm:$0xff] %v2959
        %4304 = vst [vmem:[%s217 + $0x120] sm:$0xff] %v2960
        %4305 = vst [vmem:[%s217 + $0x128] sm:$0xff] %v2961
        %4306 = vst [vmem:[%s217 + $0x130] sm:$0xff] %v2962
        %4307 = vst [vmem:[%s217 + $0x138] sm:$0xff] %v2963
        %4308 = vst [vmem:[%s217 + $0x140] sm:$0xff] %v2964
        %4309 = vst [vmem:[%s217 + $0x148] sm:$0xff] %v2965
        %4310 = vst [vmem:[%s217 + $0x150] sm:$0xff] %v2966
        %4311 = vst [vmem:[%s217 + $0x158] sm:$0xff] %v2967
        %4312 = vst [vmem:[%s217 + $0x160] sm:$0xff] %v2968
        %4313 = vst [vmem:[%s217 + $0x168] sm:$0xff] %v2969
        %4314 = vst [vmem:[%s217 + $0x170] sm:$0xff] %v2970
        %4315 = vst [vmem:[%s217 + $0x178] sm:$0xff] %v2971
        %4316 = vst [vmem:[%s217 + $0x180] sm:$0xff] %v2972
        %4317 = vst [vmem:[%s217 + $0x188] sm:$0xff] %v2973
        %4318 = vst [vmem:[%s217 + $0x190] sm:$0xff] %v2974
        %4319 = vst [vmem:[%s217 + $0x198] sm:$0xff] %v2975
        %4320 = vst [vmem:[%s217 + $0x1a0] sm:$0xff] %v2976
        %4321 = vst [vmem:[%s217 + $0x1a8] sm:$0xff] %v2977
        %4322 = vst [vmem:[%s217 + $0x1b0] sm:$0xff] %v2978
        %4323 = vst [vmem:[%s217 + $0x1b8] sm:$0xff] %v2979
        %4324 = vst [vmem:[%s217 + $0x1c0] sm:$0xff] %v2980
        %4325 = vst [vmem:[%s217 + $0x1c8] sm:$0xff] %v2981
        %4326 = vst [vmem:[%s217 + $0x1d0] sm:$0xff] %v2982
        %4327 = vst [vmem:[%s217 + $0x1d8] sm:$0xff] %v2983
        %4328 = vst [vmem:[%s217 + $0x1e0] sm:$0xff] %v2984
        %4329 = vst [vmem:[%s217 + $0x1e8] sm:$0xff] %v2985
        %4330 = vst [vmem:[%s217 + $0x1f0] sm:$0xff] %v2986
        %4331 = vst [vmem:[%s217 + $0x1f8] sm:$0xff] %v2987
        %4332 = vst [vmem:[%s217 + $0x200] sm:$0xff] %v2988
        %4333 = vst [vmem:[%s217 + $0x208] sm:$0xff] %v2989
        %4334 = vst [vmem:[%s217 + $0x210] sm:$0xff] %v2990
        %4335 = vst [vmem:[%s217 + $0x218] sm:$0xff] %v2991
        %4336 = vst [vmem:[%s217 + $0x220] sm:$0xff] %v2992
        %4337 = vst [vmem:[%s217 + $0x228] sm:$0xff] %v2993
        %4338 = vst [vmem:[%s217 + $0x230] sm:$0xff] %v2994
        %4339 = vst [vmem:[%s217 + $0x238] sm:$0xff] %v2995
        %4340 = vst [vmem:[%s217 + $0x240] sm:$0xff] %v2996
        %4341 = vst [vmem:[%s217 + $0x248] sm:$0xff] %v2997
        %4342 = vst [vmem:[%s217 + $0x250] sm:$0xff] %v2998
        %4343 = vst [vmem:[%s217 + $0x258] sm:$0xff] %v2999
        %4344 = vst [vmem:[%s217 + $0x260] sm:$0xff] %v3000
        %4345 = vst [vmem:[%s217 + $0x268] sm:$0xff] %v3001
        %4346 = vst [vmem:[%s217 + $0x270] sm:$0xff] %v3002
        %4347 = vst [vmem:[%s217 + $0x278] sm:$0xff] %v3003
        %4348 = vst [vmem:[%s217 + $0x280] sm:$0xff] %v3004
        %4349 = vst [vmem:[%s217 + $0x288] sm:$0xff] %v3005
        %4350 = vst [vmem:[%s217 + $0x290] sm:$0xff] %v3006
        %4351 = vst [vmem:[%s217 + $0x298] sm:$0xff] %v3007
        %4352 = vst [vmem:[%s217 + $0x2a0] sm:$0xff] %v3008
        %4353 = vst [vmem:[%s217 + $0x2a8] sm:$0xff] %v3009
        %4354 = vst [vmem:[%s217 + $0x2b0] sm:$0xff] %v3010
        %4355 = vst [vmem:[%s217 + $0x2b8] sm:$0xff] %v3011
        %4356 = vst [vmem:[%s217 + $0x2c0] sm:$0xff] %v3012
        %4357 = vst [vmem:[%s217 + $0x2c8] sm:$0xff] %v3013
        %4358 = vst [vmem:[%s217 + $0x2d0] sm:$0xff] %v3014
        %4359 = vst [vmem:[%s217 + $0x2d8] sm:$0xff] %v3015
        %4360 = vst [vmem:[%s217 + $0x2e0] sm:$0xff] %v3016
        %4361 = vst [vmem:[%s217 + $0x2e8] sm:$0xff] %v3017
        %4362 = vst [vmem:[%s217 + $0x2f0] sm:$0xff] %v3018
        %4363 = vst [vmem:[%s217 + $0x2f8] sm:$0xff] %v3019
        %4364 = vst [vmem:[%s217 + $0x300] sm:$0xff] %v3020
        %4365 = vst [vmem:[%s217 + $0x308] sm:$0xff] %v3021
        %4366 = vst [vmem:[%s217 + $0x310] sm:$0xff] %v3022
        %4367 = vst [vmem:[%s217 + $0x318] sm:$0xff] %v3023
        %4368 = vst [vmem:[%s217 + $0x320] sm:$0xff] %v3024
        %4369 = vst [vmem:[%s217 + $0x328] sm:$0xff] %v3025
        %4370 = vst [vmem:[%s217 + $0x330] sm:$0xff] %v3026
        %4371 = vst [vmem:[%s217 + $0x338] sm:$0xff] %v3027
        %4372 = vst [vmem:[%s217 + $0x340] sm:$0xff] %v3028
        %4373 = vst [vmem:[%s217 + $0x348] sm:$0xff] %v3029
        %4374 = vst [vmem:[%s217 + $0x350] sm:$0xff] %v3030
        %4375 = vst [vmem:[%s217 + $0x358] sm:$0xff] %v3031
        %4376 = vst [vmem:[%s217 + $0x360] sm:$0xff] %v3032
        %4377 = vst [vmem:[%s217 + $0x368] sm:$0xff] %v3033
        %4378 = vst [vmem:[%s217 + $0x370] sm:$0xff] %v3034
        %4379 = vst [vmem:[%s217 + $0x378] sm:$0xff] %v3035
        %4380 = vst [vmem:[%s217 + $0x380] sm:$0xff] %v3036
        %4381 = vst [vmem:[%s217 + $0x388] sm:$0xff] %v3037
        %4382 = vst [vmem:[%s217 + $0x390] sm:$0xff] %v3038
        %4383 = vst [vmem:[%s217 + $0x398] sm:$0xff] %v3039
        %4384 = vst [vmem:[%s217 + $0x3a0] sm:$0xff] %v3040
        %4385 = vst [vmem:[%s217 + $0x3a8] sm:$0xff] %v3041
        %4386 = vst [vmem:[%s217 + $0x3b0] sm:$0xff] %v3042
        %4387 = vst [vmem:[%s217 + $0x3b8] sm:$0xff] %v3043
        %4388 = vst [vmem:[%s217 + $0x3c0] sm:$0xff] %v3044
        %4389 = vst [vmem:[%s217 + $0x3c8] sm:$0xff] %v3045
        %4390 = vst [vmem:[%s217 + $0x3d0] sm:$0xff] %v3046
        %4391 = vst [vmem:[%s217 + $0x3d8] sm:$0xff] %v3047
        %4392 = vst [vmem:[%s217 + $0x3e0] sm:$0xff] %v3048
        %4393 = vst [vmem:[%s217 + $0x3e8] sm:$0xff] %v3049
        %4394 = vst [vmem:[%s217 + $0x3f0] sm:$0xff] %v3050
        %4395 = vst [vmem:[%s217 + $0x3f8] sm:$0xff] %v3051
        %4396 = vst [vmem:[%s217 + $0x400] sm:$0xff] %v3052
        %4397 = vst [vmem:[%s217 + $0x408] sm:$0xff] %v3053
        %4398 = vst [vmem:[%s217 + $0x410] sm:$0xff] %v3054
        %4399 = vst [vmem:[%s217 + $0x418] sm:$0xff] %v3055
        %4400 = vst [vmem:[%s217 + $0x420] sm:$0xff] %v3056
        %4401 = vst [vmem:[%s217 + $0x428] sm:$0xff] %v3057
        %4402 = vst [vmem:[%s217 + $0x430] sm:$0xff] %v3058
        %4403 = vst [vmem:[%s217 + $0x438] sm:$0xff] %v3059
        %4404 = vst [vmem:[%s217 + $0x440] sm:$0xff] %v3060
        %4405 = vst [vmem:[%s217 + $0x448] sm:$0xff] %v3061
        %4406 = vst [vmem:[%s217 + $0x450] sm:$0xff] %v3062
        %4407 = vst [vmem:[%s217 + $0x458] sm:$0xff] %v3063
        %4408 = vst [vmem:[%s217 + $0x460] sm:$0xff] %v3064
        %4409 = vst [vmem:[%s217 + $0x468] sm:$0xff] %v3065
        %4410 = vst [vmem:[%s217 + $0x470] sm:$0xff] %v3066
        %4411 = vst [vmem:[%s217 + $0x478] sm:$0xff] %v3067
        %4412 = vst [vmem:[%s217 + $0x480] sm:$0xff] %v3068
        %4413 = vst [vmem:[%s217 + $0x488] sm:$0xff] %v3069
        %4414 = vst [vmem:[%s217 + $0x490] sm:$0xff] %v3070
        %4415 = vst [vmem:[%s217 + $0x498] sm:$0xff] %v3071
        %4416 = vst [vmem:[%s217 + $0x4a0] sm:$0xff] %v3072
        %4417 = vst [vmem:[%s217 + $0x4a8] sm:$0xff] %v3073
        %4418 = vst [vmem:[%s217 + $0x4b0] sm:$0xff] %v3074
        %4419 = vst [vmem:[%s217 + $0x4b8] sm:$0xff] %v3075
        %4420 = vst [vmem:[%s217 + $0x4c0] sm:$0xff] %v3076
        %4421 = vst [vmem:[%s217 + $0x4c8] sm:$0xff] %v3077
        %4422 = vst [vmem:[%s217 + $0x4d0] sm:$0xff] %v3078
        %4423 = vst [vmem:[%s217 + $0x4d8] sm:$0xff] %v3079
        %4424 = vst [vmem:[%s217 + $0x4e0] sm:$0xff] %v3080
        %4425 = vst [vmem:[%s217 + $0x4e8] sm:$0xff] %v3081
        %4426 = vst [vmem:[%s217 + $0x4f0] sm:$0xff] %v3082
        %4427 = vst [vmem:[%s217 + $0x4f8] sm:$0xff] %v3083
        %4428 = vst [vmem:[%s217 + $0x500] sm:$0xff] %v3084
        %4429 = vst [vmem:[%s217 + $0x508] sm:$0xff] %v3085
        %4430 = vst [vmem:[%s217 + $0x510] sm:$0xff] %v3086
        %4431 = vst [vmem:[%s217 + $0x518] sm:$0xff] %v3087
        %4432 = vst [vmem:[%s217 + $0x520] sm:$0xff] %v3088
        %4433 = vst [vmem:[%s217 + $0x528] sm:$0xff] %v3089
        %4434 = vst [vmem:[%s217 + $0x530] sm:$0xff] %v3090
        %4435 = vst [vmem:[%s217 + $0x538] sm:$0xff] %v3091
        %4436 = vst [vmem:[%s217 + $0x540] sm:$0xff] %v3092
        %4437 = vst [vmem:[%s217 + $0x548] sm:$0xff] %v3093
        %4438 = vst [vmem:[%s217 + $0x550] sm:$0xff] %v3094
        %4439 = vst [vmem:[%s217 + $0x558] sm:$0xff] %v3095
        %4440 = vst [vmem:[%s217 + $0x560] sm:$0xff] %v3096
        %4441 = vst [vmem:[%s217 + $0x568] sm:$0xff] %v3097
        %4442 = vst [vmem:[%s217 + $0x570] sm:$0xff] %v3098
        %4443 = vst [vmem:[%s217 + $0x578] sm:$0xff] %v3099
        %4444 = vst [vmem:[%s217 + $0x580] sm:$0xff] %v3100
        %4445 = vst [vmem:[%s217 + $0x588] sm:$0xff] %v3101
        %4446 = vst [vmem:[%s217 + $0x590] sm:$0xff] %v3102
        %4447 = vst [vmem:[%s217 + $0x598] sm:$0xff] %v3103
        %4448 = vst [vmem:[%s217 + $0x5a0] sm:$0xff] %v3104
        %4449 = vst [vmem:[%s217 + $0x5a8] sm:$0xff] %v3105
        %4450 = vst [vmem:[%s217 + $0x5b0] sm:$0xff] %v3106
        %4451 = vst [vmem:[%s217 + $0x5b8] sm:$0xff] %v3107
        %4452 = vst [vmem:[%s217 + $0x5c0] sm:$0xff] %v3108
        %4453 = vst [vmem:[%s217 + $0x5c8] sm:$0xff] %v3109
        %4454 = vst [vmem:[%s217 + $0x5d0] sm:$0xff] %v3110
        %4455 = vst [vmem:[%s217 + $0x5d8] sm:$0xff] %v3111
        %4456 = vst [vmem:[%s217 + $0x5e0] sm:$0xff] %v3112
        %4457 = vst [vmem:[%s217 + $0x5e8] sm:$0xff] %v3113
        %4458 = vst [vmem:[%s217 + $0x5f0] sm:$0xff] %v3114
        %4459 = vst [vmem:[%s217 + $0x5f8] sm:$0xff] %v3115
        %4460 = vst [vmem:[%s217 + $0x600] sm:$0xff] %v3116
        %4461 = vst [vmem:[%s217 + $0x608] sm:$0xff] %v3117
        %4462 = vst [vmem:[%s217 + $0x610] sm:$0xff] %v3118
        %4463 = vst [vmem:[%s217 + $0x618] sm:$0xff] %v3119
        %4464 = vst [vmem:[%s217 + $0x620] sm:$0xff] %v3120
        %4465 = vst [vmem:[%s217 + $0x628] sm:$0xff] %v3121
        %4466 = vst [vmem:[%s217 + $0x630] sm:$0xff] %v3122
        %4467 = vst [vmem:[%s217 + $0x638] sm:$0xff] %v3123
        %4468 = vst [vmem:[%s217 + $0x640] sm:$0xff] %v3124
        %4469 = vst [vmem:[%s217 + $0x648] sm:$0xff] %v3125
        %4470 = vst [vmem:[%s217 + $0x650] sm:$0xff] %v3126
        %4471 = vst [vmem:[%s217 + $0x658] sm:$0xff] %v3127
        %4472 = vst [vmem:[%s217 + $0x660] sm:$0xff] %v3128
        %4473 = vst [vmem:[%s217 + $0x668] sm:$0xff] %v3129
        %4474 = vst [vmem:[%s217 + $0x670] sm:$0xff] %v3130
        %4475 = vst [vmem:[%s217 + $0x678] sm:$0xff] %v3131
        %4476 = vst [vmem:[%s217 + $0x680] sm:$0xff] %v3132
        %4477 = vst [vmem:[%s217 + $0x688] sm:$0xff] %v3133
        %4478 = vst [vmem:[%s217 + $0x690] sm:$0xff] %v3134
        %4479 = vst [vmem:[%s217 + $0x698] sm:$0xff] %v3135
        %4480 = vst [vmem:[%s217 + $0x6a0] sm:$0xff] %v3136
        %4481 = vst [vmem:[%s217 + $0x6a8] sm:$0xff] %v3137
        %4482 = vst [vmem:[%s217 + $0x6b0] sm:$0xff] %v3138
        %4483 = vst [vmem:[%s217 + $0x6b8] sm:$0xff] %v3139
        %4484 = vst [vmem:[%s217 + $0x6c0] sm:$0xff] %v3140
        %4485 = vst [vmem:[%s217 + $0x6c8] sm:$0xff] %v3141
        %4486 = vst [vmem:[%s217 + $0x6d0] sm:$0xff] %v3142
        %4487 = vst [vmem:[%s217 + $0x6d8] sm:$0xff] %v3143
        %4488 = vst [vmem:[%s217 + $0x6e0] sm:$0xff] %v3144
        %4489 = vst [vmem:[%s217 + $0x6e8] sm:$0xff] %v3145
        %4490 = vst [vmem:[%s217 + $0x6f0] sm:$0xff] %v3146
        %4491 = vst [vmem:[%s217 + $0x6f8] sm:$0xff] %v3147
        %4492 = vst [vmem:[%s217 + $0x700] sm:$0xff] %v3148
        %4493 = vst [vmem:[%s217 + $0x708] sm:$0xff] %v3149
        %4494 = vst [vmem:[%s217 + $0x710] sm:$0xff] %v3150
        %4495 = vst [vmem:[%s217 + $0x718] sm:$0xff] %v3151
        %4496 = vst [vmem:[%s217 + $0x720] sm:$0xff] %v3152
        %4497 = vst [vmem:[%s217 + $0x728] sm:$0xff] %v3153
        %4498 = vst [vmem:[%s217 + $0x730] sm:$0xff] %v3154
        %4499 = vst [vmem:[%s217 + $0x738] sm:$0xff] %v3155
        %4500 = vst [vmem:[%s217 + $0x740] sm:$0xff] %v3156
        %4501 = vst [vmem:[%s217 + $0x748] sm:$0xff] %v3157
        %4502 = vst [vmem:[%s217 + $0x750] sm:$0xff] %v3158
        %4503 = vst [vmem:[%s217 + $0x758] sm:$0xff] %v3159
        %4504 = vst [vmem:[%s217 + $0x760] sm:$0xff] %v3160
        %4505 = vst [vmem:[%s217 + $0x768] sm:$0xff] %v3161
        %4506 = vst [vmem:[%s217 + $0x770] sm:$0xff] %v3162
        %4507 = vst [vmem:[%s217 + $0x778] sm:$0xff] %v3163
        %4508 = vst [vmem:[%s217 + $0x780] sm:$0xff] %v3164
        %4509 = vst [vmem:[%s217 + $0x788] sm:$0xff] %v3165
        %4510 = vst [vmem:[%s217 + $0x790] sm:$0xff] %v3166
        %4511 = vst [vmem:[%s217 + $0x798] sm:$0xff] %v3167
        %4512 = vst [vmem:[%s217 + $0x7a0] sm:$0xff] %v3168
        %4513 = vst [vmem:[%s217 + $0x7a8] sm:$0xff] %v3169
        %4514 = vst [vmem:[%s217 + $0x7b0] sm:$0xff] %v3170
        %4515 = vst [vmem:[%s217 + $0x7b8] sm:$0xff] %v3171
        %4516 = vst [vmem:[%s217 + $0x7c0] sm:$0xff] %v3172
        %4517 = vst [vmem:[%s217 + $0x7c8] sm:$0xff] %v3173
        %4518 = vst [vmem:[%s217 + $0x7d0] sm:$0xff] %v3174
        %4519 = vst [vmem:[%s217 + $0x7d8] sm:$0xff] %v3175
        %4520 = vst [vmem:[%s217 + $0x7e0] sm:$0xff] %v3176
        %4521 = vst [vmem:[%s217 + $0x7e8] sm:$0xff] %v3177
        %4522 = vst [vmem:[%s217 + $0x7f0] sm:$0xff] %v3178
        %4523 = vst [vmem:[%s217 + $0x7f8] sm:$0xff] %v3179
        %4524 = vst [vmem:[%s217 + $0x800] sm:$0xff] %v3180
        %4525 = vst [vmem:[%s217 + $0x808] sm:$0xff] %v3181
        %4526 = vst [vmem:[%s217 + $0x810] sm:$0xff] %v3182
        %4527 = vst [vmem:[%s217 + $0x818] sm:$0xff] %v3183
        %4528 = vst [vmem:[%s217 + $0x820] sm:$0xff] %v3184
        %4529 = vst [vmem:[%s217 + $0x828] sm:$0xff] %v3185
        %4530 = vst [vmem:[%s217 + $0x830] sm:$0xff] %v3186
        %4531 = vst [vmem:[%s217 + $0x838] sm:$0xff] %v3187
        %4532 = vst [vmem:[%s217 + $0x840] sm:$0xff] %v3188
        %4533 = vst [vmem:[%s217 + $0x848] sm:$0xff] %v3189
        %4534 = vst [vmem:[%s217 + $0x850] sm:$0xff] %v3190
        %4535 = vst [vmem:[%s217 + $0x858] sm:$0xff] %v3191
        %4536 = vst [vmem:[%s217 + $0x860] sm:$0xff] %v3192
        %4537 = vst [vmem:[%s217 + $0x868] sm:$0xff] %v3193
        %4538 = vst [vmem:[%s217 + $0x870] sm:$0xff] %v3194
        %4539 = vst [vmem:[%s217 + $0x878] sm:$0xff] %v3195
        %4540 = vst [vmem:[%s217 + $0x880] sm:$0xff] %v3196
        %4541 = vst [vmem:[%s217 + $0x888] sm:$0xff] %v3197
        %4542 = vst [vmem:[%s217 + $0x890] sm:$0xff] %v3198
        %4543 = vst [vmem:[%s217 + $0x898] sm:$0xff] %v3199
        %4544 = vst [vmem:[%s217 + $0x8a0] sm:$0xff] %v3200
        %4545 = vst [vmem:[%s217 + $0x8a8] sm:$0xff] %v3201
        %4546 = vst [vmem:[%s217 + $0x8b0] sm:$0xff] %v3202
        %4547 = vst [vmem:[%s217 + $0x8b8] sm:$0xff] %v3203
        %4548 = vst [vmem:[%s217 + $0x8c0] sm:$0xff] %v3204
        %4549 = vst [vmem:[%s217 + $0x8c8] sm:$0xff] %v3205
        %4550 = vst [vmem:[%s217 + $0x8d0] sm:$0xff] %v3206
        %4551 = vst [vmem:[%s217 + $0x8d8] sm:$0xff] %v3207
        %4552 = vst [vmem:[%s217 + $0x8e0] sm:$0xff] %v3208
        %4553 = vst [vmem:[%s217 + $0x8e8] sm:$0xff] %v3209
        %4554 = vst [vmem:[%s217 + $0x8f0] sm:$0xff] %v3210
        %4555 = vst [vmem:[%s217 + $0x8f8] sm:$0xff] %v3211
        %4556 = vst [vmem:[%s217 + $0x900] sm:$0xff] %v3212
        %4557 = vst [vmem:[%s217 + $0x908] sm:$0xff] %v3213
        %4558 = vst [vmem:[%s217 + $0x910] sm:$0xff] %v3214
        %4559 = vst [vmem:[%s217 + $0x918] sm:$0xff] %v3215
        %4560 = vst [vmem:[%s217 + $0x920] sm:$0xff] %v3216
        %4561 = vst [vmem:[%s217 + $0x928] sm:$0xff] %v3217
        %4562 = vst [vmem:[%s217 + $0x930] sm:$0xff] %v3218
        %4563 = vst [vmem:[%s217 + $0x938] sm:$0xff] %v3219
        %4564 = vst [vmem:[%s217 + $0x940] sm:$0xff] %v3220
        %4565 = vst [vmem:[%s217 + $0x948] sm:$0xff] %v3221
        %4566 = vst [vmem:[%s217 + $0x950] sm:$0xff] %v3222
        %4567 = vst [vmem:[%s217 + $0x958] sm:$0xff] %v3223
        %4568 = vst [vmem:[%s217 + $0x960] sm:$0xff] %v3224
        %4569 = vst [vmem:[%s217 + $0x968] sm:$0xff] %v3225
        %4570 = vst [vmem:[%s217 + $0x970] sm:$0xff] %v3226
        %4571 = vst [vmem:[%s217 + $0x978] sm:$0xff] %v3227
        %4572 = vst [vmem:[%s217 + $0x980] sm:$0xff] %v3228
        %4573 = vst [vmem:[%s217 + $0x988] sm:$0xff] %v3229
        %4574 = vst [vmem:[%s217 + $0x990] sm:$0xff] %v3230
        %4575 = vst [vmem:[%s217 + $0x998] sm:$0xff] %v3231
        %4576 = vst [vmem:[%s217 + $0x9a0] sm:$0xff] %v3232
        %4577 = vst [vmem:[%s217 + $0x9a8] sm:$0xff] %v3233
        %4578 = vst [vmem:[%s217 + $0x9b0] sm:$0xff] %v3234
        %4579 = vst [vmem:[%s217 + $0x9b8] sm:$0xff] %v3235
        %4580 = vst [vmem:[%s217 + $0x9c0] sm:$0xff] %v3236
        %4581 = vst [vmem:[%s217 + $0x9c8] sm:$0xff] %v3237
        %4582 = vst [vmem:[%s217 + $0x9d0] sm:$0xff] %v3238
        %4583 = vst [vmem:[%s217 + $0x9d8] sm:$0xff] %v3239
        %4584 = vst [vmem:[%s217 + $0x9e0] sm:$0xff] %v3240
        %4585 = vst [vmem:[%s217 + $0x9e8] sm:$0xff] %v3241
        %4586 = vst [vmem:[%s217 + $0x9f0] sm:$0xff] %v3242
        %4587 = vst [vmem:[%s217 + $0x9f8] sm:$0xff] %v3243
        %4588 = vst [vmem:[%s217 + $0xa00] sm:$0xff] %v3244
        %4589 = vst [vmem:[%s217 + $0xa08] sm:$0xff] %v3245
        %4590 = vst [vmem:[%s217 + $0xa10] sm:$0xff] %v3246
        %4591 = vst [vmem:[%s217 + $0xa18] sm:$0xff] %v3247
        %4592 = vst [vmem:[%s217 + $0xa20] sm:$0xff] %v3248
        %4593 = vst [vmem:[%s217 + $0xa28] sm:$0xff] %v3249
        %4594 = vst [vmem:[%s217 + $0xa30] sm:$0xff] %v3250
        %4595 = vst [vmem:[%s217 + $0xa38] sm:$0xff] %v3251
        %4596 = vst [vmem:[%s217 + $0xa40] sm:$0xff] %v3252
        %4597 = vst [vmem:[%s217 + $0xa48] sm:$0xff] %v3253
        %4598 = vst [vmem:[%s217 + $0xa50] sm:$0xff] %v3254
        %4599 = vst [vmem:[%s217 + $0xa58] sm:$0xff] %v3255
        %4600 = vst [vmem:[%s217 + $0xa60] sm:$0xff] %v3256
        %4601 = vst [vmem:[%s217 + $0xa68] sm:$0xff] %v3257
        %4602 = vst [vmem:[%s217 + $0xa70] sm:$0xff] %v3258
        %4603 = vst [vmem:[%s217 + $0xa78] sm:$0xff] %v3259
        %4604 = vst [vmem:[%s217 + $0xa80] sm:$0xff] %v3260
        %4605 = vst [vmem:[%s217 + $0xa88] sm:$0xff] %v3261
        %4606 = vst [vmem:[%s217 + $0xa90] sm:$0xff] %v3262
        %4607 = vst [vmem:[%s217 + $0xa98] sm:$0xff] %v3263
        %4608 = vst [vmem:[%s217 + $0xaa0] sm:$0xff] %v3264
        %4609 = vst [vmem:[%s217 + $0xaa8] sm:$0xff] %v3265
        %4610 = vst [vmem:[%s217 + $0xab0] sm:$0xff] %v3266
        %4611 = vst [vmem:[%s217 + $0xab8] sm:$0xff] %v3267
        %4612 = vst [vmem:[%s217 + $0xac0] sm:$0xff] %v3268
        %4613 = vst [vmem:[%s217 + $0xac8] sm:$0xff] %v3269
        %4614 = vst [vmem:[%s217 + $0xad0] sm:$0xff] %v3270
        %4615 = vst [vmem:[%s217 + $0xad8] sm:$0xff] %v3271
        %4616 = vst [vmem:[%s217 + $0xae0] sm:$0xff] %v3272
        %4617 = vst [vmem:[%s217 + $0xae8] sm:$0xff] %v3273
        %4618 = vst [vmem:[%s217 + $0xaf0] sm:$0xff] %v3274
        %4619 = vst [vmem:[%s217 + $0xaf8] sm:$0xff] %v3275
        %4620 = vst [vmem:[%s217 + $0xb00] sm:$0xff] %v3276
        %4621 = vst [vmem:[%s217 + $0xb08] sm:$0xff] %v3277
        %4622 = vst [vmem:[%s217 + $0xb10] sm:$0xff] %v3278
        %4623 = vst [vmem:[%s217 + $0xb18] sm:$0xff] %v3279
        %4624 = vst [vmem:[%s217 + $0xb20] sm:$0xff] %v3280
        %4625 = vst [vmem:[%s217 + $0xb28] sm:$0xff] %v3281
        %4626 = vst [vmem:[%s217 + $0xb30] sm:$0xff] %v3282
        %4627 = vst [vmem:[%s217 + $0xb38] sm:$0xff] %v3283
        %4628 = vst [vmem:[%s217 + $0xb40] sm:$0xff] %v3284
        %4629 = vst [vmem:[%s217 + $0xb48] sm:$0xff] %v3285
        %4630 = vst [vmem:[%s217 + $0xb50] sm:$0xff] %v3286
        %4631 = vst [vmem:[%s217 + $0xb58] sm:$0xff] %v3287
        %4632 = vst [vmem:[%s217 + $0xb60] sm:$0xff] %v3288
        %4633 = vst [vmem:[%s217 + $0xb68] sm:$0xff] %v3289
        %4634 = vst [vmem:[%s217 + $0xb70] sm:$0xff] %v3290
        %4635 = vst [vmem:[%s217 + $0xb78] sm:$0xff] %v3291
        %4636 = vst [vmem:[%s217 + $0xb80] sm:$0xff] %v3292
        %4637 = vst [vmem:[%s217 + $0xb88] sm:$0xff] %v3293
        %4638 = vst [vmem:[%s217 + $0xb90] sm:$0xff] %v3294
        %4639 = vst [vmem:[%s217 + $0xb98] sm:$0xff] %v3295
        %4640 = vst [vmem:[%s217 + $0xba0] sm:$0xff] %v3296
        %4641 = vst [vmem:[%s217 + $0xba8] sm:$0xff] %v3297
        %4642 = vst [vmem:[%s217 + $0xbb0] sm:$0xff] %v3298
        %4643 = vst [vmem:[%s217 + $0xbb8] sm:$0xff] %v3299
        %4644 = vst [vmem:[%s217 + $0xbc0] sm:$0xff] %v3300
        %4645 = vst [vmem:[%s217 + $0xbc8] sm:$0xff] %v3301
        %4646 = vst [vmem:[%s217 + $0xbd0] sm:$0xff] %v3302
        %4647 = vst [vmem:[%s217 + $0xbd8] sm:$0xff] %v3303
        %4648 = vst [vmem:[%s217 + $0xbe0] sm:$0xff] %v3304
        %4649 = vst [vmem:[%s217 + $0xbe8] sm:$0xff] %v3305
        %4650 = vst [vmem:[%s217 + $0xbf0] sm:$0xff] %v3306
        %4651 = vst [vmem:[%s217 + $0xbf8] sm:$0xff] %v3307
        %4652 = vst [vmem:[%s217 + $0xc00] sm:$0xff] %v3308
        %4653 = vst [vmem:[%s217 + $0xc08] sm:$0xff] %v3309
        %4654 = vst [vmem:[%s217 + $0xc10] sm:$0xff] %v3310
        %4655 = vst [vmem:[%s217 + $0xc18] sm:$0xff] %v3311
        %4656 = vst [vmem:[%s217 + $0xc20] sm:$0xff] %v3312
        %4657 = vst [vmem:[%s217 + $0xc28] sm:$0xff] %v3313
        %4658 = vst [vmem:[%s217 + $0xc30] sm:$0xff] %v3314
        %4659 = vst [vmem:[%s217 + $0xc38] sm:$0xff] %v3315
        %4660 = vst [vmem:[%s217 + $0xc40] sm:$0xff] %v3316
        %4661 = vst [vmem:[%s217 + $0xc48] sm:$0xff] %v3317
        %4662 = vst [vmem:[%s217 + $0xc50] sm:$0xff] %v3318
        %4663 = vst [vmem:[%s217 + $0xc58] sm:$0xff] %v3319
        %4664 = vst [vmem:[%s217 + $0xc60] sm:$0xff] %v3320
        %4665 = vst [vmem:[%s217 + $0xc68] sm:$0xff] %v3321
        %4666 = vst [vmem:[%s217 + $0xc70] sm:$0xff] %v3322
        %4667 = vst [vmem:[%s217 + $0xc78] sm:$0xff] %v3323
        %4668 = vst [vmem:[%s217 + $0xc80] sm:$0xff] %v3324
        %4669 = vst [vmem:[%s217 + $0xc88] sm:$0xff] %v3325
        %4670 = vst [vmem:[%s217 + $0xc90] sm:$0xff] %v3326
        %4671 = vst [vmem:[%s217 + $0xc98] sm:$0xff] %v3327
        %4672 = vst [vmem:[%s217 + $0xca0] sm:$0xff] %v3328
        %4673 = vst [vmem:[%s217 + $0xca8] sm:$0xff] %v3329
        %4674 = vst [vmem:[%s217 + $0xcb0] sm:$0xff] %v3330
        %4675 = vst [vmem:[%s217 + $0xcb8] sm:$0xff] %v3331
        %4676 = vst [vmem:[%s217 + $0xcc0] sm:$0xff] %v3332
        %4677 = vst [vmem:[%s217 + $0xcc8] sm:$0xff] %v3333
        %4678 = vst [vmem:[%s217 + $0xcd0] sm:$0xff] %v3334
        %4679 = vst [vmem:[%s217 + $0xcd8] sm:$0xff] %v3335
        %4680 = vst [vmem:[%s217 + $0xce0] sm:$0xff] %v3336
        %4681 = vst [vmem:[%s217 + $0xce8] sm:$0xff] %v3337
        %4682 = vst [vmem:[%s217 + $0xcf0] sm:$0xff] %v3338
        %4683 = vst [vmem:[%s217 + $0xcf8] sm:$0xff] %v3339
        %4684 = vst [vmem:[%s217 + $0xd00] sm:$0xff] %v3340
        %4685 = vst [vmem:[%s217 + $0xd08] sm:$0xff] %v3341
        %4686 = vst [vmem:[%s217 + $0xd10] sm:$0xff] %v3342
        %4687 = vst [vmem:[%s217 + $0xd18] sm:$0xff] %v3343
        %4688 = vst [vmem:[%s217 + $0xd20] sm:$0xff] %v3344
        %4689 = vst [vmem:[%s217 + $0xd28] sm:$0xff] %v3345
        %4690 = vst [vmem:[%s217 + $0xd30] sm:$0xff] %v3346
        %4691 = vst [vmem:[%s217 + $0xd38] sm:$0xff] %v3347
        %4692 = vst [vmem:[%s217 + $0xd40] sm:$0xff] %v3348
        %4693 = vst [vmem:[%s217 + $0xd48] sm:$0xff] %v3349
        %4694 = vst [vmem:[%s217 + $0xd50] sm:$0xff] %v3350
        %4695 = vst [vmem:[%s217 + $0xd58] sm:$0xff] %v3351
        %4696 = vst [vmem:[%s217 + $0xd60] sm:$0xff] %v3352
        %4697 = vst [vmem:[%s217 + $0xd68] sm:$0xff] %v3353
        %4698 = vst [vmem:[%s217 + $0xd70] sm:$0xff] %v3354
        %4699 = vst [vmem:[%s217 + $0xd78] sm:$0xff] %v3355
        %4700 = vst [vmem:[%s217 + $0xd80] sm:$0xff] %v3356
        %4701 = vst [vmem:[%s217 + $0xd88] sm:$0xff] %v3357
        %4702 = vst [vmem:[%s217 + $0xd90] sm:$0xff] %v3358
        %4703 = vst [vmem:[%s217 + $0xd98] sm:$0xff] %v3359
        %4704 = vst [vmem:[%s217 + $0xda0] sm:$0xff] %v3360
        %4705 = vst [vmem:[%s217 + $0xda8] sm:$0xff] %v3361
        %4706 = vst [vmem:[%s217 + $0xdb0] sm:$0xff] %v3362
        %4707 = vst [vmem:[%s217 + $0xdb8] sm:$0xff] %v3363
        %4708 = vst [vmem:[%s217 + $0xdc0] sm:$0xff] %v3364
        %4709 = vst [vmem:[%s217 + $0xdc8] sm:$0xff] %v3365
        %4710 = vst [vmem:[%s217 + $0xdd0] sm:$0xff] %v3366
        %4711 = vst [vmem:[%s217 + $0xdd8] sm:$0xff] %v3367
        %4712 = vst [vmem:[%s217 + $0xde0] sm:$0xff] %v3368
        %4713 = vst [vmem:[%s217 + $0xde8] sm:$0xff] %v3369
        %4714 = vst [vmem:[%s217 + $0xdf0] sm:$0xff] %v3370
        %4715 = vst [vmem:[%s217 + $0xdf8] sm:$0xff] %v3371
        %4716 = vst [vmem:[%s217 + $0xe00] sm:$0xff] %v3372
        %4717 = vst [vmem:[%s217 + $0xe08] sm:$0xff] %v3373
        %4718 = vst [vmem:[%s217 + $0xe10] sm:$0xff] %v3374
        %4719 = vst [vmem:[%s217 + $0xe18] sm:$0xff] %v3375
        %4720 = vst [vmem:[%s217 + $0xe20] sm:$0xff] %v3376
        %4721 = vst [vmem:[%s217 + $0xe28] sm:$0xff] %v3377
        %4722 = vst [vmem:[%s217 + $0xe30] sm:$0xff] %v3378
        %4723 = vst [vmem:[%s217 + $0xe38] sm:$0xff] %v3379
        %4724 = vst [vmem:[%s217 + $0xe40] sm:$0xff] %v3380
        %4725 = vst [vmem:[%s217 + $0xe48] sm:$0xff] %v3381
        %4726 = vst [vmem:[%s217 + $0xe50] sm:$0xff] %v3382
        %4727 = vst [vmem:[%s217 + $0xe58] sm:$0xff] %v3383
        %4728 = vst [vmem:[%s217 + $0xe60] sm:$0xff] %v3384
        %4729 = vst [vmem:[%s217 + $0xe68] sm:$0xff] %v3385
        %4730 = vst [vmem:[%s217 + $0xe70] sm:$0xff] %v3386
        %4731 = vst [vmem:[%s217 + $0xe78] sm:$0xff] %v3387
        %4732 = vst [vmem:[%s217 + $0xe80] sm:$0xff] %v3388
        %4733 = vst [vmem:[%s217 + $0xe88] sm:$0xff] %v3389
        %4734 = vst [vmem:[%s217 + $0xe90] sm:$0xff] %v3390
        %4735 = vst [vmem:[%s217 + $0xe98] sm:$0xff] %v3391
        %4736 = vst [vmem:[%s217 + $0xea0] sm:$0xff] %v3392
        %4737 = vst [vmem:[%s217 + $0xea8] sm:$0xff] %v3393
        %4738 = vst [vmem:[%s217 + $0xeb0] sm:$0xff] %v3394
        %4739 = vst [vmem:[%s217 + $0xeb8] sm:$0xff] %v3395
        %4740 = vst [vmem:[%s217 + $0xec0] sm:$0xff] %v3396
        %4741 = vst [vmem:[%s217 + $0xec8] sm:$0xff] %v3397
        %4742 = vst [vmem:[%s217 + $0xed0] sm:$0xff] %v3398
        %4743 = vst [vmem:[%s217 + $0xed8] sm:$0xff] %v3399
        %4744 = vst [vmem:[%s217 + $0xee0] sm:$0xff] %v3400
        %4745 = vst [vmem:[%s217 + $0xee8] sm:$0xff] %v3401
        %4746 = vst [vmem:[%s217 + $0xef0] sm:$0xff] %v3402
        %4747 = vst [vmem:[%s217 + $0xef8] sm:$0xff] %v3403
        %4748 = vst [vmem:[%s217 + $0xf00] sm:$0xff] %v3404
        %4749 = vst [vmem:[%s217 + $0xf08] sm:$0xff] %v3405
        %4750 = vst [vmem:[%s217 + $0xf10] sm:$0xff] %v3406
        %4751 = vst [vmem:[%s217 + $0xf18] sm:$0xff] %v3407
        %4752 = vst [vmem:[%s217 + $0xf20] sm:$0xff] %v3408
        %4753 = vst [vmem:[%s217 + $0xf28] sm:$0xff] %v3409
        %4754 = vst [vmem:[%s217 + $0xf30] sm:$0xff] %v3410
        %4755 = vst [vmem:[%s217 + $0xf38] sm:$0xff] %v3411
        %4756 = vst [vmem:[%s217 + $0xf40] sm:$0xff] %v3412
        %4757 = vst [vmem:[%s217 + $0xf48] sm:$0xff] %v3413
        %4758 = vst [vmem:[%s217 + $0xf50] sm:$0xff] %v3414
        %4759 = vst [vmem:[%s217 + $0xf58] sm:$0xff] %v3415
        %4760 = vst [vmem:[%s217 + $0xf60] sm:$0xff] %v3416
        %4761 = vst [vmem:[%s217 + $0xf68] sm:$0xff] %v3417
        %4762 = vst [vmem:[%s217 + $0xf70] sm:$0xff] %v3418
        %4763 = vst [vmem:[%s217 + $0xf78] sm:$0xff] %v3419
        %4764 = vst [vmem:[%s217 + $0xf80] sm:$0xff] %v3420
        %4765 = vst [vmem:[%s217 + $0xf88] sm:$0xff] %v3421
        %4766 = vst [vmem:[%s217 + $0xf90] sm:$0xff] %v3422
        %4767 = vst [vmem:[%s217 + $0xf98] sm:$0xff] %v3423
        %4768 = vst [vmem:[%s217 + $0xfa0] sm:$0xff] %v3424
        %4769 = vst [vmem:[%s217 + $0xfa8] sm:$0xff] %v3425
        %4770 = vst [vmem:[%s217 + $0xfb0] sm:$0xff] %v3426
        %4771 = vst [vmem:[%s217 + $0xfb8] sm:$0xff] %v3427
        %4772 = vst [vmem:[%s217 + $0xfc0] sm:$0xff] %v3428
        %4773 = vst [vmem:[%s217 + $0xfc8] sm:$0xff] %v3429
        %4774 = vst [vmem:[%s217 + $0xfd0] sm:$0xff] %v3430
        %4775 = vst [vmem:[%s217 + $0xfd8] sm:$0xff] %v3431
        %4776 = vst [vmem:[%s217 + $0xfe0] sm:$0xff] %v3432
        %4777 = vst [vmem:[%s217 + $0xfe8] sm:$0xff] %v3433
        %4778 = vst [vmem:[%s217 + $0xff0] sm:$0xff] %v3434
        %4779 = vst [vmem:[%s217 + $0xff8] sm:$0xff] %v3435
        %4780 = vst [vmem:[%s217 + $0x1000] sm:$0xff] %v3436
        %4781 = vst [vmem:[%s217 + $0x1008] sm:$0xff] %v3437
        %4782 = vst [vmem:[%s217 + $0x1010] sm:$0xff] %v3438
        %4783 = vst [vmem:[%s217 + $0x1018] sm:$0xff] %v3439
        %4784 = vst [vmem:[%s217 + $0x1020] sm:$0xff] %v3440
        %4785 = vst [vmem:[%s217 + $0x1028] sm:$0xff] %v3441
        %4786 = vst [vmem:[%s217 + $0x1030] sm:$0xff] %v3442
        %4787 = vst [vmem:[%s217 + $0x1038] sm:$0xff] %v3443
        %4788 = vst [vmem:[%s217 + $0x1040] sm:$0xff] %v3444
        %4789 = vst [vmem:[%s217 + $0x1048] sm:$0xff] %v3445
        %4790 = vst [vmem:[%s217 + $0x1050] sm:$0xff] %v3446
        %4791 = vst [vmem:[%s217 + $0x1058] sm:$0xff] %v3447
        %4792 = vst [vmem:[%s217 + $0x1060] sm:$0xff] %v3448
        %4793 = vst [vmem:[%s217 + $0x1068] sm:$0xff] %v3449
        %4794 = vst [vmem:[%s217 + $0x1070] sm:$0xff] %v3450
        %4795 = vst [vmem:[%s217 + $0x1078] sm:$0xff] %v3451
        %4796 = vst [vmem:[%s217 + $0x1080] sm:$0xff] %v3452
        %4797 = vst [vmem:[%s217 + $0x1088] sm:$0xff] %v3453
        %4798 = vst [vmem:[%s217 + $0x1090] sm:$0xff] %v3454
        %4799 = vst [vmem:[%s217 + $0x1098] sm:$0xff] %v3455
        %4800 = vst [vmem:[%s217 + $0x10a0] sm:$0xff] %v3456
        %4801 = vst [vmem:[%s217 + $0x10a8] sm:$0xff] %v3457
        %4802 = vst [vmem:[%s217 + $0x10b0] sm:$0xff] %v3458
        %4803 = vst [vmem:[%s217 + $0x10b8] sm:$0xff] %v3459
        %4804 = vst [vmem:[%s217 + $0x10c0] sm:$0xff] %v3460
        %4805 = vst [vmem:[%s217 + $0x10c8] sm:$0xff] %v3461
        %4806 = vst [vmem:[%s217 + $0x10d0] sm:$0xff] %v3462
        %4807 = vst [vmem:[%s217 + $0x10d8] sm:$0xff] %v3463
        %4808 = vst [vmem:[%s217 + $0x10e0] sm:$0xff] %v3464
        %4809 = vst [vmem:[%s217 + $0x10e8] sm:$0xff] %v3465
        %4810 = vst [vmem:[%s217 + $0x10f0] sm:$0xff] %v3466
        %4811 = vst [vmem:[%s217 + $0x10f8] sm:$0xff] %v3467
        %4812 = vst [vmem:[%s217 + $0x1100] sm:$0xff] %v3468
        %4813 = vst [vmem:[%s217 + $0x1108] sm:$0xff] %v3469
        %4814 = vst [vmem:[%s217 + $0x1110] sm:$0xff] %v3470
        %4815 = vst [vmem:[%s217 + $0x1118] sm:$0xff] %v3471
        %4816 = vst [vmem:[%s217 + $0x1120] sm:$0xff] %v3472
        %4817 = vst [vmem:[%s217 + $0x1128] sm:$0xff] %v3473
        %4818 = vst [vmem:[%s217 + $0x1130] sm:$0xff] %v3474
        %4819 = vst [vmem:[%s217 + $0x1138] sm:$0xff] %v3475
        %4820 = vst [vmem:[%s217 + $0x1140] sm:$0xff] %v3476
        %4821 = vst [vmem:[%s217 + $0x1148] sm:$0xff] %v3477
        %4822 = vst [vmem:[%s217 + $0x1150] sm:$0xff] %v3478
        %4823 = vst [vmem:[%s217 + $0x1158] sm:$0xff] %v3479
        %4824 = vst [vmem:[%s217 + $0x1160] sm:$0xff] %v3480
        %4825 = vst [vmem:[%s217 + $0x1168] sm:$0xff] %v3481
        %4826 = vst [vmem:[%s217 + $0x1170] sm:$0xff] %v3482
        %4827 = vst [vmem:[%s217 + $0x1178] sm:$0xff] %v3483
        %4828 = vst [vmem:[%s217 + $0x1180] sm:$0xff] %v3484
        %4829 = vst [vmem:[%s217 + $0x1188] sm:$0xff] %v3485
        %4830 = vst [vmem:[%s217 + $0x1190] sm:$0xff] %v3486
        %4831 = vst [vmem:[%s217 + $0x1198] sm:$0xff] %v3487
        %4832 = vst [vmem:[%s217 + $0x11a0] sm:$0xff] %v3488
        %4833 = vst [vmem:[%s217 + $0x11a8] sm:$0xff] %v3489
        %4834 = vst [vmem:[%s217 + $0x11b0] sm:$0xff] %v3490
        %4835 = vst [vmem:[%s217 + $0x11b8] sm:$0xff] %v3491
        %4836 = vst [vmem:[%s217 + $0x11c0] sm:$0xff] %v3492
        %4837 = vst [vmem:[%s217 + $0x11c8] sm:$0xff] %v3493
        %4838 = vst [vmem:[%s217 + $0x11d0] sm:$0xff] %v3494
        %4839 = vst [vmem:[%s217 + $0x11d8] sm:$0xff] %v3495
        %4840 = vst [vmem:[%s217 + $0x11e0] sm:$0xff] %v3496
        %4841 = vst [vmem:[%s217 + $0x11e8] sm:$0xff] %v3497
        %4842 = vst [vmem:[%s217 + $0x11f0] sm:$0xff] %v3498
        %4843 = vst [vmem:[%s217 + $0x11f8] sm:$0xff] %v3499
        %4844 = vst [vmem:[%s217 + $0x1200] sm:$0xff] %v3500
        %4845 = vst [vmem:[%s217 + $0x1208] sm:$0xff] %v3501
        %4846 = vst [vmem:[%s217 + $0x1210] sm:$0xff] %v3502
        %4847 = vst [vmem:[%s217 + $0x1218] sm:$0xff] %v3503
        %4848 = vst [vmem:[%s217 + $0x1220] sm:$0xff] %v3504
        %4849 = vst [vmem:[%s217 + $0x1228] sm:$0xff] %v3505
        %4850 = vst [vmem:[%s217 + $0x1230] sm:$0xff] %v3506
        %4851 = vst [vmem:[%s217 + $0x1238] sm:$0xff] %v3507
        %4852 = vst [vmem:[%s217 + $0x1240] sm:$0xff] %v3508
        %4853 = vst [vmem:[%s217 + $0x1248] sm:$0xff] %v3509
        %4854 = vst [vmem:[%s217 + $0x1250] sm:$0xff] %v3510
        %4855 = vst [vmem:[%s217 + $0x1258] sm:$0xff] %v3511
        %4856 = vst [vmem:[%s217 + $0x1260] sm:$0xff] %v3512
        %4857 = vst [vmem:[%s217 + $0x1268] sm:$0xff] %v3513
        %4858 = vst [vmem:[%s217 + $0x1270] sm:$0xff] %v3514
        %4859 = vst [vmem:[%s217 + $0x1278] sm:$0xff] %v3515
        %4860 = vst [vmem:[%s217 + $0x1280] sm:$0xff] %v3516
        %4861 = vst [vmem:[%s217 + $0x1288] sm:$0xff] %v3517
        %4862 = vst [vmem:[%s217 + $0x1290] sm:$0xff] %v3518
        %4863 = vst [vmem:[%s217 + $0x1298] sm:$0xff] %v3519
        %4864 = vst [vmem:[%s217 + $0x12a0] sm:$0xff] %v3520
        %4865 = vst [vmem:[%s217 + $0x12a8] sm:$0xff] %v3521
        %4866 = vst [vmem:[%s217 + $0x12b0] sm:$0xff] %v3522
        %4867 = vst [vmem:[%s217 + $0x12b8] sm:$0xff] %v3523
        %4868 = vst [vmem:[%s217 + $0x12c0] sm:$0xff] %v3524
        %4869 = vst [vmem:[%s217 + $0x12c8] sm:$0xff] %v3525
        %4870 = vst [vmem:[%s217 + $0x12d0] sm:$0xff] %v3526
        %4871 = vst [vmem:[%s217 + $0x12d8] sm:$0xff] %v3527
        %4872 = vst [vmem:[%s217 + $0x12e0] sm:$0xff] %v3528
        %4873 = vst [vmem:[%s217 + $0x12e8] sm:$0xff] %v3529
        %4874 = vst [vmem:[%s217 + $0x12f0] sm:$0xff] %v3530
        %4875 = vst [vmem:[%s217 + $0x12f8] sm:$0xff] %v3531
        %4876 = vst [vmem:[%s217 + $0x1300] sm:$0xff] %v3532
        %4877 = vst [vmem:[%s217 + $0x1308] sm:$0xff] %v3533
        %4878 = vst [vmem:[%s217 + $0x1310] sm:$0xff] %v3534
        %4879 = vst [vmem:[%s217 + $0x1318] sm:$0xff] %v3535
        %4880 = vst [vmem:[%s217 + $0x1320] sm:$0xff] %v3536
        %4881 = vst [vmem:[%s217 + $0x1328] sm:$0xff] %v3537
        %4882 = vst [vmem:[%s217 + $0x1330] sm:$0xff] %v3538
        %4883 = vst [vmem:[%s217 + $0x1338] sm:$0xff] %v3539
        %4884 = vst [vmem:[%s217 + $0x1340] sm:$0xff] %v3540
        %4885 = vst [vmem:[%s217 + $0x1348] sm:$0xff] %v3541
        %4886 = vst [vmem:[%s217 + $0x1350] sm:$0xff] %v3542
        %4887 = vst [vmem:[%s217 + $0x1358] sm:$0xff] %v3543
        %4888 = vst [vmem:[%s217 + $0x1360] sm:$0xff] %v3544
        %4889 = vst [vmem:[%s217 + $0x1368] sm:$0xff] %v3545
        %4890 = vst [vmem:[%s217 + $0x1370] sm:$0xff] %v3546
        %4891 = vst [vmem:[%s217 + $0x1378] sm:$0xff] %v3547
        %4892 = vst [vmem:[%s217 + $0x1380] sm:$0xff] %v3548
        %4893 = vst [vmem:[%s217 + $0x1388] sm:$0xff] %v3549
        %4894 = vst [vmem:[%s217 + $0x1390] sm:$0xff] %v3550
        %4895 = vst [vmem:[%s217 + $0x1398] sm:$0xff] %v3551
        %4896 = vst [vmem:[%s217 + $0x13a0] sm:$0xff] %v3552
        %4897 = vst [vmem:[%s217 + $0x13a8] sm:$0xff] %v3553
        %4898 = vst [vmem:[%s217 + $0x13b0] sm:$0xff] %v3554
        %4899 = vst [vmem:[%s217 + $0x13b8] sm:$0xff] %v3555
        %4900 = vst [vmem:[%s217 + $0x13c0] sm:$0xff] %v3556
        %4901 = vst [vmem:[%s217 + $0x13c8] sm:$0xff] %v3557
        %4902 = vst [vmem:[%s217 + $0x13d0] sm:$0xff] %v3558
        %4903 = vst [vmem:[%s217 + $0x13d8] sm:$0xff] %v3559
        %4904 = vst [vmem:[%s217 + $0x13e0] sm:$0xff] %v3560
        %4905 = vst [vmem:[%s217 + $0x13e8] sm:$0xff] %v3561
        %4906 = vst [vmem:[%s217 + $0x13f0] sm:$0xff] %v3562
        %4907 = vst [vmem:[%s217 + $0x13f8] sm:$0xff] %v3563
        %4908 = vst [vmem:[%s217 + $0x1400] sm:$0xff] %v3564
        %4909 = vst [vmem:[%s217 + $0x1408] sm:$0xff] %v3565
        %4910 = vst [vmem:[%s217 + $0x1410] sm:$0xff] %v3566
        %4911 = vst [vmem:[%s217 + $0x1418] sm:$0xff] %v3567
        %4912 = vst [vmem:[%s217 + $0x1420] sm:$0xff] %v3568
        %4913 = vst [vmem:[%s217 + $0x1428] sm:$0xff] %v3569
        %4914 = vst [vmem:[%s217 + $0x1430] sm:$0xff] %v3570
        %4915 = vst [vmem:[%s217 + $0x1438] sm:$0xff] %v3571
        %4916 = vst [vmem:[%s217 + $0x1440] sm:$0xff] %v3572
        %4917 = vst [vmem:[%s217 + $0x1448] sm:$0xff] %v3573
        %4918 = vst [vmem:[%s217 + $0x1450] sm:$0xff] %v3574
        %4919 = vst [vmem:[%s217 + $0x1458] sm:$0xff] %v3575
        %4920 = vst [vmem:[%s217 + $0x1460] sm:$0xff] %v3576
        %4921 = vst [vmem:[%s217 + $0x1468] sm:$0xff] %v3577
        %4922 = vst [vmem:[%s217 + $0x1470] sm:$0xff] %v3578
        %4923 = vst [vmem:[%s217 + $0x1478] sm:$0xff] %v3579
        %4924 = vst [vmem:[%s217 + $0x1480] sm:$0xff] %v3580
        %4925 = vst [vmem:[%s217 + $0x1488] sm:$0xff] %v3581
        %4926 = vst [vmem:[%s217 + $0x1490] sm:$0xff] %v3582
        %4927 = vst [vmem:[%s217 + $0x1498] sm:$0xff] %v3583
        %4928 = vst [vmem:[%s217 + $0x14a0] sm:$0xff] %v3584
        %4929 = vst [vmem:[%s217 + $0x14a8] sm:$0xff] %v3585
        %4930 = vst [vmem:[%s217 + $0x14b0] sm:$0xff] %v3586
        %4931 = vst [vmem:[%s217 + $0x14b8] sm:$0xff] %v3587
        %4932 = vst [vmem:[%s217 + $0x14c0] sm:$0xff] %v3588
        %4933 = vst [vmem:[%s217 + $0x14c8] sm:$0xff] %v3589
        %4934 = vst [vmem:[%s217 + $0x14d0] sm:$0xff] %v3590
        %4935 = vst [vmem:[%s217 + $0x14d8] sm:$0xff] %v3591
        %4936 = vst [vmem:[%s217 + $0x14e0] sm:$0xff] %v3592
        %4937 = vst [vmem:[%s217 + $0x14e8] sm:$0xff] %v3593
        %4938 = vst [vmem:[%s217 + $0x14f0] sm:$0xff] %v3594
        %4939 = vst [vmem:[%s217 + $0x14f8] sm:$0xff] %v3595
        %4940 = vst [vmem:[%s217 + $0x1500] sm:$0xff] %v3596
        %4941 = vst [vmem:[%s217 + $0x1508] sm:$0xff] %v3597
        %4942 = vst [vmem:[%s217 + $0x1510] sm:$0xff] %v3598
        %4943 = vst [vmem:[%s217 + $0x1518] sm:$0xff] %v3599
        %4944 = vst [vmem:[%s217 + $0x1520] sm:$0xff] %v3600
        %4945 = vst [vmem:[%s217 + $0x1528] sm:$0xff] %v3601
        %4946 = vst [vmem:[%s217 + $0x1530] sm:$0xff] %v3602
        %4947 = vst [vmem:[%s217 + $0x1538] sm:$0xff] %v3603
        %4948 = vst [vmem:[%s217 + $0x1540] sm:$0xff] %v3604
        %4949 = vst [vmem:[%s217 + $0x1548] sm:$0xff] %v3605
        %4950 = vst [vmem:[%s217 + $0x1550] sm:$0xff] %v3606
        %4951 = vst [vmem:[%s217 + $0x1558] sm:$0xff] %v3607
        %4952 = vst [vmem:[%s217 + $0x1560] sm:$0xff] %v3608
        %4953 = vst [vmem:[%s217 + $0x1568] sm:$0xff] %v3609
        %4954 = vst [vmem:[%s217 + $0x1570] sm:$0xff] %v3610
        %4955 = vst [vmem:[%s217 + $0x1578] sm:$0xff] %v3611
        %4956 = vst [vmem:[%s217 + $0x1580] sm:$0xff] %v3612
        %4957 = vst [vmem:[%s217 + $0x1588] sm:$0xff] %v3613
        %4958 = vst [vmem:[%s217 + $0x1590] sm:$0xff] %v3614
        %4959 = vst [vmem:[%s217 + $0x1598] sm:$0xff] %v3615
        %4960 = vst [vmem:[%s217 + $0x15a0] sm:$0xff] %v3616
        %4961 = vst [vmem:[%s217 + $0x15a8] sm:$0xff] %v3617
        %4962 = vst [vmem:[%s217 + $0x15b0] sm:$0xff] %v3618
        %4963 = vst [vmem:[%s217 + $0x15b8] sm:$0xff] %v3619
        %4964 = vst [vmem:[%s217 + $0x15c0] sm:$0xff] %v3620
        %4965 = vst [vmem:[%s217 + $0x15c8] sm:$0xff] %v3621
        %4966 = vst [vmem:[%s217 + $0x15d0] sm:$0xff] %v3622
        %4967 = vst [vmem:[%s217 + $0x15d8] sm:$0xff] %v3623
        %4968 = vst [vmem:[%s217 + $0x15e0] sm:$0xff] %v3624
        %4969 = vst [vmem:[%s217 + $0x15e8] sm:$0xff] %v3625
        %4970 = vst [vmem:[%s217 + $0x15f0] sm:$0xff] %v3626
        %4971 = vst [vmem:[%s217 + $0x15f8] sm:$0xff] %v3627
        %4972 = vst [vmem:[%s217 + $0x1600] sm:$0xff] %v3628
        %4973 = vst [vmem:[%s217 + $0x1608] sm:$0xff] %v3629
        %4974 = vst [vmem:[%s217 + $0x1610] sm:$0xff] %v3630
        %4975 = vst [vmem:[%s217 + $0x1618] sm:$0xff] %v3631
        %4976 = vst [vmem:[%s217 + $0x1620] sm:$0xff] %v3632
        %4977 = vst [vmem:[%s217 + $0x1628] sm:$0xff] %v3633
        %4978 = vst [vmem:[%s217 + $0x1630] sm:$0xff] %v3634
        %4979 = vst [vmem:[%s217 + $0x1638] sm:$0xff] %v3635
        %4980 = vst [vmem:[%s217 + $0x1640] sm:$0xff] %v3636
        %4981 = vst [vmem:[%s217 + $0x1648] sm:$0xff] %v3637
        %4982 = vst [vmem:[%s217 + $0x1650] sm:$0xff] %v3638
        %4983 = vst [vmem:[%s217 + $0x1658] sm:$0xff] %v3639
        %4984 = vst [vmem:[%s217 + $0x1660] sm:$0xff] %v3640
        %4985 = vst [vmem:[%s217 + $0x1668] sm:$0xff] %v3641
        %4986 = vst [vmem:[%s217 + $0x1670] sm:$0xff] %v3642
        %4987 = vst [vmem:[%s217 + $0x1678] sm:$0xff] %v3643
        %4988 = vst [vmem:[%s217 + $0x1680] sm:$0xff] %v3644
        %4989 = vst [vmem:[%s217 + $0x1688] sm:$0xff] %v3645
        %4990 = vst [vmem:[%s217 + $0x1690] sm:$0xff] %v3646
        %4991 = vst [vmem:[%s217 + $0x1698] sm:$0xff] %v3647
        %4992 = vst [vmem:[%s217 + $0x16a0] sm:$0xff] %v3648
        %4993 = vst [vmem:[%s217 + $0x16a8] sm:$0xff] %v3649
        %4994 = vst [vmem:[%s217 + $0x16b0] sm:$0xff] %v3650
        %4995 = vst [vmem:[%s217 + $0x16b8] sm:$0xff] %v3651
        %4996 = vst [vmem:[%s217 + $0x16c0] sm:$0xff] %v3652
        %4997 = vst [vmem:[%s217 + $0x16c8] sm:$0xff] %v3653
        %4998 = vst [vmem:[%s217 + $0x16d0] sm:$0xff] %v3654
        %4999 = vst [vmem:[%s217 + $0x16d8] sm:$0xff] %v3655
        %5000 = vst [vmem:[%s217 + $0x16e0] sm:$0xff] %v3656
        %5001 = vst [vmem:[%s217 + $0x16e8] sm:$0xff] %v3657
        %5002 = vst [vmem:[%s217 + $0x16f0] sm:$0xff] %v3658
        %5003 = vst [vmem:[%s217 + $0x16f8] sm:$0xff] %v3659
        %5004 = vst [vmem:[%s217 + $0x1700] sm:$0xff] %v3660
        %5005 = vst [vmem:[%s217 + $0x1708] sm:$0xff] %v3661
        %5006 = vst [vmem:[%s217 + $0x1710] sm:$0xff] %v3662
        %5007 = vst [vmem:[%s217 + $0x1718] sm:$0xff] %v3663
        %5008 = vst [vmem:[%s217 + $0x1720] sm:$0xff] %v3664
        %5009 = vst [vmem:[%s217 + $0x1728] sm:$0xff] %v3665
        %5010 = vst [vmem:[%s217 + $0x1730] sm:$0xff] %v3666
        %5011 = vst [vmem:[%s217 + $0x1738] sm:$0xff] %v3667
        %5012 = vst [vmem:[%s217 + $0x1740] sm:$0xff] %v3668
        %5013 = vst [vmem:[%s217 + $0x1748] sm:$0xff] %v3669
        %5014 = vst [vmem:[%s217 + $0x1750] sm:$0xff] %v3670
        %5015 = vst [vmem:[%s217 + $0x1758] sm:$0xff] %v3671
        %5016 = vst [vmem:[%s217 + $0x1760] sm:$0xff] %v3672
        %5017 = vst [vmem:[%s217 + $0x1768] sm:$0xff] %v3673
        %5018 = vst [vmem:[%s217 + $0x1770] sm:$0xff] %v3674
        %5019 = vst [vmem:[%s217 + $0x1778] sm:$0xff] %v3675
        %5020 = vst [vmem:[%s217 + $0x1780] sm:$0xff] %v3676
        %5021 = vst [vmem:[%s217 + $0x1788] sm:$0xff] %v3677
        %5022 = vst [vmem:[%s217 + $0x1790] sm:$0xff] %v3678
        %5023 = vst [vmem:[%s217 + $0x1798] sm:$0xff] %v3679
        %5024 = vst [vmem:[%s217 + $0x17a0] sm:$0xff] %v3680
        %5025 = vst [vmem:[%s217 + $0x17a8] sm:$0xff] %v3681
        %5026 = vst [vmem:[%s217 + $0x17b0] sm:$0xff] %v3682
        %5027 = vst [vmem:[%s217 + $0x17b8] sm:$0xff] %v3683
        %5028 = vst [vmem:[%s217 + $0x17c0] sm:$0xff] %v3684
        %5029 = vst [vmem:[%s217 + $0x17c8] sm:$0xff] %v3685
        %5030 = vst [vmem:[%s217 + $0x17d0] sm:$0xff] %v3686
        %5031 = vst [vmem:[%s217 + $0x17d8] sm:$0xff] %v3687
        %5032 = vst [vmem:[%s217 + $0x17e0] sm:$0xff] %v3688
        %5033 = vst [vmem:[%s217 + $0x17e8] sm:$0xff] %v3689
        %5034 = vst [vmem:[%s217 + $0x17f0] sm:$0xff] %v3690
        %5035 = vst [vmem:[%s217 + $0x17f8] sm:$0xff] %v3691
        %5036 = vst [vmem:[%s217 + $0x1800] sm:$0xff] %v3692
        %5037 = vst [vmem:[%s217 + $0x1808] sm:$0xff] %v3693
        %5038 = vst [vmem:[%s217 + $0x1810] sm:$0xff] %v3694
        %5039 = vst [vmem:[%s217 + $0x1818] sm:$0xff] %v3695
        %5040 = vst [vmem:[%s217 + $0x1820] sm:$0xff] %v3696
        %5041 = vst [vmem:[%s217 + $0x1828] sm:$0xff] %v3697
        %5042 = vst [vmem:[%s217 + $0x1830] sm:$0xff] %v3698
        %5043 = vst [vmem:[%s217 + $0x1838] sm:$0xff] %v3699
        %5044 = vst [vmem:[%s217 + $0x1840] sm:$0xff] %v3700
        %5045 = vst [vmem:[%s217 + $0x1848] sm:$0xff] %v3701
        %5046 = vst [vmem:[%s217 + $0x1850] sm:$0xff] %v3702
        %5047 = vst [vmem:[%s217 + $0x1858] sm:$0xff] %v3703
        %5048 = vst [vmem:[%s217 + $0x1860] sm:$0xff] %v3704
        %5049 = vst [vmem:[%s217 + $0x1868] sm:$0xff] %v3705
        %5050 = vst [vmem:[%s217 + $0x1870] sm:$0xff] %v3706
        %5051 = vst [vmem:[%s217 + $0x1878] sm:$0xff] %v3707
        %5052 = vst [vmem:[%s217 + $0x1880] sm:$0xff] %v3708
        %5053 = vst [vmem:[%s217 + $0x1888] sm:$0xff] %v3709
        %5054 = vst [vmem:[%s217 + $0x1890] sm:$0xff] %v3710
        %5055 = vst [vmem:[%s217 + $0x1898] sm:$0xff] %v3711
        %5056 = vst [vmem:[%s217 + $0x18a0] sm:$0xff] %v3712
        %5057 = vst [vmem:[%s217 + $0x18a8] sm:$0xff] %v3713
        %5058 = vst [vmem:[%s217 + $0x18b0] sm:$0xff] %v3714
        %5059 = vst [vmem:[%s217 + $0x18b8] sm:$0xff] %v3715
        %5060 = vst [vmem:[%s217 + $0x18c0] sm:$0xff] %v3716
        %5061 = vst [vmem:[%s217 + $0x18c8] sm:$0xff] %v3717
        %5062 = vst [vmem:[%s217 + $0x18d0] sm:$0xff] %v3718
        %5063 = vst [vmem:[%s217 + $0x18d8] sm:$0xff] %v3719
        %5064 = vst [vmem:[%s217 + $0x18e0] sm:$0xff] %v3720
        %5065 = vst [vmem:[%s217 + $0x18e8] sm:$0xff] %v3721
        %5066 = vst [vmem:[%s217 + $0x18f0] sm:$0xff] %v3722
        %5067 = vst [vmem:[%s217 + $0x18f8] sm:$0xff] %v3723
        %5068 = vst [vmem:[%s217 + $0x1900] sm:$0xff] %v3724
        %5069 = vst [vmem:[%s217 + $0x1908] sm:$0xff] %v3725
        %5070 = vst [vmem:[%s217 + $0x1910] sm:$0xff] %v3726
        %5071 = vst [vmem:[%s217 + $0x1918] sm:$0xff] %v3727
        %5072 = vst [vmem:[%s217 + $0x1920] sm:$0xff] %v3728
        %5073 = vst [vmem:[%s217 + $0x1928] sm:$0xff] %v3729
        %5074 = vst [vmem:[%s217 + $0x1930] sm:$0xff] %v3730
        %5075 = vst [vmem:[%s217 + $0x1938] sm:$0xff] %v3731
        %5076 = vst [vmem:[%s217 + $0x1940] sm:$0xff] %v3732
        %5077 = vst [vmem:[%s217 + $0x1948] sm:$0xff] %v3733
        %5078 = vst [vmem:[%s217 + $0x1950] sm:$0xff] %v3734
        %5079 = vst [vmem:[%s217 + $0x1958] sm:$0xff] %v3735
        %5080 = vst [vmem:[%s217 + $0x1960] sm:$0xff] %v3736
        %5081 = vst [vmem:[%s217 + $0x1968] sm:$0xff] %v3737
        %5082 = vst [vmem:[%s217 + $0x1970] sm:$0xff] %v3738
        %5083 = vst [vmem:[%s217 + $0x1978] sm:$0xff] %v3739
        %5084 = vst [vmem:[%s217 + $0x1980] sm:$0xff] %v3740
        %5085 = vst [vmem:[%s217 + $0x1988] sm:$0xff] %v3741
        %5086 = vst [vmem:[%s217 + $0x1990] sm:$0xff] %v3742
        %5087 = vst [vmem:[%s217 + $0x1998] sm:$0xff] %v3743
        %5088 = vst [vmem:[%s217 + $0x19a0] sm:$0xff] %v3744
        %5089 = vst [vmem:[%s217 + $0x19a8] sm:$0xff] %v3745
        %5090 = vst [vmem:[%s217 + $0x19b0] sm:$0xff] %v3746
        %5091 = vst [vmem:[%s217 + $0x19b8] sm:$0xff] %v3747
        %5092 = vst [vmem:[%s217 + $0x19c0] sm:$0xff] %v3748
        %5093 = vst [vmem:[%s217 + $0x19c8] sm:$0xff] %v3749
        %5094 = vst [vmem:[%s217 + $0x19d0] sm:$0xff] %v3750
        %5095 = vst [vmem:[%s217 + $0x19d8] sm:$0xff] %v3751
        %5096 = vst [vmem:[%s217 + $0x19e0] sm:$0xff] %v3752
        %5097 = vst [vmem:[%s217 + $0x19e8] sm:$0xff] %v3753
        %5098 = vst [vmem:[%s217 + $0x19f0] sm:$0xff] %v3754
        %5099 = vst [vmem:[%s217 + $0x19f8] sm:$0xff] %v3755
        %5100 = vst [vmem:[%s217 + $0x1a00] sm:$0xff] %v3756
        %5101 = vst [vmem:[%s217 + $0x1a08] sm:$0xff] %v3757
        %5102 = vst [vmem:[%s217 + $0x1a10] sm:$0xff] %v3758
        %5103 = vst [vmem:[%s217 + $0x1a18] sm:$0xff] %v3759
        %5104 = vst [vmem:[%s217 + $0x1a20] sm:$0xff] %v3760
        %5105 = vst [vmem:[%s217 + $0x1a28] sm:$0xff] %v3761
        %5106 = vst [vmem:[%s217 + $0x1a30] sm:$0xff] %v3762
        %5107 = vst [vmem:[%s217 + $0x1a38] sm:$0xff] %v3763
        %5108 = vst [vmem:[%s217 + $0x1a40] sm:$0xff] %v3764
        %5109 = vst [vmem:[%s217 + $0x1a48] sm:$0xff] %v3765
        %5110 = vst [vmem:[%s217 + $0x1a50] sm:$0xff] %v3766
        %5111 = vst [vmem:[%s217 + $0x1a58] sm:$0xff] %v3767
        %5112 = vst [vmem:[%s217 + $0x1a60] sm:$0xff] %v3768
        %5113 = vst [vmem:[%s217 + $0x1a68] sm:$0xff] %v3769
        %5114 = vst [vmem:[%s217 + $0x1a70] sm:$0xff] %v3770
        %5115 = vst [vmem:[%s217 + $0x1a78] sm:$0xff] %v3771
        %5116 = vst [vmem:[%s217 + $0x1a80] sm:$0xff] %v3772
        %5117 = vst [vmem:[%s217 + $0x1a88] sm:$0xff] %v3773
        %5118 = vst [vmem:[%s217 + $0x1a90] sm:$0xff] %v3774
        %5119 = vst [vmem:[%s217 + $0x1a98] sm:$0xff] %v3775
        %5120 = vst [vmem:[%s217 + $0x1aa0] sm:$0xff] %v3776
        %5121 = vst [vmem:[%s217 + $0x1aa8] sm:$0xff] %v3777
        %5122 = vst [vmem:[%s217 + $0x1ab0] sm:$0xff] %v3778
        %5123 = vst [vmem:[%s217 + $0x1ab8] sm:$0xff] %v3779
        %5124 = vst [vmem:[%s217 + $0x1ac0] sm:$0xff] %v3780
        %5125 = vst [vmem:[%s217 + $0x1ac8] sm:$0xff] %v3781
        %5126 = vst [vmem:[%s217 + $0x1ad0] sm:$0xff] %v3782
        %5127 = vst [vmem:[%s217 + $0x1ad8] sm:$0xff] %v3783
        %5128 = vst [vmem:[%s217 + $0x1ae0] sm:$0xff] %v3784
        %5129 = vst [vmem:[%s217 + $0x1ae8] sm:$0xff] %v3785
        %5130 = vst [vmem:[%s217 + $0x1af0] sm:$0xff] %v3786
        %5131 = vst [vmem:[%s217 + $0x1af8] sm:$0xff] %v3787
        %5132 = vst [vmem:[%s217 + $0x1b00] sm:$0xff] %v3788
        %5133 = vst [vmem:[%s217 + $0x1b08] sm:$0xff] %v3789
        %5134 = vst [vmem:[%s217 + $0x1b10] sm:$0xff] %v3790
        %5135 = vst [vmem:[%s217 + $0x1b18] sm:$0xff] %v3791
        %5136 = vst [vmem:[%s217 + $0x1b20] sm:$0xff] %v3792
        %5137 = vst [vmem:[%s217 + $0x1b28] sm:$0xff] %v3793
        %5138 = vst [vmem:[%s217 + $0x1b30] sm:$0xff] %v3794
        %5139 = vst [vmem:[%s217 + $0x1b38] sm:$0xff] %v3795
        %5140 = vst [vmem:[%s217 + $0x1b40] sm:$0xff] %v3796
        %5141 = vst [vmem:[%s217 + $0x1b48] sm:$0xff] %v3797
        %5142 = vst [vmem:[%s217 + $0x1b50] sm:$0xff] %v3798
        %5143 = vst [vmem:[%s217 + $0x1b58] sm:$0xff] %v3799
        %5144 = vst [vmem:[%s217 + $0x1b60] sm:$0xff] %v3800
        %5145 = vst [vmem:[%s217 + $0x1b68] sm:$0xff] %v3801
        %5146 = vst [vmem:[%s217 + $0x1b70] sm:$0xff] %v3802
        %5147 = vst [vmem:[%s217 + $0x1b78] sm:$0xff] %v3803
        %5148 = vst [vmem:[%s217 + $0x1b80] sm:$0xff] %v3804
        %5149 = vst [vmem:[%s217 + $0x1b88] sm:$0xff] %v3805
        %5150 = vst [vmem:[%s217 + $0x1b90] sm:$0xff] %v3806
        %5151 = vst [vmem:[%s217 + $0x1b98] sm:$0xff] %v3807
        %5152 = vst [vmem:[%s217 + $0x1ba0] sm:$0xff] %v3808
        %5153 = vst [vmem:[%s217 + $0x1ba8] sm:$0xff] %v3809
        %5154 = vst [vmem:[%s217 + $0x1bb0] sm:$0xff] %v3810
        %5155 = vst [vmem:[%s217 + $0x1bb8] sm:$0xff] %v3811
        %5156 = vst [vmem:[%s217 + $0x1bc0] sm:$0xff] %v3812
        %5157 = vst [vmem:[%s217 + $0x1bc8] sm:$0xff] %v3813
        %5158 = vst [vmem:[%s217 + $0x1bd0] sm:$0xff] %v3814
        %5159 = vst [vmem:[%s217 + $0x1bd8] sm:$0xff] %v3815
        %5160 = vst [vmem:[%s217 + $0x1be0] sm:$0xff] %v3816
        %5161 = vst [vmem:[%s217 + $0x1be8] sm:$0xff] %v3817
        %5162 = vst [vmem:[%s217 + $0x1bf0] sm:$0xff] %v3818
        %5163 = vst [vmem:[%s217 + $0x1bf8] sm:$0xff] %v3819
        %5164 = vst [vmem:[%s217 + $0x1c00] sm:$0xff] %v3820
        %5165 = vst [vmem:[%s217 + $0x1c08] sm:$0xff] %v3821
        %5166 = vst [vmem:[%s217 + $0x1c10] sm:$0xff] %v3822
        %5167 = vst [vmem:[%s217 + $0x1c18] sm:$0xff] %v3823
        %5168 = vst [vmem:[%s217 + $0x1c20] sm:$0xff] %v3824
        %5169 = vst [vmem:[%s217 + $0x1c28] sm:$0xff] %v3825
        %5170 = vst [vmem:[%s217 + $0x1c30] sm:$0xff] %v3826
        %5171 = vst [vmem:[%s217 + $0x1c38] sm:$0xff] %v3827
        %5172 = vst [vmem:[%s217 + $0x1c40] sm:$0xff] %v3828
        %5173 = vst [vmem:[%s217 + $0x1c48] sm:$0xff] %v3829
        %5174 = vst [vmem:[%s217 + $0x1c50] sm:$0xff] %v3830
        %5175 = vst [vmem:[%s217 + $0x1c58] sm:$0xff] %v3831
        %5176 = vst [vmem:[%s217 + $0x1c60] sm:$0xff] %v3832
        %5177 = vst [vmem:[%s217 + $0x1c68] sm:$0xff] %v3833
        %5178 = vst [vmem:[%s217 + $0x1c70] sm:$0xff] %v3834
        %5179 = vst [vmem:[%s217 + $0x1c78] sm:$0xff] %v3835
        %5180 = vst [vmem:[%s217 + $0x1c80] sm:$0xff] %v3836
        %5181 = vst [vmem:[%s217 + $0x1c88] sm:$0xff] %v3837
        %5182 = vst [vmem:[%s217 + $0x1c90] sm:$0xff] %v3838
        %5183 = vst [vmem:[%s217 + $0x1c98] sm:$0xff] %v3839
        %5184 = vst [vmem:[%s217 + $0x1ca0] sm:$0xff] %v3840
        %5185 = vst [vmem:[%s217 + $0x1ca8] sm:$0xff] %v3841
        %5186 = vst [vmem:[%s217 + $0x1cb0] sm:$0xff] %v3842
        %5187 = vst [vmem:[%s217 + $0x1cb8] sm:$0xff] %v3843
        %5188 = vst [vmem:[%s217 + $0x1cc0] sm:$0xff] %v3844
        %5189 = vst [vmem:[%s217 + $0x1cc8] sm:$0xff] %v3845
        %5190 = vst [vmem:[%s217 + $0x1cd0] sm:$0xff] %v3846
        %5191 = vst [vmem:[%s217 + $0x1cd8] sm:$0xff] %v3847
        %5192 = vst [vmem:[%s217 + $0x1ce0] sm:$0xff] %v3848
        %5193 = vst [vmem:[%s217 + $0x1ce8] sm:$0xff] %v3849
        %5194 = vst [vmem:[%s217 + $0x1cf0] sm:$0xff] %v3850
        %5195 = vst [vmem:[%s217 + $0x1cf8] sm:$0xff] %v3851
        %5196 = vst [vmem:[%s217 + $0x1d00] sm:$0xff] %v3852
        %5197 = vst [vmem:[%s217 + $0x1d08] sm:$0xff] %v3853
        %5198 = vst [vmem:[%s217 + $0x1d10] sm:$0xff] %v3854
        %5199 = vst [vmem:[%s217 + $0x1d18] sm:$0xff] %v3855
        %5200 = vst [vmem:[%s217 + $0x1d20] sm:$0xff] %v3856
        %5201 = vst [vmem:[%s217 + $0x1d28] sm:$0xff] %v3857
        %5202 = vst [vmem:[%s217 + $0x1d30] sm:$0xff] %v3858
        %5203 = vst [vmem:[%s217 + $0x1d38] sm:$0xff] %v3859
        %5204 = vst [vmem:[%s217 + $0x1d40] sm:$0xff] %v3860
        %5205 = vst [vmem:[%s217 + $0x1d48] sm:$0xff] %v3861
        %5206 = vst [vmem:[%s217 + $0x1d50] sm:$0xff] %v3862
        %5207 = vst [vmem:[%s217 + $0x1d58] sm:$0xff] %v3863
        %5208 = vst [vmem:[%s217 + $0x1d60] sm:$0xff] %v3864
        %5209 = vst [vmem:[%s217 + $0x1d68] sm:$0xff] %v3865
        %5210 = vst [vmem:[%s217 + $0x1d70] sm:$0xff] %v3866
        %5211 = vst [vmem:[%s217 + $0x1d78] sm:$0xff] %v3867
        %5212 = vst [vmem:[%s217 + $0x1d80] sm:$0xff] %v3868
        %5213 = vst [vmem:[%s217 + $0x1d88] sm:$0xff] %v3869
        %5214 = vst [vmem:[%s217 + $0x1d90] sm:$0xff] %v3870
        %5215 = vst [vmem:[%s217 + $0x1d98] sm:$0xff] %v3871
        %5216 = vst [vmem:[%s217 + $0x1da0] sm:$0xff] %v3872
        %5217 = vst [vmem:[%s217 + $0x1da8] sm:$0xff] %v3873
        %5218 = vst [vmem:[%s217 + $0x1db0] sm:$0xff] %v3874
        %5219 = vst [vmem:[%s217 + $0x1db8] sm:$0xff] %v3875
        %5220 = vst [vmem:[%s217 + $0x1dc0] sm:$0xff] %v3876
        %5221 = vst [vmem:[%s217 + $0x1dc8] sm:$0xff] %v3877
        %5222 = vst [vmem:[%s217 + $0x1dd0] sm:$0xff] %v3878
        %5223 = vst [vmem:[%s217 + $0x1dd8] sm:$0xff] %v3879
        %5224 = vst [vmem:[%s217 + $0x1de0] sm:$0xff] %v3880
        %5225 = vst [vmem:[%s217 + $0x1de8] sm:$0xff] %v3881
        %5226 = vst [vmem:[%s217 + $0x1df0] sm:$0xff] %v3882
        %5227 = vst [vmem:[%s217 + $0x1df8] sm:$0xff] %v3883
        %5228 = vst [vmem:[%s217 + $0x1e00] sm:$0xff] %v3884
        %5229 = vst [vmem:[%s217 + $0x1e08] sm:$0xff] %v3885
        %5230 = vst [vmem:[%s217 + $0x1e10] sm:$0xff] %v3886
        %5231 = vst [vmem:[%s217 + $0x1e18] sm:$0xff] %v3887
        %5232 = vst [vmem:[%s217 + $0x1e20] sm:$0xff] %v3888
        %5233 = vst [vmem:[%s217 + $0x1e28] sm:$0xff] %v3889
        %5234 = vst [vmem:[%s217 + $0x1e30] sm:$0xff] %v3890
        %5235 = vst [vmem:[%s217 + $0x1e38] sm:$0xff] %v3891
        %5236 = vst [vmem:[%s217 + $0x1e40] sm:$0xff] %v3892
        %5237 = vst [vmem:[%s217 + $0x1e48] sm:$0xff] %v3893
        %5238 = vst [vmem:[%s217 + $0x1e50] sm:$0xff] %v3894
        %5239 = vst [vmem:[%s217 + $0x1e58] sm:$0xff] %v3895
        %5240 = vst [vmem:[%s217 + $0x1e60] sm:$0xff] %v3896
        %5241 = vst [vmem:[%s217 + $0x1e68] sm:$0xff] %v3897
        %5242 = vst [vmem:[%s217 + $0x1e70] sm:$0xff] %v3898
        %5243 = vst [vmem:[%s217 + $0x1e78] sm:$0xff] %v3899
        %5244 = vst [vmem:[%s217 + $0x1e80] sm:$0xff] %v3900
        %5245 = vst [vmem:[%s217 + $0x1e88] sm:$0xff] %v3901
        %5246 = vst [vmem:[%s217 + $0x1e90] sm:$0xff] %v3902
        %5247 = vst [vmem:[%s217 + $0x1e98] sm:$0xff] %v3903
        %5248 = vst [vmem:[%s217 + $0x1ea0] sm:$0xff] %v3904
        %5249 = vst [vmem:[%s217 + $0x1ea8] sm:$0xff] %v3905
        %5250 = vst [vmem:[%s217 + $0x1eb0] sm:$0xff] %v3906
        %5251 = vst [vmem:[%s217 + $0x1eb8] sm:$0xff] %v3907
        %5252 = vst [vmem:[%s217 + $0x1ec0] sm:$0xff] %v3908
        %5253 = vst [vmem:[%s217 + $0x1ec8] sm:$0xff] %v3909
        %5254 = vst [vmem:[%s217 + $0x1ed0] sm:$0xff] %v3910
        %5255 = vst [vmem:[%s217 + $0x1ed8] sm:$0xff] %v3911
        %5256 = vst [vmem:[%s217 + $0x1ee0] sm:$0xff] %v3912
        %5257 = vst [vmem:[%s217 + $0x1ee8] sm:$0xff] %v3913
        %5258 = vst [vmem:[%s217 + $0x1ef0] sm:$0xff] %v3914
        %5259 = vst [vmem:[%s217 + $0x1ef8] sm:$0xff] %v3915
        %5260 = vst [vmem:[%s217 + $0x1f00] sm:$0xff] %v3916
        %5261 = vst [vmem:[%s217 + $0x1f08] sm:$0xff] %v3917
        %5262 = vst [vmem:[%s217 + $0x1f10] sm:$0xff] %v3918
        %5263 = vst [vmem:[%s217 + $0x1f18] sm:$0xff] %v3919
        %5264 = vst [vmem:[%s217 + $0x1f20] sm:$0xff] %v3920
        %5265 = vst [vmem:[%s217 + $0x1f28] sm:$0xff] %v3921
        %5266 = vst [vmem:[%s217 + $0x1f30] sm:$0xff] %v3922
        %5267 = vst [vmem:[%s217 + $0x1f38] sm:$0xff] %v3923
        %5268 = vst [vmem:[%s217 + $0x1f40] sm:$0xff] %v3924
        %5269 = vst [vmem:[%s217 + $0x1f48] sm:$0xff] %v3925
        %5270 = vst [vmem:[%s217 + $0x1f50] sm:$0xff] %v3926
        %5271 = vst [vmem:[%s217 + $0x1f58] sm:$0xff] %v3927
        %5272 = vst [vmem:[%s217 + $0x1f60] sm:$0xff] %v3928
        %5273 = vst [vmem:[%s217 + $0x1f68] sm:$0xff] %v3929
        %5274 = vst [vmem:[%s217 + $0x1f70] sm:$0xff] %v3930
        %5275 = vst [vmem:[%s217 + $0x1f78] sm:$0xff] %v3931
        %5276 = vst [vmem:[%s217 + $0x1f80] sm:$0xff] %v3932
        %5277 = vst [vmem:[%s217 + $0x1f88] sm:$0xff] %v3933
        %5278 = vst [vmem:[%s217 + $0x1f90] sm:$0xff] %v3934
        %5279 = vst [vmem:[%s217 + $0x1f98] sm:$0xff] %v3935
        %5280 = vst [vmem:[%s217 + $0x1fa0] sm:$0xff] %v3936
        %5281 = vst [vmem:[%s217 + $0x1fa8] sm:$0xff] %v3937
        %5282 = vst [vmem:[%s217 + $0x1fb0] sm:$0xff] %v3938
        %5283 = vst [vmem:[%s217 + $0x1fb8] sm:$0xff] %v3939
        %5284 = vst [vmem:[%s217 + $0x1fc0] sm:$0xff] %v3940
        %5285 = vst [vmem:[%s217 + $0x1fc8] sm:$0xff] %v3941
        %5286 = vst [vmem:[%s217 + $0x1fd0] sm:$0xff] %v3942
        %5287 = vst [vmem:[%s217 + $0x1fd8] sm:$0xff] %v3943
        %5288 = vst [vmem:[%s217 + $0x1fe0] sm:$0xff] %v3944
        %5289 = vst [vmem:[%s217 + $0x1fe8] sm:$0xff] %v3945
        %5290 = vst [vmem:[%s217 + $0x1ff0] sm:$0xff] %v3946
        %5291 = vst [vmem:[%s217 + $0x1ff8] sm:$0xff] %v3947
        %5292 = vst [vmem:[%s217 + $0x2000] sm:$0xff] %v3948
        %5293 = vst [vmem:[%s217 + $0x2008] sm:$0xff] %v3949
        %5294 = vst [vmem:[%s217 + $0x2010] sm:$0xff] %v3950
        %5295 = vst [vmem:[%s217 + $0x2018] sm:$0xff] %v3951
        %5296 = vst [vmem:[%s217 + $0x2020] sm:$0xff] %v3952
        %5297 = vst [vmem:[%s217 + $0x2028] sm:$0xff] %v3953
        %5298 = vst [vmem:[%s217 + $0x2030] sm:$0xff] %v3954
        %5299 = vst [vmem:[%s217 + $0x2038] sm:$0xff] %v3955
        %5300 = vst [vmem:[%s217 + $0x2040] sm:$0xff] %v3956
        %5301 = vst [vmem:[%s217 + $0x2048] sm:$0xff] %v3957
        %5302 = vst [vmem:[%s217 + $0x2050] sm:$0xff] %v3958
        %5303 = vst [vmem:[%s217 + $0x2058] sm:$0xff] %v3959
        %5304 = vst [vmem:[%s217 + $0x2060] sm:$0xff] %v3960
        %5305 = vst [vmem:[%s217 + $0x2068] sm:$0xff] %v3961
        %5306 = vst [vmem:[%s217 + $0x2070] sm:$0xff] %v3962
        %5307 = vst [vmem:[%s217 + $0x2078] sm:$0xff] %v3963
        %5308 = vst [vmem:[%s217 + $0x2080] sm:$0xff] %v3964
        %5309 = vst [vmem:[%s217 + $0x2088] sm:$0xff] %v3965
        %5310 = vst [vmem:[%s217 + $0x2090] sm:$0xff] %v3966
        %5311 = vst [vmem:[%s217 + $0x2098] sm:$0xff] %v3967
        %5312 = vst [vmem:[%s217 + $0x20a0] sm:$0xff] %v3968
        %5313 = vst [vmem:[%s217 + $0x20a8] sm:$0xff] %v3969
        %5314 = vst [vmem:[%s217 + $0x20b0] sm:$0xff] %v3970
        %5315 = vst [vmem:[%s217 + $0x20b8] sm:$0xff] %v3971
        %5316 = vst [vmem:[%s217 + $0x20c0] sm:$0xff] %v3972
        %5317 = vst [vmem:[%s217 + $0x20c8] sm:$0xff] %v3973
        %5318 = vst [vmem:[%s217 + $0x20d0] sm:$0xff] %v3974
        %5319 = vst [vmem:[%s217 + $0x20d8] sm:$0xff] %v3975
        %5320 = vst [vmem:[%s217 + $0x20e0] sm:$0xff] %v3976
        %5321 = vst [vmem:[%s217 + $0x20e8] sm:$0xff] %v3977
        %5322 = vst [vmem:[%s217 + $0x20f0] sm:$0xff] %v3978
        %5323 = vst [vmem:[%s217 + $0x20f8] sm:$0xff] %v3979
        %5324 = vst [vmem:[%s217 + $0x2100] sm:$0xff] %v3980
        %5325 = vst [vmem:[%s217 + $0x2108] sm:$0xff] %v3981
        %5326 = vst [vmem:[%s217 + $0x2110] sm:$0xff] %v3982
        %5327 = vst [vmem:[%s217 + $0x2118] sm:$0xff] %v3983
        %5328 = vst [vmem:[%s217 + $0x2120] sm:$0xff] %v3984
        %5329 = vst [vmem:[%s217 + $0x2128] sm:$0xff] %v3985
        %5330 = vst [vmem:[%s217 + $0x2130] sm:$0xff] %v3986
        %5331 = vst [vmem:[%s217 + $0x2138] sm:$0xff] %v3987
        %5332 = vst [vmem:[%s217 + $0x2140] sm:$0xff] %v3988
        %5333 = vst [vmem:[%s217 + $0x2148] sm:$0xff] %v3989
        %5334 = vst [vmem:[%s217 + $0x2150] sm:$0xff] %v3990
        %5335 = vst [vmem:[%s217 + $0x2158] sm:$0xff] %v3991
        %5336 = vst [vmem:[%s217 + $0x2160] sm:$0xff] %v3992
        %5337 = vst [vmem:[%s217 + $0x2168] sm:$0xff] %v3993
        %5338 = vst [vmem:[%s217 + $0x2170] sm:$0xff] %v3994
        %5339 = vst [vmem:[%s217 + $0x2178] sm:$0xff] %v3995
        %5340 = vst [vmem:[%s217 + $0x2180] sm:$0xff] %v3996
        %5341 = vst [vmem:[%s217 + $0x2188] sm:$0xff] %v3997
        %5342 = vst [vmem:[%s217 + $0x2190] sm:$0xff] %v3998
        %5343 = vst [vmem:[%s217 + $0x2198] sm:$0xff] %v3999
        %5344 = vst [vmem:[%s217 + $0x21a0] sm:$0xff] %v4000
        %5345 = vst [vmem:[%s217 + $0x21a8] sm:$0xff] %v4001
        %5346 = vst [vmem:[%s217 + $0x21b0] sm:$0xff] %v4002
        %5347 = vst [vmem:[%s217 + $0x21b8] sm:$0xff] %v4003
        %5348 = vst [vmem:[%s217 + $0x21c0] sm:$0xff] %v4004
        %5349 = vst [vmem:[%s217 + $0x21c8] sm:$0xff] %v4005
        %5350 = vst [vmem:[%s217 + $0x21d0] sm:$0xff] %v4006
        %5351 = vst [vmem:[%s217 + $0x21d8] sm:$0xff] %v4007
        %5352 = vst [vmem:[%s217 + $0x21e0] sm:$0xff] %v4008
        %5353 = vst [vmem:[%s217 + $0x21e8] sm:$0xff] %v4009
        %5354 = vst [vmem:[%s217 + $0x21f0] sm:$0xff] %v4010
        %5355 = vst [vmem:[%s217 + $0x21f8] sm:$0xff] %v4011
        %5356 = vst [vmem:[%s217 + $0x2200] sm:$0xff] %v4012
        %5357 = vst [vmem:[%s217 + $0x2208] sm:$0xff] %v4013
        %5358 = vst [vmem:[%s217 + $0x2210] sm:$0xff] %v4014
        %5359 = vst [vmem:[%s217 + $0x2218] sm:$0xff] %v4015
        %5360 = vst [vmem:[%s217 + $0x2220] sm:$0xff] %v4016
        %5361 = vst [vmem:[%s217 + $0x2228] sm:$0xff] %v4017
        %5362 = vst [vmem:[%s217 + $0x2230] sm:$0xff] %v4018
        %5363 = vst [vmem:[%s217 + $0x2238] sm:$0xff] %v4019
        %5364 = vst [vmem:[%s217 + $0x2240] sm:$0xff] %v4020
        %5365 = vst [vmem:[%s217 + $0x2248] sm:$0xff] %v4021
        %5366 = vst [vmem:[%s217 + $0x2250] sm:$0xff] %v4022
        %5367 = vst [vmem:[%s217 + $0x2258] sm:$0xff] %v4023
        %5368 = vst [vmem:[%s217 + $0x2260] sm:$0xff] %v4024
        %5369 = vst [vmem:[%s217 + $0x2268] sm:$0xff] %v4025
        %5370 = vst [vmem:[%s217 + $0x2270] sm:$0xff] %v4026
        %5371 = vst [vmem:[%s217 + $0x2278] sm:$0xff] %v4027
        %5372 = vst [vmem:[%s217 + $0x2280] sm:$0xff] %v4028
        %5373 = vst [vmem:[%s217 + $0x2288] sm:$0xff] %v4029
        %5374 = vst [vmem:[%s217 + $0x2290] sm:$0xff] %v4030
        %5375 = vst [vmem:[%s217 + $0x2298] sm:$0xff] %v4031
        %5376 = vst [vmem:[%s217 + $0x22a0] sm:$0xff] %v4032
        %5377 = vst [vmem:[%s217 + $0x22a8] sm:$0xff] %v4033
        %5378 = vst [vmem:[%s217 + $0x22b0] sm:$0xff] %v4034
        %5379 = vst [vmem:[%s217 + $0x22b8] sm:$0xff] %v4035
        %5380 = vst [vmem:[%s217 + $0x22c0] sm:$0xff] %v4036
        %5381 = vst [vmem:[%s217 + $0x22c8] sm:$0xff] %v4037
        %5382 = vst [vmem:[%s217 + $0x22d0] sm:$0xff] %v4038
        %5383 = vst [vmem:[%s217 + $0x22d8] sm:$0xff] %v4039
        %5384 = vst [vmem:[%s217 + $0x22e0] sm:$0xff] %v4040
        %5385 = vst [vmem:[%s217 + $0x22e8] sm:$0xff] %v4041
        %5386 = vst [vmem:[%s217 + $0x22f0] sm:$0xff] %v4042
        %5387 = vst [vmem:[%s217 + $0x22f8] sm:$0xff] %v4043
        %5388 = vst [vmem:[%s217 + $0x2300] sm:$0xff] %v4044
        %5389 = vst [vmem:[%s217 + $0x2308] sm:$0xff] %v4045
        %5390 = vst [vmem:[%s217 + $0x2310] sm:$0xff] %v4046
        %5391 = vst [vmem:[%s217 + $0x2318] sm:$0xff] %v4047
        %5392 = vst [vmem:[%s217 + $0x2320] sm:$0xff] %v4048
        %5393 = vst [vmem:[%s217 + $0x2328] sm:$0xff] %v4049
        %5394 = vst [vmem:[%s217 + $0x2330] sm:$0xff] %v4050
        %5395 = vst [vmem:[%s217 + $0x2338] sm:$0xff] %v4051
        %5396 = vst [vmem:[%s217 + $0x2340] sm:$0xff] %v4052
        %5397 = vst [vmem:[%s217 + $0x2348] sm:$0xff] %v4053
        %5398 = vst [vmem:[%s217 + $0x2350] sm:$0xff] %v4054
        %5399 = vst [vmem:[%s217 + $0x2358] sm:$0xff] %v4055
        %5400 = vst [vmem:[%s217 + $0x2360] sm:$0xff] %v4056
        %5401 = vst [vmem:[%s217 + $0x2368] sm:$0xff] %v4057
        %5402 = vst [vmem:[%s217 + $0x2370] sm:$0xff] %v4058
        %5403 = vst [vmem:[%s217 + $0x2378] sm:$0xff] %v4059
        %5404 = vst [vmem:[%s217 + $0x2380] sm:$0xff] %v4060
        %5405 = vst [vmem:[%s217 + $0x2388] sm:$0xff] %v4061
        %5406 = vst [vmem:[%s217 + $0x2390] sm:$0xff] %v4062
        %5407 = vst [vmem:[%s217 + $0x2398] sm:$0xff] %v4063
        %5408 = vst [vmem:[%s217 + $0x23a0] sm:$0xff] %v4064
        %5409 = vst [vmem:[%s217 + $0x23a8] sm:$0xff] %v4065
        %5410 = vst [vmem:[%s217 + $0x23b0] sm:$0xff] %v4066
        %5411 = vst [vmem:[%s217 + $0x23b8] sm:$0xff] %v4067
        %5412 = vst [vmem:[%s217 + $0x23c0] sm:$0xff] %v4068
        %5413 = vst [vmem:[%s217 + $0x23c8] sm:$0xff] %v4069
        %5414 = vst [vmem:[%s217 + $0x23d0] sm:$0xff] %v4070
        %5415 = vst [vmem:[%s217 + $0x23d8] sm:$0xff] %v4071
        %5416 = vst [vmem:[%s217 + $0x23e0] sm:$0xff] %v4072
        %5417 = vst [vmem:[%s217 + $0x23e8] sm:$0xff] %v4073
        %5418 = vst [vmem:[%s217 + $0x23f0] sm:$0xff] %v4074
        %5419 = vst [vmem:[%s217 + $0x23f8] sm:$0xff] %v4075
        %5420 = vst [vmem:[%s217 + $0x2400] sm:$0xff] %v4076
        %5421 = vst [vmem:[%s217 + $0x2408] sm:$0xff] %v4077
        %5422 = vst [vmem:[%s217 + $0x2410] sm:$0xff] %v4078
        %5423 = vst [vmem:[%s217 + $0x2418] sm:$0xff] %v4079
        %5424 = vst [vmem:[%s217 + $0x2420] sm:$0xff] %v4080
        %5425 = vst [vmem:[%s217 + $0x2428] sm:$0xff] %v4081
        %5426 = vst [vmem:[%s217 + $0x2430] sm:$0xff] %v4082
        %5427 = vst [vmem:[%s217 + $0x2438] sm:$0xff] %v4083
        %5428 = vst [vmem:[%s217 + $0x2440] sm:$0xff] %v4084
        %5429 = vst [vmem:[%s217 + $0x2448] sm:$0xff] %v4085
        %5430 = vst [vmem:[%s217 + $0x2450] sm:$0xff] %v4086
        %5431 = vst [vmem:[%s217 + $0x2458] sm:$0xff] %v4087
        %5432 = vst [vmem:[%s217 + $0x2460] sm:$0xff] %v4088
        %5433 = vst [vmem:[%s217 + $0x2468] sm:$0xff] %v4089
        %5434 = vst [vmem:[%s217 + $0x2470] sm:$0xff] %v4090
        %5435 = vst [vmem:[%s217 + $0x2478] sm:$0xff] %v4091
        %5436 = vst [vmem:[%s217 + $0x2480] sm:$0xff] %v4092
        %5437 = vst [vmem:[%s217 + $0x2488] sm:$0xff] %v4093
        %5438 = vst [vmem:[%s217 + $0x2490] sm:$0xff] %v4094
        %5439 = vst [vmem:[%s217 + $0x2498] sm:$0xff] %v4095
        %5440 = vst [vmem:[%s217 + $0x24a0] sm:$0xff] %v4096
        %5441 = vst [vmem:[%s217 + $0x24a8] sm:$0xff] %v4097
        %5442 = vst [vmem:[%s217 + $0x24b0] sm:$0xff] %v4098
        %5443 = vst [vmem:[%s217 + $0x24b8] sm:$0xff] %v4099
        %5444 = vst [vmem:[%s217 + $0x24c0] sm:$0xff] %v4100
        %5445 = vst [vmem:[%s217 + $0x24c8] sm:$0xff] %v4101
        %5446 = vst [vmem:[%s217 + $0x24d0] sm:$0xff] %v4102
        %5447 = vst [vmem:[%s217 + $0x24d8] sm:$0xff] %v4103
        %5448 = vst [vmem:[%s217 + $0x24e0] sm:$0xff] %v4104
        %5449 = vst [vmem:[%s217 + $0x24e8] sm:$0xff] %v4105
        %5450 = vst [vmem:[%s217 + $0x24f0] sm:$0xff] %v4106
        %5451 = vst [vmem:[%s217 + $0x24f8] sm:$0xff] %v4107
        %5452 = vst [vmem:[%s217 + $0x2500] sm:$0xff] %v4108
        %5453 = vst [vmem:[%s217 + $0x2508] sm:$0xff] %v4109
        %5454 = vst [vmem:[%s217 + $0x2510] sm:$0xff] %v4110
        %5455 = vst [vmem:[%s217 + $0x2518] sm:$0xff] %v4111
        %5456 = vst [vmem:[%s217 + $0x2520] sm:$0xff] %v4112
        %5457 = vst [vmem:[%s217 + $0x2528] sm:$0xff] %v4113
        %5458 = vst [vmem:[%s217 + $0x2530] sm:$0xff] %v4114
        %5459 = vst [vmem:[%s217 + $0x2538] sm:$0xff] %v4115
        %5460 = vst [vmem:[%s217 + $0x2540] sm:$0xff] %v4116
        %5461 = vst [vmem:[%s217 + $0x2548] sm:$0xff] %v4117
        %5462 = vst [vmem:[%s217 + $0x2550] sm:$0xff] %v4118
        %5463 = vst [vmem:[%s217 + $0x2558] sm:$0xff] %v4119
        %5464 = vst [vmem:[%s217 + $0x2560] sm:$0xff] %v4120
        %5465 = vst [vmem:[%s217 + $0x2568] sm:$0xff] %v4121
        %5466 = vst [vmem:[%s217 + $0x2570] sm:$0xff] %v4122
        %5467 = vst [vmem:[%s217 + $0x2578] sm:$0xff] %v4123
        %5468 = vst [vmem:[%s217 + $0x2580] sm:$0xff] %v4124
        %5469 = vst [vmem:[%s217 + $0x2588] sm:$0xff] %v4125
        %5470 = vst [vmem:[%s217 + $0x2590] sm:$0xff] %v4126
        %5471 = vst [vmem:[%s217 + $0x2598] sm:$0xff] %v4127
        %5472 = vst [vmem:[%s217 + $0x25a0] sm:$0xff] %v4128
        %5473 = vst [vmem:[%s217 + $0x25a8] sm:$0xff] %v4129
        %5474 = vst [vmem:[%s217 + $0x25b0] sm:$0xff] %v4130
        %5475 = vst [vmem:[%s217 + $0x25b8] sm:$0xff] %v4131
        %5476 = vst [vmem:[%s217 + $0x25c0] sm:$0xff] %v4132
        %5477 = vst [vmem:[%s217 + $0x25c8] sm:$0xff] %v4133
        %5478 = vst [vmem:[%s217 + $0x25d0] sm:$0xff] %v4134
        %5479 = vst [vmem:[%s217 + $0x25d8] sm:$0xff] %v4135
        %5480 = vst [vmem:[%s217 + $0x25e0] sm:$0xff] %v4136
        %5481 = vst [vmem:[%s217 + $0x25e8] sm:$0xff] %v4137
        %5482 = vst [vmem:[%s217 + $0x25f0] sm:$0xff] %v4138
        %5483 = vst [vmem:[%s217 + $0x25f8] sm:$0xff] %v4139
        %5484 = vst [vmem:[%s217 + $0x2600] sm:$0xff] %v4140
        %5485 = vst [vmem:[%s217 + $0x2608] sm:$0xff] %v4141
        %5486 = vst [vmem:[%s217 + $0x2610] sm:$0xff] %v4142
        %5487 = vst [vmem:[%s217 + $0x2618] sm:$0xff] %v4143
        %5488 = vst [vmem:[%s217 + $0x2620] sm:$0xff] %v4144
        %5489 = vst [vmem:[%s217 + $0x2628] sm:$0xff] %v4145
        %5490 = vst [vmem:[%s217 + $0x2630] sm:$0xff] %v4146
        %5491 = vst [vmem:[%s217 + $0x2638] sm:$0xff] %v4147
        %5492 = vst [vmem:[%s217 + $0x2640] sm:$0xff] %v4148
        %5493 = vst [vmem:[%s217 + $0x2648] sm:$0xff] %v4149
        %5494 = vst [vmem:[%s217 + $0x2650] sm:$0xff] %v4150
        %5495 = vst [vmem:[%s217 + $0x2658] sm:$0xff] %v4151
        %5496 = vst [vmem:[%s217 + $0x2660] sm:$0xff] %v4152
        %5497 = vst [vmem:[%s217 + $0x2668] sm:$0xff] %v4153
        %5498 = vst [vmem:[%s217 + $0x2670] sm:$0xff] %v4154
        %5499 = vst [vmem:[%s217 + $0x2678] sm:$0xff] %v4155
        %5500 = vst [vmem:[%s217 + $0x2680] sm:$0xff] %v4156
        %5501 = vst [vmem:[%s217 + $0x2688] sm:$0xff] %v4157
        %5502 = vst [vmem:[%s217 + $0x2690] sm:$0xff] %v4158
        %5503 = vst [vmem:[%s217 + $0x2698] sm:$0xff] %v4159
        %5504 = vst [vmem:[%s217 + $0x26a0] sm:$0xff] %v4160
        %5505 = vst [vmem:[%s217 + $0x26a8] sm:$0xff] %v4161
        %5506 = vst [vmem:[%s217 + $0x26b0] sm:$0xff] %v4162
        %5507 = vst [vmem:[%s217 + $0x26b8] sm:$0xff] %v4163
        %5508 = vst [vmem:[%s217 + $0x26c0] sm:$0xff] %v4164
        %5509 = vst [vmem:[%s217 + $0x26c8] sm:$0xff] %v4165
        %5510 = vst [vmem:[%s217 + $0x26d0] sm:$0xff] %v4166
        %5511 = vst [vmem:[%s217 + $0x26d8] sm:$0xff] %v4167
        %5512 = vst [vmem:[%s217 + $0x26e0] sm:$0xff] %v4168
        %5513 = vst [vmem:[%s217 + $0x26e8] sm:$0xff] %v4169
        %5514 = vst [vmem:[%s217 + $0x26f0] sm:$0xff] %v4170
        %5515 = vst [vmem:[%s217 + $0x26f8] sm:$0xff] %v4171
        %5516 = vst [vmem:[%s217 + $0x2700] sm:$0xff] %v4172
        %5517 = vst [vmem:[%s217 + $0x2708] sm:$0xff] %v4173
        %5518 = vst [vmem:[%s217 + $0x2710] sm:$0xff] %v4174
        %5519 = vst [vmem:[%s217 + $0x2718] sm:$0xff] %v4175
        %5520 = vst [vmem:[%s217 + $0x2720] sm:$0xff] %v4176
        %5521 = vst [vmem:[%s217 + $0x2728] sm:$0xff] %v4177
        %5522 = vst [vmem:[%s217 + $0x2730] sm:$0xff] %v4178
        %5523 = vst [vmem:[%s217 + $0x2738] sm:$0xff] %v4179
        %5524 = vst [vmem:[%s217 + $0x2740] sm:$0xff] %v4180
        %5525 = vst [vmem:[%s217 + $0x2748] sm:$0xff] %v4181
        %5526 = vst [vmem:[%s217 + $0x2750] sm:$0xff] %v4182
        %5527 = vst [vmem:[%s217 + $0x2758] sm:$0xff] %v4183
        %5528 = vst [vmem:[%s217 + $0x2760] sm:$0xff] %v4184
        %5529 = vst [vmem:[%s217 + $0x2768] sm:$0xff] %v4185
        %5530 = vst [vmem:[%s217 + $0x2770] sm:$0xff] %v4186
        %5531 = vst [vmem:[%s217 + $0x2778] sm:$0xff] %v4187
        %5532 = vst [vmem:[%s217 + $0x2780] sm:$0xff] %v4188
        %5533 = vst [vmem:[%s217 + $0x2788] sm:$0xff] %v4189
        %5534 = vst [vmem:[%s217 + $0x2790] sm:$0xff] %v4190
        %5535 = vst [vmem:[%s217 + $0x2798] sm:$0xff] %v4191
        %5536 = vst [vmem:[%s217 + $0x27a0] sm:$0xff] %v4192
        %5537 = vst [vmem:[%s217 + $0x27a8] sm:$0xff] %v4193
        %5538 = vst [vmem:[%s217 + $0x27b0] sm:$0xff] %v4194
        %5539 = vst [vmem:[%s217 + $0x27b8] sm:$0xff] %v4195
        %5540 = vst [vmem:[%s217 + $0x27c0] sm:$0xff] %v4196
        %5541 = vst [vmem:[%s217 + $0x27c8] sm:$0xff] %v4197
        %5542 = vst [vmem:[%s217 + $0x27d0] sm:$0xff] %v4198
        %5543 = vst [vmem:[%s217 + $0x27d8] sm:$0xff] %v4199
        %5544 = vst [vmem:[%s217 + $0x27e0] sm:$0xff] %v4200
        %5545 = vst [vmem:[%s217 + $0x27e8] sm:$0xff] %v4201
        %5546 = vst [vmem:[%s217 + $0x27f0] sm:$0xff] %v4202
        %5547 = vst [vmem:[%s217 + $0x27f8] sm:$0xff] %v4203
        %5548 = vst [vmem:[%s217 + $0x2800] sm:$0xff] %v4204
        %5549 = vst [vmem:[%s217 + $0x2808] sm:$0xff] %v4205
        %5550 = vst [vmem:[%s217 + $0x2810] sm:$0xff] %v4206
        %5551 = vst [vmem:[%s217 + $0x2818] sm:$0xff] %v4207
        %5552 = vst [vmem:[%s217 + $0x2820] sm:$0xff] %v4208
        %5553 = vst [vmem:[%s217 + $0x2828] sm:$0xff] %v4209
        %5554 = vst [vmem:[%s217 + $0x2830] sm:$0xff] %v4210
        %5555 = vst [vmem:[%s217 + $0x2838] sm:$0xff] %v4211
        %5556 = vst [vmem:[%s217 + $0x2840] sm:$0xff] %v4212
        %5557 = vst [vmem:[%s217 + $0x2848] sm:$0xff] %v4213
        %5558 = vst [vmem:[%s217 + $0x2850] sm:$0xff] %v4214
        %5559 = vst [vmem:[%s217 + $0x2858] sm:$0xff] %v4215
        %5560 = vst [vmem:[%s217 + $0x2860] sm:$0xff] %v4216
        %5561 = vst [vmem:[%s217 + $0x2868] sm:$0xff] %v4217
        %5562 = vst [vmem:[%s217 + $0x2870] sm:$0xff] %v4218
        %5563 = vst [vmem:[%s217 + $0x2878] sm:$0xff] %v4219
        %5564 = vst [vmem:[%s217 + $0x2880] sm:$0xff] %v4220
        %5565 = vst [vmem:[%s217 + $0x2888] sm:$0xff] %v4221
        %5566 = vst [vmem:[%s217 + $0x2890] sm:$0xff] %v4222
        %5567 = vst [vmem:[%s217 + $0x2898] sm:$0xff] %v4223
        %5568 = vst [vmem:[%s217 + $0x28a0] sm:$0xff] %v4224
        %5569 = vst [vmem:[%s217 + $0x28a8] sm:$0xff] %v4225
        %5570 = vst [vmem:[%s217 + $0x28b0] sm:$0xff] %v4226
        %5571 = vst [vmem:[%s217 + $0x28b8] sm:$0xff] %v4227
        %5572 = vst [vmem:[%s217 + $0x28c0] sm:$0xff] %v4228
        %5573 = vst [vmem:[%s217 + $0x28c8] sm:$0xff] %v4229
        %5574 = vst [vmem:[%s217 + $0x28d0] sm:$0xff] %v4230
        %5575 = vst [vmem:[%s217 + $0x28d8] sm:$0xff] %v4231
        %5576 = vst [vmem:[%s217 + $0x28e0] sm:$0xff] %v4232
        %5577 = vst [vmem:[%s217 + $0x28e8] sm:$0xff] %v4233
        %5578 = vst [vmem:[%s217 + $0x28f0] sm:$0xff] %v4234
        %5579 = vst [vmem:[%s217 + $0x28f8] sm:$0xff] %v4235
        %5580 = vst [vmem:[%s217 + $0x2900] sm:$0xff] %v4236
        %5581 = vst [vmem:[%s217 + $0x2908] sm:$0xff] %v4237
        %5582 = vst [vmem:[%s217 + $0x2910] sm:$0xff] %v4238
        %5583 = vst [vmem:[%s217 + $0x2918] sm:$0xff] %v4239
        %5584 = vst [vmem:[%s217 + $0x2920] sm:$0xff] %v4240
        %5585 = vst [vmem:[%s217 + $0x2928] sm:$0xff] %v4241
        %5586 = vst [vmem:[%s217 + $0x2930] sm:$0xff] %v4242
        %5587 = vst [vmem:[%s217 + $0x2938] sm:$0xff] %v4243
        %5588 = vst [vmem:[%s217 + $0x2940] sm:$0xff] %v4244
        %5589 = vst [vmem:[%s217 + $0x2948] sm:$0xff] %v4245
        %5590 = vst [vmem:[%s217 + $0x2950] sm:$0xff] %v4246
        %5591 = vst [vmem:[%s217 + $0x2958] sm:$0xff] %v4247
        %5592 = vst [vmem:[%s217 + $0x2960] sm:$0xff] %v4248
        %5593 = vst [vmem:[%s217 + $0x2968] sm:$0xff] %v4249
        %5594 = vst [vmem:[%s217 + $0x2970] sm:$0xff] %v4250
        %5595 = vst [vmem:[%s217 + $0x2978] sm:$0xff] %v4251
        %5596 = vst [vmem:[%s217 + $0x2980] sm:$0xff] %v4252
        %5597 = vst [vmem:[%s217 + $0x2988] sm:$0xff] %v4253
        %5598 = vst [vmem:[%s217 + $0x2990] sm:$0xff] %v4254
        %5599 = vst [vmem:[%s217 + $0x2998] sm:$0xff] %v4255
        %5600 = vst [vmem:[%s217 + $0x29a0] sm:$0xff] %v4256
        %5601 = vst [vmem:[%s217 + $0x29a8] sm:$0xff] %v4257
        %5602 = vst [vmem:[%s217 + $0x29b0] sm:$0xff] %v4258
        %5603 = vst [vmem:[%s217 + $0x29b8] sm:$0xff] %v4259
        %5604 = vst [vmem:[%s217 + $0x29c0] sm:$0xff] %v4260
        %5605 = vst [vmem:[%s217 + $0x29c8] sm:$0xff] %v4261
        %5606 = vst [vmem:[%s217 + $0x29d0] sm:$0xff] %v4262
        %5607 = vst [vmem:[%s217 + $0x29d8] sm:$0xff] %v4263
        %5608 = vst [vmem:[%s217 + $0x29e0] sm:$0xff] %v4264
        %5609 = vst [vmem:[%s217 + $0x29e8] sm:$0xff] %v4265
        %5610 = vst [vmem:[%s217 + $0x29f0] sm:$0xff] %v4266
        %5611 = vst [vmem:[%s217 + $0x29f8] sm:$0xff] %v4267
        %s5612 = sand.u32 %s82, 1
        %s5613 = scalar_lea.sflag [#allocation4], %s5612
        %s5614 = sand.u32 %s82, 1
        %s5615 = smul.addr %s5614, 10752
        %s5616 = scalar_lea.vmem [#allocation7], %s5615
        // Predicated region
        $region37: #{tpu_custom_call.1} parent=27 // pred_check
          %p5617 = pneg %p92
        $region38: #{tpu_custom_call.1} parent=27 // pred_check_branch
          %5619 = sbr.rel (%p5617) target = $region40
        $region39: #{tpu_custom_call.1} parent=27 // pred_region
          %s5620 = smul.u32 21, %s22
          %s5621 = ssub.s32 32, %s5620
          %p5622 = scmp.lt.s32.totalorder %s5621, 21
          %s5623 = scalar_select %p5622, %s5621, 21
          %s5624 = smul.u32 128, %s5623
          %s5625 = smul.u32 %s5624, 64
          %s5627 = ssub.s32 172032, %s5625
          %5628 = vsyncadd %s5613, %s5627
          %p5629 = scmp.ne.s32.totalorder 0, %s5625
          %s5630 = smul.addr %s5620, 64
          %s5631 = smul.addr %s5630, 128
          %s5632 = scalar_lea.hbm %s2, %s5631
          %s5633 = smul.u32 512, %s5623
          %s5634 = sshll.u32 %s5616, 4
          %s5635 = int_to_ptr.vmem [resolvable:$true] %s5634
          %s5636 = sshll.u32 %s5633, 4
          %5640 = dma.vmem_to_hbm [thread:$0]  (%p5629), %s5635, %s5636, %s5632, %s5613, 8192, 8192, 512
        $region40: #{tpu_custom_call.1} parent=27 // pred_fallthru
          _
      $region28: #{tpu_custom_call.1} parent=5 // pred_fallthru
        _
      %p5641 = scmp.le.s32.totalorder 2, %s17
      // Predicated region
      $region41: #{tpu_custom_call.1} parent=5 // pred_check
        %p5642 = pneg %p5641
      $region42: #{tpu_custom_call.1} parent=5 // pred_check_branch
        %5644 = sbr.rel (%p5642) target = $region44
      $region43: #{tpu_custom_call.1} parent=5 // pred_region
        %s5645 = ssub.s32 %s17, 2
        // Predicated region
        $region45: #{tpu_custom_call.1} parent=43 // pred_check
          %p5646 = pneg %p98
        $region46: #{tpu_custom_call.1} parent=43 // pred_check_branch
          %5648 = sbr.rel (%p5646) target = $region48
        $region47: #{tpu_custom_call.1} parent=43 // pred_region
          %s5649 = sand.u32 %s83, 1
          %s5650 = scalar_lea.sflag [#allocation4], %s5649
          %s5651 = sand.u32 %s83, 1
          %s5652 = smul.addr %s5651, 10752
          %s5653 = scalar_lea.vmem [#allocation7], %s5652
          %5654 = dma.done %s5650, 172032
        $region48: #{tpu_custom_call.1} parent=43 // pred_fallthru
          _
      $region44: #{tpu_custom_call.1} parent=5 // pred_fallthru
        _
    $region6: #{tpu_custom_call.1} parent=1 // loop_footer
      %s21 = sadd.s32 1, %s17
    $region7: #{tpu_custom_call.1} parent=1 // loop_footer_branch
      %16 = sbr.rel target = $region3
    $region8: #{tpu_custom_call.1} parent=1 // loop_exit
      _
    %5655 = vsyncpa [#allocation3], 1
    %s5656 = scalar_lea.sflag [#allocation3], 1
    %5657 = vsyncpa %s5656, 1
    %5658 = vsyncpa [#allocation6], 1
    %s5659 = scalar_lea.sflag [#allocation6], 1
    %5660 = vsyncpa %s5659, 1
    %5661 = vsyncpa [#allocation4], 1
    %s5662 = scalar_lea.sflag [#allocation4], 1
    %5663 = vsyncpa %s5662, 1

</llo_original>
